<compile_context>
chip_gen: v7x
topology: tpu7x:2x2x1
jax: 0.10.0
libtpu: 0.0.40
codegen_flags: <defaults>
</compile_context>

<pallas_src>
import functools

import numpy as np

import jax
import jax.numpy as jnp
from jax.experimental import pallas as pl
from jax.experimental.pallas import tpu as pltpu

BF16 = jnp.bfloat16
F32 = jnp.float32


# -----------------------------------------------------------------------------
# Activations (tanh / exp keep this on the EUP)
# -----------------------------------------------------------------------------
def _gelu(x):
    # TODO(synk): PyTorch nn.GELU() defaults to the exact erf form; tanh form
    # differs by ~1e-3 abs.
    c = 0.7978845608028654  # sqrt(2/pi)
    return 0.5 * x * (1.0 + jnp.tanh(c * (x + 0.044715 * x * x * x)))


def _sigmoid(x):
    return 1.0 / (1.0 + jnp.exp(-x))


# -----------------------------------------------------------------------------
# In-kernel helpers (all loop bounds / shifts are Python ints at trace time)
# -----------------------------------------------------------------------------
def _conv3x3_stacked(h_bf, w_stk, mask_row_bf, side):
    """Fused 3x3 correlation over zero-padded per-image grids.

    h_bf        : (Cin, CB*L) bf16, exactly zero on pad / tail lanes.
    w_stk       : (Cout, 9*Cin+1) bf16; column kk*Cin+ci = W[co, ci, kk//3, kk%3],
                  last column = bias (enters through the interior-mask row).
    mask_row_bf : (1, CB*L) bf16, 1.0 on interior lanes of every image block.
    Returns (Cout, CB*L) f32 pre-activation with bias already added on the
    interior lanes.  Lane wrap-around of the rolled taps only ever lands on
    non-interior lanes (masked / never selected afterwards).
    """
    taps = []
    for ki in range(3):
        for kj in range(3):
            d = (ki - 1) * side + (kj - 1)
            taps.append(h_bf if d == 0 else jnp.roll(h_bf, -d, axis=1))
    stacked = jnp.concatenate(taps + [mask_row_bf], axis=0)      # (9*Cin+1, CB*L)
    return jnp.dot(w_stk, stacked, preferred_element_type=F32)   # ONE MXU matmul


def _resample(x_bf, sel_bf, lane_in):
    """Per-image lane remap (stride-2 selection / zero-dilating upsample).

    x_bf (C, CB*Lin) bf16 @ shared 0/1 matrix sel_bf (Lin, Lout), applied on
    tile-aligned per-image lane blocks -> (C, CB*Lout) f32.
    # TODO(synk): a strided lane gather/scatter through a VMEM scratch would
    # move this onto otherwise-idle vld/vst slots; kept as a small matmul for
    # lowering robustness.
    """
    cb = x_bf.shape[1] // lane_in
    outs = [jnp.dot(x_bf[:, b * lane_in:(b + 1) * lane_in], sel_bf,
                    preferred_element_type=F32) for b in range(cb)]
    return outs[0] if cb == 1 else jnp.concatenate(outs, axis=1)


def _block_transpose(x, lane_block):
    """(R, G*lane_block) -> (G, R*lane_block) with out[g, r*L+p] = x[r, g*L+p].

    Built from tile-aligned static slices + concatenation (no reshape/transpose
    relayouts).  Converts between the conv layout (channels on rows, batch in
    lanes) and the Linear layout (batch on rows).
    """
    r_dim = x.shape[0]
    g_dim = x.shape[1] // lane_block
    rows = [
        jnp.concatenate(
            [x[r:r + 1, g * lane_block:(g + 1) * lane_block] for r in range(r_dim)],
            axis=1)
        for g in range(g_dim)
    ]
    return rows[0] if g_dim == 1 else jnp.concatenate(rows, axis=0)


# -----------------------------------------------------------------------------
# The fused kernel: whole network per batch chunk, fully VMEM resident.
# Activation layout: rows = channels, lanes = [image0 | image1 | ...], each image
# block = its zero-padded spatial grid lane-padded to a multiple of 128
# (30x30 -> 1024, 16x16 -> 256, 9x9 -> 128).
# -----------------------------------------------------------------------------
def _fused_kernel(x_ref,
                  we1_ref, we2_ref, we3_ref, we4_ref,
                  wenc_ref, benc_ref, wdec_ref, bdec_ref,
                  wd1_ref, wd2_ref, wd3_ref,
                  d1_ref, d2_ref, u1_ref, u2_ref,
                  m30_ref, m16_ref, m9_ref,
                  o_ref):
    m30 = m30_ref[...]
    m16 = m16_ref[...]
    m9 = m9_ref[...]
    m30b = m30.astype(BF16)
    m16b = m16.astype(BF16)
    m9b = m9.astype(BF16)

    # ------------------------------- Encoder -------------------------------
    x = x_ref[...]                                               # (Cin, CB*1024) bf16

    # conv1 3->c_hid, stride 2: stride-1 conv on the 30-grid, then per-image
    # selection of the odd fine rows/cols onto the 16-grid interior.
    acc = _conv3x3_stacked(x, we1_ref[...], m30b, 30)
    h = _gelu(_resample(acc.astype(BF16), d1_ref[...], 1024))    # (c_hid, CB*256)

    # conv2 c_hid->c_hid, stride 1 (14x14)
    acc = _conv3x3_stacked(h.astype(BF16), we2_ref[...], m16b, 16)
    h = _gelu(acc) * m16

    # conv3 c_hid->2c_hid, stride 2 (14x14 -> 7x7)
    acc = _conv3x3_stacked(h.astype(BF16), we3_ref[...], m16b, 16)
    h = _gelu(_resample(acc.astype(BF16), d2_ref[...], 256))     # (2c_hid, CB*128)

    # conv4 2c_hid->2c_hid, stride 1 (7x7)
    acc = _conv3x3_stacked(h.astype(BF16), we4_ref[...], m9b, 9)
    feat = _gelu(acc) * m9                                       # (2c_hid, CB*128)

    # Linear(2*49*c_hid -> latent): relayout to (CB, 2c_hid*128) + ONE matmul.
    feat_t = _block_transpose(feat.astype(BF16), 128)
    z = jnp.dot(feat_t, wenc_ref[...], preferred_element_type=F32) + benc_ref[...]

    # ------------------------------- Decoder -------------------------------
    # Linear(latent -> 2*49*c_hid) + GELU, emitted directly onto padded 9-grids.
    lin = jnp.dot(z.astype(BF16), wdec_ref[...],
                  preferred_element_type=F32) + bdec_ref[...]    # (CB, 2c_hid*128)
    h = _block_transpose(_gelu(lin).astype(BF16), 128)           # (2c_hid, CB*128)

    # ConvTranspose 2c_hid->2c_hid, stride 2: zero-dilating upsample onto the
    # 16-grid, then a stride-1 conv with the flipped / channel-swapped kernel.
    up = _resample(h, u1_ref[...], 128)
    acc = _conv3x3_stacked(up.astype(BF16), wd1_ref[...], m16b, 16)
    h = _gelu(acc) * m16                                         # (2c_hid, CB*256)

    # Conv 2c_hid->2c_hid, stride 1 (14x14)
    acc = _conv3x3_stacked(h.astype(BF16), wd2_ref[...], m16b, 16)
    h = _gelu(acc) * m16

    # ConvTranspose 2c_hid->Cin, stride 2, + Sigmoid (pads cropped outside).
    up = _resample(h.astype(BF16), u2_ref[...], 256)
    acc = _conv3x3_stacked(up.astype(BF16), wd3_ref[...], m30b, 30)
    o_ref[...] = _sigmoid(acc)


# -----------------------------------------------------------------------------
# One-time parameter repacking (PyTorch layouts -> kernel layouts), all bf16.
# -----------------------------------------------------------------------------
def prepare_params(params, *, c_hid, latent_dim, chunk_b):
    C2 = 2 * c_hid

    def stack_conv(w, b):                       # w: (Cout, Cin, 3, 3) correlation
        cols = [w[:, :, ki, kj] for ki in range(3) for kj in range(3)]
        return jnp.concatenate(cols + [b[:, None]], axis=1).astype(BF16)

    def stack_convT(w, b):                      # w: (Cin, Cout, 3, 3) PyTorch layout
        # stride=2, padding=1, output_padding=1 ConvTranspose == zero-dilated
        # input + stride-1 correlation with the flipped, channel-swapped kernel.
        w_eff = jnp.flip(w, axis=(2, 3)).transpose(1, 0, 2, 3)
        return stack_conv(w_eff, b)

    # interior lanes of the padded 9x9 grid, in PyTorch (c, h, w) flatten order
    lane9 = np.array([(i // 7 + 1) * 9 + (i % 7 + 1) for i in range(49)])

    wenc = np.zeros((C2 * 128, latent_dim), np.float32)
    we = np.asarray(params["e_lin_w"])          # (latent, C2*49)
    for c in range(C2):
        wenc[c * 128 + lane9, :] = we[:, c * 49:(c + 1) * 49].T
    benc = np.asarray(params["e_lin_b"]).reshape(1, latent_dim)

    wdec = np.zeros((latent_dim, C2 * 128), np.float32)
    bdec = np.zeros((1, C2 * 128), np.float32)
    wd = np.asarray(params["d_lin_w"])          # (C2*49, latent)
    bd = np.asarray(params["d_lin_b"])
    for c in range(C2):
        wdec[:, c * 128 + lane9] = wd[c * 49:(c + 1) * 49, :].T
        bdec[0, c * 128 + lane9] = bd[c * 49:(c + 1) * 49]

    # structural 0/1 matrices (shared across batch) and interior masks
    def down_mat(side_f, lf, side_c, lc, n_out):
        m = np.zeros((lf, lc), np.float32)
        for ho in range(n_out):
            for wo in range(n_out):
                m[(2 * ho + 1) * side_f + (2 * wo + 1),
                  (ho + 1) * side_c + (wo + 1)] = 1.0
        return m

    def up_mat(side_c, lc, side_f, lf, n_in):
        m = np.zeros((lc, lf), np.float32)
        for i in range(n_in):
            for j in range(n_in):
                m[(i + 1) * side_c + (j + 1),
                  (2 * i + 1) * side_f + (2 * j + 1)] = 1.0
        return m

    def interior_mask(side, lanes, n):
        m = np.zeros((1, lanes), np.float32)
        for h in range(n):
            for w in range(n):
                m[0, (h + 1) * side + (w + 1)] = 1.0
        return np.tile(m, (1, chunk_b))

    return dict(
        we1=stack_conv(params["e_conv1_w"], params["e_conv1_b"]),
        we2=stack_conv(params["e_conv2_w"], params["e_conv2_b"]),
        we3=stack_conv(params["e_conv3_w"], params["e_conv3_b"]),
        we4=stack_conv(params["e_conv4_w"], params["e_conv4_b"]),
        wenc=jnp.asarray(wenc, BF16), benc=jnp.asarray(benc, F32),
        wdec=jnp.asarray(wdec, BF16), bdec=jnp.asarray(bdec, F32),
        wd1=stack_convT(params["d_ct1_w"], params["d_ct1_b"]),
        wd2=stack_conv(params["d_conv_w"], params["d_conv_b"]),
        wd3=stack_convT(params["d_ct2_w"], params["d_ct2_b"]),
        d1=jnp.asarray(down_mat(30, 1024, 16, 256, 14), BF16),
        d2=jnp.asarray(down_mat(16, 256, 9, 128, 7), BF16),
        u1=jnp.asarray(up_mat(9, 128, 16, 256, 7), BF16),
        u2=jnp.asarray(up_mat(16, 256, 30, 1024, 14), BF16),
        m30=jnp.asarray(interior_mask(30, 1024, 28), F32),
        m16=jnp.asarray(interior_mask(16, 256, 14), F32),
        m9=jnp.asarray(interior_mask(9, 128, 7), F32),
    )


# -----------------------------------------------------------------------------
# Forward: cheap host-side embedding -> one pallas_call (grid over batch chunks)
# -----------------------------------------------------------------------------
def autoencoder_forward(prep, x, *, chunk_b):
    B, C = x.shape[0], x.shape[1]
    assert x.shape[2] == 28 and x.shape[3] == 28, "28x28 input required"
    assert B % chunk_b == 0
    assert prep["m30"].shape == (1, chunk_b * 1024)
    n_chunks = B // chunk_b
    lane_chunk = chunk_b * 1024

    # Embed the input on zero-padded 30x30 grids, images contiguous along lanes.
    xp = jnp.pad(x, ((0, 0), (0, 0), (1, 1), (1, 1))).reshape(B, C, 900)
    xp = jnp.pad(xp, ((0, 0), (0, 0), (0, 1024 - 900)))
    x_grid = xp.transpose(1, 0, 2).reshape(C, B * 1024).astype(BF16)

    const_names = ("we1", "we2", "we3", "we4", "wenc", "benc", "wdec", "bdec",
                   "wd1", "wd2", "wd3", "d1", "d2", "u1", "u2",
                   "m30", "m16", "m9")
    consts = [prep[k] for k in const_names]

    def const_spec(a):
        zeros = (0,) * a.ndim
        return pl.BlockSpec(a.shape, lambda i, _z=zeros: _z)   # VMEM-resident

    out_grid = pl.pallas_call(
        _fused_kernel,
        out_shape=jax.ShapeDtypeStruct((C, B * 1024), F32),
        grid=(n_chunks,),
        in_specs=[pl.BlockSpec((C, lane_chunk), lambda i: (0, i))]
                 + [const_spec(a) for a in consts],
        out_specs=pl.BlockSpec((C, lane_chunk), lambda i: (0, i)),
        compiler_params=pltpu.CompilerParams(
            dimension_semantics=("parallel",)),
    )(x_grid, *consts)

    # Crop the 28x28 interiors and return NCHW.
    o = out_grid.reshape(C, B, 1024)[:, :, :900].reshape(C, B, 30, 30)
    return o[:, :, 1:29, 1:29].transpose(1, 0, 2, 3)


# -----------------------------------------------------------------------------
# Deterministic synthetic parameters (PyTorch layouts)
# -----------------------------------------------------------------------------
def init_params(key, num_input_channels=3, c_hid=4, latent_dim=16):
    keys = jax.random.split(key, 16)

    def w_init(k, shape, fan_in):
        return jax.random.normal(k, shape, F32) / jnp.sqrt(float(fan_in))

    p = {}
    p["e_conv1_w"] = w_init(keys[0], (c_hid, num_input_channels, 3, 3), num_input_channels * 9)
    p["e_conv1_b"] = 0.01 * jnp.ones((c_hid,), F32)
    p["e_conv2_w"] = w_init(keys[1], (c_hid, c_hid, 3, 3), c_hid * 9)
    p["e_conv2_b"] = 0.01 * jnp.ones((c_hid,), F32)
    p["e_conv3_w"] = w_init(keys[2], (2 * c_hid, c_hid, 3, 3), c_hid * 9)
    p["e_conv3_b"] = 0.01 * jnp.ones((2 * c_hid,), F32)
    p["e_conv4_w"] = w_init(keys[3], (2 * c_hid, 2 * c_hid, 3, 3), 2 * c_hid * 9)
    p["e_conv4_b"] = 0.01 * jnp.ones((2 * c_hid,), F32)
    p["e_lin_w"] = w_init(keys[4], (latent_dim, 2 * 49 * c_hid), 2 * 49 * c_hid)
    p["e_lin_b"] = 0.01 * jnp.ones((latent_dim,), F32)
    p["d_lin_w"] = w_init(keys[5], (2 * 49 * c_hid, latent_dim), latent_dim)
    p["d_lin_b"] = 0.01 * jnp.ones((2 * 49 * c_hid,), F32)
    p["d_ct1_w"] = w_init(keys[6], (2 * c_hid, 2 * c_hid, 3, 3), 2 * c_hid * 9)
    p["d_ct1_b"] = 0.01 * jnp.ones((2 * c_hid,), F32)
    p["d_conv_w"] = w_init(keys[7], (2 * c_hid, 2 * c_hid, 3, 3), 2 * c_hid * 9)
    p["d_conv_b"] = 0.01 * jnp.ones((2 * c_hid,), F32)
    p["d_ct2_w"] = w_init(keys[8], (2 * c_hid, 3, 3, 3), 2 * c_hid * 9)
    p["d_ct2_b"] = 0.01 * jnp.ones((3,), F32)
    return p


# -----------------------------------------------------------------------------
# Pure-JAX reference (same tanh GELU), used as an end-to-end smoke check.
# -----------------------------------------------------------------------------
def reference_forward(params, x, c_hid):
    def conv(h, w, b, stride):
        out = jax.lax.conv_general_dilated(
            h, w, window_strides=(stride, stride), padding=((1, 1), (1, 1)),
            dimension_numbers=("NCHW", "OIHW", "NCHW"))
        return out + b[None, :, None, None]

    def conv_t(h, w, b):   # stride=2, padding=1, output_padding=1
        w_eff = jnp.flip(w, axis=(2, 3)).transpose(1, 0, 2, 3)
        out = jax.lax.conv_general_dilated(
            h, w_eff, window_strides=(1, 1), padding=((1, 2), (1, 2)),
            lhs_dilation=(2, 2), dimension_numbers=("NCHW", "OIHW", "NCHW"))
        return out + b[None, :, None, None]

    B = x.shape[0]
    h = _gelu(conv(x, params["e_conv1_w"], params["e_conv1_b"], 2))
    h = _gelu(conv(h, params["e_conv2_w"], params["e_conv2_b"], 1))
    h = _gelu(conv(h, params["e_conv3_w"], params["e_conv3_b"], 2))
    h = _gelu(conv(h, params["e_conv4_w"], params["e_conv4_b"], 1))
    z = h.reshape(B, -1) @ params["e_lin_w"].T + params["e_lin_b"]
    g = _gelu(z @ params["d_lin_w"].T + params["d_lin_b"]).reshape(B, 2 * c_hid, 7, 7)
    g = _gelu(conv_t(g, params["d_ct1_w"], params["d_ct1_b"]))
    g = _gelu(conv(g, params["d_conv_w"], params["d_conv_b"], 1))
    return _sigmoid(conv_t(g, params["d_ct2_w"], params["d_ct2_b"]))


if __name__ == "__main__":
    B, C, H, W = 4, 3, 28, 28          # 28x28 is what the 2*49*c_hid Linear implies
    c_hid, latent_dim = 4, 16
    chunk_b = 2                        # images per grid step (batch folded in lanes)

    key = jax.random.PRNGKey(0)
    k_x, k_p = jax.random.split(key)
    x = jax.random.normal(k_x, (B, C, H, W), jnp.float32)
    params = init_params(k_p, num_input_channels=C, c_hid=c_hid, latent_dim=latent_dim)

    prep = prepare_params(params, c_hid=c_hid, latent_dim=latent_dim, chunk_b=chunk_b)
    fwd = jax.jit(functools.partial(autoencoder_forward, chunk_b=chunk_b))
    x_hat = fwd(prep, x)
    jax.block_until_ready(x_hat)

    assert x_hat.shape == (B, C, H, W), x_hat.shape
    assert bool(jnp.all(jnp.isfinite(x_hat)))
    assert bool(jnp.all((x_hat >= 0.0) & (x_hat <= 1.0)))      # sigmoid output range

    ref = reference_forward(params, x, c_hid)
    max_err = float(jnp.max(jnp.abs(x_hat - ref)))
    assert max_err < 0.1, f"kernel vs reference mismatch: {max_err}"

    print("KERNEL_OK")
</pallas_src>

<mosaic_0001>
module attributes {stable_mosaic.version = 11 : i64} {
  func.func @_fused_kernel(%arg0: i32, %arg1: memref<3x2048xbf16, #tpu.memory_space<vmem>>, %arg2: memref<4x28xbf16, #tpu.memory_space<vmem>>, %arg3: memref<4x37xbf16, #tpu.memory_space<vmem>>, %arg4: memref<8x37xbf16, #tpu.memory_space<vmem>>, %arg5: memref<8x73xbf16, #tpu.memory_space<vmem>>, %arg6: memref<1024x16xbf16, #tpu.memory_space<vmem>>, %arg7: memref<1x16xf32, #tpu.memory_space<vmem>>, %arg8: memref<16x1024xbf16, #tpu.memory_space<vmem>>, %arg9: memref<1x1024xf32, #tpu.memory_space<vmem>>, %arg10: memref<8x73xbf16, #tpu.memory_space<vmem>>, %arg11: memref<8x73xbf16, #tpu.memory_space<vmem>>, %arg12: memref<3x73xbf16, #tpu.memory_space<vmem>>, %arg13: memref<1024x256xbf16, #tpu.memory_space<vmem>>, %arg14: memref<256x128xbf16, #tpu.memory_space<vmem>>, %arg15: memref<128x256xbf16, #tpu.memory_space<vmem>>, %arg16: memref<256x1024xbf16, #tpu.memory_space<vmem>>, %arg17: memref<1x2048xf32, #tpu.memory_space<vmem>>, %arg18: memref<1x512xf32, #tpu.memory_space<vmem>>, %arg19: memref<1x256xf32, #tpu.memory_space<vmem>>, %arg20: memref<3x2048xf32, #tpu.memory_space<vmem>>) attributes {dimension_semantics = [#tpu.dimension_semantics<parallel>], iteration_bounds = array<i64: 2>, scalar_prefetch = 0 : i64, scratch_operands = 0 : i64, tpu.core_type = #tpu.core_type<tc>, window_params = [{transform_indices = @transform_0, window_bounds = array<i64: 3, 2048>}, {pipeline_mode = #tpu.pipeline_mode<synchronous>, transform_indices = @transform_1, window_bounds = array<i64: 4, 28>}, {pipeline_mode = #tpu.pipeline_mode<synchronous>, transform_indices = @transform_2, window_bounds = array<i64: 4, 37>}, {pipeline_mode = #tpu.pipeline_mode<synchronous>, transform_indices = @transform_3, window_bounds = array<i64: 8, 37>}, {pipeline_mode = #tpu.pipeline_mode<synchronous>, transform_indices = @transform_4, window_bounds = array<i64: 8, 73>}, {pipeline_mode = #tpu.pipeline_mode<synchronous>, transform_indices = @transform_5, window_bounds = array<i64: 1024, 16>}, {pipeline_mode = #tpu.pipeline_mode<synchronous>, transform_indices = @transform_6, window_bounds = array<i64: 1, 16>}, {pipeline_mode = #tpu.pipeline_mode<synchronous>, transform_indices = @transform_7, window_bounds = array<i64: 16, 1024>}, {pipeline_mode = #tpu.pipeline_mode<synchronous>, transform_indices = @transform_8, window_bounds = array<i64: 1, 1024>}, {pipeline_mode = #tpu.pipeline_mode<synchronous>, transform_indices = @transform_9, window_bounds = array<i64: 8, 73>}, {pipeline_mode = #tpu.pipeline_mode<synchronous>, transform_indices = @transform_10, window_bounds = array<i64: 8, 73>}, {pipeline_mode = #tpu.pipeline_mode<synchronous>, transform_indices = @transform_11, window_bounds = array<i64: 3, 73>}, {pipeline_mode = #tpu.pipeline_mode<synchronous>, transform_indices = @transform_12, window_bounds = array<i64: 1024, 256>}, {pipeline_mode = #tpu.pipeline_mode<synchronous>, transform_indices = @transform_13, window_bounds = array<i64: 256, 128>}, {pipeline_mode = #tpu.pipeline_mode<synchronous>, transform_indices = @transform_14, window_bounds = array<i64: 128, 256>}, {pipeline_mode = #tpu.pipeline_mode<synchronous>, transform_indices = @transform_15, window_bounds = array<i64: 256, 1024>}, {pipeline_mode = #tpu.pipeline_mode<synchronous>, transform_indices = @transform_16, window_bounds = array<i64: 1, 2048>}, {pipeline_mode = #tpu.pipeline_mode<synchronous>, transform_indices = @transform_17, window_bounds = array<i64: 1, 512>}, {pipeline_mode = #tpu.pipeline_mode<synchronous>, transform_indices = @transform_18, window_bounds = array<i64: 1, 256>}, {transform_indices = @transform_19, window_bounds = array<i64: 3, 2048>}]} {
    %c0 = arith.constant 0 : index
    %c0_0 = arith.constant 0 : index
    %0 = vector.load %arg17[%c0, %c0_0] : memref<1x2048xf32, #tpu.memory_space<vmem>>, vector<1x2048xf32>
    %c0_1 = arith.constant 0 : index
    %c0_2 = arith.constant 0 : index
    %1 = vector.load %arg18[%c0_1, %c0_2] : memref<1x512xf32, #tpu.memory_space<vmem>>, vector<1x512xf32>
    %c0_3 = arith.constant 0 : index
    %c0_4 = arith.constant 0 : index
    %2 = vector.load %arg19[%c0_3, %c0_4] : memref<1x256xf32, #tpu.memory_space<vmem>>, vector<1x256xf32>
    %3 = arith.truncf %0 : vector<1x2048xf32> to vector<1x2048xbf16>
    %4 = arith.truncf %1 : vector<1x512xf32> to vector<1x512xbf16>
    %5 = arith.truncf %2 : vector<1x256xf32> to vector<1x256xbf16>
    %c0_5 = arith.constant 0 : index
    %c0_6 = arith.constant 0 : index
    %6 = vector.load %arg1[%c0_5, %c0_6] : memref<3x2048xbf16, #tpu.memory_space<vmem>>, vector<3x2048xbf16>
    %c0_7 = arith.constant 0 : index
    %c0_8 = arith.constant 0 : index
    %7 = vector.load %arg2[%c0_7, %c0_8] : memref<4x28xbf16, #tpu.memory_space<vmem>>, vector<4x28xbf16>
    %8 = vector.extract_strided_slice %6 {offsets = [0, 2017], sizes = [3, 31], strides = [1, 1]} : vector<3x2048xbf16> to vector<3x31xbf16>
    %9 = vector.extract_strided_slice %6 {offsets = [0, 0], sizes = [3, 2017], strides = [1, 1]} : vector<3x2048xbf16> to vector<3x2017xbf16>
    %10 = tpu.concatenate %8, %9 in 1 : vector<3x31xbf16>, vector<3x2017xbf16> -> vector<3x2048xbf16>
    %11 = vector.extract_strided_slice %6 {offsets = [0, 2018], sizes = [3, 30], strides = [1, 1]} : vector<3x2048xbf16> to vector<3x30xbf16>
    %12 = vector.extract_strided_slice %6 {offsets = [0, 0], sizes = [3, 2018], strides = [1, 1]} : vector<3x2048xbf16> to vector<3x2018xbf16>
    %13 = tpu.concatenate %11, %12 in 1 : vector<3x30xbf16>, vector<3x2018xbf16> -> vector<3x2048xbf16>
    %14 = vector.extract_strided_slice %6 {offsets = [0, 2019], sizes = [3, 29], strides = [1, 1]} : vector<3x2048xbf16> to vector<3x29xbf16>
    %15 = vector.extract_strided_slice %6 {offsets = [0, 0], sizes = [3, 2019], strides = [1, 1]} : vector<3x2048xbf16> to vector<3x2019xbf16>
    %16 = tpu.concatenate %14, %15 in 1 : vector<3x29xbf16>, vector<3x2019xbf16> -> vector<3x2048xbf16>
    %17 = vector.extract_strided_slice %6 {offsets = [0, 2047], sizes = [3, 1], strides = [1, 1]} : vector<3x2048xbf16> to vector<3x1xbf16>
    %18 = vector.extract_strided_slice %6 {offsets = [0, 0], sizes = [3, 2047], strides = [1, 1]} : vector<3x2048xbf16> to vector<3x2047xbf16>
    %19 = tpu.concatenate %17, %18 in 1 : vector<3x1xbf16>, vector<3x2047xbf16> -> vector<3x2048xbf16>
    %20 = vector.extract_strided_slice %6 {offsets = [0, 1], sizes = [3, 2047], strides = [1, 1]} : vector<3x2048xbf16> to vector<3x2047xbf16>
    %21 = vector.extract_strided_slice %6 {offsets = [0, 0], sizes = [3, 1], strides = [1, 1]} : vector<3x2048xbf16> to vector<3x1xbf16>
    %22 = tpu.concatenate %20, %21 in 1 : vector<3x2047xbf16>, vector<3x1xbf16> -> vector<3x2048xbf16>
    %23 = vector.extract_strided_slice %6 {offsets = [0, 29], sizes = [3, 2019], strides = [1, 1]} : vector<3x2048xbf16> to vector<3x2019xbf16>
    %24 = vector.extract_strided_slice %6 {offsets = [0, 0], sizes = [3, 29], strides = [1, 1]} : vector<3x2048xbf16> to vector<3x29xbf16>
    %25 = tpu.concatenate %23, %24 in 1 : vector<3x2019xbf16>, vector<3x29xbf16> -> vector<3x2048xbf16>
    %26 = vector.extract_strided_slice %6 {offsets = [0, 30], sizes = [3, 2018], strides = [1, 1]} : vector<3x2048xbf16> to vector<3x2018xbf16>
    %27 = vector.extract_strided_slice %6 {offsets = [0, 0], sizes = [3, 30], strides = [1, 1]} : vector<3x2048xbf16> to vector<3x30xbf16>
    %28 = tpu.concatenate %26, %27 in 1 : vector<3x2018xbf16>, vector<3x30xbf16> -> vector<3x2048xbf16>
    %29 = vector.extract_strided_slice %6 {offsets = [0, 31], sizes = [3, 2017], strides = [1, 1]} : vector<3x2048xbf16> to vector<3x2017xbf16>
    %30 = vector.extract_strided_slice %6 {offsets = [0, 0], sizes = [3, 31], strides = [1, 1]} : vector<3x2048xbf16> to vector<3x31xbf16>
    %31 = tpu.concatenate %29, %30 in 1 : vector<3x2017xbf16>, vector<3x31xbf16> -> vector<3x2048xbf16>
    %32 = tpu.concatenate %10, %13, %16, %19, %6, %22, %25, %28, %31, %3 in 0 : vector<3x2048xbf16>, vector<3x2048xbf16>, vector<3x2048xbf16>, vector<3x2048xbf16>, vector<3x2048xbf16>, vector<3x2048xbf16>, vector<3x2048xbf16>, vector<3x2048xbf16>, vector<3x2048xbf16>, vector<1x2048xbf16> -> vector<28x2048xbf16>
    %cst = arith.constant dense<0.000000e+00> : vector<4x2048xf32>
    %33 = tpu.matmul %7, %32, %cst {dimension_numbers = #tpu.dot_dimension_numbers<[1], [0], [0], [1], [0, 0, 1, 1], [], []>} : vector<4x28xbf16>, vector<28x2048xbf16>, vector<4x2048xf32> -> vector<4x2048xf32>
    %34 = arith.truncf %33 : vector<4x2048xf32> to vector<4x2048xbf16>
    %c0_9 = arith.constant 0 : index
    %c0_10 = arith.constant 0 : index
    %35 = vector.load %arg13[%c0_9, %c0_10] : memref<1024x256xbf16, #tpu.memory_space<vmem>>, vector<1024x256xbf16>
    %36 = vector.extract_strided_slice %34 {offsets = [0, 0], sizes = [4, 1024], strides = [1, 1]} : vector<4x2048xbf16> to vector<4x1024xbf16>
    %cst_11 = arith.constant dense<0.000000e+00> : vector<4x256xf32>
    %37 = tpu.matmul %36, %35, %cst_11 {dimension_numbers = #tpu.dot_dimension_numbers<[1], [0], [0], [1], [0, 0, 1, 1], [], []>} : vector<4x1024xbf16>, vector<1024x256xbf16>, vector<4x256xf32> -> vector<4x256xf32>
    %38 = vector.extract_strided_slice %34 {offsets = [0, 1024], sizes = [4, 1024], strides = [1, 1]} : vector<4x2048xbf16> to vector<4x1024xbf16>
    %cst_12 = arith.constant dense<0.000000e+00> : vector<4x256xf32>
    %39 = tpu.matmul %38, %35, %cst_12 {dimension_numbers = #tpu.dot_dimension_numbers<[1], [0], [0], [1], [0, 0, 1, 1], [], []>} : vector<4x1024xbf16>, vector<1024x256xbf16>, vector<4x256xf32> -> vector<4x256xf32>
    %40 = tpu.concatenate %37, %39 in 1 : vector<4x256xf32>, vector<4x256xf32> -> vector<4x512xf32>
    %cst_13 = arith.constant 5.000000e-01 : f32
    %41 = vector.broadcast %cst_13 : f32 to vector<4x512xf32>
    %42 = arith.mulf %41, %40 : vector<4x512xf32>
    %cst_14 = arith.constant 4.471500e-02 : f32
    %43 = vector.broadcast %cst_14 : f32 to vector<4x512xf32>
    %44 = arith.mulf %43, %40 : vector<4x512xf32>
    %45 = arith.mulf %44, %40 : vector<4x512xf32>
    %46 = arith.mulf %45, %40 : vector<4x512xf32>
    %47 = arith.addf %40, %46 : vector<4x512xf32>
    %cst_15 = arith.constant 0.797884583 : f32
    %48 = vector.broadcast %cst_15 : f32 to vector<4x512xf32>
    %49 = arith.mulf %48, %47 : vector<4x512xf32>
    %50 = math.tanh %49 : vector<4x512xf32>
    %cst_16 = arith.constant 1.000000e+00 : f32
    %51 = vector.broadcast %cst_16 : f32 to vector<4x512xf32>
    %52 = arith.addf %51, %50 : vector<4x512xf32>
    %53 = arith.mulf %42, %52 : vector<4x512xf32>
    %54 = arith.truncf %53 : vector<4x512xf32> to vector<4x512xbf16>
    %c0_17 = arith.constant 0 : index
    %c0_18 = arith.constant 0 : index
    %55 = vector.load %arg3[%c0_17, %c0_18] : memref<4x37xbf16, #tpu.memory_space<vmem>>, vector<4x37xbf16>
    %56 = vector.extract_strided_slice %54 {offsets = [0, 495], sizes = [4, 17], strides = [1, 1]} : vector<4x512xbf16> to vector<4x17xbf16>
    %57 = vector.extract_strided_slice %54 {offsets = [0, 0], sizes = [4, 495], strides = [1, 1]} : vector<4x512xbf16> to vector<4x495xbf16>
    %58 = tpu.concatenate %56, %57 in 1 : vector<4x17xbf16>, vector<4x495xbf16> -> vector<4x512xbf16>
    %59 = vector.extract_strided_slice %54 {offsets = [0, 496], sizes = [4, 16], strides = [1, 1]} : vector<4x512xbf16> to vector<4x16xbf16>
    %60 = vector.extract_strided_slice %54 {offsets = [0, 0], sizes = [4, 496], strides = [1, 1]} : vector<4x512xbf16> to vector<4x496xbf16>
    %61 = tpu.concatenate %59, %60 in 1 : vector<4x16xbf16>, vector<4x496xbf16> -> vector<4x512xbf16>
    %62 = vector.extract_strided_slice %54 {offsets = [0, 497], sizes = [4, 15], strides = [1, 1]} : vector<4x512xbf16> to vector<4x15xbf16>
    %63 = vector.extract_strided_slice %54 {offsets = [0, 0], sizes = [4, 497], strides = [1, 1]} : vector<4x512xbf16> to vector<4x497xbf16>
    %64 = tpu.concatenate %62, %63 in 1 : vector<4x15xbf16>, vector<4x497xbf16> -> vector<4x512xbf16>
    %65 = vector.extract_strided_slice %54 {offsets = [0, 511], sizes = [4, 1], strides = [1, 1]} : vector<4x512xbf16> to vector<4x1xbf16>
    %66 = vector.extract_strided_slice %54 {offsets = [0, 0], sizes = [4, 511], strides = [1, 1]} : vector<4x512xbf16> to vector<4x511xbf16>
    %67 = tpu.concatenate %65, %66 in 1 : vector<4x1xbf16>, vector<4x511xbf16> -> vector<4x512xbf16>
    %68 = vector.extract_strided_slice %54 {offsets = [0, 1], sizes = [4, 511], strides = [1, 1]} : vector<4x512xbf16> to vector<4x511xbf16>
    %69 = vector.extract_strided_slice %54 {offsets = [0, 0], sizes = [4, 1], strides = [1, 1]} : vector<4x512xbf16> to vector<4x1xbf16>
    %70 = tpu.concatenate %68, %69 in 1 : vector<4x511xbf16>, vector<4x1xbf16> -> vector<4x512xbf16>
    %71 = vector.extract_strided_slice %54 {offsets = [0, 15], sizes = [4, 497], strides = [1, 1]} : vector<4x512xbf16> to vector<4x497xbf16>
    %72 = vector.extract_strided_slice %54 {offsets = [0, 0], sizes = [4, 15], strides = [1, 1]} : vector<4x512xbf16> to vector<4x15xbf16>
    %73 = tpu.concatenate %71, %72 in 1 : vector<4x497xbf16>, vector<4x15xbf16> -> vector<4x512xbf16>
    %74 = vector.extract_strided_slice %54 {offsets = [0, 16], sizes = [4, 496], strides = [1, 1]} : vector<4x512xbf16> to vector<4x496xbf16>
    %75 = vector.extract_strided_slice %54 {offsets = [0, 0], sizes = [4, 16], strides = [1, 1]} : vector<4x512xbf16> to vector<4x16xbf16>
    %76 = tpu.concatenate %74, %75 in 1 : vector<4x496xbf16>, vector<4x16xbf16> -> vector<4x512xbf16>
    %77 = vector.extract_strided_slice %54 {offsets = [0, 17], sizes = [4, 495], strides = [1, 1]} : vector<4x512xbf16> to vector<4x495xbf16>
    %78 = vector.extract_strided_slice %54 {offsets = [0, 0], sizes = [4, 17], strides = [1, 1]} : vector<4x512xbf16> to vector<4x17xbf16>
    %79 = tpu.concatenate %77, %78 in 1 : vector<4x495xbf16>, vector<4x17xbf16> -> vector<4x512xbf16>
    %80 = tpu.concatenate %58, %61, %64, %67, %54, %70, %73, %76, %79, %4 in 0 : vector<4x512xbf16>, vector<4x512xbf16>, vector<4x512xbf16>, vector<4x512xbf16>, vector<4x512xbf16>, vector<4x512xbf16>, vector<4x512xbf16>, vector<4x512xbf16>, vector<4x512xbf16>, vector<1x512xbf16> -> vector<37x512xbf16>
    %cst_19 = arith.constant dense<0.000000e+00> : vector<4x512xf32>
    %81 = tpu.matmul %55, %80, %cst_19 {dimension_numbers = #tpu.dot_dimension_numbers<[1], [0], [0], [1], [0, 0, 1, 1], [], []>} : vector<4x37xbf16>, vector<37x512xbf16>, vector<4x512xf32> -> vector<4x512xf32>
    %cst_20 = arith.constant 5.000000e-01 : f32
    %82 = vector.broadcast %cst_20 : f32 to vector<4x512xf32>
    %83 = arith.mulf %82, %81 : vector<4x512xf32>
    %cst_21 = arith.constant 4.471500e-02 : f32
    %84 = vector.broadcast %cst_21 : f32 to vector<4x512xf32>
    %85 = arith.mulf %84, %81 : vector<4x512xf32>
    %86 = arith.mulf %85, %81 : vector<4x512xf32>
    %87 = arith.mulf %86, %81 : vector<4x512xf32>
    %88 = arith.addf %81, %87 : vector<4x512xf32>
    %cst_22 = arith.constant 0.797884583 : f32
    %89 = vector.broadcast %cst_22 : f32 to vector<4x512xf32>
    %90 = arith.mulf %89, %88 : vector<4x512xf32>
    %91 = math.tanh %90 : vector<4x512xf32>
    %cst_23 = arith.constant 1.000000e+00 : f32
    %92 = vector.broadcast %cst_23 : f32 to vector<4x512xf32>
    %93 = arith.addf %92, %91 : vector<4x512xf32>
    %94 = arith.mulf %83, %93 : vector<4x512xf32>
    %95 = vector.broadcast %1 : vector<1x512xf32> to vector<4x512xf32>
    %96 = arith.mulf %94, %95 : vector<4x512xf32>
    %97 = arith.truncf %96 : vector<4x512xf32> to vector<4x512xbf16>
    %c0_24 = arith.constant 0 : index
    %c0_25 = arith.constant 0 : index
    %98 = vector.load %arg4[%c0_24, %c0_25] : memref<8x37xbf16, #tpu.memory_space<vmem>>, vector<8x37xbf16>
    %99 = vector.extract_strided_slice %97 {offsets = [0, 495], sizes = [4, 17], strides = [1, 1]} : vector<4x512xbf16> to vector<4x17xbf16>
    %100 = vector.extract_strided_slice %97 {offsets = [0, 0], sizes = [4, 495], strides = [1, 1]} : vector<4x512xbf16> to vector<4x495xbf16>
    %101 = tpu.concatenate %99, %100 in 1 : vector<4x17xbf16>, vector<4x495xbf16> -> vector<4x512xbf16>
    %102 = vector.extract_strided_slice %97 {offsets = [0, 496], sizes = [4, 16], strides = [1, 1]} : vector<4x512xbf16> to vector<4x16xbf16>
    %103 = vector.extract_strided_slice %97 {offsets = [0, 0], sizes = [4, 496], strides = [1, 1]} : vector<4x512xbf16> to vector<4x496xbf16>
    %104 = tpu.concatenate %102, %103 in 1 : vector<4x16xbf16>, vector<4x496xbf16> -> vector<4x512xbf16>
    %105 = vector.extract_strided_slice %97 {offsets = [0, 497], sizes = [4, 15], strides = [1, 1]} : vector<4x512xbf16> to vector<4x15xbf16>
    %106 = vector.extract_strided_slice %97 {offsets = [0, 0], sizes = [4, 497], strides = [1, 1]} : vector<4x512xbf16> to vector<4x497xbf16>
    %107 = tpu.concatenate %105, %106 in 1 : vector<4x15xbf16>, vector<4x497xbf16> -> vector<4x512xbf16>
    %108 = vector.extract_strided_slice %97 {offsets = [0, 511], sizes = [4, 1], strides = [1, 1]} : vector<4x512xbf16> to vector<4x1xbf16>
    %109 = vector.extract_strided_slice %97 {offsets = [0, 0], sizes = [4, 511], strides = [1, 1]} : vector<4x512xbf16> to vector<4x511xbf16>
    %110 = tpu.concatenate %108, %109 in 1 : vector<4x1xbf16>, vector<4x511xbf16> -> vector<4x512xbf16>
    %111 = vector.extract_strided_slice %97 {offsets = [0, 1], sizes = [4, 511], strides = [1, 1]} : vector<4x512xbf16> to vector<4x511xbf16>
    %112 = vector.extract_strided_slice %97 {offsets = [0, 0], sizes = [4, 1], strides = [1, 1]} : vector<4x512xbf16> to vector<4x1xbf16>
    %113 = tpu.concatenate %111, %112 in 1 : vector<4x511xbf16>, vector<4x1xbf16> -> vector<4x512xbf16>
    %114 = vector.extract_strided_slice %97 {offsets = [0, 15], sizes = [4, 497], strides = [1, 1]} : vector<4x512xbf16> to vector<4x497xbf16>
    %115 = vector.extract_strided_slice %97 {offsets = [0, 0], sizes = [4, 15], strides = [1, 1]} : vector<4x512xbf16> to vector<4x15xbf16>
    %116 = tpu.concatenate %114, %115 in 1 : vector<4x497xbf16>, vector<4x15xbf16> -> vector<4x512xbf16>
    %117 = vector.extract_strided_slice %97 {offsets = [0, 16], sizes = [4, 496], strides = [1, 1]} : vector<4x512xbf16> to vector<4x496xbf16>
    %118 = vector.extract_strided_slice %97 {offsets = [0, 0], sizes = [4, 16], strides = [1, 1]} : vector<4x512xbf16> to vector<4x16xbf16>
    %119 = tpu.concatenate %117, %118 in 1 : vector<4x496xbf16>, vector<4x16xbf16> -> vector<4x512xbf16>
    %120 = vector.extract_strided_slice %97 {offsets = [0, 17], sizes = [4, 495], strides = [1, 1]} : vector<4x512xbf16> to vector<4x495xbf16>
    %121 = vector.extract_strided_slice %97 {offsets = [0, 0], sizes = [4, 17], strides = [1, 1]} : vector<4x512xbf16> to vector<4x17xbf16>
    %122 = tpu.concatenate %120, %121 in 1 : vector<4x495xbf16>, vector<4x17xbf16> -> vector<4x512xbf16>
    %123 = tpu.concatenate %101, %104, %107, %110, %97, %113, %116, %119, %122, %4 in 0 : vector<4x512xbf16>, vector<4x512xbf16>, vector<4x512xbf16>, vector<4x512xbf16>, vector<4x512xbf16>, vector<4x512xbf16>, vector<4x512xbf16>, vector<4x512xbf16>, vector<4x512xbf16>, vector<1x512xbf16> -> vector<37x512xbf16>
    %cst_26 = arith.constant dense<0.000000e+00> : vector<8x512xf32>
    %124 = tpu.matmul %98, %123, %cst_26 {dimension_numbers = #tpu.dot_dimension_numbers<[1], [0], [0], [1], [0, 0, 1, 1], [], []>} : vector<8x37xbf16>, vector<37x512xbf16>, vector<8x512xf32> -> vector<8x512xf32>
    %125 = arith.truncf %124 : vector<8x512xf32> to vector<8x512xbf16>
    %c0_27 = arith.constant 0 : index
    %c0_28 = arith.constant 0 : index
    %126 = vector.load %arg14[%c0_27, %c0_28] : memref<256x128xbf16, #tpu.memory_space<vmem>>, vector<256x128xbf16>
    %127 = vector.extract_strided_slice %125 {offsets = [0, 0], sizes = [8, 256], strides = [1, 1]} : vector<8x512xbf16> to vector<8x256xbf16>
    %cst_29 = arith.constant dense<0.000000e+00> : vector<8x128xf32>
    %128 = tpu.matmul %127, %126, %cst_29 {dimension_numbers = #tpu.dot_dimension_numbers<[1], [0], [0], [1], [0, 0, 1, 1], [], []>} : vector<8x256xbf16>, vector<256x128xbf16>, vector<8x128xf32> -> vector<8x128xf32>
    %129 = vector.extract_strided_slice %125 {offsets = [0, 256], sizes = [8, 256], strides = [1, 1]} : vector<8x512xbf16> to vector<8x256xbf16>
    %cst_30 = arith.constant dense<0.000000e+00> : vector<8x128xf32>
    %130 = tpu.matmul %129, %126, %cst_30 {dimension_numbers = #tpu.dot_dimension_numbers<[1], [0], [0], [1], [0, 0, 1, 1], [], []>} : vector<8x256xbf16>, vector<256x128xbf16>, vector<8x128xf32> -> vector<8x128xf32>
    %131 = tpu.concatenate %128, %130 in 1 : vector<8x128xf32>, vector<8x128xf32> -> vector<8x256xf32>
    %cst_31 = arith.constant 5.000000e-01 : f32
    %132 = vector.broadcast %cst_31 : f32 to vector<8x256xf32>
    %133 = arith.mulf %132, %131 : vector<8x256xf32>
    %cst_32 = arith.constant 4.471500e-02 : f32
    %134 = vector.broadcast %cst_32 : f32 to vector<8x256xf32>
    %135 = arith.mulf %134, %131 : vector<8x256xf32>
    %136 = arith.mulf %135, %131 : vector<8x256xf32>
    %137 = arith.mulf %136, %131 : vector<8x256xf32>
    %138 = arith.addf %131, %137 : vector<8x256xf32>
    %cst_33 = arith.constant 0.797884583 : f32
    %139 = vector.broadcast %cst_33 : f32 to vector<8x256xf32>
    %140 = arith.mulf %139, %138 : vector<8x256xf32>
    %141 = math.tanh %140 : vector<8x256xf32>
    %cst_34 = arith.constant 1.000000e+00 : f32
    %142 = vector.broadcast %cst_34 : f32 to vector<8x256xf32>
    %143 = arith.addf %142, %141 : vector<8x256xf32>
    %144 = arith.mulf %133, %143 : vector<8x256xf32>
    %145 = arith.truncf %144 : vector<8x256xf32> to vector<8x256xbf16>
    %c0_35 = arith.constant 0 : index
    %c0_36 = arith.constant 0 : index
    %146 = vector.load %arg5[%c0_35, %c0_36] : memref<8x73xbf16, #tpu.memory_space<vmem>>, vector<8x73xbf16>
    %147 = vector.extract_strided_slice %145 {offsets = [0, 246], sizes = [8, 10], strides = [1, 1]} : vector<8x256xbf16> to vector<8x10xbf16>
    %148 = vector.extract_strided_slice %145 {offsets = [0, 0], sizes = [8, 246], strides = [1, 1]} : vector<8x256xbf16> to vector<8x246xbf16>
    %149 = tpu.concatenate %147, %148 in 1 : vector<8x10xbf16>, vector<8x246xbf16> -> vector<8x256xbf16>
    %150 = vector.extract_strided_slice %145 {offsets = [0, 247], sizes = [8, 9], strides = [1, 1]} : vector<8x256xbf16> to vector<8x9xbf16>
    %151 = vector.extract_strided_slice %145 {offsets = [0, 0], sizes = [8, 247], strides = [1, 1]} : vector<8x256xbf16> to vector<8x247xbf16>
    %152 = tpu.concatenate %150, %151 in 1 : vector<8x9xbf16>, vector<8x247xbf16> -> vector<8x256xbf16>
    %153 = vector.extract_strided_slice %145 {offsets = [0, 248], sizes = [8, 8], strides = [1, 1]} : vector<8x256xbf16> to vector<8x8xbf16>
    %154 = vector.extract_strided_slice %145 {offsets = [0, 0], sizes = [8, 248], strides = [1, 1]} : vector<8x256xbf16> to vector<8x248xbf16>
    %155 = tpu.concatenate %153, %154 in 1 : vector<8x8xbf16>, vector<8x248xbf16> -> vector<8x256xbf16>
    %156 = vector.extract_strided_slice %145 {offsets = [0, 255], sizes = [8, 1], strides = [1, 1]} : vector<8x256xbf16> to vector<8x1xbf16>
    %157 = vector.extract_strided_slice %145 {offsets = [0, 0], sizes = [8, 255], strides = [1, 1]} : vector<8x256xbf16> to vector<8x255xbf16>
    %158 = tpu.concatenate %156, %157 in 1 : vector<8x1xbf16>, vector<8x255xbf16> -> vector<8x256xbf16>
    %159 = vector.extract_strided_slice %145 {offsets = [0, 1], sizes = [8, 255], strides = [1, 1]} : vector<8x256xbf16> to vector<8x255xbf16>
    %160 = vector.extract_strided_slice %145 {offsets = [0, 0], sizes = [8, 1], strides = [1, 1]} : vector<8x256xbf16> to vector<8x1xbf16>
    %161 = tpu.concatenate %159, %160 in 1 : vector<8x255xbf16>, vector<8x1xbf16> -> vector<8x256xbf16>
    %162 = vector.extract_strided_slice %145 {offsets = [0, 8], sizes = [8, 248], strides = [1, 1]} : vector<8x256xbf16> to vector<8x248xbf16>
    %163 = vector.extract_strided_slice %145 {offsets = [0, 0], sizes = [8, 8], strides = [1, 1]} : vector<8x256xbf16> to vector<8x8xbf16>
    %164 = tpu.concatenate %162, %163 in 1 : vector<8x248xbf16>, vector<8x8xbf16> -> vector<8x256xbf16>
    %165 = vector.extract_strided_slice %145 {offsets = [0, 9], sizes = [8, 247], strides = [1, 1]} : vector<8x256xbf16> to vector<8x247xbf16>
    %166 = vector.extract_strided_slice %145 {offsets = [0, 0], sizes = [8, 9], strides = [1, 1]} : vector<8x256xbf16> to vector<8x9xbf16>
    %167 = tpu.concatenate %165, %166 in 1 : vector<8x247xbf16>, vector<8x9xbf16> -> vector<8x256xbf16>
    %168 = vector.extract_strided_slice %145 {offsets = [0, 10], sizes = [8, 246], strides = [1, 1]} : vector<8x256xbf16> to vector<8x246xbf16>
    %169 = vector.extract_strided_slice %145 {offsets = [0, 0], sizes = [8, 10], strides = [1, 1]} : vector<8x256xbf16> to vector<8x10xbf16>
    %170 = tpu.concatenate %168, %169 in 1 : vector<8x246xbf16>, vector<8x10xbf16> -> vector<8x256xbf16>
    %171 = tpu.concatenate %149, %152, %155, %158, %145, %161, %164, %167, %170, %5 in 0 : vector<8x256xbf16>, vector<8x256xbf16>, vector<8x256xbf16>, vector<8x256xbf16>, vector<8x256xbf16>, vector<8x256xbf16>, vector<8x256xbf16>, vector<8x256xbf16>, vector<8x256xbf16>, vector<1x256xbf16> -> vector<73x256xbf16>
    %cst_37 = arith.constant dense<0.000000e+00> : vector<8x256xf32>
    %172 = tpu.matmul %146, %171, %cst_37 {dimension_numbers = #tpu.dot_dimension_numbers<[1], [0], [0], [1], [0, 0, 1, 1], [], []>} : vector<8x73xbf16>, vector<73x256xbf16>, vector<8x256xf32> -> vector<8x256xf32>
    %cst_38 = arith.constant 5.000000e-01 : f32
    %173 = vector.broadcast %cst_38 : f32 to vector<8x256xf32>
    %174 = arith.mulf %173, %172 : vector<8x256xf32>
    %cst_39 = arith.constant 4.471500e-02 : f32
    %175 = vector.broadcast %cst_39 : f32 to vector<8x256xf32>
    %176 = arith.mulf %175, %172 : vector<8x256xf32>
    %177 = arith.mulf %176, %172 : vector<8x256xf32>
    %178 = arith.mulf %177, %172 : vector<8x256xf32>
    %179 = arith.addf %172, %178 : vector<8x256xf32>
    %cst_40 = arith.constant 0.797884583 : f32
    %180 = vector.broadcast %cst_40 : f32 to vector<8x256xf32>
    %181 = arith.mulf %180, %179 : vector<8x256xf32>
    %182 = math.tanh %181 : vector<8x256xf32>
    %cst_41 = arith.constant 1.000000e+00 : f32
    %183 = vector.broadcast %cst_41 : f32 to vector<8x256xf32>
    %184 = arith.addf %183, %182 : vector<8x256xf32>
    %185 = arith.mulf %174, %184 : vector<8x256xf32>
    %186 = vector.broadcast %2 : vector<1x256xf32> to vector<8x256xf32>
    %187 = arith.mulf %185, %186 : vector<8x256xf32>
    %188 = arith.truncf %187 : vector<8x256xf32> to vector<8x256xbf16>
    %189 = vector.extract_strided_slice %188 {offsets = [0, 0], sizes = [1, 128], strides = [1, 1]} : vector<8x256xbf16> to vector<1x128xbf16>
    %190 = vector.extract_strided_slice %188 {offsets = [1, 0], sizes = [1, 128], strides = [1, 1]} : vector<8x256xbf16> to vector<1x128xbf16>
    %191 = vector.extract_strided_slice %188 {offsets = [2, 0], sizes = [1, 128], strides = [1, 1]} : vector<8x256xbf16> to vector<1x128xbf16>
    %192 = vector.extract_strided_slice %188 {offsets = [3, 0], sizes = [1, 128], strides = [1, 1]} : vector<8x256xbf16> to vector<1x128xbf16>
    %193 = vector.extract_strided_slice %188 {offsets = [4, 0], sizes = [1, 128], strides = [1, 1]} : vector<8x256xbf16> to vector<1x128xbf16>
    %194 = vector.extract_strided_slice %188 {offsets = [5, 0], sizes = [1, 128], strides = [1, 1]} : vector<8x256xbf16> to vector<1x128xbf16>
    %195 = vector.extract_strided_slice %188 {offsets = [6, 0], sizes = [1, 128], strides = [1, 1]} : vector<8x256xbf16> to vector<1x128xbf16>
    %196 = vector.extract_strided_slice %188 {offsets = [7, 0], sizes = [1, 128], strides = [1, 1]} : vector<8x256xbf16> to vector<1x128xbf16>
    %197 = tpu.concatenate %189, %190, %191, %192, %193, %194, %195, %196 in 1 : vector<1x128xbf16>, vector<1x128xbf16>, vector<1x128xbf16>, vector<1x128xbf16>, vector<1x128xbf16>, vector<1x128xbf16>, vector<1x128xbf16>, vector<1x128xbf16> -> vector<1x1024xbf16>
    %198 = vector.extract_strided_slice %188 {offsets = [0, 128], sizes = [1, 128], strides = [1, 1]} : vector<8x256xbf16> to vector<1x128xbf16>
    %199 = vector.extract_strided_slice %188 {offsets = [1, 128], sizes = [1, 128], strides = [1, 1]} : vector<8x256xbf16> to vector<1x128xbf16>
    %200 = vector.extract_strided_slice %188 {offsets = [2, 128], sizes = [1, 128], strides = [1, 1]} : vector<8x256xbf16> to vector<1x128xbf16>
    %201 = vector.extract_strided_slice %188 {offsets = [3, 128], sizes = [1, 128], strides = [1, 1]} : vector<8x256xbf16> to vector<1x128xbf16>
    %202 = vector.extract_strided_slice %188 {offsets = [4, 128], sizes = [1, 128], strides = [1, 1]} : vector<8x256xbf16> to vector<1x128xbf16>
    %203 = vector.extract_strided_slice %188 {offsets = [5, 128], sizes = [1, 128], strides = [1, 1]} : vector<8x256xbf16> to vector<1x128xbf16>
    %204 = vector.extract_strided_slice %188 {offsets = [6, 128], sizes = [1, 128], strides = [1, 1]} : vector<8x256xbf16> to vector<1x128xbf16>
    %205 = vector.extract_strided_slice %188 {offsets = [7, 128], sizes = [1, 128], strides = [1, 1]} : vector<8x256xbf16> to vector<1x128xbf16>
    %206 = tpu.concatenate %198, %199, %200, %201, %202, %203, %204, %205 in 1 : vector<1x128xbf16>, vector<1x128xbf16>, vector<1x128xbf16>, vector<1x128xbf16>, vector<1x128xbf16>, vector<1x128xbf16>, vector<1x128xbf16>, vector<1x128xbf16> -> vector<1x1024xbf16>
    %207 = tpu.concatenate %197, %206 in 0 : vector<1x1024xbf16>, vector<1x1024xbf16> -> vector<2x1024xbf16>
    %c0_42 = arith.constant 0 : index
    %c0_43 = arith.constant 0 : index
    %208 = vector.load %arg6[%c0_42, %c0_43] : memref<1024x16xbf16, #tpu.memory_space<vmem>>, vector<1024x16xbf16>
    %cst_44 = arith.constant dense<0.000000e+00> : vector<2x16xf32>
    %209 = tpu.matmul %207, %208, %cst_44 {dimension_numbers = #tpu.dot_dimension_numbers<[1], [0], [0], [1], [0, 0, 1, 1], [], []>} : vector<2x1024xbf16>, vector<1024x16xbf16>, vector<2x16xf32> -> vector<2x16xf32>
    %c0_45 = arith.constant 0 : index
    %c0_46 = arith.constant 0 : index
    %210 = vector.load %arg7[%c0_45, %c0_46] : memref<1x16xf32, #tpu.memory_space<vmem>>, vector<1x16xf32>
    %211 = vector.broadcast %210 : vector<1x16xf32> to vector<2x16xf32>
    %212 = arith.addf %209, %211 : vector<2x16xf32>
    %213 = arith.truncf %212 : vector<2x16xf32> to vector<2x16xbf16>
    %c0_47 = arith.constant 0 : index
    %c0_48 = arith.constant 0 : index
    %214 = vector.load %arg8[%c0_47, %c0_48] : memref<16x1024xbf16, #tpu.memory_space<vmem>>, vector<16x1024xbf16>
    %cst_49 = arith.constant dense<0.000000e+00> : vector<2x1024xf32>
    %215 = tpu.matmul %213, %214, %cst_49 {dimension_numbers = #tpu.dot_dimension_numbers<[1], [0], [0], [1], [0, 0, 1, 1], [], []>} : vector<2x16xbf16>, vector<16x1024xbf16>, vector<2x1024xf32> -> vector<2x1024xf32>
    %c0_50 = arith.constant 0 : index
    %c0_51 = arith.constant 0 : index
    %216 = vector.load %arg9[%c0_50, %c0_51] : memref<1x1024xf32, #tpu.memory_space<vmem>>, vector<1x1024xf32>
    %217 = vector.broadcast %216 : vector<1x1024xf32> to vector<2x1024xf32>
    %218 = arith.addf %215, %217 : vector<2x1024xf32>
    %cst_52 = arith.constant 5.000000e-01 : f32
    %219 = vector.broadcast %cst_52 : f32 to vector<2x1024xf32>
    %220 = arith.mulf %219, %218 : vector<2x1024xf32>
    %cst_53 = arith.constant 4.471500e-02 : f32
    %221 = vector.broadcast %cst_53 : f32 to vector<2x1024xf32>
    %222 = arith.mulf %221, %218 : vector<2x1024xf32>
    %223 = arith.mulf %222, %218 : vector<2x1024xf32>
    %224 = arith.mulf %223, %218 : vector<2x1024xf32>
    %225 = arith.addf %218, %224 : vector<2x1024xf32>
    %cst_54 = arith.constant 0.797884583 : f32
    %226 = vector.broadcast %cst_54 : f32 to vector<2x1024xf32>
    %227 = arith.mulf %226, %225 : vector<2x1024xf32>
    %228 = math.tanh %227 : vector<2x1024xf32>
    %cst_55 = arith.constant 1.000000e+00 : f32
    %229 = vector.broadcast %cst_55 : f32 to vector<2x1024xf32>
    %230 = arith.addf %229, %228 : vector<2x1024xf32>
    %231 = arith.mulf %220, %230 : vector<2x1024xf32>
    %232 = arith.truncf %231 : vector<2x1024xf32> to vector<2x1024xbf16>
    %233 = vector.extract_strided_slice %232 {offsets = [0, 0], sizes = [1, 128], strides = [1, 1]} : vector<2x1024xbf16> to vector<1x128xbf16>
    %234 = vector.extract_strided_slice %232 {offsets = [1, 0], sizes = [1, 128], strides = [1, 1]} : vector<2x1024xbf16> to vector<1x128xbf16>
    %235 = tpu.concatenate %233, %234 in 1 : vector<1x128xbf16>, vector<1x128xbf16> -> vector<1x256xbf16>
    %236 = vector.extract_strided_slice %232 {offsets = [0, 128], sizes = [1, 128], strides = [1, 1]} : vector<2x1024xbf16> to vector<1x128xbf16>
    %237 = vector.extract_strided_slice %232 {offsets = [1, 128], sizes = [1, 128], strides = [1, 1]} : vector<2x1024xbf16> to vector<1x128xbf16>
    %238 = tpu.concatenate %236, %237 in 1 : vector<1x128xbf16>, vector<1x128xbf16> -> vector<1x256xbf16>
    %239 = vector.extract_strided_slice %232 {offsets = [0, 256], sizes = [1, 128], strides = [1, 1]} : vector<2x1024xbf16> to vector<1x128xbf16>
    %240 = vector.extract_strided_slice %232 {offsets = [1, 256], sizes = [1, 128], strides = [1, 1]} : vector<2x1024xbf16> to vector<1x128xbf16>
    %241 = tpu.concatenate %239, %240 in 1 : vector<1x128xbf16>, vector<1x128xbf16> -> vector<1x256xbf16>
    %242 = vector.extract_strided_slice %232 {offsets = [0, 384], sizes = [1, 128], strides = [1, 1]} : vector<2x1024xbf16> to vector<1x128xbf16>
    %243 = vector.extract_strided_slice %232 {offsets = [1, 384], sizes = [1, 128], strides = [1, 1]} : vector<2x1024xbf16> to vector<1x128xbf16>
    %244 = tpu.concatenate %242, %243 in 1 : vector<1x128xbf16>, vector<1x128xbf16> -> vector<1x256xbf16>
    %245 = vector.extract_strided_slice %232 {offsets = [0, 512], sizes = [1, 128], strides = [1, 1]} : vector<2x1024xbf16> to vector<1x128xbf16>
    %246 = vector.extract_strided_slice %232 {offsets = [1, 512], sizes = [1, 128], strides = [1, 1]} : vector<2x1024xbf16> to vector<1x128xbf16>
    %247 = tpu.concatenate %245, %246 in 1 : vector<1x128xbf16>, vector<1x128xbf16> -> vector<1x256xbf16>
    %248 = vector.extract_strided_slice %232 {offsets = [0, 640], sizes = [1, 128], strides = [1, 1]} : vector<2x1024xbf16> to vector<1x128xbf16>
    %249 = vector.extract_strided_slice %232 {offsets = [1, 640], sizes = [1, 128], strides = [1, 1]} : vector<2x1024xbf16> to vector<1x128xbf16>
    %250 = tpu.concatenate %248, %249 in 1 : vector<1x128xbf16>, vector<1x128xbf16> -> vector<1x256xbf16>
    %251 = vector.extract_strided_slice %232 {offsets = [0, 768], sizes = [1, 128], strides = [1, 1]} : vector<2x1024xbf16> to vector<1x128xbf16>
    %252 = vector.extract_strided_slice %232 {offsets = [1, 768], sizes = [1, 128], strides = [1, 1]} : vector<2x1024xbf16> to vector<1x128xbf16>
    %253 = tpu.concatenate %251, %252 in 1 : vector<1x128xbf16>, vector<1x128xbf16> -> vector<1x256xbf16>
    %254 = vector.extract_strided_slice %232 {offsets = [0, 896], sizes = [1, 128], strides = [1, 1]} : vector<2x1024xbf16> to vector<1x128xbf16>
    %255 = vector.extract_strided_slice %232 {offsets = [1, 896], sizes = [1, 128], strides = [1, 1]} : vector<2x1024xbf16> to vector<1x128xbf16>
    %256 = tpu.concatenate %254, %255 in 1 : vector<1x128xbf16>, vector<1x128xbf16> -> vector<1x256xbf16>
    %257 = tpu.concatenate %235, %238, %241, %244, %247, %250, %253, %256 in 0 : vector<1x256xbf16>, vector<1x256xbf16>, vector<1x256xbf16>, vector<1x256xbf16>, vector<1x256xbf16>, vector<1x256xbf16>, vector<1x256xbf16>, vector<1x256xbf16> -> vector<8x256xbf16>
    %c0_56 = arith.constant 0 : index
    %c0_57 = arith.constant 0 : index
    %258 = vector.load %arg15[%c0_56, %c0_57] : memref<128x256xbf16, #tpu.memory_space<vmem>>, vector<128x256xbf16>
    %259 = vector.extract_strided_slice %257 {offsets = [0, 0], sizes = [8, 128], strides = [1, 1]} : vector<8x256xbf16> to vector<8x128xbf16>
    %cst_58 = arith.constant dense<0.000000e+00> : vector<8x256xf32>
    %260 = tpu.matmul %259, %258, %cst_58 {dimension_numbers = #tpu.dot_dimension_numbers<[1], [0], [0], [1], [0, 0, 1, 1], [], []>} : vector<8x128xbf16>, vector<128x256xbf16>, vector<8x256xf32> -> vector<8x256xf32>
    %261 = vector.extract_strided_slice %257 {offsets = [0, 128], sizes = [8, 128], strides = [1, 1]} : vector<8x256xbf16> to vector<8x128xbf16>
    %cst_59 = arith.constant dense<0.000000e+00> : vector<8x256xf32>
    %262 = tpu.matmul %261, %258, %cst_59 {dimension_numbers = #tpu.dot_dimension_numbers<[1], [0], [0], [1], [0, 0, 1, 1], [], []>} : vector<8x128xbf16>, vector<128x256xbf16>, vector<8x256xf32> -> vector<8x256xf32>
    %263 = tpu.concatenate %260, %262 in 1 : vector<8x256xf32>, vector<8x256xf32> -> vector<8x512xf32>
    %264 = arith.truncf %263 : vector<8x512xf32> to vector<8x512xbf16>
    %c0_60 = arith.constant 0 : index
    %c0_61 = arith.constant 0 : index
    %265 = vector.load %arg10[%c0_60, %c0_61] : memref<8x73xbf16, #tpu.memory_space<vmem>>, vector<8x73xbf16>
    %266 = vector.extract_strided_slice %264 {offsets = [0, 495], sizes = [8, 17], strides = [1, 1]} : vector<8x512xbf16> to vector<8x17xbf16>
    %267 = vector.extract_strided_slice %264 {offsets = [0, 0], sizes = [8, 495], strides = [1, 1]} : vector<8x512xbf16> to vector<8x495xbf16>
    %268 = tpu.concatenate %266, %267 in 1 : vector<8x17xbf16>, vector<8x495xbf16> -> vector<8x512xbf16>
    %269 = vector.extract_strided_slice %264 {offsets = [0, 496], sizes = [8, 16], strides = [1, 1]} : vector<8x512xbf16> to vector<8x16xbf16>
    %270 = vector.extract_strided_slice %264 {offsets = [0, 0], sizes = [8, 496], strides = [1, 1]} : vector<8x512xbf16> to vector<8x496xbf16>
    %271 = tpu.concatenate %269, %270 in 1 : vector<8x16xbf16>, vector<8x496xbf16> -> vector<8x512xbf16>
    %272 = vector.extract_strided_slice %264 {offsets = [0, 497], sizes = [8, 15], strides = [1, 1]} : vector<8x512xbf16> to vector<8x15xbf16>
    %273 = vector.extract_strided_slice %264 {offsets = [0, 0], sizes = [8, 497], strides = [1, 1]} : vector<8x512xbf16> to vector<8x497xbf16>
    %274 = tpu.concatenate %272, %273 in 1 : vector<8x15xbf16>, vector<8x497xbf16> -> vector<8x512xbf16>
    %275 = vector.extract_strided_slice %264 {offsets = [0, 511], sizes = [8, 1], strides = [1, 1]} : vector<8x512xbf16> to vector<8x1xbf16>
    %276 = vector.extract_strided_slice %264 {offsets = [0, 0], sizes = [8, 511], strides = [1, 1]} : vector<8x512xbf16> to vector<8x511xbf16>
    %277 = tpu.concatenate %275, %276 in 1 : vector<8x1xbf16>, vector<8x511xbf16> -> vector<8x512xbf16>
    %278 = vector.extract_strided_slice %264 {offsets = [0, 1], sizes = [8, 511], strides = [1, 1]} : vector<8x512xbf16> to vector<8x511xbf16>
    %279 = vector.extract_strided_slice %264 {offsets = [0, 0], sizes = [8, 1], strides = [1, 1]} : vector<8x512xbf16> to vector<8x1xbf16>
    %280 = tpu.concatenate %278, %279 in 1 : vector<8x511xbf16>, vector<8x1xbf16> -> vector<8x512xbf16>
    %281 = vector.extract_strided_slice %264 {offsets = [0, 15], sizes = [8, 497], strides = [1, 1]} : vector<8x512xbf16> to vector<8x497xbf16>
    %282 = vector.extract_strided_slice %264 {offsets = [0, 0], sizes = [8, 15], strides = [1, 1]} : vector<8x512xbf16> to vector<8x15xbf16>
    %283 = tpu.concatenate %281, %282 in 1 : vector<8x497xbf16>, vector<8x15xbf16> -> vector<8x512xbf16>
    %284 = vector.extract_strided_slice %264 {offsets = [0, 16], sizes = [8, 496], strides = [1, 1]} : vector<8x512xbf16> to vector<8x496xbf16>
    %285 = vector.extract_strided_slice %264 {offsets = [0, 0], sizes = [8, 16], strides = [1, 1]} : vector<8x512xbf16> to vector<8x16xbf16>
    %286 = tpu.concatenate %284, %285 in 1 : vector<8x496xbf16>, vector<8x16xbf16> -> vector<8x512xbf16>
    %287 = vector.extract_strided_slice %264 {offsets = [0, 17], sizes = [8, 495], strides = [1, 1]} : vector<8x512xbf16> to vector<8x495xbf16>
    %288 = vector.extract_strided_slice %264 {offsets = [0, 0], sizes = [8, 17], strides = [1, 1]} : vector<8x512xbf16> to vector<8x17xbf16>
    %289 = tpu.concatenate %287, %288 in 1 : vector<8x495xbf16>, vector<8x17xbf16> -> vector<8x512xbf16>
    %290 = tpu.concatenate %268, %271, %274, %277, %264, %280, %283, %286, %289, %4 in 0 : vector<8x512xbf16>, vector<8x512xbf16>, vector<8x512xbf16>, vector<8x512xbf16>, vector<8x512xbf16>, vector<8x512xbf16>, vector<8x512xbf16>, vector<8x512xbf16>, vector<8x512xbf16>, vector<1x512xbf16> -> vector<73x512xbf16>
    %cst_62 = arith.constant dense<0.000000e+00> : vector<8x512xf32>
    %291 = tpu.matmul %265, %290, %cst_62 {dimension_numbers = #tpu.dot_dimension_numbers<[1], [0], [0], [1], [0, 0, 1, 1], [], []>} : vector<8x73xbf16>, vector<73x512xbf16>, vector<8x512xf32> -> vector<8x512xf32>
    %cst_63 = arith.constant 5.000000e-01 : f32
    %292 = vector.broadcast %cst_63 : f32 to vector<8x512xf32>
    %293 = arith.mulf %292, %291 : vector<8x512xf32>
    %cst_64 = arith.constant 4.471500e-02 : f32
    %294 = vector.broadcast %cst_64 : f32 to vector<8x512xf32>
    %295 = arith.mulf %294, %291 : vector<8x512xf32>
    %296 = arith.mulf %295, %291 : vector<8x512xf32>
    %297 = arith.mulf %296, %291 : vector<8x512xf32>
    %298 = arith.addf %291, %297 : vector<8x512xf32>
    %cst_65 = arith.constant 0.797884583 : f32
    %299 = vector.broadcast %cst_65 : f32 to vector<8x512xf32>
    %300 = arith.mulf %299, %298 : vector<8x512xf32>
    %301 = math.tanh %300 : vector<8x512xf32>
    %cst_66 = arith.constant 1.000000e+00 : f32
    %302 = vector.broadcast %cst_66 : f32 to vector<8x512xf32>
    %303 = arith.addf %302, %301 : vector<8x512xf32>
    %304 = arith.mulf %293, %303 : vector<8x512xf32>
    %305 = vector.broadcast %1 : vector<1x512xf32> to vector<8x512xf32>
    %306 = arith.mulf %304, %305 : vector<8x512xf32>
    %307 = arith.truncf %306 : vector<8x512xf32> to vector<8x512xbf16>
    %c0_67 = arith.constant 0 : index
    %c0_68 = arith.constant 0 : index
    %308 = vector.load %arg11[%c0_67, %c0_68] : memref<8x73xbf16, #tpu.memory_space<vmem>>, vector<8x73xbf16>
    %309 = vector.extract_strided_slice %307 {offsets = [0, 495], sizes = [8, 17], strides = [1, 1]} : vector<8x512xbf16> to vector<8x17xbf16>
    %310 = vector.extract_strided_slice %307 {offsets = [0, 0], sizes = [8, 495], strides = [1, 1]} : vector<8x512xbf16> to vector<8x495xbf16>
    %311 = tpu.concatenate %309, %310 in 1 : vector<8x17xbf16>, vector<8x495xbf16> -> vector<8x512xbf16>
    %312 = vector.extract_strided_slice %307 {offsets = [0, 496], sizes = [8, 16], strides = [1, 1]} : vector<8x512xbf16> to vector<8x16xbf16>
    %313 = vector.extract_strided_slice %307 {offsets = [0, 0], sizes = [8, 496], strides = [1, 1]} : vector<8x512xbf16> to vector<8x496xbf16>
    %314 = tpu.concatenate %312, %313 in 1 : vector<8x16xbf16>, vector<8x496xbf16> -> vector<8x512xbf16>
    %315 = vector.extract_strided_slice %307 {offsets = [0, 497], sizes = [8, 15], strides = [1, 1]} : vector<8x512xbf16> to vector<8x15xbf16>
    %316 = vector.extract_strided_slice %307 {offsets = [0, 0], sizes = [8, 497], strides = [1, 1]} : vector<8x512xbf16> to vector<8x497xbf16>
    %317 = tpu.concatenate %315, %316 in 1 : vector<8x15xbf16>, vector<8x497xbf16> -> vector<8x512xbf16>
    %318 = vector.extract_strided_slice %307 {offsets = [0, 511], sizes = [8, 1], strides = [1, 1]} : vector<8x512xbf16> to vector<8x1xbf16>
    %319 = vector.extract_strided_slice %307 {offsets = [0, 0], sizes = [8, 511], strides = [1, 1]} : vector<8x512xbf16> to vector<8x511xbf16>
    %320 = tpu.concatenate %318, %319 in 1 : vector<8x1xbf16>, vector<8x511xbf16> -> vector<8x512xbf16>
    %321 = vector.extract_strided_slice %307 {offsets = [0, 1], sizes = [8, 511], strides = [1, 1]} : vector<8x512xbf16> to vector<8x511xbf16>
    %322 = vector.extract_strided_slice %307 {offsets = [0, 0], sizes = [8, 1], strides = [1, 1]} : vector<8x512xbf16> to vector<8x1xbf16>
    %323 = tpu.concatenate %321, %322 in 1 : vector<8x511xbf16>, vector<8x1xbf16> -> vector<8x512xbf16>
    %324 = vector.extract_strided_slice %307 {offsets = [0, 15], sizes = [8, 497], strides = [1, 1]} : vector<8x512xbf16> to vector<8x497xbf16>
    %325 = vector.extract_strided_slice %307 {offsets = [0, 0], sizes = [8, 15], strides = [1, 1]} : vector<8x512xbf16> to vector<8x15xbf16>
    %326 = tpu.concatenate %324, %325 in 1 : vector<8x497xbf16>, vector<8x15xbf16> -> vector<8x512xbf16>
    %327 = vector.extract_strided_slice %307 {offsets = [0, 16], sizes = [8, 496], strides = [1, 1]} : vector<8x512xbf16> to vector<8x496xbf16>
    %328 = vector.extract_strided_slice %307 {offsets = [0, 0], sizes = [8, 16], strides = [1, 1]} : vector<8x512xbf16> to vector<8x16xbf16>
    %329 = tpu.concatenate %327, %328 in 1 : vector<8x496xbf16>, vector<8x16xbf16> -> vector<8x512xbf16>
    %330 = vector.extract_strided_slice %307 {offsets = [0, 17], sizes = [8, 495], strides = [1, 1]} : vector<8x512xbf16> to vector<8x495xbf16>
    %331 = vector.extract_strided_slice %307 {offsets = [0, 0], sizes = [8, 17], strides = [1, 1]} : vector<8x512xbf16> to vector<8x17xbf16>
    %332 = tpu.concatenate %330, %331 in 1 : vector<8x495xbf16>, vector<8x17xbf16> -> vector<8x512xbf16>
    %333 = tpu.concatenate %311, %314, %317, %320, %307, %323, %326, %329, %332, %4 in 0 : vector<8x512xbf16>, vector<8x512xbf16>, vector<8x512xbf16>, vector<8x512xbf16>, vector<8x512xbf16>, vector<8x512xbf16>, vector<8x512xbf16>, vector<8x512xbf16>, vector<8x512xbf16>, vector<1x512xbf16> -> vector<73x512xbf16>
    %cst_69 = arith.constant dense<0.000000e+00> : vector<8x512xf32>
    %334 = tpu.matmul %308, %333, %cst_69 {dimension_numbers = #tpu.dot_dimension_numbers<[1], [0], [0], [1], [0, 0, 1, 1], [], []>} : vector<8x73xbf16>, vector<73x512xbf16>, vector<8x512xf32> -> vector<8x512xf32>
    %cst_70 = arith.constant 5.000000e-01 : f32
    %335 = vector.broadcast %cst_70 : f32 to vector<8x512xf32>
    %336 = arith.mulf %335, %334 : vector<8x512xf32>
    %cst_71 = arith.constant 4.471500e-02 : f32
    %337 = vector.broadcast %cst_71 : f32 to vector<8x512xf32>
    %338 = arith.mulf %337, %334 : vector<8x512xf32>
    %339 = arith.mulf %338, %334 : vector<8x512xf32>
    %340 = arith.mulf %339, %334 : vector<8x512xf32>
    %341 = arith.addf %334, %340 : vector<8x512xf32>
    %cst_72 = arith.constant 0.797884583 : f32
    %342 = vector.broadcast %cst_72 : f32 to vector<8x512xf32>
    %343 = arith.mulf %342, %341 : vector<8x512xf32>
    %344 = math.tanh %343 : vector<8x512xf32>
    %cst_73 = arith.constant 1.000000e+00 : f32
    %345 = vector.broadcast %cst_73 : f32 to vector<8x512xf32>
    %346 = arith.addf %345, %344 : vector<8x512xf32>
    %347 = arith.mulf %336, %346 : vector<8x512xf32>
    %348 = vector.broadcast %1 : vector<1x512xf32> to vector<8x512xf32>
    %349 = arith.mulf %347, %348 : vector<8x512xf32>
    %350 = arith.truncf %349 : vector<8x512xf32> to vector<8x512xbf16>
    %c0_74 = arith.constant 0 : index
    %c0_75 = arith.constant 0 : index
    %351 = vector.load %arg16[%c0_74, %c0_75] : memref<256x1024xbf16, #tpu.memory_space<vmem>>, vector<256x1024xbf16>
    %352 = vector.extract_strided_slice %350 {offsets = [0, 0], sizes = [8, 256], strides = [1, 1]} : vector<8x512xbf16> to vector<8x256xbf16>
    %cst_76 = arith.constant dense<0.000000e+00> : vector<8x1024xf32>
    %353 = tpu.matmul %352, %351, %cst_76 {dimension_numbers = #tpu.dot_dimension_numbers<[1], [0], [0], [1], [0, 0, 1, 1], [], []>} : vector<8x256xbf16>, vector<256x1024xbf16>, vector<8x1024xf32> -> vector<8x1024xf32>
    %354 = vector.extract_strided_slice %350 {offsets = [0, 256], sizes = [8, 256], strides = [1, 1]} : vector<8x512xbf16> to vector<8x256xbf16>
    %cst_77 = arith.constant dense<0.000000e+00> : vector<8x1024xf32>
    %355 = tpu.matmul %354, %351, %cst_77 {dimension_numbers = #tpu.dot_dimension_numbers<[1], [0], [0], [1], [0, 0, 1, 1], [], []>} : vector<8x256xbf16>, vector<256x1024xbf16>, vector<8x1024xf32> -> vector<8x1024xf32>
    %356 = tpu.concatenate %353, %355 in 1 : vector<8x1024xf32>, vector<8x1024xf32> -> vector<8x2048xf32>
    %357 = arith.truncf %356 : vector<8x2048xf32> to vector<8x2048xbf16>
    %c0_78 = arith.constant 0 : index
    %c0_79 = arith.constant 0 : index
    %358 = vector.load %arg12[%c0_78, %c0_79] : memref<3x73xbf16, #tpu.memory_space<vmem>>, vector<3x73xbf16>
    %359 = vector.extract_strided_slice %357 {offsets = [0, 2017], sizes = [8, 31], strides = [1, 1]} : vector<8x2048xbf16> to vector<8x31xbf16>
    %360 = vector.extract_strided_slice %357 {offsets = [0, 0], sizes = [8, 2017], strides = [1, 1]} : vector<8x2048xbf16> to vector<8x2017xbf16>
    %361 = tpu.concatenate %359, %360 in 1 : vector<8x31xbf16>, vector<8x2017xbf16> -> vector<8x2048xbf16>
    %362 = vector.extract_strided_slice %357 {offsets = [0, 2018], sizes = [8, 30], strides = [1, 1]} : vector<8x2048xbf16> to vector<8x30xbf16>
    %363 = vector.extract_strided_slice %357 {offsets = [0, 0], sizes = [8, 2018], strides = [1, 1]} : vector<8x2048xbf16> to vector<8x2018xbf16>
    %364 = tpu.concatenate %362, %363 in 1 : vector<8x30xbf16>, vector<8x2018xbf16> -> vector<8x2048xbf16>
    %365 = vector.extract_strided_slice %357 {offsets = [0, 2019], sizes = [8, 29], strides = [1, 1]} : vector<8x2048xbf16> to vector<8x29xbf16>
    %366 = vector.extract_strided_slice %357 {offsets = [0, 0], sizes = [8, 2019], strides = [1, 1]} : vector<8x2048xbf16> to vector<8x2019xbf16>
    %367 = tpu.concatenate %365, %366 in 1 : vector<8x29xbf16>, vector<8x2019xbf16> -> vector<8x2048xbf16>
    %368 = vector.extract_strided_slice %357 {offsets = [0, 2047], sizes = [8, 1], strides = [1, 1]} : vector<8x2048xbf16> to vector<8x1xbf16>
    %369 = vector.extract_strided_slice %357 {offsets = [0, 0], sizes = [8, 2047], strides = [1, 1]} : vector<8x2048xbf16> to vector<8x2047xbf16>
    %370 = tpu.concatenate %368, %369 in 1 : vector<8x1xbf16>, vector<8x2047xbf16> -> vector<8x2048xbf16>
    %371 = vector.extract_strided_slice %357 {offsets = [0, 1], sizes = [8, 2047], strides = [1, 1]} : vector<8x2048xbf16> to vector<8x2047xbf16>
    %372 = vector.extract_strided_slice %357 {offsets = [0, 0], sizes = [8, 1], strides = [1, 1]} : vector<8x2048xbf16> to vector<8x1xbf16>
    %373 = tpu.concatenate %371, %372 in 1 : vector<8x2047xbf16>, vector<8x1xbf16> -> vector<8x2048xbf16>
    %374 = vector.extract_strided_slice %357 {offsets = [0, 29], sizes = [8, 2019], strides = [1, 1]} : vector<8x2048xbf16> to vector<8x2019xbf16>
    %375 = vector.extract_strided_slice %357 {offsets = [0, 0], sizes = [8, 29], strides = [1, 1]} : vector<8x2048xbf16> to vector<8x29xbf16>
    %376 = tpu.concatenate %374, %375 in 1 : vector<8x2019xbf16>, vector<8x29xbf16> -> vector<8x2048xbf16>
    %377 = vector.extract_strided_slice %357 {offsets = [0, 30], sizes = [8, 2018], strides = [1, 1]} : vector<8x2048xbf16> to vector<8x2018xbf16>
    %378 = vector.extract_strided_slice %357 {offsets = [0, 0], sizes = [8, 30], strides = [1, 1]} : vector<8x2048xbf16> to vector<8x30xbf16>
    %379 = tpu.concatenate %377, %378 in 1 : vector<8x2018xbf16>, vector<8x30xbf16> -> vector<8x2048xbf16>
    %380 = vector.extract_strided_slice %357 {offsets = [0, 31], sizes = [8, 2017], strides = [1, 1]} : vector<8x2048xbf16> to vector<8x2017xbf16>
    %381 = vector.extract_strided_slice %357 {offsets = [0, 0], sizes = [8, 31], strides = [1, 1]} : vector<8x2048xbf16> to vector<8x31xbf16>
    %382 = tpu.concatenate %380, %381 in 1 : vector<8x2017xbf16>, vector<8x31xbf16> -> vector<8x2048xbf16>
    %383 = tpu.concatenate %361, %364, %367, %370, %357, %373, %376, %379, %382, %3 in 0 : vector<8x2048xbf16>, vector<8x2048xbf16>, vector<8x2048xbf16>, vector<8x2048xbf16>, vector<8x2048xbf16>, vector<8x2048xbf16>, vector<8x2048xbf16>, vector<8x2048xbf16>, vector<8x2048xbf16>, vector<1x2048xbf16> -> vector<73x2048xbf16>
    %cst_80 = arith.constant dense<0.000000e+00> : vector<3x2048xf32>
    %384 = tpu.matmul %358, %383, %cst_80 {dimension_numbers = #tpu.dot_dimension_numbers<[1], [0], [0], [1], [0, 0, 1, 1], [], []>} : vector<3x73xbf16>, vector<73x2048xbf16>, vector<3x2048xf32> -> vector<3x2048xf32>
    %cst_81 = arith.constant 0.000000e+00 : f32
    %385 = vector.broadcast %cst_81 : f32 to vector<3x2048xf32>
    %386 = arith.subf %385, %384 : vector<3x2048xf32>
    %387 = math.exp %386 : vector<3x2048xf32>
    %cst_82 = arith.constant 1.000000e+00 : f32
    %388 = vector.broadcast %cst_82 : f32 to vector<3x2048xf32>
    %389 = arith.addf %388, %387 : vector<3x2048xf32>
    %cst_83 = arith.constant 1.000000e+00 : f32
    %390 = vector.broadcast %cst_83 : f32 to vector<3x2048xf32>
    %391 = arith.divf %390, %389 : vector<3x2048xf32>
    %c0_84 = arith.constant 0 : index
    %c0_85 = arith.constant 0 : index
    %392 = vector.load %arg20[%c0_84, %c0_85] : memref<3x2048xf32, #tpu.memory_space<vmem>>, vector<3x2048xf32>
    tpu.vector_store %arg20[%c0_84, %c0_85], %391 {strides = array<i32>} : memref<3x2048xf32, #tpu.memory_space<vmem>>, vector<3x2048xf32>,
    return
  }
  func.func @transform_0(%arg0: i32) -> (i32, i32) {
    %c0_i32 = arith.constant 0 : i32
    %c0_i32_0 = arith.constant 0 : i32
    return %c0_i32, %arg0 : i32, i32
  }
  func.func @transform_1(%arg0: i32) -> (i32, i32) {
    %c0_i32 = arith.constant 0 : i32
    %c0_i32_0 = arith.constant 0 : i32
    %c0_i32_1 = arith.constant 0 : i32
    return %c0_i32, %c0_i32_0 : i32, i32
  }
  func.func @transform_2(%arg0: i32) -> (i32, i32) {
    %c0_i32 = arith.constant 0 : i32
    %c0_i32_0 = arith.constant 0 : i32
    %c0_i32_1 = arith.constant 0 : i32
    return %c0_i32, %c0_i32_0 : i32, i32
  }
  func.func @transform_3(%arg0: i32) -> (i32, i32) {
    %c0_i32 = arith.constant 0 : i32
    %c0_i32_0 = arith.constant 0 : i32
    %c0_i32_1 = arith.constant 0 : i32
    return %c0_i32, %c0_i32_0 : i32, i32
  }
  func.func @transform_4(%arg0: i32) -> (i32, i32) {
    %c0_i32 = arith.constant 0 : i32
    %c0_i32_0 = arith.constant 0 : i32
    %c0_i32_1 = arith.constant 0 : i32
    return %c0_i32, %c0_i32_0 : i32, i32
  }
  func.func @transform_5(%arg0: i32) -> (i32, i32) {
    %c0_i32 = arith.constant 0 : i32
    %c0_i32_0 = arith.constant 0 : i32
    %c0_i32_1 = arith.constant 0 : i32
    return %c0_i32, %c0_i32_0 : i32, i32
  }
  func.func @transform_6(%arg0: i32) -> (i32, i32) {
    %c0_i32 = arith.constant 0 : i32
    %c0_i32_0 = arith.constant 0 : i32
    %c0_i32_1 = arith.constant 0 : i32
    return %c0_i32, %c0_i32_0 : i32, i32
  }
  func.func @transform_7(%arg0: i32) -> (i32, i32) {
    %c0_i32 = arith.constant 0 : i32
    %c0_i32_0 = arith.constant 0 : i32
    %c0_i32_1 = arith.constant 0 : i32
    return %c0_i32, %c0_i32_0 : i32, i32
  }
  func.func @transform_8(%arg0: i32) -> (i32, i32) {
    %c0_i32 = arith.constant 0 : i32
    %c0_i32_0 = arith.constant 0 : i32
    %c0_i32_1 = arith.constant 0 : i32
    return %c0_i32, %c0_i32_0 : i32, i32
  }
  func.func @transform_9(%arg0: i32) -> (i32, i32) {
    %c0_i32 = arith.constant 0 : i32
    %c0_i32_0 = arith.constant 0 : i32
    %c0_i32_1 = arith.constant 0 : i32
    return %c0_i32, %c0_i32_0 : i32, i32
  }
  func.func @transform_10(%arg0: i32) -> (i32, i32) {
    %c0_i32 = arith.constant 0 : i32
    %c0_i32_0 = arith.constant 0 : i32
    %c0_i32_1 = arith.constant 0 : i32
    return %c0_i32, %c0_i32_0 : i32, i32
  }
  func.func @transform_11(%arg0: i32) -> (i32, i32) {
    %c0_i32 = arith.constant 0 : i32
    %c0_i32_0 = arith.constant 0 : i32
    %c0_i32_1 = arith.constant 0 : i32
    return %c0_i32, %c0_i32_0 : i32, i32
  }
  func.func @transform_12(%arg0: i32) -> (i32, i32) {
    %c0_i32 = arith.constant 0 : i32
    %c0_i32_0 = arith.constant 0 : i32
    %c0_i32_1 = arith.constant 0 : i32
    return %c0_i32, %c0_i32_0 : i32, i32
  }
  func.func @transform_13(%arg0: i32) -> (i32, i32) {
    %c0_i32 = arith.constant 0 : i32
    %c0_i32_0 = arith.constant 0 : i32
    %c0_i32_1 = arith.constant 0 : i32
    return %c0_i32, %c0_i32_0 : i32, i32
  }
  func.func @transform_14(%arg0: i32) -> (i32, i32) {
    %c0_i32 = arith.constant 0 : i32
    %c0_i32_0 = arith.constant 0 : i32
    %c0_i32_1 = arith.constant 0 : i32
    return %c0_i32, %c0_i32_0 : i32, i32
  }
  func.func @transform_15(%arg0: i32) -> (i32, i32) {
    %c0_i32 = arith.constant 0 : i32
    %c0_i32_0 = arith.constant 0 : i32
    %c0_i32_1 = arith.constant 0 : i32
    return %c0_i32, %c0_i32_0 : i32, i32
  }
  func.func @transform_16(%arg0: i32) -> (i32, i32) {
    %c0_i32 = arith.constant 0 : i32
    %c0_i32_0 = arith.constant 0 : i32
    %c0_i32_1 = arith.constant 0 : i32
    return %c0_i32, %c0_i32_0 : i32, i32
  }
  func.func @transform_17(%arg0: i32) -> (i32, i32) {
    %c0_i32 = arith.constant 0 : i32
    %c0_i32_0 = arith.constant 0 : i32
    %c0_i32_1 = arith.constant 0 : i32
    return %c0_i32, %c0_i32_0 : i32, i32
  }
  func.func @transform_18(%arg0: i32) -> (i32, i32) {
    %c0_i32 = arith.constant 0 : i32
    %c0_i32_0 = arith.constant 0 : i32
    %c0_i32_1 = arith.constant 0 : i32
    return %c0_i32, %c0_i32_0 : i32, i32
  }
  func.func @transform_19(%arg0: i32) -> (i32, i32) {
    %c0_i32 = arith.constant 0 : i32
    %c0_i32_0 = arith.constant 0 : i32
    return %c0_i32, %arg0 : i32, i32
  }
}

</mosaic_0001>

<llo_original>
// kernel: autoencoder_forward.1
$region0: #{autoencoder_forward.1}
  #allocation0 [shape = 'u32[]', space=smem, size = 0x4, offset = 0x4, fixed_abs, tag = 'smem constant byte address 0x4 - core index']
  #allocation1 [shape = 'u32[144,128]{1,0:T(1,128)}', space=vmem, size = 0x12000, scoped, tag = 'internal scratch']
  %s0 = inlined_call_operand.vmem [shape: bf16[3,4096], index: 0, kind: input, shape index: {}]
  %s1 = inlined_call_operand.vmem [shape: bf16[4,28], index: 1, kind: input, shape index: {}]
  %s2 = inlined_call_operand.vmem [shape: bf16[4,37], index: 2, kind: input, shape index: {}]
  %s3 = inlined_call_operand.vmem [shape: bf16[8,37], index: 3, kind: input, shape index: {}]
  %s4 = inlined_call_operand.vmem [shape: bf16[8,73], index: 4, kind: input, shape index: {}]
  %s5 = inlined_call_operand.vmem [shape: bf16[1024,16], index: 5, kind: input, shape index: {}]
  %s6 = inlined_call_operand.vmem [shape: f32[1,16], index: 6, kind: input, shape index: {}]
  %s7 = inlined_call_operand.hbm [shape: bf16[16,1024], index: 7, kind: input, shape index: {}]
  %s8 = inlined_call_operand.vmem [shape: f32[1,1024], index: 8, kind: input, shape index: {}]
  %s9 = inlined_call_operand.vmem [shape: bf16[8,73], index: 9, kind: input, shape index: {}]
  %s10 = inlined_call_operand.vmem [shape: bf16[8,73], index: 10, kind: input, shape index: {}]
  %s11 = inlined_call_operand.vmem [shape: bf16[3,73], index: 11, kind: input, shape index: {}]
  %s12 = inlined_call_operand.vmem [shape: bf16[1024,256], index: 12, kind: input, shape index: {}]
  %s13 = inlined_call_operand.vmem [shape: bf16[256,128], index: 13, kind: input, shape index: {}]
  %s14 = inlined_call_operand.hbm [shape: bf16[128,256], index: 14, kind: input, shape index: {}]
  %s15 = inlined_call_operand.vmem [shape: bf16[256,1024], index: 15, kind: input, shape index: {}]
  %s16 = inlined_call_operand.vmem [shape: f32[1,2048], index: 16, kind: input, shape index: {}]
  %s17 = inlined_call_operand.vmem [shape: f32[1,512], index: 17, kind: input, shape index: {}]
  %s18 = inlined_call_operand.vmem [shape: f32[1,256], index: 18, kind: input, shape index: {}]
  %s19 = inlined_call_operand.vmem [shape: f32[3,4096], index: 19, kind: output, shape index: {}]
  %s20 = sld [smem:[#allocation0]]
  $region117: #{autoencoder_forward.1} parent=0
    _
  %s22 = ssub.s32 1, %s20
  %s23 = scalar_select 0, %s22, %s20
  $region1: #{autoencoder_forward.1} parent=0
    #allocation2 [shape = 'u8[32768]{0}', space=vmem, size = 0x8000, scoped, tag = 'input window, operand 7, single buffered']
    #allocation3 [shape = 's32[2]{0}', space=sflag, size = 0x8, scoped, tag = 'scoped memory for autoencoder_forward.1']
    #allocation4 [shape = 'u8[65536]{0}', space=vmem, size = 0x10000, scoped, tag = 'input window, operand 14, single buffered']
    #allocation5 [shape = 's32[1]{0}', space=sflag, size = 0x4, scoped, tag = 'scoped memory for autoencoder_forward.1']
    %24 = vsyncpa [#allocation3], 0
    %25 = vsyncpa [#allocation5], 0
    loop: start=0, step=1, limit=4
    $region2: #{autoencoder_forward.1} parent=1 // loop_pre_header
      _
    $region3: #{autoencoder_forward.1} parent=1 // loop_header
      %s27 = sphi 0, %s31
      %p28 = scmp.ge.s32.totalorder %s27, 4
      %s37 = sphi 0, %s39
      %s40 = sphi 0, %s37
      %s41 = sphi 0, %s40
      %s57 = sphi 0, %s41
      %s61 = sphi 0, %s61
      %s63 = sphi 0, %s61
      %s64 = sphi 0, %s63
      %s78 = sphi 0, %s64
      %s82 = sphi 0, %s82
      %s84 = sphi 0, %s82
      %s85 = sphi 0, %s84
      %s99 = sphi 0, %s85
      %s103 = sphi 0, %s103
      %s105 = sphi 0, %s103
      %s106 = sphi 0, %s105
      %s120 = sphi 0, %s106
      %s124 = sphi 0, %s124
      %s126 = sphi 0, %s124
      %s127 = sphi 0, %s126
      %s141 = sphi 0, %s127
      %s145 = sphi 0, %s145
      %s147 = sphi 0, %s145
      %s148 = sphi 0, %s147
      %s162 = sphi 0, %s148
      %s166 = sphi 0, %s166
      %s168 = sphi 0, %s166
      %s169 = sphi 0, %s168
      %s183 = sphi 0, %s169
      %s187 = sphi 0, %s187
      %s189 = sphi 0, %s187
      %s190 = sphi 0, %s189
      %s204 = sphi 0, %s190
      %s208 = sphi 0, %s208
      %s210 = sphi 0, %s208
      %s211 = sphi 0, %s210
      %s225 = sphi 0, %s211
      %s229 = sphi 0, %s229
      %s231 = sphi 0, %s229
      %s232 = sphi 0, %s231
      %s246 = sphi 0, %s232
      %s250 = sphi 0, %s250
      %s252 = sphi 0, %s250
      %s253 = sphi 0, %s252
      %s267 = sphi 0, %s253
      %s271 = sphi 0, %s271
      %s273 = sphi 0, %s271
      %s274 = sphi 0, %s273
      %s288 = sphi 0, %s274
      %s292 = sphi 0, %s292
      %s294 = sphi 0, %s292
      %s295 = sphi 0, %s294
      %s309 = sphi 0, %s295
      %s313 = sphi 0, %s313
      %s315 = sphi 0, %s313
      %s316 = sphi 0, %s315
      %s330 = sphi 0, %s316
      %s334 = sphi 0, %s334
      %s336 = sphi 0, %s334
      %s337 = sphi 0, %s336
      %s351 = sphi 0, %s337
      %s355 = sphi 0, %s355
      %s357 = sphi 0, %s355
      %s358 = sphi 0, %s357
      %s372 = sphi 0, %s358
      %s376 = sphi 0, %s376
      %s378 = sphi 0, %s376
      %s379 = sphi 0, %s378
      %s393 = sphi 0, %s379
      %s397 = sphi 0, %s397
      %s399 = sphi 0, %s397
      %s400 = sphi 0, %s399
      %s414 = sphi 0, %s400
      %s418 = sphi 0, %s418
      %s420 = sphi 0, %s418
      %s421 = sphi 0, %s420
      %s435 = sphi 0, %s421
      %s441 = sphi 0, %s443
      %s444 = sphi 0, %s441
      %s445 = sphi 0, %s444
      %s461 = sphi 0, %s445
    $region4: #{autoencoder_forward.1} parent=1 // loop_header_branch
      %30 = sbr.rel (%p28) target = $region8
    $region5: #{autoencoder_forward.1} parent=1 // loop_body
      %s32 = ssub.s32 %s27, 1
      %s33 = ssub.s32 %s27, 2
      %s34 = sadd.s32 %s27, 1
      %s35 = ssub.s32 %s27, %s34
      %p36 = scmp.eq.s32.totalorder %s35, 0
      %s38 = sadd.s32 %s37, 1
      %s39 = scalar_select %p36, %s37, %s38
      %p42 = pneg %p36
      %p43 = scmp.eq.s32.totalorder %s27, 1
      %p44 = por %p42, %p43
      %p45 = scmp.ne.s32.totalorder %s37, %s40
      %p46 = scmp.eq.s32.totalorder %s27, 0
      %p47 = por %p45, %p46
      %p48 = scmp.ne.s32.totalorder %s37, %s40
      %p49 = scmp.eq.s32.totalorder %s32, 1
      %p50 = por %p48, %p49
      %p51 = scmp.ne.s32.totalorder %s40, %s41
      %p52 = scmp.eq.s32.totalorder %s32, 0
      %p53 = por %p51, %p52
      %p54 = scmp.ne.s32.totalorder %s40, %s41
      %p55 = scmp.eq.s32.totalorder %s33, 1
      %p56 = por %p54, %p55
      %p58 = scmp.ne.s32.totalorder %s41, %s57
      %p59 = scmp.eq.s32.totalorder %s33, 0
      %p60 = por %p58, %p59
      %s62 = sadd.s32 %s61, 1
      %p65 = scmp.eq.s32.totalorder %s27, 1
      %p66 = scmp.ne.s32.totalorder %s61, %s63
      %p67 = scmp.eq.s32.totalorder %s27, 0
      %p68 = por %p66, %p67
      %p69 = scmp.ne.s32.totalorder %s61, %s63
      %p70 = scmp.eq.s32.totalorder %s32, 1
      %p71 = por %p69, %p70
      %p72 = scmp.ne.s32.totalorder %s63, %s64
      %p73 = scmp.eq.s32.totalorder %s32, 0
      %p74 = por %p72, %p73
      %p75 = scmp.ne.s32.totalorder %s63, %s64
      %p76 = scmp.eq.s32.totalorder %s33, 1
      %p77 = por %p75, %p76
      %p79 = scmp.ne.s32.totalorder %s64, %s78
      %p80 = scmp.eq.s32.totalorder %s33, 0
      %p81 = por %p79, %p80
      %s83 = sadd.s32 %s82, 1
      %p86 = scmp.eq.s32.totalorder %s27, 1
      %p87 = scmp.ne.s32.totalorder %s82, %s84
      %p88 = scmp.eq.s32.totalorder %s27, 0
      %p89 = por %p87, %p88
      %p90 = scmp.ne.s32.totalorder %s82, %s84
      %p91 = scmp.eq.s32.totalorder %s32, 1
      %p92 = por %p90, %p91
      %p93 = scmp.ne.s32.totalorder %s84, %s85
      %p94 = scmp.eq.s32.totalorder %s32, 0
      %p95 = por %p93, %p94
      %p96 = scmp.ne.s32.totalorder %s84, %s85
      %p97 = scmp.eq.s32.totalorder %s33, 1
      %p98 = por %p96, %p97
      %p100 = scmp.ne.s32.totalorder %s85, %s99
      %p101 = scmp.eq.s32.totalorder %s33, 0
      %p102 = por %p100, %p101
      %s104 = sadd.s32 %s103, 1
      %p107 = scmp.eq.s32.totalorder %s27, 1
      %p108 = scmp.ne.s32.totalorder %s103, %s105
      %p109 = scmp.eq.s32.totalorder %s27, 0
      %p110 = por %p108, %p109
      %p111 = scmp.ne.s32.totalorder %s103, %s105
      %p112 = scmp.eq.s32.totalorder %s32, 1
      %p113 = por %p111, %p112
      %p114 = scmp.ne.s32.totalorder %s105, %s106
      %p115 = scmp.eq.s32.totalorder %s32, 0
      %p116 = por %p114, %p115
      %p117 = scmp.ne.s32.totalorder %s105, %s106
      %p118 = scmp.eq.s32.totalorder %s33, 1
      %p119 = por %p117, %p118
      %p121 = scmp.ne.s32.totalorder %s106, %s120
      %p122 = scmp.eq.s32.totalorder %s33, 0
      %p123 = por %p121, %p122
      %s125 = sadd.s32 %s124, 1
      %p128 = scmp.eq.s32.totalorder %s27, 1
      %p129 = scmp.ne.s32.totalorder %s124, %s126
      %p130 = scmp.eq.s32.totalorder %s27, 0
      %p131 = por %p129, %p130
      %p132 = scmp.ne.s32.totalorder %s124, %s126
      %p133 = scmp.eq.s32.totalorder %s32, 1
      %p134 = por %p132, %p133
      %p135 = scmp.ne.s32.totalorder %s126, %s127
      %p136 = scmp.eq.s32.totalorder %s32, 0
      %p137 = por %p135, %p136
      %p138 = scmp.ne.s32.totalorder %s126, %s127
      %p139 = scmp.eq.s32.totalorder %s33, 1
      %p140 = por %p138, %p139
      %p142 = scmp.ne.s32.totalorder %s127, %s141
      %p143 = scmp.eq.s32.totalorder %s33, 0
      %p144 = por %p142, %p143
      %s146 = sadd.s32 %s145, 1
      %p149 = scmp.eq.s32.totalorder %s27, 1
      %p150 = scmp.ne.s32.totalorder %s145, %s147
      %p151 = scmp.eq.s32.totalorder %s27, 0
      %p152 = por %p150, %p151
      %p153 = scmp.ne.s32.totalorder %s145, %s147
      %p154 = scmp.eq.s32.totalorder %s32, 1
      %p155 = por %p153, %p154
      %p156 = scmp.ne.s32.totalorder %s147, %s148
      %p157 = scmp.eq.s32.totalorder %s32, 0
      %p158 = por %p156, %p157
      %p159 = scmp.ne.s32.totalorder %s147, %s148
      %p160 = scmp.eq.s32.totalorder %s33, 1
      %p161 = por %p159, %p160
      %p163 = scmp.ne.s32.totalorder %s148, %s162
      %p164 = scmp.eq.s32.totalorder %s33, 0
      %p165 = por %p163, %p164
      %s167 = sadd.s32 %s166, 1
      %p170 = scmp.eq.s32.totalorder %s27, 1
      %p171 = scmp.ne.s32.totalorder %s166, %s168
      %p172 = scmp.eq.s32.totalorder %s27, 0
      %p173 = por %p171, %p172
      %p174 = scmp.ne.s32.totalorder %s166, %s168
      %p175 = scmp.eq.s32.totalorder %s32, 1
      %p176 = por %p174, %p175
      %p177 = scmp.ne.s32.totalorder %s168, %s169
      %p178 = scmp.eq.s32.totalorder %s32, 0
      %p179 = por %p177, %p178
      %p180 = scmp.ne.s32.totalorder %s168, %s169
      %p181 = scmp.eq.s32.totalorder %s33, 1
      %p182 = por %p180, %p181
      %p184 = scmp.ne.s32.totalorder %s169, %s183
      %p185 = scmp.eq.s32.totalorder %s33, 0
      %p186 = por %p184, %p185
      %s188 = sadd.s32 %s187, 1
      %p191 = scmp.eq.s32.totalorder %s27, 1
      %p192 = scmp.ne.s32.totalorder %s187, %s189
      %p193 = scmp.eq.s32.totalorder %s27, 0
      %p194 = por %p192, %p193
      %p195 = scmp.ne.s32.totalorder %s187, %s189
      %p196 = scmp.eq.s32.totalorder %s32, 1
      %p197 = por %p195, %p196
      %p198 = scmp.ne.s32.totalorder %s189, %s190
      %p199 = scmp.eq.s32.totalorder %s32, 0
      %p200 = por %p198, %p199
      %p201 = scmp.ne.s32.totalorder %s189, %s190
      %p202 = scmp.eq.s32.totalorder %s33, 1
      %p203 = por %p201, %p202
      %p205 = scmp.ne.s32.totalorder %s190, %s204
      %p206 = scmp.eq.s32.totalorder %s33, 0
      %p207 = por %p205, %p206
      %s209 = sadd.s32 %s208, 1
      %p212 = scmp.eq.s32.totalorder %s27, 1
      %p213 = scmp.ne.s32.totalorder %s208, %s210
      %p214 = scmp.eq.s32.totalorder %s27, 0
      %p215 = por %p213, %p214
      %p216 = scmp.ne.s32.totalorder %s208, %s210
      %p217 = scmp.eq.s32.totalorder %s32, 1
      %p218 = por %p216, %p217
      %p219 = scmp.ne.s32.totalorder %s210, %s211
      %p220 = scmp.eq.s32.totalorder %s32, 0
      %p221 = por %p219, %p220
      %p222 = scmp.ne.s32.totalorder %s210, %s211
      %p223 = scmp.eq.s32.totalorder %s33, 1
      %p224 = por %p222, %p223
      %p226 = scmp.ne.s32.totalorder %s211, %s225
      %p227 = scmp.eq.s32.totalorder %s33, 0
      %p228 = por %p226, %p227
      %s230 = sadd.s32 %s229, 1
      %p233 = scmp.eq.s32.totalorder %s27, 1
      %p234 = scmp.ne.s32.totalorder %s229, %s231
      %p235 = scmp.eq.s32.totalorder %s27, 0
      %p236 = por %p234, %p235
      %p237 = scmp.ne.s32.totalorder %s229, %s231
      %p238 = scmp.eq.s32.totalorder %s32, 1
      %p239 = por %p237, %p238
      %p240 = scmp.ne.s32.totalorder %s231, %s232
      %p241 = scmp.eq.s32.totalorder %s32, 0
      %p242 = por %p240, %p241
      %p243 = scmp.ne.s32.totalorder %s231, %s232
      %p244 = scmp.eq.s32.totalorder %s33, 1
      %p245 = por %p243, %p244
      %p247 = scmp.ne.s32.totalorder %s232, %s246
      %p248 = scmp.eq.s32.totalorder %s33, 0
      %p249 = por %p247, %p248
      %s251 = sadd.s32 %s250, 1
      %p254 = scmp.eq.s32.totalorder %s27, 1
      %p255 = scmp.ne.s32.totalorder %s250, %s252
      %p256 = scmp.eq.s32.totalorder %s27, 0
      %p257 = por %p255, %p256
      %p258 = scmp.ne.s32.totalorder %s250, %s252
      %p259 = scmp.eq.s32.totalorder %s32, 1
      %p260 = por %p258, %p259
      %p261 = scmp.ne.s32.totalorder %s252, %s253
      %p262 = scmp.eq.s32.totalorder %s32, 0
      %p263 = por %p261, %p262
      %p264 = scmp.ne.s32.totalorder %s252, %s253
      %p265 = scmp.eq.s32.totalorder %s33, 1
      %p266 = por %p264, %p265
      %p268 = scmp.ne.s32.totalorder %s253, %s267
      %p269 = scmp.eq.s32.totalorder %s33, 0
      %p270 = por %p268, %p269
      %s272 = sadd.s32 %s271, 1
      %p275 = scmp.eq.s32.totalorder %s27, 1
      %p276 = scmp.ne.s32.totalorder %s271, %s273
      %p277 = scmp.eq.s32.totalorder %s27, 0
      %p278 = por %p276, %p277
      %p279 = scmp.ne.s32.totalorder %s271, %s273
      %p280 = scmp.eq.s32.totalorder %s32, 1
      %p281 = por %p279, %p280
      %p282 = scmp.ne.s32.totalorder %s273, %s274
      %p283 = scmp.eq.s32.totalorder %s32, 0
      %p284 = por %p282, %p283
      %p285 = scmp.ne.s32.totalorder %s273, %s274
      %p286 = scmp.eq.s32.totalorder %s33, 1
      %p287 = por %p285, %p286
      %p289 = scmp.ne.s32.totalorder %s274, %s288
      %p290 = scmp.eq.s32.totalorder %s33, 0
      %p291 = por %p289, %p290
      %s293 = sadd.s32 %s292, 1
      %p296 = scmp.eq.s32.totalorder %s27, 1
      %p297 = scmp.ne.s32.totalorder %s292, %s294
      %p298 = scmp.eq.s32.totalorder %s27, 0
      %p299 = por %p297, %p298
      %p300 = scmp.ne.s32.totalorder %s292, %s294
      %p301 = scmp.eq.s32.totalorder %s32, 1
      %p302 = por %p300, %p301
      %p303 = scmp.ne.s32.totalorder %s294, %s295
      %p304 = scmp.eq.s32.totalorder %s32, 0
      %p305 = por %p303, %p304
      %p306 = scmp.ne.s32.totalorder %s294, %s295
      %p307 = scmp.eq.s32.totalorder %s33, 1
      %p308 = por %p306, %p307
      %p310 = scmp.ne.s32.totalorder %s295, %s309
      %p311 = scmp.eq.s32.totalorder %s33, 0
      %p312 = por %p310, %p311
      %s314 = sadd.s32 %s313, 1
      %p317 = scmp.eq.s32.totalorder %s27, 1
      %p318 = scmp.ne.s32.totalorder %s313, %s315
      %p319 = scmp.eq.s32.totalorder %s27, 0
      %p320 = por %p318, %p319
      %p321 = scmp.ne.s32.totalorder %s313, %s315
      %p322 = scmp.eq.s32.totalorder %s32, 1
      %p323 = por %p321, %p322
      %p324 = scmp.ne.s32.totalorder %s315, %s316
      %p325 = scmp.eq.s32.totalorder %s32, 0
      %p326 = por %p324, %p325
      %p327 = scmp.ne.s32.totalorder %s315, %s316
      %p328 = scmp.eq.s32.totalorder %s33, 1
      %p329 = por %p327, %p328
      %p331 = scmp.ne.s32.totalorder %s316, %s330
      %p332 = scmp.eq.s32.totalorder %s33, 0
      %p333 = por %p331, %p332
      %s335 = sadd.s32 %s334, 1
      %p338 = scmp.eq.s32.totalorder %s27, 1
      %p339 = scmp.ne.s32.totalorder %s334, %s336
      %p340 = scmp.eq.s32.totalorder %s27, 0
      %p341 = por %p339, %p340
      %p342 = scmp.ne.s32.totalorder %s334, %s336
      %p343 = scmp.eq.s32.totalorder %s32, 1
      %p344 = por %p342, %p343
      %p345 = scmp.ne.s32.totalorder %s336, %s337
      %p346 = scmp.eq.s32.totalorder %s32, 0
      %p347 = por %p345, %p346
      %p348 = scmp.ne.s32.totalorder %s336, %s337
      %p349 = scmp.eq.s32.totalorder %s33, 1
      %p350 = por %p348, %p349
      %p352 = scmp.ne.s32.totalorder %s337, %s351
      %p353 = scmp.eq.s32.totalorder %s33, 0
      %p354 = por %p352, %p353
      %s356 = sadd.s32 %s355, 1
      %p359 = scmp.eq.s32.totalorder %s27, 1
      %p360 = scmp.ne.s32.totalorder %s355, %s357
      %p361 = scmp.eq.s32.totalorder %s27, 0
      %p362 = por %p360, %p361
      %p363 = scmp.ne.s32.totalorder %s355, %s357
      %p364 = scmp.eq.s32.totalorder %s32, 1
      %p365 = por %p363, %p364
      %p366 = scmp.ne.s32.totalorder %s357, %s358
      %p367 = scmp.eq.s32.totalorder %s32, 0
      %p368 = por %p366, %p367
      %p369 = scmp.ne.s32.totalorder %s357, %s358
      %p370 = scmp.eq.s32.totalorder %s33, 1
      %p371 = por %p369, %p370
      %p373 = scmp.ne.s32.totalorder %s358, %s372
      %p374 = scmp.eq.s32.totalorder %s33, 0
      %p375 = por %p373, %p374
      %s377 = sadd.s32 %s376, 1
      %p380 = scmp.eq.s32.totalorder %s27, 1
      %p381 = scmp.ne.s32.totalorder %s376, %s378
      %p382 = scmp.eq.s32.totalorder %s27, 0
      %p383 = por %p381, %p382
      %p384 = scmp.ne.s32.totalorder %s376, %s378
      %p385 = scmp.eq.s32.totalorder %s32, 1
      %p386 = por %p384, %p385
      %p387 = scmp.ne.s32.totalorder %s378, %s379
      %p388 = scmp.eq.s32.totalorder %s32, 0
      %p389 = por %p387, %p388
      %p390 = scmp.ne.s32.totalorder %s378, %s379
      %p391 = scmp.eq.s32.totalorder %s33, 1
      %p392 = por %p390, %p391
      %p394 = scmp.ne.s32.totalorder %s379, %s393
      %p395 = scmp.eq.s32.totalorder %s33, 0
      %p396 = por %p394, %p395
      %s398 = sadd.s32 %s397, 1
      %p401 = scmp.eq.s32.totalorder %s27, 1
      %p402 = scmp.ne.s32.totalorder %s397, %s399
      %p403 = scmp.eq.s32.totalorder %s27, 0
      %p404 = por %p402, %p403
      %p405 = scmp.ne.s32.totalorder %s397, %s399
      %p406 = scmp.eq.s32.totalorder %s32, 1
      %p407 = por %p405, %p406
      %p408 = scmp.ne.s32.totalorder %s399, %s400
      %p409 = scmp.eq.s32.totalorder %s32, 0
      %p410 = por %p408, %p409
      %p411 = scmp.ne.s32.totalorder %s399, %s400
      %p412 = scmp.eq.s32.totalorder %s33, 1
      %p413 = por %p411, %p412
      %p415 = scmp.ne.s32.totalorder %s400, %s414
      %p416 = scmp.eq.s32.totalorder %s33, 0
      %p417 = por %p415, %p416
      %s419 = sadd.s32 %s418, 1
      %p422 = scmp.eq.s32.totalorder %s27, 1
      %p423 = scmp.ne.s32.totalorder %s418, %s420
      %p424 = scmp.eq.s32.totalorder %s27, 0
      %p425 = por %p423, %p424
      %p426 = scmp.ne.s32.totalorder %s418, %s420
      %p427 = scmp.eq.s32.totalorder %s32, 1
      %p428 = por %p426, %p427
      %p429 = scmp.ne.s32.totalorder %s420, %s421
      %p430 = scmp.eq.s32.totalorder %s32, 0
      %p431 = por %p429, %p430
      %p432 = scmp.ne.s32.totalorder %s420, %s421
      %p433 = scmp.eq.s32.totalorder %s33, 1
      %p434 = por %p432, %p433
      %p436 = scmp.ne.s32.totalorder %s421, %s435
      %p437 = scmp.eq.s32.totalorder %s33, 0
      %p438 = por %p436, %p437
      %s439 = ssub.s32 %s27, %s34
      %p440 = scmp.eq.s32.totalorder %s439, 0
      %s442 = sadd.s32 %s441, 1
      %s443 = scalar_select %p440, %s441, %s442
      %p446 = pneg %p440
      %p447 = scmp.eq.s32.totalorder %s27, 1
      %p448 = por %p446, %p447
      %p449 = scmp.ne.s32.totalorder %s441, %s444
      %p450 = scmp.eq.s32.totalorder %s27, 0
      %p451 = por %p449, %p450
      %p452 = scmp.ne.s32.totalorder %s441, %s444
      %p453 = scmp.eq.s32.totalorder %s32, 1
      %p454 = por %p452, %p453
      %p455 = scmp.ne.s32.totalorder %s444, %s445
      %p456 = scmp.eq.s32.totalorder %s32, 0
      %p457 = por %p455, %p456
      %p458 = scmp.ne.s32.totalorder %s444, %s445
      %p459 = scmp.eq.s32.totalorder %s33, 1
      %p460 = por %p458, %p459
      %p462 = scmp.ne.s32.totalorder %s445, %s461
      %p463 = scmp.eq.s32.totalorder %s33, 0
      %p464 = por %p462, %p463
      %p465 = scmp.le.s32.totalorder 1, %s27
      %p466 = scmp.lt.s32.totalorder %s27, 3
      %p467 = pnand %p465, %p466
      %p468 = pneg %p467
      // Predicated region
      $region9: #{autoencoder_forward.1} parent=5 // pred_check
        _
      $region10: #{autoencoder_forward.1} parent=5 // pred_check_branch
        %470 = sbr.rel (%p467) target = $region12
      $region11: #{autoencoder_forward.1} parent=5 // pred_region
        %s471 = ssub.s32 %s27, 1
        // Predicated region
        $region13: #{autoencoder_forward.1} parent=11 // pred_check
          %p472 = pneg %p74
        $region14: #{autoencoder_forward.1} parent=11 // pred_check_branch
          %474 = sbr.rel (%p472) target = $region16
        $region15: #{autoencoder_forward.1} parent=11 // pred_region
          _
        $region16: #{autoencoder_forward.1} parent=11 // pred_fallthru
          _
        // Predicated region
        $region17: #{autoencoder_forward.1} parent=11 // pred_check
          %p475 = pneg %p95
        $region18: #{autoencoder_forward.1} parent=11 // pred_check_branch
          %477 = sbr.rel (%p475) target = $region20
        $region19: #{autoencoder_forward.1} parent=11 // pred_region
          _
        $region20: #{autoencoder_forward.1} parent=11 // pred_fallthru
          _
        // Predicated region
        $region21: #{autoencoder_forward.1} parent=11 // pred_check
          %p478 = pneg %p116
        $region22: #{autoencoder_forward.1} parent=11 // pred_check_branch
          %480 = sbr.rel (%p478) target = $region24
        $region23: #{autoencoder_forward.1} parent=11 // pred_region
          _
        $region24: #{autoencoder_forward.1} parent=11 // pred_fallthru
          _
        // Predicated region
        $region25: #{autoencoder_forward.1} parent=11 // pred_check
          %p481 = pneg %p137
        $region26: #{autoencoder_forward.1} parent=11 // pred_check_branch
          %483 = sbr.rel (%p481) target = $region28
        $region27: #{autoencoder_forward.1} parent=11 // pred_region
          _
        $region28: #{autoencoder_forward.1} parent=11 // pred_fallthru
          _
        // Predicated region
        $region29: #{autoencoder_forward.1} parent=11 // pred_check
          %p484 = pneg %p158
        $region30: #{autoencoder_forward.1} parent=11 // pred_check_branch
          %486 = sbr.rel (%p484) target = $region32
        $region31: #{autoencoder_forward.1} parent=11 // pred_region
          _
        $region32: #{autoencoder_forward.1} parent=11 // pred_fallthru
          _
        // Predicated region
        $region33: #{autoencoder_forward.1} parent=11 // pred_check
          %p487 = pneg %p179
        $region34: #{autoencoder_forward.1} parent=11 // pred_check_branch
          %489 = sbr.rel (%p487) target = $region36
        $region35: #{autoencoder_forward.1} parent=11 // pred_region
          _
        $region36: #{autoencoder_forward.1} parent=11 // pred_fallthru
          _
        // Predicated region
        $region37: #{autoencoder_forward.1} parent=11 // pred_check
          %p490 = pneg %p200
        $region38: #{autoencoder_forward.1} parent=11 // pred_check_branch
          %492 = sbr.rel (%p490) target = $region40
        $region39: #{autoencoder_forward.1} parent=11 // pred_region
          %s494 = ssub.s32 1024, 1024
          %495 = vsyncadd [#allocation3], %s494
          %s496 = sshll.u32 [#allocation2], 4
          %s497 = int_to_ptr.vmem [resolvable:$true] %s496
          %502 = dma.hbm_to_vmem [thread:$0]  %s7, 1024, %s497, [#allocation3], 512, 512, 32
        $region40: #{autoencoder_forward.1} parent=11 // pred_fallthru
          _
        // Predicated region
        $region41: #{autoencoder_forward.1} parent=11 // pred_check
          %p503 = pneg %p221
        $region42: #{autoencoder_forward.1} parent=11 // pred_check_branch
          %505 = sbr.rel (%p503) target = $region44
        $region43: #{autoencoder_forward.1} parent=11 // pred_region
          _
        $region44: #{autoencoder_forward.1} parent=11 // pred_fallthru
          _
        // Predicated region
        $region45: #{autoencoder_forward.1} parent=11 // pred_check
          %p506 = pneg %p242
        $region46: #{autoencoder_forward.1} parent=11 // pred_check_branch
          %508 = sbr.rel (%p506) target = $region48
        $region47: #{autoencoder_forward.1} parent=11 // pred_region
          _
        $region48: #{autoencoder_forward.1} parent=11 // pred_fallthru
          _
        // Predicated region
        $region49: #{autoencoder_forward.1} parent=11 // pred_check
          %p509 = pneg %p263
        $region50: #{autoencoder_forward.1} parent=11 // pred_check_branch
          %511 = sbr.rel (%p509) target = $region52
        $region51: #{autoencoder_forward.1} parent=11 // pred_region
          _
        $region52: #{autoencoder_forward.1} parent=11 // pred_fallthru
          _
        // Predicated region
        $region53: #{autoencoder_forward.1} parent=11 // pred_check
          %p512 = pneg %p284
        $region54: #{autoencoder_forward.1} parent=11 // pred_check_branch
          %514 = sbr.rel (%p512) target = $region56
        $region55: #{autoencoder_forward.1} parent=11 // pred_region
          _
        $region56: #{autoencoder_forward.1} parent=11 // pred_fallthru
          _
        // Predicated region
        $region57: #{autoencoder_forward.1} parent=11 // pred_check
          %p515 = pneg %p305
        $region58: #{autoencoder_forward.1} parent=11 // pred_check_branch
          %517 = sbr.rel (%p515) target = $region60
        $region59: #{autoencoder_forward.1} parent=11 // pred_region
          _
        $region60: #{autoencoder_forward.1} parent=11 // pred_fallthru
          _
        // Predicated region
        $region61: #{autoencoder_forward.1} parent=11 // pred_check
          %p518 = pneg %p326
        $region62: #{autoencoder_forward.1} parent=11 // pred_check_branch
          %520 = sbr.rel (%p518) target = $region64
        $region63: #{autoencoder_forward.1} parent=11 // pred_region
          _
        $region64: #{autoencoder_forward.1} parent=11 // pred_fallthru
          _
        // Predicated region
        $region65: #{autoencoder_forward.1} parent=11 // pred_check
          %p521 = pneg %p347
        $region66: #{autoencoder_forward.1} parent=11 // pred_check_branch
          %523 = sbr.rel (%p521) target = $region68
        $region67: #{autoencoder_forward.1} parent=11 // pred_region
          %s525 = ssub.s32 2048, 2048
          %526 = vsyncadd [#allocation5], %s525
          %s527 = sshll.u32 [#allocation4], 4
          %s528 = int_to_ptr.vmem [resolvable:$true] %s527
          %533 = dma.hbm_to_vmem [thread:$0]  %s14, 2048, %s528, [#allocation5], 128, 128, 8
        $region68: #{autoencoder_forward.1} parent=11 // pred_fallthru
          _
        // Predicated region
        $region69: #{autoencoder_forward.1} parent=11 // pred_check
          %p534 = pneg %p368
        $region70: #{autoencoder_forward.1} parent=11 // pred_check_branch
          %536 = sbr.rel (%p534) target = $region72
        $region71: #{autoencoder_forward.1} parent=11 // pred_region
          _
        $region72: #{autoencoder_forward.1} parent=11 // pred_fallthru
          _
        // Predicated region
        $region73: #{autoencoder_forward.1} parent=11 // pred_check
          %p537 = pneg %p389
        $region74: #{autoencoder_forward.1} parent=11 // pred_check_branch
          %539 = sbr.rel (%p537) target = $region76
        $region75: #{autoencoder_forward.1} parent=11 // pred_region
          _
        $region76: #{autoencoder_forward.1} parent=11 // pred_fallthru
          _
        // Predicated region
        $region77: #{autoencoder_forward.1} parent=11 // pred_check
          %p540 = pneg %p410
        $region78: #{autoencoder_forward.1} parent=11 // pred_check_branch
          %542 = sbr.rel (%p540) target = $region80
        $region79: #{autoencoder_forward.1} parent=11 // pred_region
          _
        $region80: #{autoencoder_forward.1} parent=11 // pred_fallthru
          _
        // Predicated region
        $region81: #{autoencoder_forward.1} parent=11 // pred_check
          %p543 = pneg %p431
        $region82: #{autoencoder_forward.1} parent=11 // pred_check_branch
          %545 = sbr.rel (%p543) target = $region84
        $region83: #{autoencoder_forward.1} parent=11 // pred_region
          _
        $region84: #{autoencoder_forward.1} parent=11 // pred_fallthru
          _
      $region12: #{autoencoder_forward.1} parent=5 // pred_fallthru
        _
      %p546 = scmp.lt.s32.totalorder %s27, 2
      // Predicated region
      $region85: #{autoencoder_forward.1} parent=5 // pred_check
        %p547 = pneg %p546
      $region86: #{autoencoder_forward.1} parent=5 // pred_check_branch
        %549 = sbr.rel (%p547) target = $region88
      $region87: #{autoencoder_forward.1} parent=5 // pred_region
        // Predicated region
        $region89: #{autoencoder_forward.1} parent=87 // pred_check
          %p550 = pneg %p47
        $region90: #{autoencoder_forward.1} parent=87 // pred_check_branch
          %552 = sbr.rel (%p550) target = $region92
        $region91: #{autoencoder_forward.1} parent=87 // pred_region
          %s553 = smul.u32 16, %s27
          %p554 = scmp.lt.s32.totalorder %s553, 31
          %s555 = scalar_select %p554, %s553, 31
          %s556 = smul.addr %s555, 2
          %s557 = scalar_lea.vmem %s0, %s556
          %s558 = smul.u32 16, %s27
        $region92: #{autoencoder_forward.1} parent=87 // pred_fallthru
          _
      $region88: #{autoencoder_forward.1} parent=5 // pred_fallthru
        _
      %p559 = scmp.le.s32.totalorder 1, %s27
      %p560 = scmp.lt.s32.totalorder %s27, 3
      %p561 = pnand %p559, %p560
      %p562 = pneg %p561
      // Predicated region
      $region93: #{autoencoder_forward.1} parent=5 // pred_check
        _
      $region94: #{autoencoder_forward.1} parent=5 // pred_check_branch
        %564 = sbr.rel (%p561) target = $region96
      $region95: #{autoencoder_forward.1} parent=5 // pred_region
        %s565 = ssub.s32 %s27, 1
        // Predicated region
        $region97: #{autoencoder_forward.1} parent=95 // pred_check
          %p566 = pneg %p200
        $region98: #{autoencoder_forward.1} parent=95 // pred_check_branch
          %568 = sbr.rel (%p566) target = $region100
        $region99: #{autoencoder_forward.1} parent=95 // pred_region
          %569 = dma.done [#allocation3], 1024
        $region100: #{autoencoder_forward.1} parent=95 // pred_fallthru
          _
        // Predicated region
        $region101: #{autoencoder_forward.1} parent=95 // pred_check
          %p570 = pneg %p347
        $region102: #{autoencoder_forward.1} parent=95 // pred_check_branch
          %572 = sbr.rel (%p570) target = $region104
        $region103: #{autoencoder_forward.1} parent=95 // pred_region
          %573 = dma.done [#allocation5], 2048
        $region104: #{autoencoder_forward.1} parent=95 // pred_fallthru
          _
        %s574 = smul.u32 16, %s32
        %p575 = scmp.lt.s32.totalorder %s574, 31
        %s576 = scalar_select %p575, %s574, 31
        %s577 = smul.addr %s576, 2
        %s578 = scalar_lea.vmem %s0, %s577
        %p579 = pneg %p53
        %p580 = pneg %p50
        %p581 = pneg %p74
        %p582 = pneg %p71
        %p583 = pneg %p95
        %p584 = pneg %p92
        %p585 = pneg %p116
        %p586 = pneg %p113
        %p587 = pneg %p137
        %p588 = pneg %p134
        %p589 = pneg %p158
        %p590 = pneg %p155
        %p591 = pneg %p179
        %p592 = pneg %p176
        %p593 = pneg %p200
        %p594 = pneg %p197
        %p595 = pneg %p221
        %p596 = pneg %p218
        %p597 = pneg %p242
        %p598 = pneg %p239
        %p599 = pneg %p263
        %p600 = pneg %p260
        %p601 = pneg %p284
        %p602 = pneg %p281
        %p603 = pneg %p305
        %p604 = pneg %p302
        %p605 = pneg %p326
        %p606 = pneg %p323
        %p607 = pneg %p347
        %p608 = pneg %p344
        %p609 = pneg %p368
        %p610 = pneg %p365
        %p611 = pneg %p389
        %p612 = pneg %p386
        %p613 = pneg %p410
        %p614 = pneg %p407
        %p615 = pneg %p431
        %p616 = pneg %p428
        %p617 = pneg %p457
        %p618 = pneg %p454
        %s619 = smul.u32 16, %s32
        %p620 = scmp.lt.s32.totalorder %s619, 31
        %s621 = scalar_select %p620, %s619, 31
        %s622 = smul.addr %s621, 4
        %s623 = scalar_lea.vmem %s19, %s622
        %s624 = smul.u32 16, %s32
        %p625 = scmp.lt.s32.totalorder %s624, 31
        %s626 = scalar_select %p625, %s624, 31
        %s627 = smul.addr %s626, 2
        %s628 = scalar_lea.vmem %s0, %s627
        %s629 = smul.u32 16, %s32
        %s630 = smul.u32 16, %s32
        %p631 = scmp.lt.s32.totalorder %s630, 31
        %s632 = scalar_select %p631, %s630, 31
        %s633 = smul.addr %s632, 4
        %s634 = scalar_lea.vmem %s19, %s633
        %s635 = smul.u32 16, %s32
        %v637 = vld [vmem:[%s16] sm:$0xff]
        %v638 = vld [vmem:[%s16 + $0x8] sm:$0xff]
        %v639 = vld [vmem:[%s17] sm:$0xf]
        %v640 = vld [vmem:[%s18] sm:$0x3]
        %v643 = vlaneseq
        %v644 = vshrl.u32 %v643, 7
        %v645 = vsub.s32 0, %v644
        %v646 = vrot.slane %v637, %v645
        %v647 = vlaneseq
        %v648 = vshrl.u32 %v647, 7
        %v649 = vsub.s32 1, %v648
        %v650 = vrot.slane %v637, %v649
        %v651 = vlaneseq
        %v652 = vshrl.u32 %v651, 7
        %v653 = vsub.s32 2, %v652
        %v654 = vrot.slane %v637, %v653
        %v655 = vlaneseq
        %v656 = vshrl.u32 %v655, 7
        %v657 = vsub.s32 3, %v656
        %v658 = vrot.slane %v637, %v657
        %v659 = vlaneseq
        %v660 = vshrl.u32 %v659, 7
        %v661 = vsub.s32 4, %v660
        %v662 = vrot.slane %v637, %v661
        %v663 = vlaneseq
        %v664 = vshrl.u32 %v663, 7
        %v665 = vsub.s32 5, %v664
        %v666 = vrot.slane %v637, %v665
        %v667 = vlaneseq
        %v668 = vshrl.u32 %v667, 7
        %v669 = vsub.s32 6, %v668
        %v670 = vrot.slane %v637, %v669
        %v671 = vlaneseq
        %v672 = vshrl.u32 %v671, 7
        %v673 = vsub.s32 7, %v672
        %v674 = vrot.slane %v637, %v673
        %v675 = vlaneseq
        %v676 = vshrl.u32 %v675, 7
        %v677 = vsub.s32 0, %v676
        %v678 = vrot.slane %v638, %v677
        %v679 = vlaneseq
        %v680 = vshrl.u32 %v679, 7
        %v681 = vsub.s32 1, %v680
        %v682 = vrot.slane %v638, %v681
        %v683 = vlaneseq
        %v684 = vshrl.u32 %v683, 7
        %v685 = vsub.s32 2, %v684
        %v686 = vrot.slane %v638, %v685
        %v687 = vlaneseq
        %v688 = vshrl.u32 %v687, 7
        %v689 = vsub.s32 3, %v688
        %v690 = vrot.slane %v638, %v689
        %v691 = vlaneseq
        %v692 = vshrl.u32 %v691, 7
        %v693 = vsub.s32 4, %v692
        %v694 = vrot.slane %v638, %v693
        %v695 = vlaneseq
        %v696 = vshrl.u32 %v695, 7
        %v697 = vsub.s32 5, %v696
        %v698 = vrot.slane %v638, %v697
        %v699 = vlaneseq
        %v700 = vshrl.u32 %v699, 7
        %v701 = vsub.s32 6, %v700
        %v702 = vrot.slane %v638, %v701
        %v703 = vlaneseq
        %v704 = vshrl.u32 %v703, 7
        %v705 = vsub.s32 7, %v704
        %v706 = vrot.slane %v638, %v705
        %v723 = vpack.c.bf16 %v646, %v646
        %v724 = vpack.c.bf16 %v650, %v650
        %v725 = vpack.c.bf16 %v654, %v654
        %v726 = vpack.c.bf16 %v658, %v658
        %v727 = vpack.c.bf16 %v662, %v662
        %v728 = vpack.c.bf16 %v666, %v666
        %v729 = vpack.c.bf16 %v670, %v670
        %v730 = vpack.c.bf16 %v674, %v674
        %v731 = vpack.c.bf16 %v678, %v678
        %v732 = vpack.c.bf16 %v682, %v682
        %v733 = vpack.c.bf16 %v686, %v686
        %v734 = vpack.c.bf16 %v690, %v690
        %v735 = vpack.c.bf16 %v694, %v694
        %v736 = vpack.c.bf16 %v698, %v698
        %v737 = vpack.c.bf16 %v702, %v702
        %v738 = vpack.c.bf16 %v706, %v706
        %v740 = vlaneseq
        %v741 = vshrl.u32 %v740, 7
        %v742 = vsub.s32 0, %v741
        %v743 = vrot.slane %v639, %v742
        %v744 = vlaneseq
        %v745 = vshrl.u32 %v744, 7
        %v746 = vsub.s32 1, %v745
        %v747 = vrot.slane %v639, %v746
        %v748 = vlaneseq
        %v749 = vshrl.u32 %v748, 7
        %v750 = vsub.s32 2, %v749
        %v751 = vrot.slane %v639, %v750
        %v752 = vlaneseq
        %v753 = vshrl.u32 %v752, 7
        %v754 = vsub.s32 3, %v753
        %v755 = vrot.slane %v639, %v754
        %v760 = vpack.c.bf16 %v743, %v743
        %v761 = vpack.c.bf16 %v747, %v747
        %v762 = vpack.c.bf16 %v751, %v751
        %v763 = vpack.c.bf16 %v755, %v755
        %v765 = vlaneseq
        %v766 = vshrl.u32 %v765, 7
        %v767 = vsub.s32 0, %v766
        %v768 = vrot.slane %v640, %v767
        %v769 = vlaneseq
        %v770 = vshrl.u32 %v769, 7
        %v771 = vsub.s32 1, %v770
        %v772 = vrot.slane %v640, %v771
        %v775 = vpack.c.bf16 %v768, %v768
        %v776 = vpack.c.bf16 %v772, %v772
        %v777 = vld [vmem:[%s628] sm:$0xff]
        %v778 = vld [vmem:[%s628 + $0x8] sm:$0xff]
        %v779 = vld [vmem:[%s628 + $0x10] sm:$0xff]
        %v780 = vld [vmem:[%s628 + $0x18] sm:$0xff]
        %v781 = vld [vmem:[%s1] sm:$0x3]
        %v783 = vcombine.high %v780, %v780
        %v785 = vunpack.c.l.s4 1983009808
        %v786 = vunpack.c.0.s8 %v785
        %v787 = vlaneseq
        %v788 = vshrl.u32 %v787, 7
        %v789 = vsub.s32 %v786, %v788
        %v790 = vrot.slane %v780, %v789
        %v792 = vunpack.c.l.s4 1983009808
        %v793 = vunpack.c.0.s8 %v792
        %v794 = vlaneseq
        %v795 = vshrl.u32 %v794, 7
        %v796 = vsub.s32 %v793, %v795
        %v797 = vrot.slane %v783, %v796
        %v798 = vcombine.high %v797, %v797
        %799 = vrot.lane.b32.xlu0 %v798, 31
        %v800 = vpop.permute.xlu0 %799
        %v804 = vcombine.high %v777, %v777
        %v806 = vunpack.c.l.s4 1983009808
        %v807 = vunpack.c.0.s8 %v806
        %v808 = vlaneseq
        %v809 = vshrl.u32 %v808, 7
        %v810 = vsub.s32 %v807, %v809
        %v811 = vrot.slane %v777, %v810
        %v813 = vunpack.c.l.s4 1983009808
        %v814 = vunpack.c.0.s8 %v813
        %v815 = vlaneseq
        %v816 = vshrl.u32 %v815, 7
        %v817 = vsub.s32 %v814, %v816
        %v818 = vrot.slane %v804, %v817
        %v819 = vcombine.high %v811, %v811
        %v820 = vcombine.high %v818, %v818
        %v821 = vcombine.high %v778, %v778
        %v823 = vunpack.c.l.s4 1983009808
        %v824 = vunpack.c.0.s8 %v823
        %v825 = vlaneseq
        %v826 = vshrl.u32 %v825, 7
        %v827 = vsub.s32 %v824, %v826
        %v828 = vrot.slane %v778, %v827
        %v830 = vunpack.c.l.s4 1983009808
        %v831 = vunpack.c.0.s8 %v830
        %v832 = vlaneseq
        %v833 = vshrl.u32 %v832, 7
        %v834 = vsub.s32 %v831, %v833
        %v835 = vrot.slane %v821, %v834
        %v836 = vcombine.high %v828, %v828
        %v837 = vcombine.high %v835, %v835
        %v838 = vcombine.high %v779, %v779
        %v840 = vunpack.c.l.s4 1983009808
        %v841 = vunpack.c.0.s8 %v840
        %v842 = vlaneseq
        %v843 = vshrl.u32 %v842, 7
        %v844 = vsub.s32 %v841, %v843
        %v845 = vrot.slane %v779, %v844
        %v847 = vunpack.c.l.s4 1983009808
        %v848 = vunpack.c.0.s8 %v847
        %v849 = vlaneseq
        %v850 = vshrl.u32 %v849, 7
        %v851 = vsub.s32 %v848, %v850
        %v852 = vrot.slane %v838, %v851
        %v853 = vcombine.high %v845, %v845
        %v854 = vcombine.high %v852, %v852
        %v855 = vcombine.high %v790, %v790
        %856 = vrot.lane.b32.xlu0 %v811, 31
        %v857 = vpop.permute.xlu0 %856
        %858 = vrot.lane.b32.xlu0 %v819, 31
        %v859 = vpop.permute.xlu0 %858
        %860 = vrot.lane.b32.xlu0 %v818, 31
        %v861 = vpop.permute.xlu0 %860
        %862 = vrot.lane.b32.xlu0 %v820, 31
        %v863 = vpop.permute.xlu0 %862
        %864 = vrot.lane.b32.xlu0 %v828, 31
        %v865 = vpop.permute.xlu0 %864
        %866 = vrot.lane.b32.xlu0 %v836, 31
        %v867 = vpop.permute.xlu0 %866
        %868 = vrot.lane.b32.xlu0 %v835, 31
        %v869 = vpop.permute.xlu0 %868
        %870 = vrot.lane.b32.xlu0 %v837, 31
        %v871 = vpop.permute.xlu0 %870
        %872 = vrot.lane.b32.xlu0 %v845, 31
        %v873 = vpop.permute.xlu0 %872
        %874 = vrot.lane.b32.xlu0 %v853, 31
        %v875 = vpop.permute.xlu0 %874
        %876 = vrot.lane.b32.xlu0 %v852, 31
        %v877 = vpop.permute.xlu0 %876
        %878 = vrot.lane.b32.xlu0 %v854, 31
        %v879 = vpop.permute.xlu0 %878
        %880 = vrot.lane.b32.xlu0 %v790, 31
        %v881 = vpop.permute.xlu0 %880
        %882 = vrot.lane.b32.xlu0 %v855, 31
        %v883 = vpop.permute.xlu0 %882
        %884 = vrot.lane.b32.xlu0 %v797, 31
        %v885 = vpop.permute.xlu0 %884
        %vm886 = vcmask 252928
        %v887 = vsel %vm886, %v857, %v859
        %v888 = vsel %vm886, %v859, %v861
        %v889 = vsel %vm886, %v861, %v863
        %v890 = vsel %vm886, %v863, %v865
        %v891 = vsel %vm886, %v865, %v867
        %v892 = vsel %vm886, %v867, %v869
        %v893 = vsel %vm886, %v869, %v871
        %v894 = vsel %vm886, %v871, %v873
        %v895 = vsel %vm886, %v873, %v875
        %v896 = vsel %vm886, %v875, %v877
        %v897 = vsel %vm886, %v877, %v879
        %v898 = vsel %vm886, %v879, %v881
        %v899 = vsel %vm886, %v881, %v883
        %v900 = vsel %vm886, %v883, %v885
        %v901 = vsel %vm886, %v885, %v800
        %vm917 = vcmask 252928
        %v920 = vsel %vm917, %v800, %v857
        %922 = vrot.lane.b32.xlu0 %v798, 30
        %v923 = vpop.permute.xlu0 %922
        %924 = vrot.lane.b32.xlu0 %v811, 30
        %v925 = vpop.permute.xlu0 %924
        %926 = vrot.lane.b32.xlu0 %v819, 30
        %v927 = vpop.permute.xlu0 %926
        %928 = vrot.lane.b32.xlu0 %v818, 30
        %v929 = vpop.permute.xlu0 %928
        %930 = vrot.lane.b32.xlu0 %v820, 30
        %v931 = vpop.permute.xlu0 %930
        %932 = vrot.lane.b32.xlu0 %v828, 30
        %v933 = vpop.permute.xlu0 %932
        %934 = vrot.lane.b32.xlu0 %v836, 30
        %v935 = vpop.permute.xlu0 %934
        %936 = vrot.lane.b32.xlu0 %v835, 30
        %v937 = vpop.permute.xlu0 %936
        %938 = vrot.lane.b32.xlu0 %v837, 30
        %v939 = vpop.permute.xlu0 %938
        %940 = vrot.lane.b32.xlu0 %v845, 30
        %v941 = vpop.permute.xlu0 %940
        %942 = vrot.lane.b32.xlu0 %v853, 30
        %v943 = vpop.permute.xlu0 %942
        %944 = vrot.lane.b32.xlu0 %v852, 30
        %v945 = vpop.permute.xlu0 %944
        %946 = vrot.lane.b32.xlu0 %v854, 30
        %v947 = vpop.permute.xlu0 %946
        %948 = vrot.lane.b32.xlu0 %v790, 30
        %v949 = vpop.permute.xlu0 %948
        %950 = vrot.lane.b32.xlu0 %v855, 30
        %v951 = vpop.permute.xlu0 %950
        %952 = vrot.lane.b32.xlu0 %v797, 30
        %v953 = vpop.permute.xlu0 %952
        %vm954 = vcmask 244736
        %v955 = vsel %vm954, %v925, %v927
        %v956 = vsel %vm954, %v927, %v929
        %v957 = vsel %vm954, %v929, %v931
        %v958 = vsel %vm954, %v931, %v933
        %v959 = vsel %vm954, %v933, %v935
        %v960 = vsel %vm954, %v935, %v937
        %v961 = vsel %vm954, %v937, %v939
        %v962 = vsel %vm954, %v939, %v941
        %v963 = vsel %vm954, %v941, %v943
        %v964 = vsel %vm954, %v943, %v945
        %v965 = vsel %vm954, %v945, %v947
        %v966 = vsel %vm954, %v947, %v949
        %v967 = vsel %vm954, %v949, %v951
        %v968 = vsel %vm954, %v951, %v953
        %v969 = vsel %vm954, %v953, %v923
        %vm970 = vcmask 244736
        %v973 = vsel %vm970, %v923, %v925
        %974 = vrot.lane.b32.xlu0 %v798, 29
        %v975 = vpop.permute.xlu0 %974
        %976 = vrot.lane.b32.xlu0 %v811, 29
        %v977 = vpop.permute.xlu0 %976
        %978 = vrot.lane.b32.xlu0 %v819, 29
        %v979 = vpop.permute.xlu0 %978
        %980 = vrot.lane.b32.xlu0 %v818, 29
        %v981 = vpop.permute.xlu0 %980
        %982 = vrot.lane.b32.xlu0 %v820, 29
        %v983 = vpop.permute.xlu0 %982
        %984 = vrot.lane.b32.xlu0 %v828, 29
        %v985 = vpop.permute.xlu0 %984
        %986 = vrot.lane.b32.xlu0 %v836, 29
        %v987 = vpop.permute.xlu0 %986
        %988 = vrot.lane.b32.xlu0 %v835, 29
        %v989 = vpop.permute.xlu0 %988
        %990 = vrot.lane.b32.xlu0 %v837, 29
        %v991 = vpop.permute.xlu0 %990
        %992 = vrot.lane.b32.xlu0 %v845, 29
        %v993 = vpop.permute.xlu0 %992
        %994 = vrot.lane.b32.xlu0 %v853, 29
        %v995 = vpop.permute.xlu0 %994
        %996 = vrot.lane.b32.xlu0 %v852, 29
        %v997 = vpop.permute.xlu0 %996
        %998 = vrot.lane.b32.xlu0 %v854, 29
        %v999 = vpop.permute.xlu0 %998
        %1000 = vrot.lane.b32.xlu0 %v790, 29
        %v1001 = vpop.permute.xlu0 %1000
        %1002 = vrot.lane.b32.xlu0 %v855, 29
        %v1003 = vpop.permute.xlu0 %1002
        %1004 = vrot.lane.b32.xlu0 %v797, 29
        %v1005 = vpop.permute.xlu0 %1004
        %vm1006 = vcmask 236544
        %v1007 = vsel %vm1006, %v977, %v979
        %v1008 = vsel %vm1006, %v979, %v981
        %v1009 = vsel %vm1006, %v981, %v983
        %v1010 = vsel %vm1006, %v983, %v985
        %v1011 = vsel %vm1006, %v985, %v987
        %v1012 = vsel %vm1006, %v987, %v989
        %v1013 = vsel %vm1006, %v989, %v991
        %v1014 = vsel %vm1006, %v991, %v993
        %v1015 = vsel %vm1006, %v993, %v995
        %v1016 = vsel %vm1006, %v995, %v997
        %v1017 = vsel %vm1006, %v997, %v999
        %v1018 = vsel %vm1006, %v999, %v1001
        %v1019 = vsel %vm1006, %v1001, %v1003
        %v1020 = vsel %vm1006, %v1003, %v1005
        %v1021 = vsel %vm1006, %v1005, %v975
        %vm1022 = vcmask 236544
        %v1025 = vsel %vm1022, %v975, %v977
        %1026 = vrot.lane.b32.xlu0 %v798, 1
        %v1027 = vpop.permute.xlu0 %1026
        %1028 = vrot.lane.b32.xlu0 %v811, 1
        %v1029 = vpop.permute.xlu0 %1028
        %1030 = vrot.lane.b32.xlu0 %v819, 1
        %v1031 = vpop.permute.xlu0 %1030
        %1032 = vrot.lane.b32.xlu0 %v818, 1
        %v1033 = vpop.permute.xlu0 %1032
        %1034 = vrot.lane.b32.xlu0 %v820, 1
        %v1035 = vpop.permute.xlu0 %1034
        %1036 = vrot.lane.b32.xlu0 %v828, 1
        %v1037 = vpop.permute.xlu0 %1036
        %1038 = vrot.lane.b32.xlu0 %v836, 1
        %v1039 = vpop.permute.xlu0 %1038
        %1040 = vrot.lane.b32.xlu0 %v835, 1
        %v1041 = vpop.permute.xlu0 %1040
        %1042 = vrot.lane.b32.xlu0 %v837, 1
        %v1043 = vpop.permute.xlu0 %1042
        %1044 = vrot.lane.b32.xlu0 %v845, 1
        %v1045 = vpop.permute.xlu0 %1044
        %1046 = vrot.lane.b32.xlu0 %v853, 1
        %v1047 = vpop.permute.xlu0 %1046
        %1048 = vrot.lane.b32.xlu0 %v852, 1
        %v1049 = vpop.permute.xlu0 %1048
        %1050 = vrot.lane.b32.xlu0 %v854, 1
        %v1051 = vpop.permute.xlu0 %1050
        %1052 = vrot.lane.b32.xlu0 %v790, 1
        %v1053 = vpop.permute.xlu0 %1052
        %1054 = vrot.lane.b32.xlu0 %v855, 1
        %v1055 = vpop.permute.xlu0 %1054
        %1056 = vrot.lane.b32.xlu0 %v797, 1
        %v1057 = vpop.permute.xlu0 %1056
        %vm1058 = vcmask 7168
        %v1059 = vsel %vm1058, %v1029, %v1031
        %v1060 = vsel %vm1058, %v1031, %v1033
        %v1061 = vsel %vm1058, %v1033, %v1035
        %v1062 = vsel %vm1058, %v1035, %v1037
        %v1063 = vsel %vm1058, %v1037, %v1039
        %v1064 = vsel %vm1058, %v1039, %v1041
        %v1065 = vsel %vm1058, %v1041, %v1043
        %v1066 = vsel %vm1058, %v1043, %v1045
        %v1067 = vsel %vm1058, %v1045, %v1047
        %v1068 = vsel %vm1058, %v1047, %v1049
        %v1069 = vsel %vm1058, %v1049, %v1051
        %v1070 = vsel %vm1058, %v1051, %v1053
        %v1071 = vsel %vm1058, %v1053, %v1055
        %v1072 = vsel %vm1058, %v1055, %v1057
        %v1073 = vsel %vm1058, %v1057, %v1027
        %vm1074 = vcmask 7168
        %v1077 = vsel %vm1074, %v1027, %v1029
        %1078 = vrot.lane.b32.xlu0 %v811, 127
        %v1079 = vpop.permute.xlu0 %1078
        %1080 = vrot.lane.b32.xlu0 %v819, 127
        %v1081 = vpop.permute.xlu0 %1080
        %1082 = vrot.lane.b32.xlu0 %v818, 127
        %v1083 = vpop.permute.xlu0 %1082
        %1084 = vrot.lane.b32.xlu0 %v820, 127
        %v1085 = vpop.permute.xlu0 %1084
        %1086 = vrot.lane.b32.xlu0 %v828, 127
        %v1087 = vpop.permute.xlu0 %1086
        %1088 = vrot.lane.b32.xlu0 %v836, 127
        %v1089 = vpop.permute.xlu0 %1088
        %1090 = vrot.lane.b32.xlu0 %v835, 127
        %v1091 = vpop.permute.xlu0 %1090
        %1092 = vrot.lane.b32.xlu0 %v837, 127
        %v1093 = vpop.permute.xlu0 %1092
        %1094 = vrot.lane.b32.xlu0 %v845, 127
        %v1095 = vpop.permute.xlu0 %1094
        %1096 = vrot.lane.b32.xlu0 %v853, 127
        %v1097 = vpop.permute.xlu0 %1096
        %1098 = vrot.lane.b32.xlu0 %v852, 127
        %v1099 = vpop.permute.xlu0 %1098
        %1100 = vrot.lane.b32.xlu0 %v854, 127
        %v1101 = vpop.permute.xlu0 %1100
        %1102 = vrot.lane.b32.xlu0 %v790, 127
        %v1103 = vpop.permute.xlu0 %1102
        %1104 = vrot.lane.b32.xlu0 %v855, 127
        %v1105 = vpop.permute.xlu0 %1104
        %1106 = vrot.lane.b32.xlu0 %v797, 127
        %v1107 = vpop.permute.xlu0 %1106
        %1108 = vrot.lane.b32.xlu0 %v798, 127
        %v1109 = vpop.permute.xlu0 %1108
        %vm1110 = vcmask 1039360
        %v1111 = vsel %vm1110, %v1079, %v1081
        %v1112 = vsel %vm1110, %v1081, %v1083
        %v1113 = vsel %vm1110, %v1083, %v1085
        %v1114 = vsel %vm1110, %v1085, %v1087
        %v1115 = vsel %vm1110, %v1087, %v1089
        %v1116 = vsel %vm1110, %v1089, %v1091
        %v1117 = vsel %vm1110, %v1091, %v1093
        %v1118 = vsel %vm1110, %v1093, %v1095
        %v1119 = vsel %vm1110, %v1095, %v1097
        %v1120 = vsel %vm1110, %v1097, %v1099
        %v1121 = vsel %vm1110, %v1099, %v1101
        %v1122 = vsel %vm1110, %v1101, %v1103
        %v1123 = vsel %vm1110, %v1103, %v1105
        %v1124 = vsel %vm1110, %v1105, %v1107
        %v1125 = vsel %vm1110, %v1107, %v1109
        %vm1126 = vcmask 1039360
        %v1129 = vsel %vm1126, %v1109, %v1079
        %1130 = vrot.lane.b32.xlu0 %v811, 99
        %v1131 = vpop.permute.xlu0 %1130
        %1132 = vrot.lane.b32.xlu0 %v819, 99
        %v1133 = vpop.permute.xlu0 %1132
        %1134 = vrot.lane.b32.xlu0 %v818, 99
        %v1135 = vpop.permute.xlu0 %1134
        %1136 = vrot.lane.b32.xlu0 %v820, 99
        %v1137 = vpop.permute.xlu0 %1136
        %1138 = vrot.lane.b32.xlu0 %v828, 99
        %v1139 = vpop.permute.xlu0 %1138
        %1140 = vrot.lane.b32.xlu0 %v836, 99
        %v1141 = vpop.permute.xlu0 %1140
        %1142 = vrot.lane.b32.xlu0 %v835, 99
        %v1143 = vpop.permute.xlu0 %1142
        %1144 = vrot.lane.b32.xlu0 %v837, 99
        %v1145 = vpop.permute.xlu0 %1144
        %1146 = vrot.lane.b32.xlu0 %v845, 99
        %v1147 = vpop.permute.xlu0 %1146
        %1148 = vrot.lane.b32.xlu0 %v853, 99
        %v1149 = vpop.permute.xlu0 %1148
        %1150 = vrot.lane.b32.xlu0 %v852, 99
        %v1151 = vpop.permute.xlu0 %1150
        %1152 = vrot.lane.b32.xlu0 %v854, 99
        %v1153 = vpop.permute.xlu0 %1152
        %1154 = vrot.lane.b32.xlu0 %v790, 99
        %v1155 = vpop.permute.xlu0 %1154
        %1156 = vrot.lane.b32.xlu0 %v855, 99
        %v1157 = vpop.permute.xlu0 %1156
        %1158 = vrot.lane.b32.xlu0 %v797, 99
        %v1159 = vpop.permute.xlu0 %1158
        %1160 = vrot.lane.b32.xlu0 %v798, 99
        %v1161 = vpop.permute.xlu0 %1160
        %vm1162 = vcmask 809984
        %v1163 = vsel %vm1162, %v1131, %v1133
        %v1164 = vsel %vm1162, %v1133, %v1135
        %v1165 = vsel %vm1162, %v1135, %v1137
        %v1166 = vsel %vm1162, %v1137, %v1139
        %v1167 = vsel %vm1162, %v1139, %v1141
        %v1168 = vsel %vm1162, %v1141, %v1143
        %v1169 = vsel %vm1162, %v1143, %v1145
        %v1170 = vsel %vm1162, %v1145, %v1147
        %v1171 = vsel %vm1162, %v1147, %v1149
        %v1172 = vsel %vm1162, %v1149, %v1151
        %v1173 = vsel %vm1162, %v1151, %v1153
        %v1174 = vsel %vm1162, %v1153, %v1155
        %v1175 = vsel %vm1162, %v1155, %v1157
        %v1176 = vsel %vm1162, %v1157, %v1159
        %v1177 = vsel %vm1162, %v1159, %v1161
        %vm1178 = vcmask 809984
        %v1181 = vsel %vm1178, %v1161, %v1131
        %1182 = vrot.lane.b32.xlu0 %v811, 98
        %v1183 = vpop.permute.xlu0 %1182
        %1184 = vrot.lane.b32.xlu0 %v819, 98
        %v1185 = vpop.permute.xlu0 %1184
        %1186 = vrot.lane.b32.xlu0 %v818, 98
        %v1187 = vpop.permute.xlu0 %1186
        %1188 = vrot.lane.b32.xlu0 %v820, 98
        %v1189 = vpop.permute.xlu0 %1188
        %1190 = vrot.lane.b32.xlu0 %v828, 98
        %v1191 = vpop.permute.xlu0 %1190
        %1192 = vrot.lane.b32.xlu0 %v836, 98
        %v1193 = vpop.permute.xlu0 %1192
        %1194 = vrot.lane.b32.xlu0 %v835, 98
        %v1195 = vpop.permute.xlu0 %1194
        %1196 = vrot.lane.b32.xlu0 %v837, 98
        %v1197 = vpop.permute.xlu0 %1196
        %1198 = vrot.lane.b32.xlu0 %v845, 98
        %v1199 = vpop.permute.xlu0 %1198
        %1200 = vrot.lane.b32.xlu0 %v853, 98
        %v1201 = vpop.permute.xlu0 %1200
        %1202 = vrot.lane.b32.xlu0 %v852, 98
        %v1203 = vpop.permute.xlu0 %1202
        %1204 = vrot.lane.b32.xlu0 %v854, 98
        %v1205 = vpop.permute.xlu0 %1204
        %1206 = vrot.lane.b32.xlu0 %v790, 98
        %v1207 = vpop.permute.xlu0 %1206
        %1208 = vrot.lane.b32.xlu0 %v855, 98
        %v1209 = vpop.permute.xlu0 %1208
        %1210 = vrot.lane.b32.xlu0 %v797, 98
        %v1211 = vpop.permute.xlu0 %1210
        %1212 = vrot.lane.b32.xlu0 %v798, 98
        %v1213 = vpop.permute.xlu0 %1212
        %vm1214 = vcmask 801792
        %v1215 = vsel %vm1214, %v1183, %v1185
        %v1216 = vsel %vm1214, %v1185, %v1187
        %v1217 = vsel %vm1214, %v1187, %v1189
        %v1218 = vsel %vm1214, %v1189, %v1191
        %v1219 = vsel %vm1214, %v1191, %v1193
        %v1220 = vsel %vm1214, %v1193, %v1195
        %v1221 = vsel %vm1214, %v1195, %v1197
        %v1222 = vsel %vm1214, %v1197, %v1199
        %v1223 = vsel %vm1214, %v1199, %v1201
        %v1224 = vsel %vm1214, %v1201, %v1203
        %v1225 = vsel %vm1214, %v1203, %v1205
        %v1226 = vsel %vm1214, %v1205, %v1207
        %v1227 = vsel %vm1214, %v1207, %v1209
        %v1228 = vsel %vm1214, %v1209, %v1211
        %v1229 = vsel %vm1214, %v1211, %v1213
        %vm1230 = vcmask 801792
        %v1233 = vsel %vm1230, %v1213, %v1183
        %1234 = vrot.lane.b32.xlu0 %v811, 97
        %v1235 = vpop.permute.xlu0 %1234
        %1236 = vrot.lane.b32.xlu0 %v819, 97
        %v1237 = vpop.permute.xlu0 %1236
        %1238 = vrot.lane.b32.xlu0 %v818, 97
        %v1239 = vpop.permute.xlu0 %1238
        %1240 = vrot.lane.b32.xlu0 %v820, 97
        %v1241 = vpop.permute.xlu0 %1240
        %1242 = vrot.lane.b32.xlu0 %v828, 97
        %v1243 = vpop.permute.xlu0 %1242
        %1244 = vrot.lane.b32.xlu0 %v836, 97
        %v1245 = vpop.permute.xlu0 %1244
        %1246 = vrot.lane.b32.xlu0 %v835, 97
        %v1247 = vpop.permute.xlu0 %1246
        %1248 = vrot.lane.b32.xlu0 %v837, 97
        %v1249 = vpop.permute.xlu0 %1248
        %1250 = vrot.lane.b32.xlu0 %v845, 97
        %v1251 = vpop.permute.xlu0 %1250
        %1252 = vrot.lane.b32.xlu0 %v853, 97
        %v1253 = vpop.permute.xlu0 %1252
        %1254 = vrot.lane.b32.xlu0 %v852, 97
        %v1255 = vpop.permute.xlu0 %1254
        %1256 = vrot.lane.b32.xlu0 %v854, 97
        %v1257 = vpop.permute.xlu0 %1256
        %1258 = vrot.lane.b32.xlu0 %v790, 97
        %v1259 = vpop.permute.xlu0 %1258
        %1260 = vrot.lane.b32.xlu0 %v855, 97
        %v1261 = vpop.permute.xlu0 %1260
        %1262 = vrot.lane.b32.xlu0 %v797, 97
        %v1263 = vpop.permute.xlu0 %1262
        %1264 = vrot.lane.b32.xlu0 %v798, 97
        %v1265 = vpop.permute.xlu0 %1264
        %vm1266 = vcmask 793600
        %v1267 = vsel %vm1266, %v1235, %v1237
        %v1268 = vsel %vm1266, %v1237, %v1239
        %v1269 = vsel %vm1266, %v1239, %v1241
        %v1270 = vsel %vm1266, %v1241, %v1243
        %v1271 = vsel %vm1266, %v1243, %v1245
        %v1272 = vsel %vm1266, %v1245, %v1247
        %v1273 = vsel %vm1266, %v1247, %v1249
        %v1274 = vsel %vm1266, %v1249, %v1251
        %v1275 = vsel %vm1266, %v1251, %v1253
        %v1276 = vsel %vm1266, %v1253, %v1255
        %v1277 = vsel %vm1266, %v1255, %v1257
        %v1278 = vsel %vm1266, %v1257, %v1259
        %v1279 = vsel %vm1266, %v1259, %v1261
        %v1280 = vsel %vm1266, %v1261, %v1263
        %v1281 = vsel %vm1266, %v1263, %v1265
        %vm1282 = vcmask 793600
        %v1285 = vsel %vm1282, %v1265, %v1235
        %v1286 = vshrl.u32 %v973, 16
        %v1288 = vrot.slane %v1286, 6
        %v1289 = vshll.u32 %v973, 16
        %v1291 = vrot.slane %v1289, 7
        %v1292 = vor.u32 %v1288, %v1291
        %v1294 = vshrl.u32 %v955, 16
        %v1296 = vrot.slane %v1294, 6
        %v1297 = vshll.u32 %v955, 16
        %v1299 = vrot.slane %v1297, 7
        %v1300 = vor.u32 %v1296, %v1299
        %v1302 = vshrl.u32 %v956, 16
        %v1304 = vrot.slane %v1302, 6
        %v1305 = vshll.u32 %v956, 16
        %v1307 = vrot.slane %v1305, 7
        %v1308 = vor.u32 %v1304, %v1307
        %v1310 = vshrl.u32 %v957, 16
        %v1312 = vrot.slane %v1310, 6
        %v1313 = vshll.u32 %v957, 16
        %v1315 = vrot.slane %v1313, 7
        %v1316 = vor.u32 %v1312, %v1315
        %v1318 = vshrl.u32 %v958, 16
        %v1320 = vrot.slane %v1318, 6
        %v1321 = vshll.u32 %v958, 16
        %v1323 = vrot.slane %v1321, 7
        %v1324 = vor.u32 %v1320, %v1323
        %v1326 = vshrl.u32 %v959, 16
        %v1328 = vrot.slane %v1326, 6
        %v1329 = vshll.u32 %v959, 16
        %v1331 = vrot.slane %v1329, 7
        %v1332 = vor.u32 %v1328, %v1331
        %v1334 = vshrl.u32 %v960, 16
        %v1336 = vrot.slane %v1334, 6
        %v1337 = vshll.u32 %v960, 16
        %v1339 = vrot.slane %v1337, 7
        %v1340 = vor.u32 %v1336, %v1339
        %v1342 = vshrl.u32 %v961, 16
        %v1344 = vrot.slane %v1342, 6
        %v1345 = vshll.u32 %v961, 16
        %v1347 = vrot.slane %v1345, 7
        %v1348 = vor.u32 %v1344, %v1347
        %v1350 = vshrl.u32 %v962, 16
        %v1352 = vrot.slane %v1350, 6
        %v1353 = vshll.u32 %v962, 16
        %v1355 = vrot.slane %v1353, 7
        %v1356 = vor.u32 %v1352, %v1355
        %v1358 = vshrl.u32 %v963, 16
        %v1360 = vrot.slane %v1358, 6
        %v1361 = vshll.u32 %v963, 16
        %v1363 = vrot.slane %v1361, 7
        %v1364 = vor.u32 %v1360, %v1363
        %v1366 = vshrl.u32 %v964, 16
        %v1368 = vrot.slane %v1366, 6
        %v1369 = vshll.u32 %v964, 16
        %v1371 = vrot.slane %v1369, 7
        %v1372 = vor.u32 %v1368, %v1371
        %v1374 = vshrl.u32 %v965, 16
        %v1376 = vrot.slane %v1374, 6
        %v1377 = vshll.u32 %v965, 16
        %v1379 = vrot.slane %v1377, 7
        %v1380 = vor.u32 %v1376, %v1379
        %v1382 = vshrl.u32 %v966, 16
        %v1384 = vrot.slane %v1382, 6
        %v1385 = vshll.u32 %v966, 16
        %v1387 = vrot.slane %v1385, 7
        %v1388 = vor.u32 %v1384, %v1387
        %v1390 = vshrl.u32 %v967, 16
        %v1392 = vrot.slane %v1390, 6
        %v1393 = vshll.u32 %v967, 16
        %v1395 = vrot.slane %v1393, 7
        %v1396 = vor.u32 %v1392, %v1395
        %v1398 = vshrl.u32 %v968, 16
        %v1400 = vrot.slane %v1398, 6
        %v1401 = vshll.u32 %v968, 16
        %v1403 = vrot.slane %v1401, 7
        %v1404 = vor.u32 %v1400, %v1403
        %v1406 = vshrl.u32 %v969, 16
        %v1408 = vrot.slane %v1406, 6
        %v1409 = vshll.u32 %v969, 16
        %v1411 = vrot.slane %v1409, 7
        %v1412 = vor.u32 %v1408, %v1411
        %v1430 = vrot.slane %v1025, 5
        %v1431 = vrot.slane %v1007, 5
        %v1432 = vrot.slane %v1008, 5
        %v1433 = vrot.slane %v1009, 5
        %v1434 = vrot.slane %v1010, 5
        %v1435 = vrot.slane %v1011, 5
        %v1436 = vrot.slane %v1012, 5
        %v1437 = vrot.slane %v1013, 5
        %v1438 = vrot.slane %v1014, 5
        %v1439 = vrot.slane %v1015, 5
        %v1440 = vrot.slane %v1016, 5
        %v1441 = vrot.slane %v1017, 5
        %v1442 = vrot.slane %v1018, 5
        %v1443 = vrot.slane %v1019, 5
        %v1444 = vrot.slane %v1020, 5
        %v1445 = vrot.slane %v1021, 5
        %v1446 = vshrl.u32 %v1077, 16
        %v1448 = vrot.slane %v1446, 3
        %v1449 = vshll.u32 %v1077, 16
        %v1451 = vrot.slane %v1449, 4
        %v1452 = vor.u32 %v1448, %v1451
        %v1454 = vshrl.u32 %v1059, 16
        %v1456 = vrot.slane %v1454, 3
        %v1457 = vshll.u32 %v1059, 16
        %v1459 = vrot.slane %v1457, 4
        %v1460 = vor.u32 %v1456, %v1459
        %v1462 = vshrl.u32 %v1060, 16
        %v1464 = vrot.slane %v1462, 3
        %v1465 = vshll.u32 %v1060, 16
        %v1467 = vrot.slane %v1465, 4
        %v1468 = vor.u32 %v1464, %v1467
        %v1470 = vshrl.u32 %v1061, 16
        %v1472 = vrot.slane %v1470, 3
        %v1473 = vshll.u32 %v1061, 16
        %v1475 = vrot.slane %v1473, 4
        %v1476 = vor.u32 %v1472, %v1475
        %v1478 = vshrl.u32 %v1062, 16
        %v1480 = vrot.slane %v1478, 3
        %v1481 = vshll.u32 %v1062, 16
        %v1483 = vrot.slane %v1481, 4
        %v1484 = vor.u32 %v1480, %v1483
        %v1486 = vshrl.u32 %v1063, 16
        %v1488 = vrot.slane %v1486, 3
        %v1489 = vshll.u32 %v1063, 16
        %v1491 = vrot.slane %v1489, 4
        %v1492 = vor.u32 %v1488, %v1491
        %v1494 = vshrl.u32 %v1064, 16
        %v1496 = vrot.slane %v1494, 3
        %v1497 = vshll.u32 %v1064, 16
        %v1499 = vrot.slane %v1497, 4
        %v1500 = vor.u32 %v1496, %v1499
        %v1502 = vshrl.u32 %v1065, 16
        %v1504 = vrot.slane %v1502, 3
        %v1505 = vshll.u32 %v1065, 16
        %v1507 = vrot.slane %v1505, 4
        %v1508 = vor.u32 %v1504, %v1507
        %v1510 = vshrl.u32 %v1066, 16
        %v1512 = vrot.slane %v1510, 3
        %v1513 = vshll.u32 %v1066, 16
        %v1515 = vrot.slane %v1513, 4
        %v1516 = vor.u32 %v1512, %v1515
        %v1518 = vshrl.u32 %v1067, 16
        %v1520 = vrot.slane %v1518, 3
        %v1521 = vshll.u32 %v1067, 16
        %v1523 = vrot.slane %v1521, 4
        %v1524 = vor.u32 %v1520, %v1523
        %v1526 = vshrl.u32 %v1068, 16
        %v1528 = vrot.slane %v1526, 3
        %v1529 = vshll.u32 %v1068, 16
        %v1531 = vrot.slane %v1529, 4
        %v1532 = vor.u32 %v1528, %v1531
        %v1534 = vshrl.u32 %v1069, 16
        %v1536 = vrot.slane %v1534, 3
        %v1537 = vshll.u32 %v1069, 16
        %v1539 = vrot.slane %v1537, 4
        %v1540 = vor.u32 %v1536, %v1539
        %v1542 = vshrl.u32 %v1070, 16
        %v1544 = vrot.slane %v1542, 3
        %v1545 = vshll.u32 %v1070, 16
        %v1547 = vrot.slane %v1545, 4
        %v1548 = vor.u32 %v1544, %v1547
        %v1550 = vshrl.u32 %v1071, 16
        %v1552 = vrot.slane %v1550, 3
        %v1553 = vshll.u32 %v1071, 16
        %v1555 = vrot.slane %v1553, 4
        %v1556 = vor.u32 %v1552, %v1555
        %v1558 = vshrl.u32 %v1072, 16
        %v1560 = vrot.slane %v1558, 3
        %v1561 = vshll.u32 %v1072, 16
        %v1563 = vrot.slane %v1561, 4
        %v1564 = vor.u32 %v1560, %v1563
        %v1566 = vshrl.u32 %v1073, 16
        %v1568 = vrot.slane %v1566, 3
        %v1569 = vshll.u32 %v1073, 16
        %v1571 = vrot.slane %v1569, 4
        %v1572 = vor.u32 %v1568, %v1571
        %v1589 = vcombine.low %v777, %v777
        %v1591 = vunpack.c.l.s4 1983009808
        %v1592 = vunpack.c.0.s8 %v1591
        %v1593 = vlaneseq
        %v1594 = vshrl.u32 %v1593, 7
        %v1595 = vsub.s32 %v1592, %v1594
        %v1596 = vrot.slane %v1589, %v1595
        %v1597 = vcombine.low %v1596, %v1596
        %v1598 = vcombine.low %v811, %v811
        %v1599 = vcombine.low %v778, %v778
        %v1601 = vunpack.c.l.s4 1983009808
        %v1602 = vunpack.c.0.s8 %v1601
        %v1603 = vlaneseq
        %v1604 = vshrl.u32 %v1603, 7
        %v1605 = vsub.s32 %v1602, %v1604
        %v1606 = vrot.slane %v1599, %v1605
        %v1607 = vcombine.low %v1606, %v1606
        %v1608 = vcombine.low %v828, %v828
        %v1609 = vcombine.low %v779, %v779
        %v1611 = vunpack.c.l.s4 1983009808
        %v1612 = vunpack.c.0.s8 %v1611
        %v1613 = vlaneseq
        %v1614 = vshrl.u32 %v1613, 7
        %v1615 = vsub.s32 %v1612, %v1614
        %v1616 = vrot.slane %v1609, %v1615
        %v1617 = vcombine.low %v1616, %v1616
        %v1618 = vcombine.low %v845, %v845
        %v1619 = vcombine.low %v780, %v780
        %v1621 = vunpack.c.l.s4 1983009808
        %v1622 = vunpack.c.0.s8 %v1621
        %v1623 = vlaneseq
        %v1624 = vshrl.u32 %v1623, 7
        %v1625 = vsub.s32 %v1622, %v1624
        %v1626 = vrot.slane %v1619, %v1625
        %v1627 = vcombine.low %v1626, %v1626
        %v1628 = vcombine.low %v790, %v790
        %v1630 = vshll.u32 %v1111, 16
        %v1632 = vrot.slane %v1630, 1
        %v1634 = vshll.u32 %v1112, 16
        %v1636 = vrot.slane %v1634, 1
        %v1638 = vshll.u32 %v1113, 16
        %v1640 = vrot.slane %v1638, 1
        %v1642 = vshll.u32 %v1114, 16
        %v1644 = vrot.slane %v1642, 1
        %v1646 = vshll.u32 %v1115, 16
        %v1648 = vrot.slane %v1646, 1
        %v1650 = vshll.u32 %v1116, 16
        %v1652 = vrot.slane %v1650, 1
        %v1654 = vshll.u32 %v1117, 16
        %v1656 = vrot.slane %v1654, 1
        %v1658 = vshll.u32 %v1118, 16
        %v1660 = vrot.slane %v1658, 1
        %v1662 = vshll.u32 %v1119, 16
        %v1664 = vrot.slane %v1662, 1
        %v1666 = vshll.u32 %v1120, 16
        %v1668 = vrot.slane %v1666, 1
        %v1670 = vshll.u32 %v1121, 16
        %v1672 = vrot.slane %v1670, 1
        %v1674 = vshll.u32 %v1122, 16
        %v1676 = vrot.slane %v1674, 1
        %v1678 = vshll.u32 %v1123, 16
        %v1680 = vrot.slane %v1678, 1
        %v1682 = vshll.u32 %v1124, 16
        %v1684 = vrot.slane %v1682, 1
        %v1686 = vshll.u32 %v1125, 16
        %v1688 = vrot.slane %v1686, 1
        %v1689 = vshll.u32 %v1129, 16
        %v1691 = vrot.slane %v1689, 1
        %v1692 = vshrl.u32 %v1111, 16
        %v1694 = vor.u32 %v1692, %v1632
        %v1695 = vshrl.u32 %v1112, 16
        %v1697 = vor.u32 %v1695, %v1636
        %v1698 = vshrl.u32 %v1113, 16
        %v1700 = vor.u32 %v1698, %v1640
        %v1701 = vshrl.u32 %v1114, 16
        %v1703 = vor.u32 %v1701, %v1644
        %v1704 = vshrl.u32 %v1115, 16
        %v1706 = vor.u32 %v1704, %v1648
        %v1707 = vshrl.u32 %v1116, 16
        %v1709 = vor.u32 %v1707, %v1652
        %v1710 = vshrl.u32 %v1117, 16
        %v1712 = vor.u32 %v1710, %v1656
        %v1713 = vshrl.u32 %v1118, 16
        %v1715 = vor.u32 %v1713, %v1660
        %v1716 = vshrl.u32 %v1119, 16
        %v1718 = vor.u32 %v1716, %v1664
        %v1719 = vshrl.u32 %v1120, 16
        %v1721 = vor.u32 %v1719, %v1668
        %v1722 = vshrl.u32 %v1121, 16
        %v1724 = vor.u32 %v1722, %v1672
        %v1725 = vshrl.u32 %v1122, 16
        %v1727 = vor.u32 %v1725, %v1676
        %v1728 = vshrl.u32 %v1123, 16
        %v1730 = vor.u32 %v1728, %v1680
        %v1731 = vshrl.u32 %v1124, 16
        %v1733 = vor.u32 %v1731, %v1684
        %v1734 = vshrl.u32 %v1125, 16
        %v1736 = vor.u32 %v1734, %v1688
        %v1737 = vshrl.u32 %v1129, 16
        %v1739 = vor.u32 %v1737, %v1691
        %v1757 = vrot.slane %v1163, 7
        %v1758 = vrot.slane %v1164, 7
        %v1759 = vrot.slane %v1165, 7
        %v1760 = vrot.slane %v1166, 7
        %v1761 = vrot.slane %v1167, 7
        %v1762 = vrot.slane %v1168, 7
        %v1763 = vrot.slane %v1169, 7
        %v1764 = vrot.slane %v1170, 7
        %v1765 = vrot.slane %v1171, 7
        %v1766 = vrot.slane %v1172, 7
        %v1767 = vrot.slane %v1173, 7
        %v1768 = vrot.slane %v1174, 7
        %v1769 = vrot.slane %v1175, 7
        %v1770 = vrot.slane %v1176, 7
        %v1771 = vrot.slane %v1177, 7
        %v1772 = vrot.slane %v1181, 7
        %v1774 = vshrl.u32 %v1215, 16
        %v1776 = vrot.slane %v1774, 5
        %v1777 = vshll.u32 %v1215, 16
        %v1779 = vrot.slane %v1777, 6
        %v1780 = vor.u32 %v1776, %v1779
        %v1782 = vshrl.u32 %v1216, 16
        %v1784 = vrot.slane %v1782, 5
        %v1785 = vshll.u32 %v1216, 16
        %v1787 = vrot.slane %v1785, 6
        %v1788 = vor.u32 %v1784, %v1787
        %v1790 = vshrl.u32 %v1217, 16
        %v1792 = vrot.slane %v1790, 5
        %v1793 = vshll.u32 %v1217, 16
        %v1795 = vrot.slane %v1793, 6
        %v1796 = vor.u32 %v1792, %v1795
        %v1798 = vshrl.u32 %v1218, 16
        %v1800 = vrot.slane %v1798, 5
        %v1801 = vshll.u32 %v1218, 16
        %v1803 = vrot.slane %v1801, 6
        %v1804 = vor.u32 %v1800, %v1803
        %v1806 = vshrl.u32 %v1219, 16
        %v1808 = vrot.slane %v1806, 5
        %v1809 = vshll.u32 %v1219, 16
        %v1811 = vrot.slane %v1809, 6
        %v1812 = vor.u32 %v1808, %v1811
        %v1814 = vshrl.u32 %v1220, 16
        %v1816 = vrot.slane %v1814, 5
        %v1817 = vshll.u32 %v1220, 16
        %v1819 = vrot.slane %v1817, 6
        %v1820 = vor.u32 %v1816, %v1819
        %v1822 = vshrl.u32 %v1221, 16
        %v1824 = vrot.slane %v1822, 5
        %v1825 = vshll.u32 %v1221, 16
        %v1827 = vrot.slane %v1825, 6
        %v1828 = vor.u32 %v1824, %v1827
        %v1830 = vshrl.u32 %v1222, 16
        %v1832 = vrot.slane %v1830, 5
        %v1833 = vshll.u32 %v1222, 16
        %v1835 = vrot.slane %v1833, 6
        %v1836 = vor.u32 %v1832, %v1835
        %v1838 = vshrl.u32 %v1223, 16
        %v1840 = vrot.slane %v1838, 5
        %v1841 = vshll.u32 %v1223, 16
        %v1843 = vrot.slane %v1841, 6
        %v1844 = vor.u32 %v1840, %v1843
        %v1846 = vshrl.u32 %v1224, 16
        %v1848 = vrot.slane %v1846, 5
        %v1849 = vshll.u32 %v1224, 16
        %v1851 = vrot.slane %v1849, 6
        %v1852 = vor.u32 %v1848, %v1851
        %v1854 = vshrl.u32 %v1225, 16
        %v1856 = vrot.slane %v1854, 5
        %v1857 = vshll.u32 %v1225, 16
        %v1859 = vrot.slane %v1857, 6
        %v1860 = vor.u32 %v1856, %v1859
        %v1862 = vshrl.u32 %v1226, 16
        %v1864 = vrot.slane %v1862, 5
        %v1865 = vshll.u32 %v1226, 16
        %v1867 = vrot.slane %v1865, 6
        %v1868 = vor.u32 %v1864, %v1867
        %v1870 = vshrl.u32 %v1227, 16
        %v1872 = vrot.slane %v1870, 5
        %v1873 = vshll.u32 %v1227, 16
        %v1875 = vrot.slane %v1873, 6
        %v1876 = vor.u32 %v1872, %v1875
        %v1878 = vshrl.u32 %v1228, 16
        %v1880 = vrot.slane %v1878, 5
        %v1881 = vshll.u32 %v1228, 16
        %v1883 = vrot.slane %v1881, 6
        %v1884 = vor.u32 %v1880, %v1883
        %v1886 = vshrl.u32 %v1229, 16
        %v1888 = vrot.slane %v1886, 5
        %v1889 = vshll.u32 %v1229, 16
        %v1891 = vrot.slane %v1889, 6
        %v1892 = vor.u32 %v1888, %v1891
        %v1893 = vshrl.u32 %v1233, 16
        %v1895 = vrot.slane %v1893, 5
        %v1896 = vshll.u32 %v1233, 16
        %v1898 = vrot.slane %v1896, 6
        %v1899 = vor.u32 %v1895, %v1898
        %v1917 = vrot.slane %v1267, 4
        %v1918 = vrot.slane %v1268, 4
        %v1919 = vrot.slane %v1269, 4
        %v1920 = vrot.slane %v1270, 4
        %v1921 = vrot.slane %v1271, 4
        %v1922 = vrot.slane %v1272, 4
        %v1923 = vrot.slane %v1273, 4
        %v1924 = vrot.slane %v1274, 4
        %v1925 = vrot.slane %v1275, 4
        %v1926 = vrot.slane %v1276, 4
        %v1927 = vrot.slane %v1277, 4
        %v1928 = vrot.slane %v1278, 4
        %v1929 = vrot.slane %v1279, 4
        %v1930 = vrot.slane %v1280, 4
        %v1931 = vrot.slane %v1281, 4
        %v1932 = vrot.slane %v1285, 4
        %v1934 = vshll.u32 %v723, 16
        %v1936 = vrot.slane %v1934, 3
        %v1938 = vshll.u32 %v724, 16
        %v1940 = vrot.slane %v1938, 3
        %v1942 = vshll.u32 %v725, 16
        %v1944 = vrot.slane %v1942, 3
        %v1946 = vshll.u32 %v726, 16
        %v1948 = vrot.slane %v1946, 3
        %v1950 = vshll.u32 %v727, 16
        %v1952 = vrot.slane %v1950, 3
        %v1954 = vshll.u32 %v728, 16
        %v1956 = vrot.slane %v1954, 3
        %v1958 = vshll.u32 %v729, 16
        %v1960 = vrot.slane %v1958, 3
        %v1962 = vshll.u32 %v730, 16
        %v1964 = vrot.slane %v1962, 3
        %v1966 = vshll.u32 %v731, 16
        %v1968 = vrot.slane %v1966, 3
        %v1970 = vshll.u32 %v732, 16
        %v1972 = vrot.slane %v1970, 3
        %v1974 = vshll.u32 %v733, 16
        %v1976 = vrot.slane %v1974, 3
        %v1978 = vshll.u32 %v734, 16
        %v1980 = vrot.slane %v1978, 3
        %v1982 = vshll.u32 %v735, 16
        %v1984 = vrot.slane %v1982, 3
        %v1986 = vshll.u32 %v736, 16
        %v1988 = vrot.slane %v1986, 3
        %v1990 = vshll.u32 %v737, 16
        %v1992 = vrot.slane %v1990, 3
        %v1994 = vshll.u32 %v738, 16
        %v1996 = vrot.slane %v1994, 3
        %vm2013 = vcmask 1041408
        %vm2014 = vsmask.f32 1280
        %vm2015 = vmand %vm2013, %vm2014
        %v2016 = vsel %vm2015, %v920, %v1292
        %v2017 = vsel %vm2015, %v887, %v1300
        %v2018 = vsel %vm2015, %v888, %v1308
        %v2019 = vsel %vm2015, %v889, %v1316
        %v2020 = vsel %vm2015, %v890, %v1324
        %v2021 = vsel %vm2015, %v891, %v1332
        %v2022 = vsel %vm2015, %v892, %v1340
        %v2023 = vsel %vm2015, %v893, %v1348
        %v2024 = vsel %vm2015, %v894, %v1356
        %v2025 = vsel %vm2015, %v895, %v1364
        %v2026 = vsel %vm2015, %v896, %v1372
        %v2027 = vsel %vm2015, %v897, %v1380
        %v2028 = vsel %vm2015, %v898, %v1388
        %v2029 = vsel %vm2015, %v899, %v1396
        %v2030 = vsel %vm2015, %v900, %v1404
        %v2031 = vsel %vm2015, %v901, %v1412
        %vm2032 = vcmask 1042432
        %v2035 = vsel %vm2032, %v2016, %v1430
        %v2039 = vsel %vm2032, %v2017, %v1431
        %v2043 = vsel %vm2032, %v2018, %v1432
        %v2047 = vsel %vm2032, %v2019, %v1433
        %v2051 = vsel %vm2032, %v2020, %v1434
        %v2055 = vsel %vm2032, %v2021, %v1435
        %v2059 = vsel %vm2032, %v2022, %v1436
        %v2063 = vsel %vm2032, %v2023, %v1437
        %v2067 = vsel %vm2032, %v2024, %v1438
        %v2071 = vsel %vm2032, %v2025, %v1439
        %v2075 = vsel %vm2032, %v2026, %v1440
        %v2079 = vsel %vm2032, %v2027, %v1441
        %v2083 = vsel %vm2032, %v2028, %v1442
        %v2087 = vsel %vm2032, %v2029, %v1443
        %v2091 = vsel %vm2032, %v2030, %v1444
        %v2095 = vsel %vm2032, %v2031, %v1445
        %vm2097 = vcmask 1044480
        %vm2098 = vsmask.f32 4352
        %vm2099 = vmand %vm2097, %vm2098
        %v2100 = vsel %vm2099, %v2035, %v1452
        %v2101 = vsel %vm2099, %v2039, %v1460
        %v2102 = vsel %vm2099, %v2043, %v1468
        %v2103 = vsel %vm2099, %v2047, %v1476
        %v2104 = vsel %vm2099, %v2051, %v1484
        %v2105 = vsel %vm2099, %v2055, %v1492
        %v2106 = vsel %vm2099, %v2059, %v1500
        %v2107 = vsel %vm2099, %v2063, %v1508
        %v2108 = vsel %vm2099, %v2067, %v1516
        %v2109 = vsel %vm2099, %v2071, %v1524
        %v2110 = vsel %vm2099, %v2075, %v1532
        %v2111 = vsel %vm2099, %v2079, %v1540
        %v2112 = vsel %vm2099, %v2083, %v1548
        %v2113 = vsel %vm2099, %v2087, %v1556
        %v2114 = vsel %vm2099, %v2091, %v1564
        %v2115 = vsel %vm2099, %v2095, %v1572
        %vm2116 = vcmask 1045504
        %v2119 = vsel %vm2116, %v2100, %v1597
        %v2123 = vsel %vm2116, %v2101, %v1596
        %v2127 = vsel %vm2116, %v2102, %v1598
        %v2131 = vsel %vm2116, %v2103, %v811
        %v2135 = vsel %vm2116, %v2104, %v1607
        %v2139 = vsel %vm2116, %v2105, %v1606
        %v2143 = vsel %vm2116, %v2106, %v1608
        %v2147 = vsel %vm2116, %v2107, %v828
        %v2151 = vsel %vm2116, %v2108, %v1617
        %v2155 = vsel %vm2116, %v2109, %v1616
        %v2159 = vsel %vm2116, %v2110, %v1618
        %v2163 = vsel %vm2116, %v2111, %v845
        %v2167 = vsel %vm2116, %v2112, %v1627
        %v2171 = vsel %vm2116, %v2113, %v1626
        %v2175 = vsel %vm2116, %v2114, %v1628
        %v2179 = vsel %vm2116, %v2115, %v790
        %vm2181 = vcmask 1047552
        %vm2182 = vsmask.f32 7424
        %vm2183 = vmand %vm2181, %vm2182
        %v2184 = vsel %vm2183, %v2119, %v1632
        %v2185 = vsel %vm2183, %v2123, %v1636
        %v2186 = vsel %vm2183, %v2127, %v1640
        %v2187 = vsel %vm2183, %v2131, %v1644
        %v2188 = vsel %vm2183, %v2135, %v1648
        %v2189 = vsel %vm2183, %v2139, %v1652
        %v2190 = vsel %vm2183, %v2143, %v1656
        %v2191 = vsel %vm2183, %v2147, %v1660
        %v2192 = vsel %vm2183, %v2151, %v1664
        %v2193 = vsel %vm2183, %v2155, %v1668
        %v2194 = vsel %vm2183, %v2159, %v1672
        %v2195 = vsel %vm2183, %v2163, %v1676
        %v2196 = vsel %vm2183, %v2167, %v1680
        %v2197 = vsel %vm2183, %v2171, %v1684
        %v2198 = vsel %vm2183, %v2175, %v1688
        %v2199 = vsel %vm2183, %v2179, %v1691
        %vm2200 = vcmask 1040384
        %v2203 = vsel %vm2200, %v1694, %v1757
        %v2207 = vsel %vm2200, %v1697, %v1758
        %v2211 = vsel %vm2200, %v1700, %v1759
        %v2215 = vsel %vm2200, %v1703, %v1760
        %v2219 = vsel %vm2200, %v1706, %v1761
        %v2223 = vsel %vm2200, %v1709, %v1762
        %v2227 = vsel %vm2200, %v1712, %v1763
        %v2231 = vsel %vm2200, %v1715, %v1764
        %v2235 = vsel %vm2200, %v1718, %v1765
        %v2239 = vsel %vm2200, %v1721, %v1766
        %v2243 = vsel %vm2200, %v1724, %v1767
        %v2247 = vsel %vm2200, %v1727, %v1768
        %v2251 = vsel %vm2200, %v1730, %v1769
        %v2255 = vsel %vm2200, %v1733, %v1770
        %v2259 = vsel %vm2200, %v1736, %v1771
        %v2263 = vsel %vm2200, %v1739, %v1772
        %vm2265 = vcmask 1042432
        %vm2266 = vsmask.f32 2304
        %vm2267 = vmand %vm2265, %vm2266
        %v2268 = vsel %vm2267, %v2203, %v1780
        %v2269 = vsel %vm2267, %v2207, %v1788
        %v2270 = vsel %vm2267, %v2211, %v1796
        %v2271 = vsel %vm2267, %v2215, %v1804
        %v2272 = vsel %vm2267, %v2219, %v1812
        %v2273 = vsel %vm2267, %v2223, %v1820
        %v2274 = vsel %vm2267, %v2227, %v1828
        %v2275 = vsel %vm2267, %v2231, %v1836
        %v2276 = vsel %vm2267, %v2235, %v1844
        %v2277 = vsel %vm2267, %v2239, %v1852
        %v2278 = vsel %vm2267, %v2243, %v1860
        %v2279 = vsel %vm2267, %v2247, %v1868
        %v2280 = vsel %vm2267, %v2251, %v1876
        %v2281 = vsel %vm2267, %v2255, %v1884
        %v2282 = vsel %vm2267, %v2259, %v1892
        %v2283 = vsel %vm2267, %v2263, %v1899
        %vm2284 = vcmask 1043456
        %v2287 = vsel %vm2284, %v2268, %v1917
        %v2291 = vsel %vm2284, %v2269, %v1918
        %v2295 = vsel %vm2284, %v2270, %v1919
        %v2299 = vsel %vm2284, %v2271, %v1920
        %v2303 = vsel %vm2284, %v2272, %v1921
        %v2307 = vsel %vm2284, %v2273, %v1922
        %v2311 = vsel %vm2284, %v2274, %v1923
        %v2315 = vsel %vm2284, %v2275, %v1924
        %v2319 = vsel %vm2284, %v2276, %v1925
        %v2323 = vsel %vm2284, %v2277, %v1926
        %v2327 = vsel %vm2284, %v2278, %v1927
        %v2331 = vsel %vm2284, %v2279, %v1928
        %v2335 = vsel %vm2284, %v2280, %v1929
        %v2339 = vsel %vm2284, %v2281, %v1930
        %v2343 = vsel %vm2284, %v2282, %v1931
        %v2347 = vsel %vm2284, %v2283, %v1932
        %vm2349 = vcmask 1045504
        %vm2350 = vsmask.f32 5376
        %vm2351 = vmand %vm2349, %vm2350
        %v2352 = vsel %vm2351, %v2287, %v1936
        %v2353 = vsel %vm2351, %v2291, %v1940
        %v2354 = vsel %vm2351, %v2295, %v1944
        %v2355 = vsel %vm2351, %v2299, %v1948
        %v2356 = vsel %vm2351, %v2303, %v1952
        %v2357 = vsel %vm2351, %v2307, %v1956
        %v2358 = vsel %vm2351, %v2311, %v1960
        %v2359 = vsel %vm2351, %v2315, %v1964
        %v2360 = vsel %vm2351, %v2319, %v1968
        %v2361 = vsel %vm2351, %v2323, %v1972
        %v2362 = vsel %vm2351, %v2327, %v1976
        %v2363 = vsel %vm2351, %v2331, %v1980
        %v2364 = vsel %vm2351, %v2335, %v1984
        %v2365 = vsel %vm2351, %v2339, %v1988
        %v2366 = vsel %vm2351, %v2343, %v1992
        %v2367 = vsel %vm2351, %v2347, %v1996
        %vm2368 = vcmask 228352
        %v2370 = vsel %vm2368, %v781, 0
        %v2373 = vsel %vm2116, %v2352, 0
        %v2376 = vsel %vm2116, %v2353, 0
        %v2379 = vsel %vm2116, %v2354, 0
        %v2382 = vsel %vm2116, %v2355, 0
        %v2385 = vsel %vm2116, %v2356, 0
        %v2388 = vsel %vm2116, %v2357, 0
        %v2391 = vsel %vm2116, %v2358, 0
        %v2394 = vsel %vm2116, %v2359, 0
        %v2397 = vsel %vm2116, %v2360, 0
        %v2400 = vsel %vm2116, %v2361, 0
        %v2403 = vsel %vm2116, %v2362, 0
        %v2406 = vsel %vm2116, %v2363, 0
        %v2409 = vsel %vm2116, %v2364, 0
        %v2412 = vsel %vm2116, %v2365, 0
        %v2415 = vsel %vm2116, %v2366, 0
        %v2418 = vsel %vm2116, %v2367, 0
        %2420 = vmatprep.subr.bf16.mxu0 %v2185
        %2421 = vmatpush1.bf16.msra.mxu0 %v2184
        %2422 = vmatprep.subr.bf16.mxu0 %v2376
        %2423 = vmatpush1.bf16.msra.mxu0 %v2373
        %2424 = vmatprep.subr.bf16.mxu0 0
        %2425 = vmatpush1.bf16.msra.mxu0 0
        %2426 = vmatprep.subr.bf16.mxu0 0
        %2427 = vmatpush1.bf16.msra.mxu0 0
        %2428 = vmatprep.subr.bf16.mxu0 0
        %2429 = vmatpush1.bf16.msra.mxu0 0
        %2430 = vmatprep.subr.bf16.mxu0 0
        %2431 = vmatpush1.bf16.msra.mxu0 0
        %2432 = vmatprep.subr.bf16.mxu0 0
        %2433 = vmatpush1.bf16.msra.mxu0 0
        %2434 = vmatprep.subr.bf16.mxu0 0
        %2435 = vmatpush1.bf16.msra.mxu0 0
        %2436 = vmatprep.subr.bf16.mxu0 0
        %2437 = vmatpush1.bf16.msra.mxu0 0
        %2438 = vmatprep.subr.bf16.mxu0 0
        %2439 = vmatpush1.bf16.msra.mxu0 0
        %2440 = vmatprep.subr.bf16.mxu0 0
        %2441 = vmatpush1.bf16.msra.mxu0 0
        %2442 = vmatprep.subr.bf16.mxu0 0
        %2443 = vmatpush1.bf16.msra.mxu0 0
        %2444 = vmatprep.subr.bf16.mxu0 0
        %2445 = vmatpush1.bf16.msra.mxu0 0
        %2446 = vmatprep.subr.bf16.mxu0 0
        %2447 = vmatpush1.bf16.msra.mxu0 0
        %2448 = vmatprep.subr.bf16.mxu0 0
        %2449 = vmatpush1.bf16.msra.mxu0 0
        %2450 = vmatprep.subr.bf16.mxu0 0
        %2451 = vmatpush1.bf16.msra.mxu0 0
        %2452 = vmatprep.mubr.bf16.mxu0 0
        %2453 = vmatmul.mubr.bf16.gmra.mrb[0].mxu0 %v2370
        %v2454 = vpop.f32.mrb[0].mxu0
        %v2455 = vadd.f32 0.0, %v2454
        %v2456 = vpop.f32.mrb[0].mxu0
        %v2457 = vadd.f32 0.0, %v2456
        %v2458 = vpop.f32.mrb[0].mxu0
        %v2459 = vpop.f32.mrb[0].mxu0
        %2460 = vdwg.mxu0
        %2461 = vmatprep.subr.bf16.mxu0 %v2187
        %2462 = vmatpush1.bf16.msra.mxu0 %v2186
        %2463 = vmatprep.subr.bf16.mxu0 %v2382
        %2464 = vmatpush1.bf16.msra.mxu0 %v2379
        %2465 = vmatprep.subr.bf16.mxu0 0
        %2466 = vmatpush1.bf16.msra.mxu0 0
        %2467 = vmatprep.subr.bf16.mxu0 0
        %2468 = vmatpush1.bf16.msra.mxu0 0
        %2469 = vmatprep.subr.bf16.mxu0 0
        %2470 = vmatpush1.bf16.msra.mxu0 0
        %2471 = vmatprep.subr.bf16.mxu0 0
        %2472 = vmatpush1.bf16.msra.mxu0 0
        %2473 = vmatprep.subr.bf16.mxu0 0
        %2474 = vmatpush1.bf16.msra.mxu0 0
        %2475 = vmatprep.subr.bf16.mxu0 0
        %2476 = vmatpush1.bf16.msra.mxu0 0
        %2477 = vmatprep.subr.bf16.mxu0 0
        %2478 = vmatpush1.bf16.msra.mxu0 0
        %2479 = vmatprep.subr.bf16.mxu0 0
        %2480 = vmatpush1.bf16.msra.mxu0 0
        %2481 = vmatprep.subr.bf16.mxu0 0
        %2482 = vmatpush1.bf16.msra.mxu0 0
        %2483 = vmatprep.subr.bf16.mxu0 0
        %2484 = vmatpush1.bf16.msra.mxu0 0
        %2485 = vmatprep.subr.bf16.mxu0 0
        %2486 = vmatpush1.bf16.msra.mxu0 0
        %2487 = vmatprep.subr.bf16.mxu0 0
        %2488 = vmatpush1.bf16.msra.mxu0 0
        %2489 = vmatprep.subr.bf16.mxu0 0
        %2490 = vmatpush1.bf16.msra.mxu0 0
        %2491 = vmatprep.subr.bf16.mxu0 0
        %2492 = vmatpush1.bf16.msra.mxu0 0
        %2493 = vmatprep.mubr.bf16.mxu0 0
        %2494 = vmatmul.mubr.bf16.gmra.mrb[0].mxu0 %v2370
        %v2495 = vpop.f32.mrb[0].mxu0
        %v2496 = vadd.f32 0.0, %v2495
        %v2497 = vpop.f32.mrb[0].mxu0
        %v2498 = vadd.f32 0.0, %v2497
        %v2499 = vpop.f32.mrb[0].mxu0
        %v2500 = vpop.f32.mrb[0].mxu0
        %2501 = vdwg.mxu0
        %2502 = vmatprep.subr.bf16.mxu0 %v2189
        %2503 = vmatpush1.bf16.msra.mxu0 %v2188
        %2504 = vmatprep.subr.bf16.mxu0 %v2388
        %2505 = vmatpush1.bf16.msra.mxu0 %v2385
        %2506 = vmatprep.subr.bf16.mxu0 0
        %2507 = vmatpush1.bf16.msra.mxu0 0
        %2508 = vmatprep.subr.bf16.mxu0 0
        %2509 = vmatpush1.bf16.msra.mxu0 0
        %2510 = vmatprep.subr.bf16.mxu0 0
        %2511 = vmatpush1.bf16.msra.mxu0 0
        %2512 = vmatprep.subr.bf16.mxu0 0
        %2513 = vmatpush1.bf16.msra.mxu0 0
        %2514 = vmatprep.subr.bf16.mxu0 0
        %2515 = vmatpush1.bf16.msra.mxu0 0
        %2516 = vmatprep.subr.bf16.mxu0 0
        %2517 = vmatpush1.bf16.msra.mxu0 0
        %2518 = vmatprep.subr.bf16.mxu0 0
        %2519 = vmatpush1.bf16.msra.mxu0 0
        %2520 = vmatprep.subr.bf16.mxu0 0
        %2521 = vmatpush1.bf16.msra.mxu0 0
        %2522 = vmatprep.subr.bf16.mxu0 0
        %2523 = vmatpush1.bf16.msra.mxu0 0
        %2524 = vmatprep.subr.bf16.mxu0 0
        %2525 = vmatpush1.bf16.msra.mxu0 0
        %2526 = vmatprep.subr.bf16.mxu0 0
        %2527 = vmatpush1.bf16.msra.mxu0 0
        %2528 = vmatprep.subr.bf16.mxu0 0
        %2529 = vmatpush1.bf16.msra.mxu0 0
        %2530 = vmatprep.subr.bf16.mxu0 0
        %2531 = vmatpush1.bf16.msra.mxu0 0
        %2532 = vmatprep.subr.bf16.mxu0 0
        %2533 = vmatpush1.bf16.msra.mxu0 0
        %2534 = vmatprep.mubr.bf16.mxu0 0
        %2535 = vmatmul.mubr.bf16.gmra.mrb[0].mxu0 %v2370
        %v2536 = vpop.f32.mrb[0].mxu0
        %v2537 = vadd.f32 0.0, %v2536
        %v2538 = vpop.f32.mrb[0].mxu0
        %v2539 = vadd.f32 0.0, %v2538
        %v2540 = vpop.f32.mrb[0].mxu0
        %v2541 = vpop.f32.mrb[0].mxu0
        %2542 = vdwg.mxu0
        %2543 = vmatprep.subr.bf16.mxu0 %v2191
        %2544 = vmatpush1.bf16.msra.mxu0 %v2190
        %2545 = vmatprep.subr.bf16.mxu0 %v2394
        %2546 = vmatpush1.bf16.msra.mxu0 %v2391
        %2547 = vmatprep.subr.bf16.mxu0 0
        %2548 = vmatpush1.bf16.msra.mxu0 0
        %2549 = vmatprep.subr.bf16.mxu0 0
        %2550 = vmatpush1.bf16.msra.mxu0 0
        %2551 = vmatprep.subr.bf16.mxu0 0
        %2552 = vmatpush1.bf16.msra.mxu0 0
        %2553 = vmatprep.subr.bf16.mxu0 0
        %2554 = vmatpush1.bf16.msra.mxu0 0
        %2555 = vmatprep.subr.bf16.mxu0 0
        %2556 = vmatpush1.bf16.msra.mxu0 0
        %2557 = vmatprep.subr.bf16.mxu0 0
        %2558 = vmatpush1.bf16.msra.mxu0 0
        %2559 = vmatprep.subr.bf16.mxu0 0
        %2560 = vmatpush1.bf16.msra.mxu0 0
        %2561 = vmatprep.subr.bf16.mxu0 0
        %2562 = vmatpush1.bf16.msra.mxu0 0
        %2563 = vmatprep.subr.bf16.mxu0 0
        %2564 = vmatpush1.bf16.msra.mxu0 0
        %2565 = vmatprep.subr.bf16.mxu0 0
        %2566 = vmatpush1.bf16.msra.mxu0 0
        %2567 = vmatprep.subr.bf16.mxu0 0
        %2568 = vmatpush1.bf16.msra.mxu0 0
        %2569 = vmatprep.subr.bf16.mxu0 0
        %2570 = vmatpush1.bf16.msra.mxu0 0
        %2571 = vmatprep.subr.bf16.mxu0 0
        %2572 = vmatpush1.bf16.msra.mxu0 0
        %2573 = vmatprep.subr.bf16.mxu0 0
        %2574 = vmatpush1.bf16.msra.mxu0 0
        %2575 = vmatprep.mubr.bf16.mxu0 0
        %2576 = vmatmul.mubr.bf16.gmra.mrb[0].mxu0 %v2370
        %v2577 = vpop.f32.mrb[0].mxu0
        %v2578 = vadd.f32 0.0, %v2577
        %v2579 = vpop.f32.mrb[0].mxu0
        %v2580 = vadd.f32 0.0, %v2579
        %v2581 = vpop.f32.mrb[0].mxu0
        %v2582 = vpop.f32.mrb[0].mxu0
        %2583 = vdwg.mxu0
        %2584 = vmatprep.subr.bf16.mxu0 %v2193
        %2585 = vmatpush1.bf16.msra.mxu0 %v2192
        %2586 = vmatprep.subr.bf16.mxu0 %v2400
        %2587 = vmatpush1.bf16.msra.mxu0 %v2397
        %2588 = vmatprep.subr.bf16.mxu0 0
        %2589 = vmatpush1.bf16.msra.mxu0 0
        %2590 = vmatprep.subr.bf16.mxu0 0
        %2591 = vmatpush1.bf16.msra.mxu0 0
        %2592 = vmatprep.subr.bf16.mxu0 0
        %2593 = vmatpush1.bf16.msra.mxu0 0
        %2594 = vmatprep.subr.bf16.mxu0 0
        %2595 = vmatpush1.bf16.msra.mxu0 0
        %2596 = vmatprep.subr.bf16.mxu0 0
        %2597 = vmatpush1.bf16.msra.mxu0 0
        %2598 = vmatprep.subr.bf16.mxu0 0
        %2599 = vmatpush1.bf16.msra.mxu0 0
        %2600 = vmatprep.subr.bf16.mxu0 0
        %2601 = vmatpush1.bf16.msra.mxu0 0
        %2602 = vmatprep.subr.bf16.mxu0 0
        %2603 = vmatpush1.bf16.msra.mxu0 0
        %2604 = vmatprep.subr.bf16.mxu0 0
        %2605 = vmatpush1.bf16.msra.mxu0 0
        %2606 = vmatprep.subr.bf16.mxu0 0
        %2607 = vmatpush1.bf16.msra.mxu0 0
        %2608 = vmatprep.subr.bf16.mxu0 0
        %2609 = vmatpush1.bf16.msra.mxu0 0
        %2610 = vmatprep.subr.bf16.mxu0 0
        %2611 = vmatpush1.bf16.msra.mxu0 0
        %2612 = vmatprep.subr.bf16.mxu0 0
        %2613 = vmatpush1.bf16.msra.mxu0 0
        %2614 = vmatprep.subr.bf16.mxu0 0
        %2615 = vmatpush1.bf16.msra.mxu0 0
        %2616 = vmatprep.mubr.bf16.mxu0 0
        %2617 = vmatmul.mubr.bf16.gmra.mrb[0].mxu0 %v2370
        %v2618 = vpop.f32.mrb[0].mxu0
        %v2619 = vadd.f32 0.0, %v2618
        %v2620 = vpop.f32.mrb[0].mxu0
        %v2621 = vadd.f32 0.0, %v2620
        %v2622 = vpop.f32.mrb[0].mxu0
        %v2623 = vpop.f32.mrb[0].mxu0
        %2624 = vdwg.mxu0
        %2625 = vmatprep.subr.bf16.mxu0 %v2195
        %2626 = vmatpush1.bf16.msra.mxu0 %v2194
        %2627 = vmatprep.subr.bf16.mxu0 %v2406
        %2628 = vmatpush1.bf16.msra.mxu0 %v2403
        %2629 = vmatprep.subr.bf16.mxu0 0
        %2630 = vmatpush1.bf16.msra.mxu0 0
        %2631 = vmatprep.subr.bf16.mxu0 0
        %2632 = vmatpush1.bf16.msra.mxu0 0
        %2633 = vmatprep.subr.bf16.mxu0 0
        %2634 = vmatpush1.bf16.msra.mxu0 0
        %2635 = vmatprep.subr.bf16.mxu0 0
        %2636 = vmatpush1.bf16.msra.mxu0 0
        %2637 = vmatprep.subr.bf16.mxu0 0
        %2638 = vmatpush1.bf16.msra.mxu0 0
        %2639 = vmatprep.subr.bf16.mxu0 0
        %2640 = vmatpush1.bf16.msra.mxu0 0
        %2641 = vmatprep.subr.bf16.mxu0 0
        %2642 = vmatpush1.bf16.msra.mxu0 0
        %2643 = vmatprep.subr.bf16.mxu0 0
        %2644 = vmatpush1.bf16.msra.mxu0 0
        %2645 = vmatprep.subr.bf16.mxu0 0
        %2646 = vmatpush1.bf16.msra.mxu0 0
        %2647 = vmatprep.subr.bf16.mxu0 0
        %2648 = vmatpush1.bf16.msra.mxu0 0
        %2649 = vmatprep.subr.bf16.mxu0 0
        %2650 = vmatpush1.bf16.msra.mxu0 0
        %2651 = vmatprep.subr.bf16.mxu0 0
        %2652 = vmatpush1.bf16.msra.mxu0 0
        %2653 = vmatprep.subr.bf16.mxu0 0
        %2654 = vmatpush1.bf16.msra.mxu0 0
        %2655 = vmatprep.subr.bf16.mxu0 0
        %2656 = vmatpush1.bf16.msra.mxu0 0
        %2657 = vmatprep.mubr.bf16.mxu0 0
        %2658 = vmatmul.mubr.bf16.gmra.mrb[0].mxu0 %v2370
        %v2659 = vpop.f32.mrb[0].mxu0
        %v2660 = vadd.f32 0.0, %v2659
        %v2661 = vpop.f32.mrb[0].mxu0
        %v2662 = vadd.f32 0.0, %v2661
        %v2663 = vpop.f32.mrb[0].mxu0
        %v2664 = vpop.f32.mrb[0].mxu0
        %2665 = vdwg.mxu0
        %2666 = vmatprep.subr.bf16.mxu0 %v2197
        %2667 = vmatpush1.bf16.msra.mxu0 %v2196
        %2668 = vmatprep.subr.bf16.mxu0 %v2412
        %2669 = vmatpush1.bf16.msra.mxu0 %v2409
        %2670 = vmatprep.subr.bf16.mxu0 0
        %2671 = vmatpush1.bf16.msra.mxu0 0
        %2672 = vmatprep.subr.bf16.mxu0 0
        %2673 = vmatpush1.bf16.msra.mxu0 0
        %2674 = vmatprep.subr.bf16.mxu0 0
        %2675 = vmatpush1.bf16.msra.mxu0 0
        %2676 = vmatprep.subr.bf16.mxu0 0
        %2677 = vmatpush1.bf16.msra.mxu0 0
        %2678 = vmatprep.subr.bf16.mxu0 0
        %2679 = vmatpush1.bf16.msra.mxu0 0
        %2680 = vmatprep.subr.bf16.mxu0 0
        %2681 = vmatpush1.bf16.msra.mxu0 0
        %2682 = vmatprep.subr.bf16.mxu0 0
        %2683 = vmatpush1.bf16.msra.mxu0 0
        %2684 = vmatprep.subr.bf16.mxu0 0
        %2685 = vmatpush1.bf16.msra.mxu0 0
        %2686 = vmatprep.subr.bf16.mxu0 0
        %2687 = vmatpush1.bf16.msra.mxu0 0
        %2688 = vmatprep.subr.bf16.mxu0 0
        %2689 = vmatpush1.bf16.msra.mxu0 0
        %2690 = vmatprep.subr.bf16.mxu0 0
        %2691 = vmatpush1.bf16.msra.mxu0 0
        %2692 = vmatprep.subr.bf16.mxu0 0
        %2693 = vmatpush1.bf16.msra.mxu0 0
        %2694 = vmatprep.subr.bf16.mxu0 0
        %2695 = vmatpush1.bf16.msra.mxu0 0
        %2696 = vmatprep.subr.bf16.mxu0 0
        %2697 = vmatpush1.bf16.msra.mxu0 0
        %2698 = vmatprep.mubr.bf16.mxu0 0
        %2699 = vmatmul.mubr.bf16.gmra.mrb[0].mxu0 %v2370
        %v2700 = vpop.f32.mrb[0].mxu0
        %v2701 = vadd.f32 0.0, %v2700
        %v2702 = vpop.f32.mrb[0].mxu0
        %v2703 = vadd.f32 0.0, %v2702
        %v2704 = vpop.f32.mrb[0].mxu0
        %v2705 = vpop.f32.mrb[0].mxu0
        %2706 = vdwg.mxu0
        %2707 = vmatprep.subr.bf16.mxu0 %v2199
        %2708 = vmatpush1.bf16.msra.mxu0 %v2198
        %2709 = vmatprep.subr.bf16.mxu0 %v2418
        %2710 = vmatpush1.bf16.msra.mxu0 %v2415
        %2711 = vmatprep.subr.bf16.mxu0 0
        %2712 = vmatpush1.bf16.msra.mxu0 0
        %2713 = vmatprep.subr.bf16.mxu0 0
        %2714 = vmatpush1.bf16.msra.mxu0 0
        %2715 = vmatprep.subr.bf16.mxu0 0
        %2716 = vmatpush1.bf16.msra.mxu0 0
        %2717 = vmatprep.subr.bf16.mxu0 0
        %2718 = vmatpush1.bf16.msra.mxu0 0
        %2719 = vmatprep.subr.bf16.mxu0 0
        %2720 = vmatpush1.bf16.msra.mxu0 0
        %2721 = vmatprep.subr.bf16.mxu0 0
        %2722 = vmatpush1.bf16.msra.mxu0 0
        %2723 = vmatprep.subr.bf16.mxu0 0
        %2724 = vmatpush1.bf16.msra.mxu0 0
        %2725 = vmatprep.subr.bf16.mxu0 0
        %2726 = vmatpush1.bf16.msra.mxu0 0
        %2727 = vmatprep.subr.bf16.mxu0 0
        %2728 = vmatpush1.bf16.msra.mxu0 0
        %2729 = vmatprep.subr.bf16.mxu0 0
        %2730 = vmatpush1.bf16.msra.mxu0 0
        %2731 = vmatprep.subr.bf16.mxu0 0
        %2732 = vmatpush1.bf16.msra.mxu0 0
        %2733 = vmatprep.subr.bf16.mxu0 0
        %2734 = vmatpush1.bf16.msra.mxu0 0
        %2735 = vmatprep.subr.bf16.mxu0 0
        %2736 = vmatpush1.bf16.msra.mxu0 0
        %2737 = vmatprep.subr.bf16.mxu0 0
        %2738 = vmatpush1.bf16.msra.mxu0 0
        %2739 = vmatprep.mubr.bf16.mxu0 0
        %2740 = vmatmul.mubr.bf16.gmra.mrb[0].mxu0 %v2370
        %v2741 = vpop.f32.mrb[0].mxu0
        %v2742 = vadd.f32 0.0, %v2741
        %v2743 = vpop.f32.mrb[0].mxu0
        %v2744 = vadd.f32 0.0, %v2743
        %v2745 = vpop.f32.mrb[0].mxu0
        %v2746 = vpop.f32.mrb[0].mxu0
        %2747 = vdwg.mxu0
        %v2748 = vpack.c.bf16 %v2455, %v2455
        %v2749 = vpack.c.bf16 %v2457, %v2457
        %v2750 = vpack.c.bf16 %v2496, %v2496
        %v2751 = vpack.c.bf16 %v2498, %v2498
        %v2752 = vpack.c.bf16 %v2537, %v2537
        %v2753 = vpack.c.bf16 %v2539, %v2539
        %v2754 = vpack.c.bf16 %v2578, %v2578
        %v2755 = vpack.c.bf16 %v2580, %v2580
        %v2756 = vpack.c.bf16 %v2619, %v2619
        %v2757 = vpack.c.bf16 %v2621, %v2621
        %v2758 = vpack.c.bf16 %v2660, %v2660
        %v2759 = vpack.c.bf16 %v2662, %v2662
        %v2760 = vpack.c.bf16 %v2701, %v2701
        %v2761 = vpack.c.bf16 %v2703, %v2703
        %v2762 = vpack.c.bf16 %v2742, %v2742
        %v2763 = vpack.c.bf16 %v2744, %v2744
        %v2764 = vld [vmem:[%s12] sm:$0xff]
        %v2765 = vld [vmem:[%s12 + $0x8] sm:$0xff]
        %v2766 = vld [vmem:[%s12 + $0x10] sm:$0xff]
        %v2767 = vld [vmem:[%s12 + $0x18] sm:$0xff]
        %v2768 = vld [vmem:[%s12 + $0x20] sm:$0xff]
        %v2769 = vld [vmem:[%s12 + $0x28] sm:$0xff]
        %v2770 = vld [vmem:[%s12 + $0x30] sm:$0xff]
        %v2771 = vld [vmem:[%s12 + $0x38] sm:$0xff]
        %v2772 = vld [vmem:[%s12 + $0x40] sm:$0xff]
        %v2773 = vld [vmem:[%s12 + $0x48] sm:$0xff]
        %v2774 = vld [vmem:[%s12 + $0x50] sm:$0xff]
        %v2775 = vld [vmem:[%s12 + $0x58] sm:$0xff]
        %v2776 = vld [vmem:[%s12 + $0x60] sm:$0xff]
        %v2777 = vld [vmem:[%s12 + $0x68] sm:$0xff]
        %v2778 = vld [vmem:[%s12 + $0x70] sm:$0xff]
        %v2779 = vld [vmem:[%s12 + $0x78] sm:$0xff]
        %v2780 = vld [vmem:[%s12 + $0x80] sm:$0xff]
        %v2781 = vld [vmem:[%s12 + $0x88] sm:$0xff]
        %v2782 = vld [vmem:[%s12 + $0x90] sm:$0xff]
        %v2783 = vld [vmem:[%s12 + $0x98] sm:$0xff]
        %v2784 = vld [vmem:[%s12 + $0xa0] sm:$0xff]
        %v2785 = vld [vmem:[%s12 + $0xa8] sm:$0xff]
        %v2786 = vld [vmem:[%s12 + $0xb0] sm:$0xff]
        %v2787 = vld [vmem:[%s12 + $0xb8] sm:$0xff]
        %v2788 = vld [vmem:[%s12 + $0xc0] sm:$0xff]
        %v2789 = vld [vmem:[%s12 + $0xc8] sm:$0xff]
        %v2790 = vld [vmem:[%s12 + $0xd0] sm:$0xff]
        %v2791 = vld [vmem:[%s12 + $0xd8] sm:$0xff]
        %v2792 = vld [vmem:[%s12 + $0xe0] sm:$0xff]
        %v2793 = vld [vmem:[%s12 + $0xe8] sm:$0xff]
        %v2794 = vld [vmem:[%s12 + $0xf0] sm:$0xff]
        %v2795 = vld [vmem:[%s12 + $0xf8] sm:$0xff]
        %v2796 = vld [vmem:[%s12 + $0x100] sm:$0xff]
        %v2797 = vld [vmem:[%s12 + $0x108] sm:$0xff]
        %v2798 = vld [vmem:[%s12 + $0x110] sm:$0xff]
        %v2799 = vld [vmem:[%s12 + $0x118] sm:$0xff]
        %v2800 = vld [vmem:[%s12 + $0x120] sm:$0xff]
        %v2801 = vld [vmem:[%s12 + $0x128] sm:$0xff]
        %v2802 = vld [vmem:[%s12 + $0x130] sm:$0xff]
        %v2803 = vld [vmem:[%s12 + $0x138] sm:$0xff]
        %v2804 = vld [vmem:[%s12 + $0x140] sm:$0xff]
        %v2805 = vld [vmem:[%s12 + $0x148] sm:$0xff]
        %v2806 = vld [vmem:[%s12 + $0x150] sm:$0xff]
        %v2807 = vld [vmem:[%s12 + $0x158] sm:$0xff]
        %v2808 = vld [vmem:[%s12 + $0x160] sm:$0xff]
        %v2809 = vld [vmem:[%s12 + $0x168] sm:$0xff]
        %v2810 = vld [vmem:[%s12 + $0x170] sm:$0xff]
        %v2811 = vld [vmem:[%s12 + $0x178] sm:$0xff]
        %v2812 = vld [vmem:[%s12 + $0x180] sm:$0xff]
        %v2813 = vld [vmem:[%s12 + $0x188] sm:$0xff]
        %v2814 = vld [vmem:[%s12 + $0x190] sm:$0xff]
        %v2815 = vld [vmem:[%s12 + $0x198] sm:$0xff]
        %v2816 = vld [vmem:[%s12 + $0x1a0] sm:$0xff]
        %v2817 = vld [vmem:[%s12 + $0x1a8] sm:$0xff]
        %v2818 = vld [vmem:[%s12 + $0x1b0] sm:$0xff]
        %v2819 = vld [vmem:[%s12 + $0x1b8] sm:$0xff]
        %v2820 = vld [vmem:[%s12 + $0x1c0] sm:$0xff]
        %v2821 = vld [vmem:[%s12 + $0x1c8] sm:$0xff]
        %v2822 = vld [vmem:[%s12 + $0x1d0] sm:$0xff]
        %v2823 = vld [vmem:[%s12 + $0x1d8] sm:$0xff]
        %v2824 = vld [vmem:[%s12 + $0x1e0] sm:$0xff]
        %v2825 = vld [vmem:[%s12 + $0x1e8] sm:$0xff]
        %v2826 = vld [vmem:[%s12 + $0x1f0] sm:$0xff]
        %v2827 = vld [vmem:[%s12 + $0x1f8] sm:$0xff]
        %v2828 = vld [vmem:[%s12 + $0x200] sm:$0xff]
        %v2829 = vld [vmem:[%s12 + $0x208] sm:$0xff]
        %v2830 = vld [vmem:[%s12 + $0x210] sm:$0xff]
        %v2831 = vld [vmem:[%s12 + $0x218] sm:$0xff]
        %v2832 = vld [vmem:[%s12 + $0x220] sm:$0xff]
        %v2833 = vld [vmem:[%s12 + $0x228] sm:$0xff]
        %v2834 = vld [vmem:[%s12 + $0x230] sm:$0xff]
        %v2835 = vld [vmem:[%s12 + $0x238] sm:$0xff]
        %v2836 = vld [vmem:[%s12 + $0x240] sm:$0xff]
        %v2837 = vld [vmem:[%s12 + $0x248] sm:$0xff]
        %v2838 = vld [vmem:[%s12 + $0x250] sm:$0xff]
        %v2839 = vld [vmem:[%s12 + $0x258] sm:$0xff]
        %v2840 = vld [vmem:[%s12 + $0x260] sm:$0xff]
        %v2841 = vld [vmem:[%s12 + $0x268] sm:$0xff]
        %v2842 = vld [vmem:[%s12 + $0x270] sm:$0xff]
        %v2843 = vld [vmem:[%s12 + $0x278] sm:$0xff]
        %v2844 = vld [vmem:[%s12 + $0x280] sm:$0xff]
        %v2845 = vld [vmem:[%s12 + $0x288] sm:$0xff]
        %v2846 = vld [vmem:[%s12 + $0x290] sm:$0xff]
        %v2847 = vld [vmem:[%s12 + $0x298] sm:$0xff]
        %v2848 = vld [vmem:[%s12 + $0x2a0] sm:$0xff]
        %v2849 = vld [vmem:[%s12 + $0x2a8] sm:$0xff]
        %v2850 = vld [vmem:[%s12 + $0x2b0] sm:$0xff]
        %v2851 = vld [vmem:[%s12 + $0x2b8] sm:$0xff]
        %v2852 = vld [vmem:[%s12 + $0x2c0] sm:$0xff]
        %v2853 = vld [vmem:[%s12 + $0x2c8] sm:$0xff]
        %v2854 = vld [vmem:[%s12 + $0x2d0] sm:$0xff]
        %v2855 = vld [vmem:[%s12 + $0x2d8] sm:$0xff]
        %v2856 = vld [vmem:[%s12 + $0x2e0] sm:$0xff]
        %v2857 = vld [vmem:[%s12 + $0x2e8] sm:$0xff]
        %v2858 = vld [vmem:[%s12 + $0x2f0] sm:$0xff]
        %v2859 = vld [vmem:[%s12 + $0x2f8] sm:$0xff]
        %v2860 = vld [vmem:[%s12 + $0x300] sm:$0xff]
        %v2861 = vld [vmem:[%s12 + $0x308] sm:$0xff]
        %v2862 = vld [vmem:[%s12 + $0x310] sm:$0xff]
        %v2863 = vld [vmem:[%s12 + $0x318] sm:$0xff]
        %v2864 = vld [vmem:[%s12 + $0x320] sm:$0xff]
        %v2865 = vld [vmem:[%s12 + $0x328] sm:$0xff]
        %v2866 = vld [vmem:[%s12 + $0x330] sm:$0xff]
        %v2867 = vld [vmem:[%s12 + $0x338] sm:$0xff]
        %v2868 = vld [vmem:[%s12 + $0x340] sm:$0xff]
        %v2869 = vld [vmem:[%s12 + $0x348] sm:$0xff]
        %v2870 = vld [vmem:[%s12 + $0x350] sm:$0xff]
        %v2871 = vld [vmem:[%s12 + $0x358] sm:$0xff]
        %v2872 = vld [vmem:[%s12 + $0x360] sm:$0xff]
        %v2873 = vld [vmem:[%s12 + $0x368] sm:$0xff]
        %v2874 = vld [vmem:[%s12 + $0x370] sm:$0xff]
        %v2875 = vld [vmem:[%s12 + $0x378] sm:$0xff]
        %v2876 = vld [vmem:[%s12 + $0x380] sm:$0xff]
        %v2877 = vld [vmem:[%s12 + $0x388] sm:$0xff]
        %v2878 = vld [vmem:[%s12 + $0x390] sm:$0xff]
        %v2879 = vld [vmem:[%s12 + $0x398] sm:$0xff]
        %v2880 = vld [vmem:[%s12 + $0x3a0] sm:$0xff]
        %v2881 = vld [vmem:[%s12 + $0x3a8] sm:$0xff]
        %v2882 = vld [vmem:[%s12 + $0x3b0] sm:$0xff]
        %v2883 = vld [vmem:[%s12 + $0x3b8] sm:$0xff]
        %v2884 = vld [vmem:[%s12 + $0x3c0] sm:$0xff]
        %v2885 = vld [vmem:[%s12 + $0x3c8] sm:$0xff]
        %v2886 = vld [vmem:[%s12 + $0x3d0] sm:$0xff]
        %v2887 = vld [vmem:[%s12 + $0x3d8] sm:$0xff]
        %v2888 = vld [vmem:[%s12 + $0x3e0] sm:$0xff]
        %v2889 = vld [vmem:[%s12 + $0x3e8] sm:$0xff]
        %v2890 = vld [vmem:[%s12 + $0x3f0] sm:$0xff]
        %v2891 = vld [vmem:[%s12 + $0x3f8] sm:$0xff]
        %v3020 = vunpack.c.l.b16 %v2764
        %v3021 = vunpack.c.h.b16 %v2764
        %v3022 = vunpack.c.l.b16 %v2765
        %v3023 = vunpack.c.h.b16 %v2765
        %v3024 = vunpack.c.l.b16 %v2766
        %v3025 = vunpack.c.h.b16 %v2766
        %v3026 = vunpack.c.l.b16 %v2767
        %v3027 = vunpack.c.h.b16 %v2767
        %v3028 = vunpack.c.l.b16 %v2768
        %v3029 = vunpack.c.h.b16 %v2768
        %v3030 = vunpack.c.l.b16 %v2769
        %v3031 = vunpack.c.h.b16 %v2769
        %v3032 = vunpack.c.l.b16 %v2770
        %v3033 = vunpack.c.h.b16 %v2770
        %v3034 = vunpack.c.l.b16 %v2771
        %v3035 = vunpack.c.h.b16 %v2771
        %v3036 = vunpack.c.l.b16 %v2772
        %v3037 = vunpack.c.h.b16 %v2772
        %v3038 = vunpack.c.l.b16 %v2773
        %v3039 = vunpack.c.h.b16 %v2773
        %v3040 = vunpack.c.l.b16 %v2774
        %v3041 = vunpack.c.h.b16 %v2774
        %v3042 = vunpack.c.l.b16 %v2775
        %v3043 = vunpack.c.h.b16 %v2775
        %v3044 = vunpack.c.l.b16 %v2776
        %v3045 = vunpack.c.h.b16 %v2776
        %v3046 = vunpack.c.l.b16 %v2777
        %v3047 = vunpack.c.h.b16 %v2777
        %v3048 = vunpack.c.l.b16 %v2778
        %v3049 = vunpack.c.h.b16 %v2778
        %v3050 = vunpack.c.l.b16 %v2779
        %v3051 = vunpack.c.h.b16 %v2779
        %v3052 = vunpack.c.l.b16 %v2780
        %v3053 = vunpack.c.h.b16 %v2780
        %v3054 = vunpack.c.l.b16 %v2781
        %v3055 = vunpack.c.h.b16 %v2781
        %v3056 = vunpack.c.l.b16 %v2782
        %v3057 = vunpack.c.h.b16 %v2782
        %v3058 = vunpack.c.l.b16 %v2783
        %v3059 = vunpack.c.h.b16 %v2783
        %v3060 = vunpack.c.l.b16 %v2784
        %v3061 = vunpack.c.h.b16 %v2784
        %v3062 = vunpack.c.l.b16 %v2785
        %v3063 = vunpack.c.h.b16 %v2785
        %v3064 = vunpack.c.l.b16 %v2786
        %v3065 = vunpack.c.h.b16 %v2786
        %v3066 = vunpack.c.l.b16 %v2787
        %v3067 = vunpack.c.h.b16 %v2787
        %v3068 = vunpack.c.l.b16 %v2788
        %v3069 = vunpack.c.h.b16 %v2788
        %v3070 = vunpack.c.l.b16 %v2789
        %v3071 = vunpack.c.h.b16 %v2789
        %v3072 = vunpack.c.l.b16 %v2790
        %v3073 = vunpack.c.h.b16 %v2790
        %v3074 = vunpack.c.l.b16 %v2791
        %v3075 = vunpack.c.h.b16 %v2791
        %v3076 = vunpack.c.l.b16 %v2792
        %v3077 = vunpack.c.h.b16 %v2792
        %v3078 = vunpack.c.l.b16 %v2793
        %v3079 = vunpack.c.h.b16 %v2793
        %v3080 = vunpack.c.l.b16 %v2794
        %v3081 = vunpack.c.h.b16 %v2794
        %v3082 = vunpack.c.l.b16 %v2795
        %v3083 = vunpack.c.h.b16 %v2795
        %v3084 = vunpack.c.l.b16 %v2796
        %v3085 = vunpack.c.h.b16 %v2796
        %v3086 = vunpack.c.l.b16 %v2797
        %v3087 = vunpack.c.h.b16 %v2797
        %v3088 = vunpack.c.l.b16 %v2798
        %v3089 = vunpack.c.h.b16 %v2798
        %v3090 = vunpack.c.l.b16 %v2799
        %v3091 = vunpack.c.h.b16 %v2799
        %v3092 = vunpack.c.l.b16 %v2800
        %v3093 = vunpack.c.h.b16 %v2800
        %v3094 = vunpack.c.l.b16 %v2801
        %v3095 = vunpack.c.h.b16 %v2801
        %v3096 = vunpack.c.l.b16 %v2802
        %v3097 = vunpack.c.h.b16 %v2802
        %v3098 = vunpack.c.l.b16 %v2803
        %v3099 = vunpack.c.h.b16 %v2803
        %v3100 = vunpack.c.l.b16 %v2804
        %v3101 = vunpack.c.h.b16 %v2804
        %v3102 = vunpack.c.l.b16 %v2805
        %v3103 = vunpack.c.h.b16 %v2805
        %v3104 = vunpack.c.l.b16 %v2806
        %v3105 = vunpack.c.h.b16 %v2806
        %v3106 = vunpack.c.l.b16 %v2807
        %v3107 = vunpack.c.h.b16 %v2807
        %v3108 = vunpack.c.l.b16 %v2808
        %v3109 = vunpack.c.h.b16 %v2808
        %v3110 = vunpack.c.l.b16 %v2809
        %v3111 = vunpack.c.h.b16 %v2809
        %v3112 = vunpack.c.l.b16 %v2810
        %v3113 = vunpack.c.h.b16 %v2810
        %v3114 = vunpack.c.l.b16 %v2811
        %v3115 = vunpack.c.h.b16 %v2811
        %v3116 = vunpack.c.l.b16 %v2812
        %v3117 = vunpack.c.h.b16 %v2812
        %v3118 = vunpack.c.l.b16 %v2813
        %v3119 = vunpack.c.h.b16 %v2813
        %v3120 = vunpack.c.l.b16 %v2814
        %v3121 = vunpack.c.h.b16 %v2814
        %v3122 = vunpack.c.l.b16 %v2815
        %v3123 = vunpack.c.h.b16 %v2815
        %v3124 = vunpack.c.l.b16 %v2816
        %v3125 = vunpack.c.h.b16 %v2816
        %v3126 = vunpack.c.l.b16 %v2817
        %v3127 = vunpack.c.h.b16 %v2817
        %v3128 = vunpack.c.l.b16 %v2818
        %v3129 = vunpack.c.h.b16 %v2818
        %v3130 = vunpack.c.l.b16 %v2819
        %v3131 = vunpack.c.h.b16 %v2819
        %v3132 = vunpack.c.l.b16 %v2820
        %v3133 = vunpack.c.h.b16 %v2820
        %v3134 = vunpack.c.l.b16 %v2821
        %v3135 = vunpack.c.h.b16 %v2821
        %v3136 = vunpack.c.l.b16 %v2822
        %v3137 = vunpack.c.h.b16 %v2822
        %v3138 = vunpack.c.l.b16 %v2823
        %v3139 = vunpack.c.h.b16 %v2823
        %v3140 = vunpack.c.l.b16 %v2824
        %v3141 = vunpack.c.h.b16 %v2824
        %v3142 = vunpack.c.l.b16 %v2825
        %v3143 = vunpack.c.h.b16 %v2825
        %v3144 = vunpack.c.l.b16 %v2826
        %v3145 = vunpack.c.h.b16 %v2826
        %v3146 = vunpack.c.l.b16 %v2827
        %v3147 = vunpack.c.h.b16 %v2827
        %v3148 = vunpack.c.l.b16 %v2828
        %v3149 = vunpack.c.h.b16 %v2828
        %v3150 = vunpack.c.l.b16 %v2829
        %v3151 = vunpack.c.h.b16 %v2829
        %v3152 = vunpack.c.l.b16 %v2830
        %v3153 = vunpack.c.h.b16 %v2830
        %v3154 = vunpack.c.l.b16 %v2831
        %v3155 = vunpack.c.h.b16 %v2831
        %v3156 = vunpack.c.l.b16 %v2832
        %v3157 = vunpack.c.h.b16 %v2832
        %v3158 = vunpack.c.l.b16 %v2833
        %v3159 = vunpack.c.h.b16 %v2833
        %v3160 = vunpack.c.l.b16 %v2834
        %v3161 = vunpack.c.h.b16 %v2834
        %v3162 = vunpack.c.l.b16 %v2835
        %v3163 = vunpack.c.h.b16 %v2835
        %v3164 = vunpack.c.l.b16 %v2836
        %v3165 = vunpack.c.h.b16 %v2836
        %v3166 = vunpack.c.l.b16 %v2837
        %v3167 = vunpack.c.h.b16 %v2837
        %v3168 = vunpack.c.l.b16 %v2838
        %v3169 = vunpack.c.h.b16 %v2838
        %v3170 = vunpack.c.l.b16 %v2839
        %v3171 = vunpack.c.h.b16 %v2839
        %v3172 = vunpack.c.l.b16 %v2840
        %v3173 = vunpack.c.h.b16 %v2840
        %v3174 = vunpack.c.l.b16 %v2841
        %v3175 = vunpack.c.h.b16 %v2841
        %v3176 = vunpack.c.l.b16 %v2842
        %v3177 = vunpack.c.h.b16 %v2842
        %v3178 = vunpack.c.l.b16 %v2843
        %v3179 = vunpack.c.h.b16 %v2843
        %v3180 = vunpack.c.l.b16 %v2844
        %v3181 = vunpack.c.h.b16 %v2844
        %v3182 = vunpack.c.l.b16 %v2845
        %v3183 = vunpack.c.h.b16 %v2845
        %v3184 = vunpack.c.l.b16 %v2846
        %v3185 = vunpack.c.h.b16 %v2846
        %v3186 = vunpack.c.l.b16 %v2847
        %v3187 = vunpack.c.h.b16 %v2847
        %v3188 = vunpack.c.l.b16 %v2848
        %v3189 = vunpack.c.h.b16 %v2848
        %v3190 = vunpack.c.l.b16 %v2849
        %v3191 = vunpack.c.h.b16 %v2849
        %v3192 = vunpack.c.l.b16 %v2850
        %v3193 = vunpack.c.h.b16 %v2850
        %v3194 = vunpack.c.l.b16 %v2851
        %v3195 = vunpack.c.h.b16 %v2851
        %v3196 = vunpack.c.l.b16 %v2852
        %v3197 = vunpack.c.h.b16 %v2852
        %v3198 = vunpack.c.l.b16 %v2853
        %v3199 = vunpack.c.h.b16 %v2853
        %v3200 = vunpack.c.l.b16 %v2854
        %v3201 = vunpack.c.h.b16 %v2854
        %v3202 = vunpack.c.l.b16 %v2855
        %v3203 = vunpack.c.h.b16 %v2855
        %v3204 = vunpack.c.l.b16 %v2856
        %v3205 = vunpack.c.h.b16 %v2856
        %v3206 = vunpack.c.l.b16 %v2857
        %v3207 = vunpack.c.h.b16 %v2857
        %v3208 = vunpack.c.l.b16 %v2858
        %v3209 = vunpack.c.h.b16 %v2858
        %v3210 = vunpack.c.l.b16 %v2859
        %v3211 = vunpack.c.h.b16 %v2859
        %v3212 = vunpack.c.l.b16 %v2860
        %v3213 = vunpack.c.h.b16 %v2860
        %v3214 = vunpack.c.l.b16 %v2861
        %v3215 = vunpack.c.h.b16 %v2861
        %v3216 = vunpack.c.l.b16 %v2862
        %v3217 = vunpack.c.h.b16 %v2862
        %v3218 = vunpack.c.l.b16 %v2863
        %v3219 = vunpack.c.h.b16 %v2863
        %v3220 = vunpack.c.l.b16 %v2864
        %v3221 = vunpack.c.h.b16 %v2864
        %v3222 = vunpack.c.l.b16 %v2865
        %v3223 = vunpack.c.h.b16 %v2865
        %v3224 = vunpack.c.l.b16 %v2866
        %v3225 = vunpack.c.h.b16 %v2866
        %v3226 = vunpack.c.l.b16 %v2867
        %v3227 = vunpack.c.h.b16 %v2867
        %v3228 = vunpack.c.l.b16 %v2868
        %v3229 = vunpack.c.h.b16 %v2868
        %v3230 = vunpack.c.l.b16 %v2869
        %v3231 = vunpack.c.h.b16 %v2869
        %v3232 = vunpack.c.l.b16 %v2870
        %v3233 = vunpack.c.h.b16 %v2870
        %v3234 = vunpack.c.l.b16 %v2871
        %v3235 = vunpack.c.h.b16 %v2871
        %v3236 = vunpack.c.l.b16 %v2872
        %v3237 = vunpack.c.h.b16 %v2872
        %v3238 = vunpack.c.l.b16 %v2873
        %v3239 = vunpack.c.h.b16 %v2873
        %v3240 = vunpack.c.l.b16 %v2874
        %v3241 = vunpack.c.h.b16 %v2874
        %v3242 = vunpack.c.l.b16 %v2875
        %v3243 = vunpack.c.h.b16 %v2875
        %v3244 = vunpack.c.l.b16 %v2876
        %v3245 = vunpack.c.h.b16 %v2876
        %v3246 = vunpack.c.l.b16 %v2877
        %v3247 = vunpack.c.h.b16 %v2877
        %v3248 = vunpack.c.l.b16 %v2878
        %v3249 = vunpack.c.h.b16 %v2878
        %v3250 = vunpack.c.l.b16 %v2879
        %v3251 = vunpack.c.h.b16 %v2879
        %v3252 = vunpack.c.l.b16 %v2880
        %v3253 = vunpack.c.h.b16 %v2880
        %v3254 = vunpack.c.l.b16 %v2881
        %v3255 = vunpack.c.h.b16 %v2881
        %v3256 = vunpack.c.l.b16 %v2882
        %v3257 = vunpack.c.h.b16 %v2882
        %v3258 = vunpack.c.l.b16 %v2883
        %v3259 = vunpack.c.h.b16 %v2883
        %v3260 = vunpack.c.l.b16 %v2884
        %v3261 = vunpack.c.h.b16 %v2884
        %v3262 = vunpack.c.l.b16 %v2885
        %v3263 = vunpack.c.h.b16 %v2885
        %v3264 = vunpack.c.l.b16 %v2886
        %v3265 = vunpack.c.h.b16 %v2886
        %v3266 = vunpack.c.l.b16 %v2887
        %v3267 = vunpack.c.h.b16 %v2887
        %v3268 = vunpack.c.l.b16 %v2888
        %v3269 = vunpack.c.h.b16 %v2888
        %v3270 = vunpack.c.l.b16 %v2889
        %v3271 = vunpack.c.h.b16 %v2889
        %v3272 = vunpack.c.l.b16 %v2890
        %v3273 = vunpack.c.h.b16 %v2890
        %v3274 = vunpack.c.l.b16 %v2891
        %v3275 = vunpack.c.h.b16 %v2891
        %v3276 = vpack.c.b16 %v3022, %v3020
        %v3277 = vpack.c.b16 %v3023, %v3021
        %v3278 = vpack.c.b16 %v3026, %v3024
        %v3279 = vpack.c.b16 %v3027, %v3025
        %v3280 = vpack.c.b16 %v3030, %v3028
        %v3281 = vpack.c.b16 %v3031, %v3029
        %v3282 = vpack.c.b16 %v3034, %v3032
        %v3283 = vpack.c.b16 %v3035, %v3033
        %v3284 = vpack.c.b16 %v3038, %v3036
        %v3285 = vpack.c.b16 %v3039, %v3037
        %v3286 = vpack.c.b16 %v3042, %v3040
        %v3287 = vpack.c.b16 %v3043, %v3041
        %v3288 = vpack.c.b16 %v3046, %v3044
        %v3289 = vpack.c.b16 %v3047, %v3045
        %v3290 = vpack.c.b16 %v3050, %v3048
        %v3291 = vpack.c.b16 %v3051, %v3049
        %v3292 = vpack.c.b16 %v3054, %v3052
        %v3293 = vpack.c.b16 %v3055, %v3053
        %v3294 = vpack.c.b16 %v3058, %v3056
        %v3295 = vpack.c.b16 %v3059, %v3057
        %v3296 = vpack.c.b16 %v3062, %v3060
        %v3297 = vpack.c.b16 %v3063, %v3061
        %v3298 = vpack.c.b16 %v3066, %v3064
        %v3299 = vpack.c.b16 %v3067, %v3065
        %v3300 = vpack.c.b16 %v3070, %v3068
        %v3301 = vpack.c.b16 %v3071, %v3069
        %v3302 = vpack.c.b16 %v3074, %v3072
        %v3303 = vpack.c.b16 %v3075, %v3073
        %v3304 = vpack.c.b16 %v3078, %v3076
        %v3305 = vpack.c.b16 %v3079, %v3077
        %v3306 = vpack.c.b16 %v3082, %v3080
        %v3307 = vpack.c.b16 %v3083, %v3081
        %v3308 = vpack.c.b16 %v3086, %v3084
        %v3309 = vpack.c.b16 %v3087, %v3085
        %v3310 = vpack.c.b16 %v3090, %v3088
        %v3311 = vpack.c.b16 %v3091, %v3089
        %v3312 = vpack.c.b16 %v3094, %v3092
        %v3313 = vpack.c.b16 %v3095, %v3093
        %v3314 = vpack.c.b16 %v3098, %v3096
        %v3315 = vpack.c.b16 %v3099, %v3097
        %v3316 = vpack.c.b16 %v3102, %v3100
        %v3317 = vpack.c.b16 %v3103, %v3101
        %v3318 = vpack.c.b16 %v3106, %v3104
        %v3319 = vpack.c.b16 %v3107, %v3105
        %v3320 = vpack.c.b16 %v3110, %v3108
        %v3321 = vpack.c.b16 %v3111, %v3109
        %v3322 = vpack.c.b16 %v3114, %v3112
        %v3323 = vpack.c.b16 %v3115, %v3113
        %v3324 = vpack.c.b16 %v3118, %v3116
        %v3325 = vpack.c.b16 %v3119, %v3117
        %v3326 = vpack.c.b16 %v3122, %v3120
        %v3327 = vpack.c.b16 %v3123, %v3121
        %v3328 = vpack.c.b16 %v3126, %v3124
        %v3329 = vpack.c.b16 %v3127, %v3125
        %v3330 = vpack.c.b16 %v3130, %v3128
        %v3331 = vpack.c.b16 %v3131, %v3129
        %v3332 = vpack.c.b16 %v3134, %v3132
        %v3333 = vpack.c.b16 %v3135, %v3133
        %v3334 = vpack.c.b16 %v3138, %v3136
        %v3335 = vpack.c.b16 %v3139, %v3137
        %v3336 = vpack.c.b16 %v3142, %v3140
        %v3337 = vpack.c.b16 %v3143, %v3141
        %v3338 = vpack.c.b16 %v3146, %v3144
        %v3339 = vpack.c.b16 %v3147, %v3145
        %v3340 = vpack.c.b16 %v3150, %v3148
        %v3341 = vpack.c.b16 %v3151, %v3149
        %v3342 = vpack.c.b16 %v3154, %v3152
        %v3343 = vpack.c.b16 %v3155, %v3153
        %v3344 = vpack.c.b16 %v3158, %v3156
        %v3345 = vpack.c.b16 %v3159, %v3157
        %v3346 = vpack.c.b16 %v3162, %v3160
        %v3347 = vpack.c.b16 %v3163, %v3161
        %v3348 = vpack.c.b16 %v3166, %v3164
        %v3349 = vpack.c.b16 %v3167, %v3165
        %v3350 = vpack.c.b16 %v3170, %v3168
        %v3351 = vpack.c.b16 %v3171, %v3169
        %v3352 = vpack.c.b16 %v3174, %v3172
        %v3353 = vpack.c.b16 %v3175, %v3173
        %v3354 = vpack.c.b16 %v3178, %v3176
        %v3355 = vpack.c.b16 %v3179, %v3177
        %v3356 = vpack.c.b16 %v3182, %v3180
        %v3357 = vpack.c.b16 %v3183, %v3181
        %v3358 = vpack.c.b16 %v3186, %v3184
        %v3359 = vpack.c.b16 %v3187, %v3185
        %v3360 = vpack.c.b16 %v3190, %v3188
        %v3361 = vpack.c.b16 %v3191, %v3189
        %v3362 = vpack.c.b16 %v3194, %v3192
        %v3363 = vpack.c.b16 %v3195, %v3193
        %v3364 = vpack.c.b16 %v3198, %v3196
        %v3365 = vpack.c.b16 %v3199, %v3197
        %v3366 = vpack.c.b16 %v3202, %v3200
        %v3367 = vpack.c.b16 %v3203, %v3201
        %v3368 = vpack.c.b16 %v3206, %v3204
        %v3369 = vpack.c.b16 %v3207, %v3205
        %v3370 = vpack.c.b16 %v3210, %v3208
        %v3371 = vpack.c.b16 %v3211, %v3209
        %v3372 = vpack.c.b16 %v3214, %v3212
        %v3373 = vpack.c.b16 %v3215, %v3213
        %v3374 = vpack.c.b16 %v3218, %v3216
        %v3375 = vpack.c.b16 %v3219, %v3217
        %v3376 = vpack.c.b16 %v3222, %v3220
        %v3377 = vpack.c.b16 %v3223, %v3221
        %v3378 = vpack.c.b16 %v3226, %v3224
        %v3379 = vpack.c.b16 %v3227, %v3225
        %v3380 = vpack.c.b16 %v3230, %v3228
        %v3381 = vpack.c.b16 %v3231, %v3229
        %v3382 = vpack.c.b16 %v3234, %v3232
        %v3383 = vpack.c.b16 %v3235, %v3233
        %v3384 = vpack.c.b16 %v3238, %v3236
        %v3385 = vpack.c.b16 %v3239, %v3237
        %v3386 = vpack.c.b16 %v3242, %v3240
        %v3387 = vpack.c.b16 %v3243, %v3241
        %v3388 = vpack.c.b16 %v3246, %v3244
        %v3389 = vpack.c.b16 %v3247, %v3245
        %v3390 = vpack.c.b16 %v3250, %v3248
        %v3391 = vpack.c.b16 %v3251, %v3249
        %v3392 = vpack.c.b16 %v3254, %v3252
        %v3393 = vpack.c.b16 %v3255, %v3253
        %v3394 = vpack.c.b16 %v3258, %v3256
        %v3395 = vpack.c.b16 %v3259, %v3257
        %v3396 = vpack.c.b16 %v3262, %v3260
        %v3397 = vpack.c.b16 %v3263, %v3261
        %v3398 = vpack.c.b16 %v3266, %v3264
        %v3399 = vpack.c.b16 %v3267, %v3265
        %v3400 = vpack.c.b16 %v3270, %v3268
        %v3401 = vpack.c.b16 %v3271, %v3269
        %v3402 = vpack.c.b16 %v3274, %v3272
        %v3403 = vpack.c.b16 %v3275, %v3273
        %3532 = vmatprep.subr.bf16.mxu0 %v3277
        %3533 = vmatpush1.bf16.msra.mxu0 %v3276
        %3534 = vmatprep.subr.bf16.mxu0 %v3279
        %3535 = vmatpush1.bf16.msra.mxu0 %v3278
        %3536 = vmatprep.subr.bf16.mxu0 %v3281
        %3537 = vmatpush1.bf16.msra.mxu0 %v3280
        %3538 = vmatprep.subr.bf16.mxu0 %v3283
        %3539 = vmatpush1.bf16.msra.mxu0 %v3282
        %3540 = vmatprep.subr.bf16.mxu0 %v3285
        %3541 = vmatpush1.bf16.msra.mxu0 %v3284
        %3542 = vmatprep.subr.bf16.mxu0 %v3287
        %3543 = vmatpush1.bf16.msra.mxu0 %v3286
        %3544 = vmatprep.subr.bf16.mxu0 %v3289
        %3545 = vmatpush1.bf16.msra.mxu0 %v3288
        %3546 = vmatprep.subr.bf16.mxu0 %v3291
        %3547 = vmatpush1.bf16.msra.mxu0 %v3290
        %3548 = vmatprep.subr.bf16.mxu0 %v3293
        %3549 = vmatpush1.bf16.msra.mxu0 %v3292
        %3550 = vmatprep.subr.bf16.mxu0 %v3295
        %3551 = vmatpush1.bf16.msra.mxu0 %v3294
        %3552 = vmatprep.subr.bf16.mxu0 %v3297
        %3553 = vmatpush1.bf16.msra.mxu0 %v3296
        %3554 = vmatprep.subr.bf16.mxu0 %v3299
        %3555 = vmatpush1.bf16.msra.mxu0 %v3298
        %3556 = vmatprep.subr.bf16.mxu0 %v3301
        %3557 = vmatpush1.bf16.msra.mxu0 %v3300
        %3558 = vmatprep.subr.bf16.mxu0 %v3303
        %3559 = vmatpush1.bf16.msra.mxu0 %v3302
        %3560 = vmatprep.subr.bf16.mxu0 %v3305
        %3561 = vmatpush1.bf16.msra.mxu0 %v3304
        %3562 = vmatprep.subr.bf16.mxu0 %v3307
        %3563 = vmatpush1.bf16.msra.mxu0 %v3306
        %3564 = vmatprep.mubr.bf16.mxu0 %v2749
        %3565 = vmatmul.mubr.bf16.gmra.mrb[0].mxu0 %v2748
        %v3566 = vpop.f32.mrb[0].mxu0
        %v3567 = vadd.f32 0.0, %v3566
        %v3568 = vpop.f32.mrb[0].mxu0
        %v3569 = vadd.f32 0.0, %v3568
        %v3570 = vpop.f32.mrb[0].mxu0
        %v3571 = vpop.f32.mrb[0].mxu0
        %3572 = vdwg.mxu0
        %3573 = vmatprep.subr.bf16.mxu0 %v3309
        %3574 = vmatpush1.bf16.msra.mxu0 %v3308
        %3575 = vmatprep.subr.bf16.mxu0 %v3311
        %3576 = vmatpush1.bf16.msra.mxu0 %v3310
        %3577 = vmatprep.subr.bf16.mxu0 %v3313
        %3578 = vmatpush1.bf16.msra.mxu0 %v3312
        %3579 = vmatprep.subr.bf16.mxu0 %v3315
        %3580 = vmatpush1.bf16.msra.mxu0 %v3314
        %3581 = vmatprep.subr.bf16.mxu0 %v3317
        %3582 = vmatpush1.bf16.msra.mxu0 %v3316
        %3583 = vmatprep.subr.bf16.mxu0 %v3319
        %3584 = vmatpush1.bf16.msra.mxu0 %v3318
        %3585 = vmatprep.subr.bf16.mxu0 %v3321
        %3586 = vmatpush1.bf16.msra.mxu0 %v3320
        %3587 = vmatprep.subr.bf16.mxu0 %v3323
        %3588 = vmatpush1.bf16.msra.mxu0 %v3322
        %3589 = vmatprep.subr.bf16.mxu0 %v3325
        %3590 = vmatpush1.bf16.msra.mxu0 %v3324
        %3591 = vmatprep.subr.bf16.mxu0 %v3327
        %3592 = vmatpush1.bf16.msra.mxu0 %v3326
        %3593 = vmatprep.subr.bf16.mxu0 %v3329
        %3594 = vmatpush1.bf16.msra.mxu0 %v3328
        %3595 = vmatprep.subr.bf16.mxu0 %v3331
        %3596 = vmatpush1.bf16.msra.mxu0 %v3330
        %3597 = vmatprep.subr.bf16.mxu0 %v3333
        %3598 = vmatpush1.bf16.msra.mxu0 %v3332
        %3599 = vmatprep.subr.bf16.mxu0 %v3335
        %3600 = vmatpush1.bf16.msra.mxu0 %v3334
        %3601 = vmatprep.subr.bf16.mxu0 %v3337
        %3602 = vmatpush1.bf16.msra.mxu0 %v3336
        %3603 = vmatprep.subr.bf16.mxu0 %v3339
        %3604 = vmatpush1.bf16.msra.mxu0 %v3338
        %3605 = vmatprep.mubr.bf16.mxu0 %v2751
        %3606 = vmatmul.mubr.bf16.gmra.mrb[0].mxu0 %v2750
        %v3607 = vpop.f32.mrb[0].mxu0
        %v3608 = vadd.f32 %v3567, %v3607
        %v3609 = vpop.f32.mrb[0].mxu0
        %v3610 = vadd.f32 %v3569, %v3609
        %v3611 = vpop.f32.mrb[0].mxu0
        %v3612 = vpop.f32.mrb[0].mxu0
        %3613 = vdwg.mxu0
        %3614 = vmatprep.subr.bf16.mxu0 %v3341
        %3615 = vmatpush1.bf16.msra.mxu0 %v3340
        %3616 = vmatprep.subr.bf16.mxu0 %v3343
        %3617 = vmatpush1.bf16.msra.mxu0 %v3342
        %3618 = vmatprep.subr.bf16.mxu0 %v3345
        %3619 = vmatpush1.bf16.msra.mxu0 %v3344
        %3620 = vmatprep.subr.bf16.mxu0 %v3347
        %3621 = vmatpush1.bf16.msra.mxu0 %v3346
        %3622 = vmatprep.subr.bf16.mxu0 %v3349
        %3623 = vmatpush1.bf16.msra.mxu0 %v3348
        %3624 = vmatprep.subr.bf16.mxu0 %v3351
        %3625 = vmatpush1.bf16.msra.mxu0 %v3350
        %3626 = vmatprep.subr.bf16.mxu0 %v3353
        %3627 = vmatpush1.bf16.msra.mxu0 %v3352
        %3628 = vmatprep.subr.bf16.mxu0 %v3355
        %3629 = vmatpush1.bf16.msra.mxu0 %v3354
        %3630 = vmatprep.subr.bf16.mxu0 %v3357
        %3631 = vmatpush1.bf16.msra.mxu0 %v3356
        %3632 = vmatprep.subr.bf16.mxu0 %v3359
        %3633 = vmatpush1.bf16.msra.mxu0 %v3358
        %3634 = vmatprep.subr.bf16.mxu0 %v3361
        %3635 = vmatpush1.bf16.msra.mxu0 %v3360
        %3636 = vmatprep.subr.bf16.mxu0 %v3363
        %3637 = vmatpush1.bf16.msra.mxu0 %v3362
        %3638 = vmatprep.subr.bf16.mxu0 %v3365
        %3639 = vmatpush1.bf16.msra.mxu0 %v3364
        %3640 = vmatprep.subr.bf16.mxu0 %v3367
        %3641 = vmatpush1.bf16.msra.mxu0 %v3366
        %3642 = vmatprep.subr.bf16.mxu0 %v3369
        %3643 = vmatpush1.bf16.msra.mxu0 %v3368
        %3644 = vmatprep.subr.bf16.mxu0 %v3371
        %3645 = vmatpush1.bf16.msra.mxu0 %v3370
        %3646 = vmatprep.mubr.bf16.mxu0 %v2753
        %3647 = vmatmul.mubr.bf16.gmra.mrb[0].mxu0 %v2752
        %v3648 = vpop.f32.mrb[0].mxu0
        %v3649 = vadd.f32 %v3608, %v3648
        %v3650 = vpop.f32.mrb[0].mxu0
        %v3651 = vadd.f32 %v3610, %v3650
        %v3652 = vpop.f32.mrb[0].mxu0
        %v3653 = vpop.f32.mrb[0].mxu0
        %3654 = vdwg.mxu0
        %3655 = vmatprep.subr.bf16.mxu0 %v3373
        %3656 = vmatpush1.bf16.msra.mxu0 %v3372
        %3657 = vmatprep.subr.bf16.mxu0 %v3375
        %3658 = vmatpush1.bf16.msra.mxu0 %v3374
        %3659 = vmatprep.subr.bf16.mxu0 %v3377
        %3660 = vmatpush1.bf16.msra.mxu0 %v3376
        %3661 = vmatprep.subr.bf16.mxu0 %v3379
        %3662 = vmatpush1.bf16.msra.mxu0 %v3378
        %3663 = vmatprep.subr.bf16.mxu0 %v3381
        %3664 = vmatpush1.bf16.msra.mxu0 %v3380
        %3665 = vmatprep.subr.bf16.mxu0 %v3383
        %3666 = vmatpush1.bf16.msra.mxu0 %v3382
        %3667 = vmatprep.subr.bf16.mxu0 %v3385
        %3668 = vmatpush1.bf16.msra.mxu0 %v3384
        %3669 = vmatprep.subr.bf16.mxu0 %v3387
        %3670 = vmatpush1.bf16.msra.mxu0 %v3386
        %3671 = vmatprep.subr.bf16.mxu0 %v3389
        %3672 = vmatpush1.bf16.msra.mxu0 %v3388
        %3673 = vmatprep.subr.bf16.mxu0 %v3391
        %3674 = vmatpush1.bf16.msra.mxu0 %v3390
        %3675 = vmatprep.subr.bf16.mxu0 %v3393
        %3676 = vmatpush1.bf16.msra.mxu0 %v3392
        %3677 = vmatprep.subr.bf16.mxu0 %v3395
        %3678 = vmatpush1.bf16.msra.mxu0 %v3394
        %3679 = vmatprep.subr.bf16.mxu0 %v3397
        %3680 = vmatpush1.bf16.msra.mxu0 %v3396
        %3681 = vmatprep.subr.bf16.mxu0 %v3399
        %3682 = vmatpush1.bf16.msra.mxu0 %v3398
        %3683 = vmatprep.subr.bf16.mxu0 %v3401
        %3684 = vmatpush1.bf16.msra.mxu0 %v3400
        %3685 = vmatprep.subr.bf16.mxu0 %v3403
        %3686 = vmatpush1.bf16.msra.mxu0 %v3402
        %3687 = vmatprep.mubr.bf16.mxu0 %v2755
        %3688 = vmatmul.mubr.bf16.gmra.mrb[0].mxu0 %v2754
        %v3689 = vpop.f32.mrb[0].mxu0
        %v3690 = vadd.f32 %v3649, %v3689
        %v3691 = vpop.f32.mrb[0].mxu0
        %v3692 = vadd.f32 %v3651, %v3691
        %v3693 = vpop.f32.mrb[0].mxu0
        %v3694 = vpop.f32.mrb[0].mxu0
        %3695 = vdwg.mxu0
        %3696 = vmatprep.subr.bf16.mxu0 %v3277
        %3697 = vmatpush1.bf16.msra.mxu0 %v3276
        %3698 = vmatprep.subr.bf16.mxu0 %v3279
        %3699 = vmatpush1.bf16.msra.mxu0 %v3278
        %3700 = vmatprep.subr.bf16.mxu0 %v3281
        %3701 = vmatpush1.bf16.msra.mxu0 %v3280
        %3702 = vmatprep.subr.bf16.mxu0 %v3283
        %3703 = vmatpush1.bf16.msra.mxu0 %v3282
        %3704 = vmatprep.subr.bf16.mxu0 %v3285
        %3705 = vmatpush1.bf16.msra.mxu0 %v3284
        %3706 = vmatprep.subr.bf16.mxu0 %v3287
        %3707 = vmatpush1.bf16.msra.mxu0 %v3286
        %3708 = vmatprep.subr.bf16.mxu0 %v3289
        %3709 = vmatpush1.bf16.msra.mxu0 %v3288
        %3710 = vmatprep.subr.bf16.mxu0 %v3291
        %3711 = vmatpush1.bf16.msra.mxu0 %v3290
        %3712 = vmatprep.subr.bf16.mxu0 %v3293
        %3713 = vmatpush1.bf16.msra.mxu0 %v3292
        %3714 = vmatprep.subr.bf16.mxu0 %v3295
        %3715 = vmatpush1.bf16.msra.mxu0 %v3294
        %3716 = vmatprep.subr.bf16.mxu0 %v3297
        %3717 = vmatpush1.bf16.msra.mxu0 %v3296
        %3718 = vmatprep.subr.bf16.mxu0 %v3299
        %3719 = vmatpush1.bf16.msra.mxu0 %v3298
        %3720 = vmatprep.subr.bf16.mxu0 %v3301
        %3721 = vmatpush1.bf16.msra.mxu0 %v3300
        %3722 = vmatprep.subr.bf16.mxu0 %v3303
        %3723 = vmatpush1.bf16.msra.mxu0 %v3302
        %3724 = vmatprep.subr.bf16.mxu0 %v3305
        %3725 = vmatpush1.bf16.msra.mxu0 %v3304
        %3726 = vmatprep.subr.bf16.mxu0 %v3307
        %3727 = vmatpush1.bf16.msra.mxu0 %v3306
        %3728 = vmatprep.mubr.bf16.mxu0 %v2757
        %3729 = vmatmul.mubr.bf16.gmra.mrb[0].mxu0 %v2756
        %v3730 = vpop.f32.mrb[0].mxu0
        %v3731 = vadd.f32 0.0, %v3730
        %v3732 = vpop.f32.mrb[0].mxu0
        %v3733 = vadd.f32 0.0, %v3732
        %v3734 = vpop.f32.mrb[0].mxu0
        %v3735 = vpop.f32.mrb[0].mxu0
        %3736 = vdwg.mxu0
        %3737 = vmatprep.subr.bf16.mxu0 %v3309
        %3738 = vmatpush1.bf16.msra.mxu0 %v3308
        %3739 = vmatprep.subr.bf16.mxu0 %v3311
        %3740 = vmatpush1.bf16.msra.mxu0 %v3310
        %3741 = vmatprep.subr.bf16.mxu0 %v3313
        %3742 = vmatpush1.bf16.msra.mxu0 %v3312
        %3743 = vmatprep.subr.bf16.mxu0 %v3315
        %3744 = vmatpush1.bf16.msra.mxu0 %v3314
        %3745 = vmatprep.subr.bf16.mxu0 %v3317
        %3746 = vmatpush1.bf16.msra.mxu0 %v3316
        %3747 = vmatprep.subr.bf16.mxu0 %v3319
        %3748 = vmatpush1.bf16.msra.mxu0 %v3318
        %3749 = vmatprep.subr.bf16.mxu0 %v3321
        %3750 = vmatpush1.bf16.msra.mxu0 %v3320
        %3751 = vmatprep.subr.bf16.mxu0 %v3323
        %3752 = vmatpush1.bf16.msra.mxu0 %v3322
        %3753 = vmatprep.subr.bf16.mxu0 %v3325
        %3754 = vmatpush1.bf16.msra.mxu0 %v3324
        %3755 = vmatprep.subr.bf16.mxu0 %v3327
        %3756 = vmatpush1.bf16.msra.mxu0 %v3326
        %3757 = vmatprep.subr.bf16.mxu0 %v3329
        %3758 = vmatpush1.bf16.msra.mxu0 %v3328
        %3759 = vmatprep.subr.bf16.mxu0 %v3331
        %3760 = vmatpush1.bf16.msra.mxu0 %v3330
        %3761 = vmatprep.subr.bf16.mxu0 %v3333
        %3762 = vmatpush1.bf16.msra.mxu0 %v3332
        %3763 = vmatprep.subr.bf16.mxu0 %v3335
        %3764 = vmatpush1.bf16.msra.mxu0 %v3334
        %3765 = vmatprep.subr.bf16.mxu0 %v3337
        %3766 = vmatpush1.bf16.msra.mxu0 %v3336
        %3767 = vmatprep.subr.bf16.mxu0 %v3339
        %3768 = vmatpush1.bf16.msra.mxu0 %v3338
        %3769 = vmatprep.mubr.bf16.mxu0 %v2759
        %3770 = vmatmul.mubr.bf16.gmra.mrb[0].mxu0 %v2758
        %v3771 = vpop.f32.mrb[0].mxu0
        %v3772 = vadd.f32 %v3731, %v3771
        %v3773 = vpop.f32.mrb[0].mxu0
        %v3774 = vadd.f32 %v3733, %v3773
        %v3775 = vpop.f32.mrb[0].mxu0
        %v3776 = vpop.f32.mrb[0].mxu0
        %3777 = vdwg.mxu0
        %3778 = vmatprep.subr.bf16.mxu0 %v3341
        %3779 = vmatpush1.bf16.msra.mxu0 %v3340
        %3780 = vmatprep.subr.bf16.mxu0 %v3343
        %3781 = vmatpush1.bf16.msra.mxu0 %v3342
        %3782 = vmatprep.subr.bf16.mxu0 %v3345
        %3783 = vmatpush1.bf16.msra.mxu0 %v3344
        %3784 = vmatprep.subr.bf16.mxu0 %v3347
        %3785 = vmatpush1.bf16.msra.mxu0 %v3346
        %3786 = vmatprep.subr.bf16.mxu0 %v3349
        %3787 = vmatpush1.bf16.msra.mxu0 %v3348
        %3788 = vmatprep.subr.bf16.mxu0 %v3351
        %3789 = vmatpush1.bf16.msra.mxu0 %v3350
        %3790 = vmatprep.subr.bf16.mxu0 %v3353
        %3791 = vmatpush1.bf16.msra.mxu0 %v3352
        %3792 = vmatprep.subr.bf16.mxu0 %v3355
        %3793 = vmatpush1.bf16.msra.mxu0 %v3354
        %3794 = vmatprep.subr.bf16.mxu0 %v3357
        %3795 = vmatpush1.bf16.msra.mxu0 %v3356
        %3796 = vmatprep.subr.bf16.mxu0 %v3359
        %3797 = vmatpush1.bf16.msra.mxu0 %v3358
        %3798 = vmatprep.subr.bf16.mxu0 %v3361
        %3799 = vmatpush1.bf16.msra.mxu0 %v3360
        %3800 = vmatprep.subr.bf16.mxu0 %v3363
        %3801 = vmatpush1.bf16.msra.mxu0 %v3362
        %3802 = vmatprep.subr.bf16.mxu0 %v3365
        %3803 = vmatpush1.bf16.msra.mxu0 %v3364
        %3804 = vmatprep.subr.bf16.mxu0 %v3367
        %3805 = vmatpush1.bf16.msra.mxu0 %v3366
        %3806 = vmatprep.subr.bf16.mxu0 %v3369
        %3807 = vmatpush1.bf16.msra.mxu0 %v3368
        %3808 = vmatprep.subr.bf16.mxu0 %v3371
        %3809 = vmatpush1.bf16.msra.mxu0 %v3370
        %3810 = vmatprep.mubr.bf16.mxu0 %v2761
        %3811 = vmatmul.mubr.bf16.gmra.mrb[0].mxu0 %v2760
        %v3812 = vpop.f32.mrb[0].mxu0
        %v3813 = vadd.f32 %v3772, %v3812
        %v3814 = vpop.f32.mrb[0].mxu0
        %v3815 = vadd.f32 %v3774, %v3814
        %v3816 = vpop.f32.mrb[0].mxu0
        %v3817 = vpop.f32.mrb[0].mxu0
        %3818 = vdwg.mxu0
        %3819 = vmatprep.subr.bf16.mxu0 %v3373
        %3820 = vmatpush1.bf16.msra.mxu0 %v3372
        %3821 = vmatprep.subr.bf16.mxu0 %v3375
        %3822 = vmatpush1.bf16.msra.mxu0 %v3374
        %3823 = vmatprep.subr.bf16.mxu0 %v3377
        %3824 = vmatpush1.bf16.msra.mxu0 %v3376
        %3825 = vmatprep.subr.bf16.mxu0 %v3379
        %3826 = vmatpush1.bf16.msra.mxu0 %v3378
        %3827 = vmatprep.subr.bf16.mxu0 %v3381
        %3828 = vmatpush1.bf16.msra.mxu0 %v3380
        %3829 = vmatprep.subr.bf16.mxu0 %v3383
        %3830 = vmatpush1.bf16.msra.mxu0 %v3382
        %3831 = vmatprep.subr.bf16.mxu0 %v3385
        %3832 = vmatpush1.bf16.msra.mxu0 %v3384
        %3833 = vmatprep.subr.bf16.mxu0 %v3387
        %3834 = vmatpush1.bf16.msra.mxu0 %v3386
        %3835 = vmatprep.subr.bf16.mxu0 %v3389
        %3836 = vmatpush1.bf16.msra.mxu0 %v3388
        %3837 = vmatprep.subr.bf16.mxu0 %v3391
        %3838 = vmatpush1.bf16.msra.mxu0 %v3390
        %3839 = vmatprep.subr.bf16.mxu0 %v3393
        %3840 = vmatpush1.bf16.msra.mxu0 %v3392
        %3841 = vmatprep.subr.bf16.mxu0 %v3395
        %3842 = vmatpush1.bf16.msra.mxu0 %v3394
        %3843 = vmatprep.subr.bf16.mxu0 %v3397
        %3844 = vmatpush1.bf16.msra.mxu0 %v3396
        %3845 = vmatprep.subr.bf16.mxu0 %v3399
        %3846 = vmatpush1.bf16.msra.mxu0 %v3398
        %3847 = vmatprep.subr.bf16.mxu0 %v3401
        %3848 = vmatpush1.bf16.msra.mxu0 %v3400
        %3849 = vmatprep.subr.bf16.mxu0 %v3403
        %3850 = vmatpush1.bf16.msra.mxu0 %v3402
        %3851 = vmatprep.mubr.bf16.mxu0 %v2763
        %3852 = vmatmul.mubr.bf16.gmra.mrb[0].mxu0 %v2762
        %v3853 = vpop.f32.mrb[0].mxu0
        %v3854 = vadd.f32 %v3813, %v3853
        %v3855 = vpop.f32.mrb[0].mxu0
        %v3856 = vadd.f32 %v3815, %v3855
        %v3857 = vpop.f32.mrb[0].mxu0
        %v3858 = vpop.f32.mrb[0].mxu0
        %3859 = vdwg.mxu0
        %v3860 = vmul.f32 %v3690, 0.5
        %v3861 = vmul.f32 %v3692, 0.5
        %v3862 = vmul.f32 %v3854, 0.5
        %v3863 = vmul.f32 %v3856, 0.5
        %v3864 = vmul.f32 %v3690, 0.044715
        %v3865 = vmul.f32 %v3692, 0.044715
        %v3866 = vmul.f32 %v3854, 0.044715
        %v3867 = vmul.f32 %v3856, 0.044715
        %v3868 = vmul.f32 %v3864, %v3690
        %v3869 = vmul.f32 %v3865, %v3692
        %v3870 = vmul.f32 %v3866, %v3854
        %v3871 = vmul.f32 %v3867, %v3856
        %v3872 = vmul.f32 %v3868, %v3690
        %v3873 = vmul.f32 %v3869, %v3692
        %v3874 = vmul.f32 %v3870, %v3854
        %v3875 = vmul.f32 %v3871, %v3856
        %v3876 = vadd.f32 %v3690, %v3872
        %v3877 = vadd.f32 %v3692, %v3873
        %v3878 = vadd.f32 %v3854, %v3874
        %v3879 = vadd.f32 %v3856, %v3875
        %v3880 = vmul.f32 %v3876, 0.7978846
        %v3881 = vmul.f32 %v3877, 0.7978846
        %v3882 = vmul.f32 %v3878, 0.7978846
        %v3883 = vmul.f32 %v3879, 0.7978846
        %v3884 = vtanh.pop %v3880
        %v3885 = vtanh.pop %v3881
        %v3886 = vtanh.pop %v3882
        %v3887 = vtanh.pop %v3883
        %v3888 = vadd.f32 %v3884, 1.0
        %v3889 = vadd.f32 %v3885, 1.0
        %v3890 = vadd.f32 %v3886, 1.0
        %v3891 = vadd.f32 %v3887, 1.0
        %v3892 = vmul.f32 %v3860, %v3888
        %v3893 = vmul.f32 %v3861, %v3889
        %v3894 = vmul.f32 %v3862, %v3890
        %v3895 = vmul.f32 %v3863, %v3891
        %v3896 = vpack.c.bf16 %v3892, %v3892
        %v3897 = vpack.c.bf16 %v3893, %v3893
        %v3898 = vpack.c.bf16 %v3894, %v3894
        %v3899 = vpack.c.bf16 %v3895, %v3895
        %v3900 = vld [vmem:[%s2] sm:$0x3]
        %3902 = vrot.lane.b32.xlu0 %v3899, 17
        %v3903 = vpop.permute.xlu0 %3902
        %3907 = vrot.lane.b32.xlu0 %v3896, 17
        %v3908 = vpop.permute.xlu0 %3907
        %3909 = vrot.lane.b32.xlu0 %v3897, 17
        %v3910 = vpop.permute.xlu0 %3909
        %3911 = vrot.lane.b32.xlu0 %v3898, 17
        %v3912 = vpop.permute.xlu0 %3911
        %vm3913 = vcmask 138240
        %v3914 = vsel %vm3913, %v3908, %v3910
        %v3915 = vsel %vm3913, %v3910, %v3912
        %v3916 = vsel %vm3913, %v3912, %v3903
        %vm3917 = vcmask 138240
        %v3920 = vsel %vm3917, %v3903, %v3908
        %3921 = vrot.lane.b32.xlu0 %v3899, 16
        %v3922 = vpop.permute.xlu0 %3921
        %3923 = vrot.lane.b32.xlu0 %v3896, 16
        %v3924 = vpop.permute.xlu0 %3923
        %3925 = vrot.lane.b32.xlu0 %v3897, 16
        %v3926 = vpop.permute.xlu0 %3925
        %3927 = vrot.lane.b32.xlu0 %v3898, 16
        %v3928 = vpop.permute.xlu0 %3927
        %vm3929 = vcmask 130048
        %v3930 = vsel %vm3929, %v3924, %v3926
        %v3931 = vsel %vm3929, %v3926, %v3928
        %v3932 = vsel %vm3929, %v3928, %v3922
        %vm3933 = vcmask 130048
        %v3936 = vsel %vm3933, %v3922, %v3924
        %3937 = vrot.lane.b32.xlu0 %v3899, 15
        %v3938 = vpop.permute.xlu0 %3937
        %3939 = vrot.lane.b32.xlu0 %v3896, 15
        %v3940 = vpop.permute.xlu0 %3939
        %3941 = vrot.lane.b32.xlu0 %v3897, 15
        %v3942 = vpop.permute.xlu0 %3941
        %3943 = vrot.lane.b32.xlu0 %v3898, 15
        %v3944 = vpop.permute.xlu0 %3943
        %vm3945 = vcmask 121856
        %v3946 = vsel %vm3945, %v3940, %v3942
        %v3947 = vsel %vm3945, %v3942, %v3944
        %v3948 = vsel %vm3945, %v3944, %v3938
        %vm3949 = vcmask 121856
        %v3952 = vsel %vm3949, %v3938, %v3940
        %3953 = vrot.lane.b32.xlu0 %v3899, 1
        %v3954 = vpop.permute.xlu0 %3953
        %3955 = vrot.lane.b32.xlu0 %v3896, 1
        %v3956 = vpop.permute.xlu0 %3955
        %3957 = vrot.lane.b32.xlu0 %v3897, 1
        %v3958 = vpop.permute.xlu0 %3957
        %3959 = vrot.lane.b32.xlu0 %v3898, 1
        %v3960 = vpop.permute.xlu0 %3959
        %v3961 = vsel %vm1058, %v3956, %v3958
        %v3962 = vsel %vm1058, %v3958, %v3960
        %v3963 = vsel %vm1058, %v3960, %v3954
        %v3966 = vsel %vm1074, %v3954, %v3956
        %3967 = vrot.lane.b32.xlu0 %v3896, 127
        %v3968 = vpop.permute.xlu0 %3967
        %3969 = vrot.lane.b32.xlu0 %v3897, 127
        %v3970 = vpop.permute.xlu0 %3969
        %3971 = vrot.lane.b32.xlu0 %v3898, 127
        %v3972 = vpop.permute.xlu0 %3971
        %3973 = vrot.lane.b32.xlu0 %v3899, 127
        %v3974 = vpop.permute.xlu0 %3973
        %v3975 = vsel %vm1110, %v3968, %v3970
        %v3976 = vsel %vm1110, %v3970, %v3972
        %v3977 = vsel %vm1110, %v3972, %v3974
        %v3980 = vsel %vm1126, %v3974, %v3968
        %3981 = vrot.lane.b32.xlu0 %v3896, 113
        %v3982 = vpop.permute.xlu0 %3981
        %3983 = vrot.lane.b32.xlu0 %v3897, 113
        %v3984 = vpop.permute.xlu0 %3983
        %3985 = vrot.lane.b32.xlu0 %v3898, 113
        %v3986 = vpop.permute.xlu0 %3985
        %3987 = vrot.lane.b32.xlu0 %v3899, 113
        %v3988 = vpop.permute.xlu0 %3987
        %vm3989 = vcmask 924672
        %v3990 = vsel %vm3989, %v3982, %v3984
        %v3991 = vsel %vm3989, %v3984, %v3986
        %v3992 = vsel %vm3989, %v3986, %v3988
        %vm3993 = vcmask 924672
        %v3996 = vsel %vm3993, %v3988, %v3982
        %3997 = vrot.lane.b32.xlu0 %v3896, 112
        %v3998 = vpop.permute.xlu0 %3997
        %3999 = vrot.lane.b32.xlu0 %v3897, 112
        %v4000 = vpop.permute.xlu0 %3999
        %4001 = vrot.lane.b32.xlu0 %v3898, 112
        %v4002 = vpop.permute.xlu0 %4001
        %4003 = vrot.lane.b32.xlu0 %v3899, 112
        %v4004 = vpop.permute.xlu0 %4003
        %vm4005 = vcmask 916480
        %v4006 = vsel %vm4005, %v3998, %v4000
        %v4007 = vsel %vm4005, %v4000, %v4002
        %v4008 = vsel %vm4005, %v4002, %v4004
        %vm4009 = vcmask 916480
        %v4012 = vsel %vm4009, %v4004, %v3998
        %4013 = vrot.lane.b32.xlu0 %v3896, 111
        %v4014 = vpop.permute.xlu0 %4013
        %4015 = vrot.lane.b32.xlu0 %v3897, 111
        %v4016 = vpop.permute.xlu0 %4015
        %4017 = vrot.lane.b32.xlu0 %v3898, 111
        %v4018 = vpop.permute.xlu0 %4017
        %4019 = vrot.lane.b32.xlu0 %v3899, 111
        %v4020 = vpop.permute.xlu0 %4019
        %vm4021 = vcmask 908288
        %v4022 = vsel %vm4021, %v4014, %v4016
        %v4023 = vsel %vm4021, %v4016, %v4018
        %v4024 = vsel %vm4021, %v4018, %v4020
        %vm4025 = vcmask 908288
        %v4028 = vsel %vm4025, %v4020, %v4014
        %v4030 = vrot.slane %v3936, 6
        %v4031 = vrot.slane %v3930, 6
        %v4032 = vrot.slane %v3931, 6
        %v4033 = vrot.slane %v3932, 6
        %v4035 = vrot.slane %v3952, 4
        %v4036 = vrot.slane %v3946, 4
        %v4037 = vrot.slane %v3947, 4
        %v4038 = vrot.slane %v3948, 4
        %v4040 = vrot.slane %v3966, 2
        %v4041 = vrot.slane %v3961, 2
        %v4042 = vrot.slane %v3962, 2
        %v4043 = vrot.slane %v3963, 2
        %v4045 = vrot.slane %v3975, 6
        %v4046 = vrot.slane %v3976, 6
        %v4047 = vrot.slane %v3977, 6
        %v4048 = vrot.slane %v3980, 6
        %v4050 = vrot.slane %v3990, 4
        %v4051 = vrot.slane %v3991, 4
        %v4052 = vrot.slane %v3992, 4
        %v4053 = vrot.slane %v3996, 4
        %v4055 = vrot.slane %v4006, 2
        %v4056 = vrot.slane %v4007, 2
        %v4057 = vrot.slane %v4008, 2
        %v4058 = vrot.slane %v4012, 2
        %v4063 = vrot.slane %v760, 6
        %v4064 = vrot.slane %v761, 6
        %v4065 = vrot.slane %v762, 6
        %v4066 = vrot.slane %v763, 6
        %vm4067 = vcmask 1041408
        %v4069 = vsel %vm4067, %v3920, %v4030
        %v4072 = vsel %vm4067, %v3914, %v4031
        %v4075 = vsel %vm4067, %v3915, %v4032
        %v4078 = vsel %vm4067, %v3916, %v4033
        %v4080 = vsel %vm2284, %v4069, %v4035
        %v4082 = vsel %vm2284, %v4072, %v4036
        %v4084 = vsel %vm2284, %v4075, %v4037
        %v4086 = vsel %vm2284, %v4078, %v4038
        %v4088 = vsel %vm2116, %v4080, %v4040
        %v4091 = vsel %vm2116, %v4082, %v4041
        %v4094 = vsel %vm2116, %v4084, %v4042
        %v4097 = vsel %vm2116, %v4086, %v4043
        %v4101 = vsel %vm4067, %v3896, %v4045
        %v4104 = vsel %vm4067, %v3897, %v4046
        %v4107 = vsel %vm4067, %v3898, %v4047
        %v4110 = vsel %vm4067, %v3899, %v4048
        %v4112 = vsel %vm2284, %v4101, %v4050
        %v4114 = vsel %vm2284, %v4104, %v4051
        %v4116 = vsel %vm2284, %v4107, %v4052
        %v4118 = vsel %vm2284, %v4110, %v4053
        %v4120 = vsel %vm2116, %v4112, %v4055
        %v4123 = vsel %vm2116, %v4114, %v4056
        %v4126 = vsel %vm2116, %v4116, %v4057
        %v4129 = vsel %vm2116, %v4118, %v4058
        %v4133 = vsel %vm4067, %v4022, %v4063
        %v4136 = vsel %vm4067, %v4023, %v4064
        %v4139 = vsel %vm4067, %v4024, %v4065
        %v4141 = vsel %vm4067, %v4028, %v4066
        %vm4142 = vcmask 302080
        %v4144 = vsel %vm4142, %v3900, 0
        %v4146 = vsel %vm4067, 4294967295, 65535
        %v4147 = vsel %vm2032, %v4146, 0
        %v4148 = vand.u32 %v4133, %v4147
        %v4150 = vand.u32 %v4136, %v4147
        %v4152 = vand.u32 %v4139, %v4147
        %v4154 = vand.u32 %v4141, %v4147
        %4156 = vmatprep.subr.bf16.mxu0 %v4091
        %4157 = vmatpush1.bf16.msra.mxu0 %v4088
        %4158 = vmatprep.subr.bf16.mxu0 %v4123
        %4159 = vmatpush1.bf16.msra.mxu0 %v4120
        %4160 = vmatprep.subr.bf16.mxu0 %v4150
        %4161 = vmatpush1.bf16.msra.mxu0 %v4148
        %4162 = vmatprep.subr.bf16.mxu0 0
        %4163 = vmatpush1.bf16.msra.mxu0 0
        %4164 = vmatprep.subr.bf16.mxu0 0
        %4165 = vmatpush1.bf16.msra.mxu0 0
        %4166 = vmatprep.subr.bf16.mxu0 0
        %4167 = vmatpush1.bf16.msra.mxu0 0
        %4168 = vmatprep.subr.bf16.mxu0 0
        %4169 = vmatpush1.bf16.msra.mxu0 0
        %4170 = vmatprep.subr.bf16.mxu0 0
        %4171 = vmatpush1.bf16.msra.mxu0 0
        %4172 = vmatprep.subr.bf16.mxu0 0
        %4173 = vmatpush1.bf16.msra.mxu0 0
        %4174 = vmatprep.subr.bf16.mxu0 0
        %4175 = vmatpush1.bf16.msra.mxu0 0
        %4176 = vmatprep.subr.bf16.mxu0 0
        %4177 = vmatpush1.bf16.msra.mxu0 0
        %4178 = vmatprep.subr.bf16.mxu0 0
        %4179 = vmatpush1.bf16.msra.mxu0 0
        %4180 = vmatprep.subr.bf16.mxu0 0
        %4181 = vmatpush1.bf16.msra.mxu0 0
        %4182 = vmatprep.subr.bf16.mxu0 0
        %4183 = vmatpush1.bf16.msra.mxu0 0
        %4184 = vmatprep.subr.bf16.mxu0 0
        %4185 = vmatpush1.bf16.msra.mxu0 0
        %4186 = vmatprep.subr.bf16.mxu0 0
        %4187 = vmatpush1.bf16.msra.mxu0 0
        %4188 = vmatprep.mubr.bf16.mxu0 0
        %4189 = vmatmul.mubr.bf16.gmra.mrb[0].mxu0 %v4144
        %v4190 = vpop.f32.mrb[0].mxu0
        %v4191 = vadd.f32 0.0, %v4190
        %v4192 = vpop.f32.mrb[0].mxu0
        %v4193 = vadd.f32 0.0, %v4192
        %v4194 = vpop.f32.mrb[0].mxu0
        %v4195 = vpop.f32.mrb[0].mxu0
        %4196 = vdwg.mxu0
        %4197 = vmatprep.subr.bf16.mxu0 %v4097
        %4198 = vmatpush1.bf16.msra.mxu0 %v4094
        %4199 = vmatprep.subr.bf16.mxu0 %v4129
        %4200 = vmatpush1.bf16.msra.mxu0 %v4126
        %4201 = vmatprep.subr.bf16.mxu0 %v4154
        %4202 = vmatpush1.bf16.msra.mxu0 %v4152
        %4203 = vmatprep.subr.bf16.mxu0 0
        %4204 = vmatpush1.bf16.msra.mxu0 0
        %4205 = vmatprep.subr.bf16.mxu0 0
        %4206 = vmatpush1.bf16.msra.mxu0 0
        %4207 = vmatprep.subr.bf16.mxu0 0
        %4208 = vmatpush1.bf16.msra.mxu0 0
        %4209 = vmatprep.subr.bf16.mxu0 0
        %4210 = vmatpush1.bf16.msra.mxu0 0
        %4211 = vmatprep.subr.bf16.mxu0 0
        %4212 = vmatpush1.bf16.msra.mxu0 0
        %4213 = vmatprep.subr.bf16.mxu0 0
        %4214 = vmatpush1.bf16.msra.mxu0 0
        %4215 = vmatprep.subr.bf16.mxu0 0
        %4216 = vmatpush1.bf16.msra.mxu0 0
        %4217 = vmatprep.subr.bf16.mxu0 0
        %4218 = vmatpush1.bf16.msra.mxu0 0
        %4219 = vmatprep.subr.bf16.mxu0 0
        %4220 = vmatpush1.bf16.msra.mxu0 0
        %4221 = vmatprep.subr.bf16.mxu0 0
        %4222 = vmatpush1.bf16.msra.mxu0 0
        %4223 = vmatprep.subr.bf16.mxu0 0
        %4224 = vmatpush1.bf16.msra.mxu0 0
        %4225 = vmatprep.subr.bf16.mxu0 0
        %4226 = vmatpush1.bf16.msra.mxu0 0
        %4227 = vmatprep.subr.bf16.mxu0 0
        %4228 = vmatpush1.bf16.msra.mxu0 0
        %4229 = vmatprep.mubr.bf16.mxu0 0
        %4230 = vmatmul.mubr.bf16.gmra.mrb[0].mxu0 %v4144
        %v4231 = vpop.f32.mrb[0].mxu0
        %v4232 = vadd.f32 0.0, %v4231
        %v4233 = vpop.f32.mrb[0].mxu0
        %v4234 = vadd.f32 0.0, %v4233
        %v4235 = vpop.f32.mrb[0].mxu0
        %v4236 = vpop.f32.mrb[0].mxu0
        %4237 = vdwg.mxu0
        %v4238 = vmul.f32 %v4191, 0.5
        %v4239 = vmul.f32 %v4193, 0.5
        %v4240 = vmul.f32 %v4232, 0.5
        %v4241 = vmul.f32 %v4234, 0.5
        %v4242 = vmul.f32 %v4191, 0.044715
        %v4243 = vmul.f32 %v4193, 0.044715
        %v4244 = vmul.f32 %v4232, 0.044715
        %v4245 = vmul.f32 %v4234, 0.044715
        %v4246 = vmul.f32 %v4242, %v4191
        %v4247 = vmul.f32 %v4243, %v4193
        %v4248 = vmul.f32 %v4244, %v4232
        %v4249 = vmul.f32 %v4245, %v4234
        %v4250 = vmul.f32 %v4246, %v4191
        %v4251 = vmul.f32 %v4247, %v4193
        %v4252 = vmul.f32 %v4248, %v4232
        %v4253 = vmul.f32 %v4249, %v4234
        %v4254 = vadd.f32 %v4191, %v4250
        %v4255 = vadd.f32 %v4193, %v4251
        %v4256 = vadd.f32 %v4232, %v4252
        %v4257 = vadd.f32 %v4234, %v4253
        %v4258 = vmul.f32 %v4254, 0.7978846
        %v4259 = vmul.f32 %v4255, 0.7978846
        %v4260 = vmul.f32 %v4256, 0.7978846
        %v4261 = vmul.f32 %v4257, 0.7978846
        %v4262 = vtanh.pop %v4258
        %v4263 = vtanh.pop %v4259
        %v4264 = vtanh.pop %v4260
        %v4265 = vtanh.pop %v4261
        %v4266 = vadd.f32 %v4262, 1.0
        %v4267 = vadd.f32 %v4263, 1.0
        %v4268 = vadd.f32 %v4264, 1.0
        %v4269 = vadd.f32 %v4265, 1.0
        %v4270 = vmul.f32 %v4238, %v4266
        %v4271 = vmul.f32 %v4239, %v4267
        %v4272 = vmul.f32 %v4240, %v4268
        %v4273 = vmul.f32 %v4241, %v4269
        %v4274 = vmul.f32 %v4270, %v743
        %v4275 = vmul.f32 %v4271, %v747
        %v4276 = vmul.f32 %v4272, %v751
        %v4277 = vmul.f32 %v4273, %v755
        %v4278 = vpack.c.bf16 %v4274, %v4274
        %v4279 = vpack.c.bf16 %v4275, %v4275
        %v4280 = vpack.c.bf16 %v4276, %v4276
        %v4281 = vpack.c.bf16 %v4277, %v4277
        %v4282 = vld [vmem:[%s3] sm:$0xf]
        %4284 = vrot.lane.b32.xlu0 %v4281, 17
        %v4285 = vpop.permute.xlu0 %4284
        %4289 = vrot.lane.b32.xlu0 %v4278, 17
        %v4290 = vpop.permute.xlu0 %4289
        %4291 = vrot.lane.b32.xlu0 %v4279, 17
        %v4292 = vpop.permute.xlu0 %4291
        %4293 = vrot.lane.b32.xlu0 %v4280, 17
        %v4294 = vpop.permute.xlu0 %4293
        %v4295 = vsel %vm3913, %v4290, %v4292
        %v4296 = vsel %vm3913, %v4292, %v4294
        %v4297 = vsel %vm3913, %v4294, %v4285
        %v4300 = vsel %vm3917, %v4285, %v4290
        %4301 = vrot.lane.b32.xlu0 %v4281, 16
        %v4302 = vpop.permute.xlu0 %4301
        %4303 = vrot.lane.b32.xlu0 %v4278, 16
        %v4304 = vpop.permute.xlu0 %4303
        %4305 = vrot.lane.b32.xlu0 %v4279, 16
        %v4306 = vpop.permute.xlu0 %4305
        %4307 = vrot.lane.b32.xlu0 %v4280, 16
        %v4308 = vpop.permute.xlu0 %4307
        %v4309 = vsel %vm3929, %v4304, %v4306
        %v4310 = vsel %vm3929, %v4306, %v4308
        %v4311 = vsel %vm3929, %v4308, %v4302
        %v4314 = vsel %vm3933, %v4302, %v4304
        %4315 = vrot.lane.b32.xlu0 %v4281, 15
        %v4316 = vpop.permute.xlu0 %4315
        %4317 = vrot.lane.b32.xlu0 %v4278, 15
        %v4318 = vpop.permute.xlu0 %4317
        %4319 = vrot.lane.b32.xlu0 %v4279, 15
        %v4320 = vpop.permute.xlu0 %4319
        %4321 = vrot.lane.b32.xlu0 %v4280, 15
        %v4322 = vpop.permute.xlu0 %4321
        %v4323 = vsel %vm3945, %v4318, %v4320
        %v4324 = vsel %vm3945, %v4320, %v4322
        %v4325 = vsel %vm3945, %v4322, %v4316
        %v4328 = vsel %vm3949, %v4316, %v4318
        %4329 = vrot.lane.b32.xlu0 %v4281, 1
        %v4330 = vpop.permute.xlu0 %4329
        %4331 = vrot.lane.b32.xlu0 %v4278, 1
        %v4332 = vpop.permute.xlu0 %4331
        %4333 = vrot.lane.b32.xlu0 %v4279, 1
        %v4334 = vpop.permute.xlu0 %4333
        %4335 = vrot.lane.b32.xlu0 %v4280, 1
        %v4336 = vpop.permute.xlu0 %4335
        %v4337 = vsel %vm1058, %v4332, %v4334
        %v4338 = vsel %vm1058, %v4334, %v4336
        %v4339 = vsel %vm1058, %v4336, %v4330
        %v4342 = vsel %vm1074, %v4330, %v4332
        %4343 = vrot.lane.b32.xlu0 %v4278, 127
        %v4344 = vpop.permute.xlu0 %4343
        %4345 = vrot.lane.b32.xlu0 %v4279, 127
        %v4346 = vpop.permute.xlu0 %4345
        %4347 = vrot.lane.b32.xlu0 %v4280, 127
        %v4348 = vpop.permute.xlu0 %4347
        %4349 = vrot.lane.b32.xlu0 %v4281, 127
        %v4350 = vpop.permute.xlu0 %4349
        %v4351 = vsel %vm1110, %v4344, %v4346
        %v4352 = vsel %vm1110, %v4346, %v4348
        %v4353 = vsel %vm1110, %v4348, %v4350
        %v4356 = vsel %vm1126, %v4350, %v4344
        %4357 = vrot.lane.b32.xlu0 %v4278, 113
        %v4358 = vpop.permute.xlu0 %4357
        %4359 = vrot.lane.b32.xlu0 %v4279, 113
        %v4360 = vpop.permute.xlu0 %4359
        %4361 = vrot.lane.b32.xlu0 %v4280, 113
        %v4362 = vpop.permute.xlu0 %4361
        %4363 = vrot.lane.b32.xlu0 %v4281, 113
        %v4364 = vpop.permute.xlu0 %4363
        %v4365 = vsel %vm3989, %v4358, %v4360
        %v4366 = vsel %vm3989, %v4360, %v4362
        %v4367 = vsel %vm3989, %v4362, %v4364
        %v4370 = vsel %vm3993, %v4364, %v4358
        %4371 = vrot.lane.b32.xlu0 %v4278, 112
        %v4372 = vpop.permute.xlu0 %4371
        %4373 = vrot.lane.b32.xlu0 %v4279, 112
        %v4374 = vpop.permute.xlu0 %4373
        %4375 = vrot.lane.b32.xlu0 %v4280, 112
        %v4376 = vpop.permute.xlu0 %4375
        %4377 = vrot.lane.b32.xlu0 %v4281, 112
        %v4378 = vpop.permute.xlu0 %4377
        %v4379 = vsel %vm4005, %v4372, %v4374
        %v4380 = vsel %vm4005, %v4374, %v4376
        %v4381 = vsel %vm4005, %v4376, %v4378
        %v4384 = vsel %vm4009, %v4378, %v4372
        %4385 = vrot.lane.b32.xlu0 %v4278, 111
        %v4386 = vpop.permute.xlu0 %4385
        %4387 = vrot.lane.b32.xlu0 %v4279, 111
        %v4388 = vpop.permute.xlu0 %4387
        %4389 = vrot.lane.b32.xlu0 %v4280, 111
        %v4390 = vpop.permute.xlu0 %4389
        %4391 = vrot.lane.b32.xlu0 %v4281, 111
        %v4392 = vpop.permute.xlu0 %4391
        %v4393 = vsel %vm4021, %v4386, %v4388
        %v4394 = vsel %vm4021, %v4388, %v4390
        %v4395 = vsel %vm4021, %v4390, %v4392
        %v4398 = vsel %vm4025, %v4392, %v4386
        %v4400 = vrot.slane %v4314, 6
        %v4401 = vrot.slane %v4309, 6
        %v4402 = vrot.slane %v4310, 6
        %v4403 = vrot.slane %v4311, 6
        %v4405 = vrot.slane %v4328, 4
        %v4406 = vrot.slane %v4323, 4
        %v4407 = vrot.slane %v4324, 4
        %v4408 = vrot.slane %v4325, 4
        %v4410 = vrot.slane %v4342, 2
        %v4411 = vrot.slane %v4337, 2
        %v4412 = vrot.slane %v4338, 2
        %v4413 = vrot.slane %v4339, 2
        %v4415 = vrot.slane %v4351, 6
        %v4416 = vrot.slane %v4352, 6
        %v4417 = vrot.slane %v4353, 6
        %v4418 = vrot.slane %v4356, 6
        %v4420 = vrot.slane %v4365, 4
        %v4421 = vrot.slane %v4366, 4
        %v4422 = vrot.slane %v4367, 4
        %v4423 = vrot.slane %v4370, 4
        %v4425 = vrot.slane %v4379, 2
        %v4426 = vrot.slane %v4380, 2
        %v4427 = vrot.slane %v4381, 2
        %v4428 = vrot.slane %v4384, 2
        %v4430 = vsel %vm4067, %v4300, %v4400
        %v4433 = vsel %vm4067, %v4295, %v4401
        %v4436 = vsel %vm4067, %v4296, %v4402
        %v4439 = vsel %vm4067, %v4297, %v4403
        %v4441 = vsel %vm2284, %v4430, %v4405
        %v4443 = vsel %vm2284, %v4433, %v4406
        %v4445 = vsel %vm2284, %v4436, %v4407
        %v4447 = vsel %vm2284, %v4439, %v4408
        %v4449 = vsel %vm2116, %v4441, %v4410
        %v4452 = vsel %vm2116, %v4443, %v4411
        %v4455 = vsel %vm2116, %v4445, %v4412
        %v4458 = vsel %vm2116, %v4447, %v4413
        %v4462 = vsel %vm4067, %v4278, %v4415
        %v4465 = vsel %vm4067, %v4279, %v4416
        %v4468 = vsel %vm4067, %v4280, %v4417
        %v4471 = vsel %vm4067, %v4281, %v4418
        %v4473 = vsel %vm2284, %v4462, %v4420
        %v4475 = vsel %vm2284, %v4465, %v4421
        %v4477 = vsel %vm2284, %v4468, %v4422
        %v4479 = vsel %vm2284, %v4471, %v4423
        %v4481 = vsel %vm2116, %v4473, %v4425
        %v4484 = vsel %vm2116, %v4475, %v4426
        %v4487 = vsel %vm2116, %v4477, %v4427
        %v4490 = vsel %vm2116, %v4479, %v4428
        %v4493 = vsel %vm4067, %v4393, %v4063
        %v4495 = vsel %vm4067, %v4394, %v4064
        %v4497 = vsel %vm4067, %v4395, %v4065
        %v4498 = vsel %vm4067, %v4398, %v4066
        %v4500 = vsel %vm4142, %v4282, 0
        %v4502 = vand.u32 %v4493, %v4147
        %v4504 = vand.u32 %v4495, %v4147
        %v4506 = vand.u32 %v4497, %v4147
        %v4508 = vand.u32 %v4498, %v4147
        %4510 = vmatprep.subr.bf16.mxu0 %v4452
        %4511 = vmatpush1.bf16.msra.mxu0 %v4449
        %4512 = vmatprep.subr.bf16.mxu0 %v4484
        %4513 = vmatpush1.bf16.msra.mxu0 %v4481
        %4514 = vmatprep.subr.bf16.mxu0 %v4504
        %4515 = vmatpush1.bf16.msra.mxu0 %v4502
        %4516 = vmatprep.subr.bf16.mxu0 0
        %4517 = vmatpush1.bf16.msra.mxu0 0
        %4518 = vmatprep.subr.bf16.mxu0 0
        %4519 = vmatpush1.bf16.msra.mxu0 0
        %4520 = vmatprep.subr.bf16.mxu0 0
        %4521 = vmatpush1.bf16.msra.mxu0 0
        %4522 = vmatprep.subr.bf16.mxu0 0
        %4523 = vmatpush1.bf16.msra.mxu0 0
        %4524 = vmatprep.subr.bf16.mxu0 0
        %4525 = vmatpush1.bf16.msra.mxu0 0
        %4526 = vmatprep.subr.bf16.mxu0 0
        %4527 = vmatpush1.bf16.msra.mxu0 0
        %4528 = vmatprep.subr.bf16.mxu0 0
        %4529 = vmatpush1.bf16.msra.mxu0 0
        %4530 = vmatprep.subr.bf16.mxu0 0
        %4531 = vmatpush1.bf16.msra.mxu0 0
        %4532 = vmatprep.subr.bf16.mxu0 0
        %4533 = vmatpush1.bf16.msra.mxu0 0
        %4534 = vmatprep.subr.bf16.mxu0 0
        %4535 = vmatpush1.bf16.msra.mxu0 0
        %4536 = vmatprep.subr.bf16.mxu0 0
        %4537 = vmatpush1.bf16.msra.mxu0 0
        %4538 = vmatprep.subr.bf16.mxu0 0
        %4539 = vmatpush1.bf16.msra.mxu0 0
        %4540 = vmatprep.subr.bf16.mxu0 0
        %4541 = vmatpush1.bf16.msra.mxu0 0
        %4542 = vmatprep.mubr.bf16.mxu0 0
        %4543 = vmatmul.mubr.bf16.gmra.mrb[0].mxu0 %v4500
        %v4544 = vpop.f32.mrb[0].mxu0
        %v4545 = vadd.f32 0.0, %v4544
        %v4546 = vpop.f32.mrb[0].mxu0
        %v4547 = vadd.f32 0.0, %v4546
        %v4548 = vpop.f32.mrb[0].mxu0
        %v4549 = vpop.f32.mrb[0].mxu0
        %4550 = vdwg.mxu0
        %4551 = vmatprep.subr.bf16.mxu0 %v4458
        %4552 = vmatpush1.bf16.msra.mxu0 %v4455
        %4553 = vmatprep.subr.bf16.mxu0 %v4490
        %4554 = vmatpush1.bf16.msra.mxu0 %v4487
        %4555 = vmatprep.subr.bf16.mxu0 %v4508
        %4556 = vmatpush1.bf16.msra.mxu0 %v4506
        %4557 = vmatprep.subr.bf16.mxu0 0
        %4558 = vmatpush1.bf16.msra.mxu0 0
        %4559 = vmatprep.subr.bf16.mxu0 0
        %4560 = vmatpush1.bf16.msra.mxu0 0
        %4561 = vmatprep.subr.bf16.mxu0 0
        %4562 = vmatpush1.bf16.msra.mxu0 0
        %4563 = vmatprep.subr.bf16.mxu0 0
        %4564 = vmatpush1.bf16.msra.mxu0 0
        %4565 = vmatprep.subr.bf16.mxu0 0
        %4566 = vmatpush1.bf16.msra.mxu0 0
        %4567 = vmatprep.subr.bf16.mxu0 0
        %4568 = vmatpush1.bf16.msra.mxu0 0
        %4569 = vmatprep.subr.bf16.mxu0 0
        %4570 = vmatpush1.bf16.msra.mxu0 0
        %4571 = vmatprep.subr.bf16.mxu0 0
        %4572 = vmatpush1.bf16.msra.mxu0 0
        %4573 = vmatprep.subr.bf16.mxu0 0
        %4574 = vmatpush1.bf16.msra.mxu0 0
        %4575 = vmatprep.subr.bf16.mxu0 0
        %4576 = vmatpush1.bf16.msra.mxu0 0
        %4577 = vmatprep.subr.bf16.mxu0 0
        %4578 = vmatpush1.bf16.msra.mxu0 0
        %4579 = vmatprep.subr.bf16.mxu0 0
        %4580 = vmatpush1.bf16.msra.mxu0 0
        %4581 = vmatprep.subr.bf16.mxu0 0
        %4582 = vmatpush1.bf16.msra.mxu0 0
        %4583 = vmatprep.mubr.bf16.mxu0 0
        %4584 = vmatmul.mubr.bf16.gmra.mrb[0].mxu0 %v4500
        %v4585 = vpop.f32.mrb[0].mxu0
        %v4586 = vadd.f32 0.0, %v4585
        %v4587 = vpop.f32.mrb[0].mxu0
        %v4588 = vadd.f32 0.0, %v4587
        %v4589 = vpop.f32.mrb[0].mxu0
        %v4590 = vpop.f32.mrb[0].mxu0
        %4591 = vdwg.mxu0
        %v4592 = vpack.c.bf16 %v4545, %v4545
        %v4593 = vpack.c.bf16 %v4547, %v4547
        %v4594 = vpack.c.bf16 %v4586, %v4586
        %v4595 = vpack.c.bf16 %v4588, %v4588
        %v4596 = vld [vmem:[%s13] sm:$0xf]
        %v4597 = vld [vmem:[%s13 + $0x4] sm:$0xf]
        %v4598 = vld [vmem:[%s13 + $0x8] sm:$0xf]
        %v4599 = vld [vmem:[%s13 + $0xc] sm:$0xf]
        %v4600 = vld [vmem:[%s13 + $0x10] sm:$0xf]
        %v4601 = vld [vmem:[%s13 + $0x14] sm:$0xf]
        %v4602 = vld [vmem:[%s13 + $0x18] sm:$0xf]
        %v4603 = vld [vmem:[%s13 + $0x1c] sm:$0xf]
        %v4604 = vld [vmem:[%s13 + $0x20] sm:$0xf]
        %v4605 = vld [vmem:[%s13 + $0x24] sm:$0xf]
        %v4606 = vld [vmem:[%s13 + $0x28] sm:$0xf]
        %v4607 = vld [vmem:[%s13 + $0x2c] sm:$0xf]
        %v4608 = vld [vmem:[%s13 + $0x30] sm:$0xf]
        %v4609 = vld [vmem:[%s13 + $0x34] sm:$0xf]
        %v4610 = vld [vmem:[%s13 + $0x38] sm:$0xf]
        %v4611 = vld [vmem:[%s13 + $0x3c] sm:$0xf]
        %v4612 = vld [vmem:[%s13 + $0x40] sm:$0xf]
        %v4613 = vld [vmem:[%s13 + $0x44] sm:$0xf]
        %v4614 = vld [vmem:[%s13 + $0x48] sm:$0xf]
        %v4615 = vld [vmem:[%s13 + $0x4c] sm:$0xf]
        %v4616 = vld [vmem:[%s13 + $0x50] sm:$0xf]
        %v4617 = vld [vmem:[%s13 + $0x54] sm:$0xf]
        %v4618 = vld [vmem:[%s13 + $0x58] sm:$0xf]
        %v4619 = vld [vmem:[%s13 + $0x5c] sm:$0xf]
        %v4620 = vld [vmem:[%s13 + $0x60] sm:$0xf]
        %v4621 = vld [vmem:[%s13 + $0x64] sm:$0xf]
        %v4622 = vld [vmem:[%s13 + $0x68] sm:$0xf]
        %v4623 = vld [vmem:[%s13 + $0x6c] sm:$0xf]
        %v4624 = vld [vmem:[%s13 + $0x70] sm:$0xf]
        %v4625 = vld [vmem:[%s13 + $0x74] sm:$0xf]
        %v4626 = vld [vmem:[%s13 + $0x78] sm:$0xf]
        %v4627 = vld [vmem:[%s13 + $0x7c] sm:$0xf]
        %v4660 = vunpack.c.l.b16 %v4596
        %v4661 = vunpack.c.l.b16 %v4597
        %v4662 = vunpack.c.l.b16 %v4598
        %v4663 = vunpack.c.l.b16 %v4599
        %v4664 = vunpack.c.l.b16 %v4600
        %v4665 = vunpack.c.l.b16 %v4601
        %v4666 = vunpack.c.l.b16 %v4602
        %v4667 = vunpack.c.l.b16 %v4603
        %v4668 = vunpack.c.l.b16 %v4604
        %v4669 = vunpack.c.l.b16 %v4605
        %v4670 = vunpack.c.l.b16 %v4606
        %v4671 = vunpack.c.l.b16 %v4607
        %v4672 = vunpack.c.l.b16 %v4608
        %v4673 = vunpack.c.l.b16 %v4609
        %v4674 = vunpack.c.l.b16 %v4610
        %v4675 = vunpack.c.l.b16 %v4611
        %v4676 = vunpack.c.l.b16 %v4612
        %v4677 = vunpack.c.l.b16 %v4613
        %v4678 = vunpack.c.l.b16 %v4614
        %v4679 = vunpack.c.l.b16 %v4615
        %v4680 = vunpack.c.l.b16 %v4616
        %v4681 = vunpack.c.l.b16 %v4617
        %v4682 = vunpack.c.l.b16 %v4618
        %v4683 = vunpack.c.l.b16 %v4619
        %v4684 = vunpack.c.l.b16 %v4620
        %v4685 = vunpack.c.l.b16 %v4621
        %v4686 = vunpack.c.l.b16 %v4622
        %v4687 = vunpack.c.l.b16 %v4623
        %v4688 = vunpack.c.l.b16 %v4624
        %v4689 = vunpack.c.l.b16 %v4625
        %v4690 = vunpack.c.l.b16 %v4626
        %v4691 = vunpack.c.l.b16 %v4627
        %v4692 = vpack.c.b16 %v4661, %v4660
        %v4693 = vpack.c.b16 %v4663, %v4662
        %v4694 = vpack.c.b16 %v4665, %v4664
        %v4695 = vpack.c.b16 %v4667, %v4666
        %v4696 = vpack.c.b16 %v4669, %v4668
        %v4697 = vpack.c.b16 %v4671, %v4670
        %v4698 = vpack.c.b16 %v4673, %v4672
        %v4699 = vpack.c.b16 %v4675, %v4674
        %v4700 = vpack.c.b16 %v4677, %v4676
        %v4701 = vpack.c.b16 %v4679, %v4678
        %v4702 = vpack.c.b16 %v4681, %v4680
        %v4703 = vpack.c.b16 %v4683, %v4682
        %v4704 = vpack.c.b16 %v4685, %v4684
        %v4705 = vpack.c.b16 %v4687, %v4686
        %v4706 = vpack.c.b16 %v4689, %v4688
        %v4707 = vpack.c.b16 %v4691, %v4690
        %4724 = vmatprep.subr.bf16.mxu0 0
        %4725 = vmatpush1.bf16.msra.mxu0 %v4692
        %4726 = vmatprep.subr.bf16.mxu0 0
        %4727 = vmatpush1.bf16.msra.mxu0 %v4693
        %4728 = vmatprep.subr.bf16.mxu0 0
        %4729 = vmatpush1.bf16.msra.mxu0 %v4694
        %4730 = vmatprep.subr.bf16.mxu0 0
        %4731 = vmatpush1.bf16.msra.mxu0 %v4695
        %4732 = vmatprep.subr.bf16.mxu0 0
        %4733 = vmatpush1.bf16.msra.mxu0 %v4696
        %4734 = vmatprep.subr.bf16.mxu0 0
        %4735 = vmatpush1.bf16.msra.mxu0 %v4697
        %4736 = vmatprep.subr.bf16.mxu0 0
        %4737 = vmatpush1.bf16.msra.mxu0 %v4698
        %4738 = vmatprep.subr.bf16.mxu0 0
        %4739 = vmatpush1.bf16.msra.mxu0 %v4699
        %4740 = vmatprep.subr.bf16.mxu0 0
        %4741 = vmatpush1.bf16.msra.mxu0 %v4700
        %4742 = vmatprep.subr.bf16.mxu0 0
        %4743 = vmatpush1.bf16.msra.mxu0 %v4701
        %4744 = vmatprep.subr.bf16.mxu0 0
        %4745 = vmatpush1.bf16.msra.mxu0 %v4702
        %4746 = vmatprep.subr.bf16.mxu0 0
        %4747 = vmatpush1.bf16.msra.mxu0 %v4703
        %4748 = vmatprep.subr.bf16.mxu0 0
        %4749 = vmatpush1.bf16.msra.mxu0 %v4704
        %4750 = vmatprep.subr.bf16.mxu0 0
        %4751 = vmatpush1.bf16.msra.mxu0 %v4705
        %4752 = vmatprep.subr.bf16.mxu0 0
        %4753 = vmatpush1.bf16.msra.mxu0 %v4706
        %4754 = vmatprep.subr.bf16.mxu0 0
        %4755 = vmatpush1.bf16.msra.mxu0 %v4707
        %4756 = vmatprep.mubr.bf16.mxu0 %v4593
        %4757 = vmatmul.mubr.bf16.gmra.mrb[0].mxu0 %v4592
        %v4758 = vpop.f32.mrb[0].mxu0
        %v4759 = vadd.f32 0.0, %v4758
        %v4760 = vpop.f32.mrb[0].mxu0
        %v4761 = vpop.f32.mrb[0].mxu0
        %v4762 = vpop.f32.mrb[0].mxu0
        %4763 = vdwg.mxu0
        %4764 = vmatprep.subr.bf16.mxu0 0
        %4765 = vmatpush1.bf16.msra.mxu0 %v4692
        %4766 = vmatprep.subr.bf16.mxu0 0
        %4767 = vmatpush1.bf16.msra.mxu0 %v4693
        %4768 = vmatprep.subr.bf16.mxu0 0
        %4769 = vmatpush1.bf16.msra.mxu0 %v4694
        %4770 = vmatprep.subr.bf16.mxu0 0
        %4771 = vmatpush1.bf16.msra.mxu0 %v4695
        %4772 = vmatprep.subr.bf16.mxu0 0
        %4773 = vmatpush1.bf16.msra.mxu0 %v4696
        %4774 = vmatprep.subr.bf16.mxu0 0
        %4775 = vmatpush1.bf16.msra.mxu0 %v4697
        %4776 = vmatprep.subr.bf16.mxu0 0
        %4777 = vmatpush1.bf16.msra.mxu0 %v4698
        %4778 = vmatprep.subr.bf16.mxu0 0
        %4779 = vmatpush1.bf16.msra.mxu0 %v4699
        %4780 = vmatprep.subr.bf16.mxu0 0
        %4781 = vmatpush1.bf16.msra.mxu0 %v4700
        %4782 = vmatprep.subr.bf16.mxu0 0
        %4783 = vmatpush1.bf16.msra.mxu0 %v4701
        %4784 = vmatprep.subr.bf16.mxu0 0
        %4785 = vmatpush1.bf16.msra.mxu0 %v4702
        %4786 = vmatprep.subr.bf16.mxu0 0
        %4787 = vmatpush1.bf16.msra.mxu0 %v4703
        %4788 = vmatprep.subr.bf16.mxu0 0
        %4789 = vmatpush1.bf16.msra.mxu0 %v4704
        %4790 = vmatprep.subr.bf16.mxu0 0
        %4791 = vmatpush1.bf16.msra.mxu0 %v4705
        %4792 = vmatprep.subr.bf16.mxu0 0
        %4793 = vmatpush1.bf16.msra.mxu0 %v4706
        %4794 = vmatprep.subr.bf16.mxu0 0
        %4795 = vmatpush1.bf16.msra.mxu0 %v4707
        %4796 = vmatprep.mubr.bf16.mxu0 %v4595
        %4797 = vmatmul.mubr.bf16.gmra.mrb[0].mxu0 %v4594
        %v4798 = vpop.f32.mrb[0].mxu0
        %v4799 = vadd.f32 0.0, %v4798
        %v4800 = vpop.f32.mrb[0].mxu0
        %v4801 = vpop.f32.mrb[0].mxu0
        %v4802 = vpop.f32.mrb[0].mxu0
        %4803 = vdwg.mxu0
        %v4804 = vmul.f32 %v4759, 0.5
        %v4805 = vmul.f32 %v4799, 0.5
        %v4806 = vmul.f32 %v4759, 0.044715
        %v4807 = vmul.f32 %v4799, 0.044715
        %v4808 = vmul.f32 %v4806, %v4759
        %v4809 = vmul.f32 %v4807, %v4799
        %v4810 = vmul.f32 %v4808, %v4759
        %v4811 = vmul.f32 %v4809, %v4799
        %v4812 = vadd.f32 %v4759, %v4810
        %v4813 = vadd.f32 %v4799, %v4811
        %v4814 = vmul.f32 %v4812, 0.7978846
        %v4815 = vmul.f32 %v4813, 0.7978846
        %v4816 = vtanh.pop %v4814
        %v4817 = vtanh.pop %v4815
        %v4818 = vadd.f32 %v4816, 1.0
        %v4819 = vadd.f32 %v4817, 1.0
        %v4820 = vmul.f32 %v4804, %v4818
        %v4821 = vmul.f32 %v4805, %v4819
        %v4822 = vpack.c.bf16 %v4820, %v4820
        %v4823 = vpack.c.bf16 %v4821, %v4821
        %v4824 = vld [vmem:[%s4] sm:$0xf]
        %4826 = vrot.lane.b32.xlu0 %v4823, 10
        %v4827 = vpop.permute.xlu0 %4826
        %4829 = vrot.lane.b32.xlu0 %v4822, 10
        %v4830 = vpop.permute.xlu0 %4829
        %vm4831 = vcmask 80896
        %v4832 = vsel %vm4831, %v4830, %v4827
        %vm4833 = vcmask 80896
        %v4836 = vsel %vm4833, %v4827, %v4830
        %4837 = vrot.lane.b32.xlu0 %v4823, 9
        %v4838 = vpop.permute.xlu0 %4837
        %4839 = vrot.lane.b32.xlu0 %v4822, 9
        %v4840 = vpop.permute.xlu0 %4839
        %vm4841 = vcmask 72704
        %v4842 = vsel %vm4841, %v4840, %v4838
        %vm4843 = vcmask 72704
        %v4846 = vsel %vm4843, %v4838, %v4840
        %4847 = vrot.lane.b32.xlu0 %v4823, 8
        %v4848 = vpop.permute.xlu0 %4847
        %4849 = vrot.lane.b32.xlu0 %v4822, 8
        %v4850 = vpop.permute.xlu0 %4849
        %vm4851 = vcmask 64512
        %v4852 = vsel %vm4851, %v4850, %v4848
        %vm4853 = vcmask 64512
        %v4856 = vsel %vm4853, %v4848, %v4850
        %4857 = vrot.lane.b32.xlu0 %v4823, 1
        %v4858 = vpop.permute.xlu0 %4857
        %4859 = vrot.lane.b32.xlu0 %v4822, 1
        %v4860 = vpop.permute.xlu0 %4859
        %v4861 = vsel %vm1058, %v4860, %v4858
        %v4864 = vsel %vm1074, %v4858, %v4860
        %4865 = vrot.lane.b32.xlu0 %v4822, 127
        %v4866 = vpop.permute.xlu0 %4865
        %4867 = vrot.lane.b32.xlu0 %v4823, 127
        %v4868 = vpop.permute.xlu0 %4867
        %v4869 = vsel %vm1110, %v4866, %v4868
        %v4872 = vsel %vm1126, %v4868, %v4866
        %4873 = vrot.lane.b32.xlu0 %v4822, 120
        %v4874 = vpop.permute.xlu0 %4873
        %4875 = vrot.lane.b32.xlu0 %v4823, 120
        %v4876 = vpop.permute.xlu0 %4875
        %vm4877 = vcmask 982016
        %v4878 = vsel %vm4877, %v4874, %v4876
        %vm4879 = vcmask 982016
        %v4882 = vsel %vm4879, %v4876, %v4874
        %4883 = vrot.lane.b32.xlu0 %v4822, 119
        %v4884 = vpop.permute.xlu0 %4883
        %4885 = vrot.lane.b32.xlu0 %v4823, 119
        %v4886 = vpop.permute.xlu0 %4885
        %vm4887 = vcmask 973824
        %v4888 = vsel %vm4887, %v4884, %v4886
        %vm4889 = vcmask 973824
        %v4892 = vsel %vm4889, %v4886, %v4884
        %4893 = vrot.lane.b32.xlu0 %v4822, 118
        %v4894 = vpop.permute.xlu0 %4893
        %4895 = vrot.lane.b32.xlu0 %v4823, 118
        %v4896 = vpop.permute.xlu0 %4895
        %vm4897 = vcmask 965632
        %v4898 = vsel %vm4897, %v4894, %v4896
        %vm4899 = vcmask 965632
        %v4902 = vsel %vm4899, %v4896, %v4894
        %v4904 = vrot.slane %v4846, 4
        %v4905 = vrot.slane %v4842, 4
        %v4907 = vrot.slane %v4864, 4
        %v4908 = vrot.slane %v4861, 4
        %v4910 = vrot.slane %v4869, 4
        %v4911 = vrot.slane %v4872, 4
        %v4913 = vrot.slane %v4888, 4
        %v4914 = vrot.slane %v4892, 4
        %v4917 = vrot.slane %v775, 4
        %v4918 = vrot.slane %v776, 4
        %v4920 = vsel %vm2284, %v4836, %v4904
        %v4924 = vsel %vm2284, %v4832, %v4905
        %v4927 = vsel %vm2284, %v4856, %v4907
        %v4931 = vsel %vm2284, %v4852, %v4908
        %v4935 = vsel %vm2284, %v4822, %v4910
        %v4939 = vsel %vm2284, %v4823, %v4911
        %v4943 = vsel %vm2284, %v4878, %v4913
        %v4946 = vsel %vm2284, %v4882, %v4914
        %v4950 = vsel %vm2284, %v4898, %v4917
        %v4952 = vsel %vm2284, %v4902, %v4918
        %vm4953 = vcmask 596992
        %v4955 = vsel %vm4953, %v4824, 0
        %vm4957 = vcmask 1044480
        %v4958 = vsel %vm2284, 4294967295, 65535
        %v4959 = vsel %vm4957, %v4958, 0
        %v4960 = vand.u32 %v4950, %v4959
        %v4962 = vand.u32 %v4952, %v4959
        %4964 = vmatprep.subr.bf16.mxu0 %v4924
        %4965 = vmatpush1.bf16.msra.mxu0 %v4920
        %4966 = vmatprep.subr.bf16.mxu0 %v4931
        %4967 = vmatpush1.bf16.msra.mxu0 %v4927
        %4968 = vmatprep.subr.bf16.mxu0 %v4939
        %4969 = vmatpush1.bf16.msra.mxu0 %v4935
        %4970 = vmatprep.subr.bf16.mxu0 %v4946
        %4971 = vmatpush1.bf16.msra.mxu0 %v4943
        %4972 = vmatprep.subr.bf16.mxu0 %v4962
        %4973 = vmatpush1.bf16.msra.mxu0 %v4960
        %4974 = vmatprep.subr.bf16.mxu0 0
        %4975 = vmatpush1.bf16.msra.mxu0 0
        %4976 = vmatprep.subr.bf16.mxu0 0
        %4977 = vmatpush1.bf16.msra.mxu0 0
        %4978 = vmatprep.subr.bf16.mxu0 0
        %4979 = vmatpush1.bf16.msra.mxu0 0
        %4980 = vmatprep.subr.bf16.mxu0 0
        %4981 = vmatpush1.bf16.msra.mxu0 0
        %4982 = vmatprep.subr.bf16.mxu0 0
        %4983 = vmatpush1.bf16.msra.mxu0 0
        %4984 = vmatprep.subr.bf16.mxu0 0
        %4985 = vmatpush1.bf16.msra.mxu0 0
        %4986 = vmatprep.subr.bf16.mxu0 0
        %4987 = vmatpush1.bf16.msra.mxu0 0
        %4988 = vmatprep.subr.bf16.mxu0 0
        %4989 = vmatpush1.bf16.msra.mxu0 0
        %4990 = vmatprep.subr.bf16.mxu0 0
        %4991 = vmatpush1.bf16.msra.mxu0 0
        %4992 = vmatprep.subr.bf16.mxu0 0
        %4993 = vmatpush1.bf16.msra.mxu0 0
        %4994 = vmatprep.subr.bf16.mxu0 0
        %4995 = vmatpush1.bf16.msra.mxu0 0
        %4996 = vmatprep.mubr.bf16.mxu0 0
        %4997 = vmatmul.mubr.bf16.gmra.mrb[0].mxu0 %v4955
        %v4998 = vpop.f32.mrb[0].mxu0
        %v4999 = vadd.f32 0.0, %v4998
        %v5000 = vpop.f32.mrb[0].mxu0
        %v5001 = vadd.f32 0.0, %v5000
        %v5002 = vpop.f32.mrb[0].mxu0
        %v5003 = vpop.f32.mrb[0].mxu0
        %5004 = vdwg.mxu0
        %v5005 = vmul.f32 %v4999, 0.5
        %v5006 = vmul.f32 %v5001, 0.5
        %v5007 = vmul.f32 %v4999, 0.044715
        %v5008 = vmul.f32 %v5001, 0.044715
        %v5009 = vmul.f32 %v5007, %v4999
        %v5010 = vmul.f32 %v5008, %v5001
        %v5011 = vmul.f32 %v5009, %v4999
        %v5012 = vmul.f32 %v5010, %v5001
        %v5013 = vadd.f32 %v4999, %v5011
        %v5014 = vadd.f32 %v5001, %v5012
        %v5015 = vmul.f32 %v5013, 0.7978846
        %v5016 = vmul.f32 %v5014, 0.7978846
        %v5017 = vtanh.pop %v5015
        %v5018 = vtanh.pop %v5016
        %v5019 = vadd.f32 %v5017, 1.0
        %v5020 = vadd.f32 %v5018, 1.0
        %v5021 = vmul.f32 %v5005, %v5019
        %v5022 = vmul.f32 %v5006, %v5020
        %v5023 = vmul.f32 %v5021, %v768
        %v5024 = vmul.f32 %v5022, %v772
        %v5025 = vpack.c.bf16 %v5023, %v5023
        %v5026 = vpack.c.bf16 %v5024, %v5024
        %v5028 = vshrl.u32 %v5025, 16
        %v5032 = vrot.slane %v5025, 1
        %v5034 = vrot.slane %v5028, 1
        %v5036 = vrot.slane %v5025, 2
        %v5038 = vrot.slane %v5028, 2
        %v5040 = vrot.slane %v5025, 3
        %v5042 = vrot.slane %v5028, 3
        %v5045 = vshrl.u32 %v5026, 16
        %v5048 = vrot.slane %v5026, 1
        %v5049 = vrot.slane %v5045, 1
        %v5050 = vrot.slane %v5026, 2
        %v5051 = vrot.slane %v5045, 2
        %v5052 = vrot.slane %v5026, 3
        %v5053 = vrot.slane %v5045, 3
        %v5054 = vshll.u32 %v5026, 16
        %v5057 = vshll.u32 %v5045, 16
        %v5060 = vshll.u32 %v5048, 16
        %v5063 = vshll.u32 %v5049, 16
        %v5066 = vshll.u32 %v5050, 16
        %v5069 = vshll.u32 %v5051, 16
        %v5072 = vshll.u32 %v5052, 16
        %v5075 = vshll.u32 %v5053, 16
        %vm5085 = vcmask 1040384
        %vm5086 = vsmask.f32 256
        %vm5087 = vmand %vm5085, %vm5086
        %v5088 = vsel %vm5087, %v5025, %v5054
        %v5089 = vsel %vm5087, %v5028, %v5057
        %v5090 = vsel %vm5087, %v5032, %v5060
        %v5091 = vsel %vm5087, %v5034, %v5063
        %v5092 = vsel %vm5087, %v5036, %v5066
        %v5093 = vsel %vm5087, %v5038, %v5069
        %v5094 = vsel %vm5087, %v5040, %v5072
        %v5095 = vsel %vm5087, %v5042, %v5075
        %v5096 = vld [vmem:[%s5] sm:$0xf]
        %v5097 = vld [vmem:[%s5 + $0x4] sm:$0xf]
        %v5098 = vld [vmem:[%s5 + $0x8] sm:$0xf]
        %v5099 = vld [vmem:[%s5 + $0xc] sm:$0xf]
        %v5100 = vld [vmem:[%s5 + $0x10] sm:$0xf]
        %v5101 = vld [vmem:[%s5 + $0x14] sm:$0xf]
        %v5102 = vld [vmem:[%s5 + $0x18] sm:$0xf]
        %v5103 = vld [vmem:[%s5 + $0x1c] sm:$0xf]
        %v5104 = vld [vmem:[%s5 + $0x20] sm:$0xf]
        %v5105 = vld [vmem:[%s5 + $0x24] sm:$0xf]
        %v5106 = vld [vmem:[%s5 + $0x28] sm:$0xf]
        %v5107 = vld [vmem:[%s5 + $0x2c] sm:$0xf]
        %v5108 = vld [vmem:[%s5 + $0x30] sm:$0xf]
        %v5109 = vld [vmem:[%s5 + $0x34] sm:$0xf]
        %v5110 = vld [vmem:[%s5 + $0x38] sm:$0xf]
        %v5111 = vld [vmem:[%s5 + $0x3c] sm:$0xf]
        %v5112 = vld [vmem:[%s5 + $0x40] sm:$0xf]
        %v5113 = vld [vmem:[%s5 + $0x44] sm:$0xf]
        %v5114 = vld [vmem:[%s5 + $0x48] sm:$0xf]
        %v5115 = vld [vmem:[%s5 + $0x4c] sm:$0xf]
        %v5116 = vld [vmem:[%s5 + $0x50] sm:$0xf]
        %v5117 = vld [vmem:[%s5 + $0x54] sm:$0xf]
        %v5118 = vld [vmem:[%s5 + $0x58] sm:$0xf]
        %v5119 = vld [vmem:[%s5 + $0x5c] sm:$0xf]
        %v5120 = vld [vmem:[%s5 + $0x60] sm:$0xf]
        %v5121 = vld [vmem:[%s5 + $0x64] sm:$0xf]
        %v5122 = vld [vmem:[%s5 + $0x68] sm:$0xf]
        %v5123 = vld [vmem:[%s5 + $0x6c] sm:$0xf]
        %v5124 = vld [vmem:[%s5 + $0x70] sm:$0xf]
        %v5125 = vld [vmem:[%s5 + $0x74] sm:$0xf]
        %v5126 = vld [vmem:[%s5 + $0x78] sm:$0xf]
        %v5127 = vld [vmem:[%s5 + $0x7c] sm:$0xf]
        %v5128 = vld [vmem:[%s5 + $0x80] sm:$0xf]
        %v5129 = vld [vmem:[%s5 + $0x84] sm:$0xf]
        %v5130 = vld [vmem:[%s5 + $0x88] sm:$0xf]
        %v5131 = vld [vmem:[%s5 + $0x8c] sm:$0xf]
        %v5132 = vld [vmem:[%s5 + $0x90] sm:$0xf]
        %v5133 = vld [vmem:[%s5 + $0x94] sm:$0xf]
        %v5134 = vld [vmem:[%s5 + $0x98] sm:$0xf]
        %v5135 = vld [vmem:[%s5 + $0x9c] sm:$0xf]
        %v5136 = vld [vmem:[%s5 + $0xa0] sm:$0xf]
        %v5137 = vld [vmem:[%s5 + $0xa4] sm:$0xf]
        %v5138 = vld [vmem:[%s5 + $0xa8] sm:$0xf]
        %v5139 = vld [vmem:[%s5 + $0xac] sm:$0xf]
        %v5140 = vld [vmem:[%s5 + $0xb0] sm:$0xf]
        %v5141 = vld [vmem:[%s5 + $0xb4] sm:$0xf]
        %v5142 = vld [vmem:[%s5 + $0xb8] sm:$0xf]
        %v5143 = vld [vmem:[%s5 + $0xbc] sm:$0xf]
        %v5144 = vld [vmem:[%s5 + $0xc0] sm:$0xf]
        %v5145 = vld [vmem:[%s5 + $0xc4] sm:$0xf]
        %v5146 = vld [vmem:[%s5 + $0xc8] sm:$0xf]
        %v5147 = vld [vmem:[%s5 + $0xcc] sm:$0xf]
        %v5148 = vld [vmem:[%s5 + $0xd0] sm:$0xf]
        %v5149 = vld [vmem:[%s5 + $0xd4] sm:$0xf]
        %v5150 = vld [vmem:[%s5 + $0xd8] sm:$0xf]
        %v5151 = vld [vmem:[%s5 + $0xdc] sm:$0xf]
        %v5152 = vld [vmem:[%s5 + $0xe0] sm:$0xf]
        %v5153 = vld [vmem:[%s5 + $0xe4] sm:$0xf]
        %v5154 = vld [vmem:[%s5 + $0xe8] sm:$0xf]
        %v5155 = vld [vmem:[%s5 + $0xec] sm:$0xf]
        %v5156 = vld [vmem:[%s5 + $0xf0] sm:$0xf]
        %v5157 = vld [vmem:[%s5 + $0xf4] sm:$0xf]
        %v5158 = vld [vmem:[%s5 + $0xf8] sm:$0xf]
        %v5159 = vld [vmem:[%s5 + $0xfc] sm:$0xf]
        %v5160 = vld [vmem:[%s5 + $0x100] sm:$0xf]
        %v5161 = vld [vmem:[%s5 + $0x104] sm:$0xf]
        %v5162 = vld [vmem:[%s5 + $0x108] sm:$0xf]
        %v5163 = vld [vmem:[%s5 + $0x10c] sm:$0xf]
        %v5164 = vld [vmem:[%s5 + $0x110] sm:$0xf]
        %v5165 = vld [vmem:[%s5 + $0x114] sm:$0xf]
        %v5166 = vld [vmem:[%s5 + $0x118] sm:$0xf]
        %v5167 = vld [vmem:[%s5 + $0x11c] sm:$0xf]
        %v5168 = vld [vmem:[%s5 + $0x120] sm:$0xf]
        %v5169 = vld [vmem:[%s5 + $0x124] sm:$0xf]
        %v5170 = vld [vmem:[%s5 + $0x128] sm:$0xf]
        %v5171 = vld [vmem:[%s5 + $0x12c] sm:$0xf]
        %v5172 = vld [vmem:[%s5 + $0x130] sm:$0xf]
        %v5173 = vld [vmem:[%s5 + $0x134] sm:$0xf]
        %v5174 = vld [vmem:[%s5 + $0x138] sm:$0xf]
        %v5175 = vld [vmem:[%s5 + $0x13c] sm:$0xf]
        %v5176 = vld [vmem:[%s5 + $0x140] sm:$0xf]
        %v5177 = vld [vmem:[%s5 + $0x144] sm:$0xf]
        %v5178 = vld [vmem:[%s5 + $0x148] sm:$0xf]
        %v5179 = vld [vmem:[%s5 + $0x14c] sm:$0xf]
        %v5180 = vld [vmem:[%s5 + $0x150] sm:$0xf]
        %v5181 = vld [vmem:[%s5 + $0x154] sm:$0xf]
        %v5182 = vld [vmem:[%s5 + $0x158] sm:$0xf]
        %v5183 = vld [vmem:[%s5 + $0x15c] sm:$0xf]
        %v5184 = vld [vmem:[%s5 + $0x160] sm:$0xf]
        %v5185 = vld [vmem:[%s5 + $0x164] sm:$0xf]
        %v5186 = vld [vmem:[%s5 + $0x168] sm:$0xf]
        %v5187 = vld [vmem:[%s5 + $0x16c] sm:$0xf]
        %v5188 = vld [vmem:[%s5 + $0x170] sm:$0xf]
        %v5189 = vld [vmem:[%s5 + $0x174] sm:$0xf]
        %v5190 = vld [vmem:[%s5 + $0x178] sm:$0xf]
        %v5191 = vld [vmem:[%s5 + $0x17c] sm:$0xf]
        %v5192 = vld [vmem:[%s5 + $0x180] sm:$0xf]
        %v5193 = vld [vmem:[%s5 + $0x184] sm:$0xf]
        %v5194 = vld [vmem:[%s5 + $0x188] sm:$0xf]
        %v5195 = vld [vmem:[%s5 + $0x18c] sm:$0xf]
        %v5196 = vld [vmem:[%s5 + $0x190] sm:$0xf]
        %v5197 = vld [vmem:[%s5 + $0x194] sm:$0xf]
        %v5198 = vld [vmem:[%s5 + $0x198] sm:$0xf]
        %v5199 = vld [vmem:[%s5 + $0x19c] sm:$0xf]
        %v5200 = vld [vmem:[%s5 + $0x1a0] sm:$0xf]
        %v5201 = vld [vmem:[%s5 + $0x1a4] sm:$0xf]
        %v5202 = vld [vmem:[%s5 + $0x1a8] sm:$0xf]
        %v5203 = vld [vmem:[%s5 + $0x1ac] sm:$0xf]
        %v5204 = vld [vmem:[%s5 + $0x1b0] sm:$0xf]
        %v5205 = vld [vmem:[%s5 + $0x1b4] sm:$0xf]
        %v5206 = vld [vmem:[%s5 + $0x1b8] sm:$0xf]
        %v5207 = vld [vmem:[%s5 + $0x1bc] sm:$0xf]
        %v5208 = vld [vmem:[%s5 + $0x1c0] sm:$0xf]
        %v5209 = vld [vmem:[%s5 + $0x1c4] sm:$0xf]
        %v5210 = vld [vmem:[%s5 + $0x1c8] sm:$0xf]
        %v5211 = vld [vmem:[%s5 + $0x1cc] sm:$0xf]
        %v5212 = vld [vmem:[%s5 + $0x1d0] sm:$0xf]
        %v5213 = vld [vmem:[%s5 + $0x1d4] sm:$0xf]
        %v5214 = vld [vmem:[%s5 + $0x1d8] sm:$0xf]
        %v5215 = vld [vmem:[%s5 + $0x1dc] sm:$0xf]
        %v5216 = vld [vmem:[%s5 + $0x1e0] sm:$0xf]
        %v5217 = vld [vmem:[%s5 + $0x1e4] sm:$0xf]
        %v5218 = vld [vmem:[%s5 + $0x1e8] sm:$0xf]
        %v5219 = vld [vmem:[%s5 + $0x1ec] sm:$0xf]
        %v5220 = vld [vmem:[%s5 + $0x1f0] sm:$0xf]
        %v5221 = vld [vmem:[%s5 + $0x1f4] sm:$0xf]
        %v5222 = vld [vmem:[%s5 + $0x1f8] sm:$0xf]
        %v5223 = vld [vmem:[%s5 + $0x1fc] sm:$0xf]
        %v5224 = vld [vmem:[%s6] sm:$0x1]
        %v5226 = vlaneseq
        %v5227 = vshrl.u32 %v5226, 7
        %v5228 = vsub.s32 0, %v5227
        %v5229 = vrot.slane %v5224, %v5228
        %v5359 = vunpack.c.l.b16 %v5096
        %v5360 = vunpack.c.l.b16 %v5097
        %v5361 = vunpack.c.l.b16 %v5098
        %v5362 = vunpack.c.l.b16 %v5099
        %v5363 = vunpack.c.l.b16 %v5100
        %v5364 = vunpack.c.l.b16 %v5101
        %v5365 = vunpack.c.l.b16 %v5102
        %v5366 = vunpack.c.l.b16 %v5103
        %v5367 = vunpack.c.l.b16 %v5104
        %v5368 = vunpack.c.l.b16 %v5105
        %v5369 = vunpack.c.l.b16 %v5106
        %v5370 = vunpack.c.l.b16 %v5107
        %v5371 = vunpack.c.l.b16 %v5108
        %v5372 = vunpack.c.l.b16 %v5109
        %v5373 = vunpack.c.l.b16 %v5110
        %v5374 = vunpack.c.l.b16 %v5111
        %v5375 = vunpack.c.l.b16 %v5112
        %v5376 = vunpack.c.l.b16 %v5113
        %v5377 = vunpack.c.l.b16 %v5114
        %v5378 = vunpack.c.l.b16 %v5115
        %v5379 = vunpack.c.l.b16 %v5116
        %v5380 = vunpack.c.l.b16 %v5117
        %v5381 = vunpack.c.l.b16 %v5118
        %v5382 = vunpack.c.l.b16 %v5119
        %v5383 = vunpack.c.l.b16 %v5120
        %v5384 = vunpack.c.l.b16 %v5121
        %v5385 = vunpack.c.l.b16 %v5122
        %v5386 = vunpack.c.l.b16 %v5123
        %v5387 = vunpack.c.l.b16 %v5124
        %v5388 = vunpack.c.l.b16 %v5125
        %v5389 = vunpack.c.l.b16 %v5126
        %v5390 = vunpack.c.l.b16 %v5127
        %v5391 = vunpack.c.l.b16 %v5128
        %v5392 = vunpack.c.l.b16 %v5129
        %v5393 = vunpack.c.l.b16 %v5130
        %v5394 = vunpack.c.l.b16 %v5131
        %v5395 = vunpack.c.l.b16 %v5132
        %v5396 = vunpack.c.l.b16 %v5133
        %v5397 = vunpack.c.l.b16 %v5134
        %v5398 = vunpack.c.l.b16 %v5135
        %v5399 = vunpack.c.l.b16 %v5136
        %v5400 = vunpack.c.l.b16 %v5137
        %v5401 = vunpack.c.l.b16 %v5138
        %v5402 = vunpack.c.l.b16 %v5139
        %v5403 = vunpack.c.l.b16 %v5140
        %v5404 = vunpack.c.l.b16 %v5141
        %v5405 = vunpack.c.l.b16 %v5142
        %v5406 = vunpack.c.l.b16 %v5143
        %v5407 = vunpack.c.l.b16 %v5144
        %v5408 = vunpack.c.l.b16 %v5145
        %v5409 = vunpack.c.l.b16 %v5146
        %v5410 = vunpack.c.l.b16 %v5147
        %v5411 = vunpack.c.l.b16 %v5148
        %v5412 = vunpack.c.l.b16 %v5149
        %v5413 = vunpack.c.l.b16 %v5150
        %v5414 = vunpack.c.l.b16 %v5151
        %v5415 = vunpack.c.l.b16 %v5152
        %v5416 = vunpack.c.l.b16 %v5153
        %v5417 = vunpack.c.l.b16 %v5154
        %v5418 = vunpack.c.l.b16 %v5155
        %v5419 = vunpack.c.l.b16 %v5156
        %v5420 = vunpack.c.l.b16 %v5157
        %v5421 = vunpack.c.l.b16 %v5158
        %v5422 = vunpack.c.l.b16 %v5159
        %v5423 = vunpack.c.l.b16 %v5160
        %v5424 = vunpack.c.l.b16 %v5161
        %v5425 = vunpack.c.l.b16 %v5162
        %v5426 = vunpack.c.l.b16 %v5163
        %v5427 = vunpack.c.l.b16 %v5164
        %v5428 = vunpack.c.l.b16 %v5165
        %v5429 = vunpack.c.l.b16 %v5166
        %v5430 = vunpack.c.l.b16 %v5167
        %v5431 = vunpack.c.l.b16 %v5168
        %v5432 = vunpack.c.l.b16 %v5169
        %v5433 = vunpack.c.l.b16 %v5170
        %v5434 = vunpack.c.l.b16 %v5171
        %v5435 = vunpack.c.l.b16 %v5172
        %v5436 = vunpack.c.l.b16 %v5173
        %v5437 = vunpack.c.l.b16 %v5174
        %v5438 = vunpack.c.l.b16 %v5175
        %v5439 = vunpack.c.l.b16 %v5176
        %v5440 = vunpack.c.l.b16 %v5177
        %v5441 = vunpack.c.l.b16 %v5178
        %v5442 = vunpack.c.l.b16 %v5179
        %v5443 = vunpack.c.l.b16 %v5180
        %v5444 = vunpack.c.l.b16 %v5181
        %v5445 = vunpack.c.l.b16 %v5182
        %v5446 = vunpack.c.l.b16 %v5183
        %v5447 = vunpack.c.l.b16 %v5184
        %v5448 = vunpack.c.l.b16 %v5185
        %v5449 = vunpack.c.l.b16 %v5186
        %v5450 = vunpack.c.l.b16 %v5187
        %v5451 = vunpack.c.l.b16 %v5188
        %v5452 = vunpack.c.l.b16 %v5189
        %v5453 = vunpack.c.l.b16 %v5190
        %v5454 = vunpack.c.l.b16 %v5191
        %v5455 = vunpack.c.l.b16 %v5192
        %v5456 = vunpack.c.l.b16 %v5193
        %v5457 = vunpack.c.l.b16 %v5194
        %v5458 = vunpack.c.l.b16 %v5195
        %v5459 = vunpack.c.l.b16 %v5196
        %v5460 = vunpack.c.l.b16 %v5197
        %v5461 = vunpack.c.l.b16 %v5198
        %v5462 = vunpack.c.l.b16 %v5199
        %v5463 = vunpack.c.l.b16 %v5200
        %v5464 = vunpack.c.l.b16 %v5201
        %v5465 = vunpack.c.l.b16 %v5202
        %v5466 = vunpack.c.l.b16 %v5203
        %v5467 = vunpack.c.l.b16 %v5204
        %v5468 = vunpack.c.l.b16 %v5205
        %v5469 = vunpack.c.l.b16 %v5206
        %v5470 = vunpack.c.l.b16 %v5207
        %v5471 = vunpack.c.l.b16 %v5208
        %v5472 = vunpack.c.l.b16 %v5209
        %v5473 = vunpack.c.l.b16 %v5210
        %v5474 = vunpack.c.l.b16 %v5211
        %v5475 = vunpack.c.l.b16 %v5212
        %v5476 = vunpack.c.l.b16 %v5213
        %v5477 = vunpack.c.l.b16 %v5214
        %v5478 = vunpack.c.l.b16 %v5215
        %v5479 = vunpack.c.l.b16 %v5216
        %v5480 = vunpack.c.l.b16 %v5217
        %v5481 = vunpack.c.l.b16 %v5218
        %v5482 = vunpack.c.l.b16 %v5219
        %v5483 = vunpack.c.l.b16 %v5220
        %v5484 = vunpack.c.l.b16 %v5221
        %v5485 = vunpack.c.l.b16 %v5222
        %v5486 = vunpack.c.l.b16 %v5223
        %v5487 = vpack.c.b16 %v5360, %v5359
        %v5488 = vpack.c.b16 %v5362, %v5361
        %v5489 = vpack.c.b16 %v5364, %v5363
        %v5490 = vpack.c.b16 %v5366, %v5365
        %v5491 = vpack.c.b16 %v5368, %v5367
        %v5492 = vpack.c.b16 %v5370, %v5369
        %v5493 = vpack.c.b16 %v5372, %v5371
        %v5494 = vpack.c.b16 %v5374, %v5373
        %v5495 = vpack.c.b16 %v5376, %v5375
        %v5496 = vpack.c.b16 %v5378, %v5377
        %v5497 = vpack.c.b16 %v5380, %v5379
        %v5498 = vpack.c.b16 %v5382, %v5381
        %v5499 = vpack.c.b16 %v5384, %v5383
        %v5500 = vpack.c.b16 %v5386, %v5385
        %v5501 = vpack.c.b16 %v5388, %v5387
        %v5502 = vpack.c.b16 %v5390, %v5389
        %v5503 = vpack.c.b16 %v5392, %v5391
        %v5504 = vpack.c.b16 %v5394, %v5393
        %v5505 = vpack.c.b16 %v5396, %v5395
        %v5506 = vpack.c.b16 %v5398, %v5397
        %v5507 = vpack.c.b16 %v5400, %v5399
        %v5508 = vpack.c.b16 %v5402, %v5401
        %v5509 = vpack.c.b16 %v5404, %v5403
        %v5510 = vpack.c.b16 %v5406, %v5405
        %v5511 = vpack.c.b16 %v5408, %v5407
        %v5512 = vpack.c.b16 %v5410, %v5409
        %v5513 = vpack.c.b16 %v5412, %v5411
        %v5514 = vpack.c.b16 %v5414, %v5413
        %v5515 = vpack.c.b16 %v5416, %v5415
        %v5516 = vpack.c.b16 %v5418, %v5417
        %v5517 = vpack.c.b16 %v5420, %v5419
        %v5518 = vpack.c.b16 %v5422, %v5421
        %v5519 = vpack.c.b16 %v5424, %v5423
        %v5520 = vpack.c.b16 %v5426, %v5425
        %v5521 = vpack.c.b16 %v5428, %v5427
        %v5522 = vpack.c.b16 %v5430, %v5429
        %v5523 = vpack.c.b16 %v5432, %v5431
        %v5524 = vpack.c.b16 %v5434, %v5433
        %v5525 = vpack.c.b16 %v5436, %v5435
        %v5526 = vpack.c.b16 %v5438, %v5437
        %v5527 = vpack.c.b16 %v5440, %v5439
        %v5528 = vpack.c.b16 %v5442, %v5441
        %v5529 = vpack.c.b16 %v5444, %v5443
        %v5530 = vpack.c.b16 %v5446, %v5445
        %v5531 = vpack.c.b16 %v5448, %v5447
        %v5532 = vpack.c.b16 %v5450, %v5449
        %v5533 = vpack.c.b16 %v5452, %v5451
        %v5534 = vpack.c.b16 %v5454, %v5453
        %v5535 = vpack.c.b16 %v5456, %v5455
        %v5536 = vpack.c.b16 %v5458, %v5457
        %v5537 = vpack.c.b16 %v5460, %v5459
        %v5538 = vpack.c.b16 %v5462, %v5461
        %v5539 = vpack.c.b16 %v5464, %v5463
        %v5540 = vpack.c.b16 %v5466, %v5465
        %v5541 = vpack.c.b16 %v5468, %v5467
        %v5542 = vpack.c.b16 %v5470, %v5469
        %v5543 = vpack.c.b16 %v5472, %v5471
        %v5544 = vpack.c.b16 %v5474, %v5473
        %v5545 = vpack.c.b16 %v5476, %v5475
        %v5546 = vpack.c.b16 %v5478, %v5477
        %v5547 = vpack.c.b16 %v5480, %v5479
        %v5548 = vpack.c.b16 %v5482, %v5481
        %v5549 = vpack.c.b16 %v5484, %v5483
        %v5550 = vpack.c.b16 %v5486, %v5485
        %5615 = vmatprep.subr.bf16.mxu0 0
        %5616 = vmatpush1.bf16.msra.mxu0 %v5487
        %5617 = vmatprep.subr.bf16.mxu0 0
        %5618 = vmatpush1.bf16.msra.mxu0 %v5488
        %5619 = vmatprep.subr.bf16.mxu0 0
        %5620 = vmatpush1.bf16.msra.mxu0 %v5489
        %5621 = vmatprep.subr.bf16.mxu0 0
        %5622 = vmatpush1.bf16.msra.mxu0 %v5490
        %5623 = vmatprep.subr.bf16.mxu0 0
        %5624 = vmatpush1.bf16.msra.mxu0 %v5491
        %5625 = vmatprep.subr.bf16.mxu0 0
        %5626 = vmatpush1.bf16.msra.mxu0 %v5492
        %5627 = vmatprep.subr.bf16.mxu0 0
        %5628 = vmatpush1.bf16.msra.mxu0 %v5493
        %5629 = vmatprep.subr.bf16.mxu0 0
        %5630 = vmatpush1.bf16.msra.mxu0 %v5494
        %5631 = vmatprep.subr.bf16.mxu0 0
        %5632 = vmatpush1.bf16.msra.mxu0 %v5495
        %5633 = vmatprep.subr.bf16.mxu0 0
        %5634 = vmatpush1.bf16.msra.mxu0 %v5496
        %5635 = vmatprep.subr.bf16.mxu0 0
        %5636 = vmatpush1.bf16.msra.mxu0 %v5497
        %5637 = vmatprep.subr.bf16.mxu0 0
        %5638 = vmatpush1.bf16.msra.mxu0 %v5498
        %5639 = vmatprep.subr.bf16.mxu0 0
        %5640 = vmatpush1.bf16.msra.mxu0 %v5499
        %5641 = vmatprep.subr.bf16.mxu0 0
        %5642 = vmatpush1.bf16.msra.mxu0 %v5500
        %5643 = vmatprep.subr.bf16.mxu0 0
        %5644 = vmatpush1.bf16.msra.mxu0 %v5501
        %5645 = vmatprep.subr.bf16.mxu0 0
        %5646 = vmatpush1.bf16.msra.mxu0 %v5502
        %5647 = vmatprep.mubr.bf16.mxu0 %v5089
        %5648 = vmatmul.mubr.bf16.gmra.mrb[0].mxu0 %v5088
        %v5649 = vpop.f32.mrb[0].mxu0
        %v5650 = vadd.f32 %v5229, %v5649
        %v5651 = vpop.f32.mrb[0].mxu0
        %v5652 = vpop.f32.mrb[0].mxu0
        %v5653 = vpop.f32.mrb[0].mxu0
        %5654 = vdwg.mxu0
        %5655 = vmatprep.subr.bf16.mxu0 0
        %5656 = vmatpush1.bf16.msra.mxu0 %v5503
        %5657 = vmatprep.subr.bf16.mxu0 0
        %5658 = vmatpush1.bf16.msra.mxu0 %v5504
        %5659 = vmatprep.subr.bf16.mxu0 0
        %5660 = vmatpush1.bf16.msra.mxu0 %v5505
        %5661 = vmatprep.subr.bf16.mxu0 0
        %5662 = vmatpush1.bf16.msra.mxu0 %v5506
        %5663 = vmatprep.subr.bf16.mxu0 0
        %5664 = vmatpush1.bf16.msra.mxu0 %v5507
        %5665 = vmatprep.subr.bf16.mxu0 0
        %5666 = vmatpush1.bf16.msra.mxu0 %v5508
        %5667 = vmatprep.subr.bf16.mxu0 0
        %5668 = vmatpush1.bf16.msra.mxu0 %v5509
        %5669 = vmatprep.subr.bf16.mxu0 0
        %5670 = vmatpush1.bf16.msra.mxu0 %v5510
        %5671 = vmatprep.subr.bf16.mxu0 0
        %5672 = vmatpush1.bf16.msra.mxu0 %v5511
        %5673 = vmatprep.subr.bf16.mxu0 0
        %5674 = vmatpush1.bf16.msra.mxu0 %v5512
        %5675 = vmatprep.subr.bf16.mxu0 0
        %5676 = vmatpush1.bf16.msra.mxu0 %v5513
        %5677 = vmatprep.subr.bf16.mxu0 0
        %5678 = vmatpush1.bf16.msra.mxu0 %v5514
        %5679 = vmatprep.subr.bf16.mxu0 0
        %5680 = vmatpush1.bf16.msra.mxu0 %v5515
        %5681 = vmatprep.subr.bf16.mxu0 0
        %5682 = vmatpush1.bf16.msra.mxu0 %v5516
        %5683 = vmatprep.subr.bf16.mxu0 0
        %5684 = vmatpush1.bf16.msra.mxu0 %v5517
        %5685 = vmatprep.subr.bf16.mxu0 0
        %5686 = vmatpush1.bf16.msra.mxu0 %v5518
        %5687 = vmatprep.mubr.bf16.mxu0 %v5091
        %5688 = vmatmul.mubr.bf16.gmra.mrb[0].mxu0 %v5090
        %v5689 = vpop.f32.mrb[0].mxu0
        %v5690 = vadd.f32 %v5650, %v5689
        %v5691 = vpop.f32.mrb[0].mxu0
        %v5692 = vpop.f32.mrb[0].mxu0
        %v5693 = vpop.f32.mrb[0].mxu0
        %5694 = vdwg.mxu0
        %5695 = vmatprep.subr.bf16.mxu0 0
        %5696 = vmatpush1.bf16.msra.mxu0 %v5519
        %5697 = vmatprep.subr.bf16.mxu0 0
        %5698 = vmatpush1.bf16.msra.mxu0 %v5520
        %5699 = vmatprep.subr.bf16.mxu0 0
        %5700 = vmatpush1.bf16.msra.mxu0 %v5521
        %5701 = vmatprep.subr.bf16.mxu0 0
        %5702 = vmatpush1.bf16.msra.mxu0 %v5522
        %5703 = vmatprep.subr.bf16.mxu0 0
        %5704 = vmatpush1.bf16.msra.mxu0 %v5523
        %5705 = vmatprep.subr.bf16.mxu0 0
        %5706 = vmatpush1.bf16.msra.mxu0 %v5524
        %5707 = vmatprep.subr.bf16.mxu0 0
        %5708 = vmatpush1.bf16.msra.mxu0 %v5525
        %5709 = vmatprep.subr.bf16.mxu0 0
        %5710 = vmatpush1.bf16.msra.mxu0 %v5526
        %5711 = vmatprep.subr.bf16.mxu0 0
        %5712 = vmatpush1.bf16.msra.mxu0 %v5527
        %5713 = vmatprep.subr.bf16.mxu0 0
        %5714 = vmatpush1.bf16.msra.mxu0 %v5528
        %5715 = vmatprep.subr.bf16.mxu0 0
        %5716 = vmatpush1.bf16.msra.mxu0 %v5529
        %5717 = vmatprep.subr.bf16.mxu0 0
        %5718 = vmatpush1.bf16.msra.mxu0 %v5530
        %5719 = vmatprep.subr.bf16.mxu0 0
        %5720 = vmatpush1.bf16.msra.mxu0 %v5531
        %5721 = vmatprep.subr.bf16.mxu0 0
        %5722 = vmatpush1.bf16.msra.mxu0 %v5532
        %5723 = vmatprep.subr.bf16.mxu0 0
        %5724 = vmatpush1.bf16.msra.mxu0 %v5533
        %5725 = vmatprep.subr.bf16.mxu0 0
        %5726 = vmatpush1.bf16.msra.mxu0 %v5534
        %5727 = vmatprep.mubr.bf16.mxu0 %v5093
        %5728 = vmatmul.mubr.bf16.gmra.mrb[0].mxu0 %v5092
        %v5729 = vpop.f32.mrb[0].mxu0
        %v5730 = vadd.f32 %v5690, %v5729
        %v5731 = vpop.f32.mrb[0].mxu0
        %v5732 = vpop.f32.mrb[0].mxu0
        %v5733 = vpop.f32.mrb[0].mxu0
        %5734 = vdwg.mxu0
        %5735 = vmatprep.subr.bf16.mxu0 0
        %5736 = vmatpush1.bf16.msra.mxu0 %v5535
        %5737 = vmatprep.subr.bf16.mxu0 0
        %5738 = vmatpush1.bf16.msra.mxu0 %v5536
        %5739 = vmatprep.subr.bf16.mxu0 0
        %5740 = vmatpush1.bf16.msra.mxu0 %v5537
        %5741 = vmatprep.subr.bf16.mxu0 0
        %5742 = vmatpush1.bf16.msra.mxu0 %v5538
        %5743 = vmatprep.subr.bf16.mxu0 0
        %5744 = vmatpush1.bf16.msra.mxu0 %v5539
        %5745 = vmatprep.subr.bf16.mxu0 0
        %5746 = vmatpush1.bf16.msra.mxu0 %v5540
        %5747 = vmatprep.subr.bf16.mxu0 0
        %5748 = vmatpush1.bf16.msra.mxu0 %v5541
        %5749 = vmatprep.subr.bf16.mxu0 0
        %5750 = vmatpush1.bf16.msra.mxu0 %v5542
        %5751 = vmatprep.subr.bf16.mxu0 0
        %5752 = vmatpush1.bf16.msra.mxu0 %v5543
        %5753 = vmatprep.subr.bf16.mxu0 0
        %5754 = vmatpush1.bf16.msra.mxu0 %v5544
        %5755 = vmatprep.subr.bf16.mxu0 0
        %5756 = vmatpush1.bf16.msra.mxu0 %v5545
        %5757 = vmatprep.subr.bf16.mxu0 0
        %5758 = vmatpush1.bf16.msra.mxu0 %v5546
        %5759 = vmatprep.subr.bf16.mxu0 0
        %5760 = vmatpush1.bf16.msra.mxu0 %v5547
        %5761 = vmatprep.subr.bf16.mxu0 0
        %5762 = vmatpush1.bf16.msra.mxu0 %v5548
        %5763 = vmatprep.subr.bf16.mxu0 0
        %5764 = vmatpush1.bf16.msra.mxu0 %v5549
        %5765 = vmatprep.subr.bf16.mxu0 0
        %5766 = vmatpush1.bf16.msra.mxu0 %v5550
        %5767 = vmatprep.mubr.bf16.mxu0 %v5095
        %5768 = vmatmul.mubr.bf16.gmra.mrb[0].mxu0 %v5094
        %v5769 = vpop.f32.mrb[0].mxu0
        %v5770 = vadd.f32 %v5730, %v5769
        %v5771 = vpop.f32.mrb[0].mxu0
        %v5772 = vpop.f32.mrb[0].mxu0
        %v5773 = vpop.f32.mrb[0].mxu0
        %5774 = vdwg.mxu0
        %v5775 = vpack.c.bf16 %v5770, %v5770
        %v5776 = vld [vmem:[#allocation2] sm:$0xff]
        %v5777 = vld [vmem:[#allocation2 + $0x8] sm:$0xff]
        %v5778 = vld [vmem:[#allocation2 + $0x10] sm:$0xff]
        %v5779 = vld [vmem:[#allocation2 + $0x18] sm:$0xff]
        %v5780 = vld [vmem:[#allocation2 + $0x20] sm:$0xff]
        %v5781 = vld [vmem:[#allocation2 + $0x28] sm:$0xff]
        %v5782 = vld [vmem:[#allocation2 + $0x30] sm:$0xff]
        %v5783 = vld [vmem:[#allocation2 + $0x38] sm:$0xff]
        %v5784 = vld [vmem:[%s8] sm:$0xff]
        %v5786 = vlaneseq
        %v5787 = vshrl.u32 %v5786, 7
        %v5788 = vsub.s32 0, %v5787
        %v5789 = vrot.slane %v5784, %v5788
        %v5790 = vlaneseq
        %v5791 = vshrl.u32 %v5790, 7
        %v5792 = vsub.s32 1, %v5791
        %v5793 = vrot.slane %v5784, %v5792
        %v5794 = vlaneseq
        %v5795 = vshrl.u32 %v5794, 7
        %v5796 = vsub.s32 2, %v5795
        %v5797 = vrot.slane %v5784, %v5796
        %v5798 = vlaneseq
        %v5799 = vshrl.u32 %v5798, 7
        %v5800 = vsub.s32 3, %v5799
        %v5801 = vrot.slane %v5784, %v5800
        %v5802 = vlaneseq
        %v5803 = vshrl.u32 %v5802, 7
        %v5804 = vsub.s32 4, %v5803
        %v5805 = vrot.slane %v5784, %v5804
        %v5806 = vlaneseq
        %v5807 = vshrl.u32 %v5806, 7
        %v5808 = vsub.s32 5, %v5807
        %v5809 = vrot.slane %v5784, %v5808
        %v5810 = vlaneseq
        %v5811 = vshrl.u32 %v5810, 7
        %v5812 = vsub.s32 6, %v5811
        %v5813 = vrot.slane %v5784, %v5812
        %v5814 = vlaneseq
        %v5815 = vshrl.u32 %v5814, 7
        %v5816 = vsub.s32 7, %v5815
        %v5817 = vrot.slane %v5784, %v5816
        %v5834 = vunpack.c.l.b16 %v5776
        %v5835 = vunpack.c.h.b16 %v5776
        %v5836 = vunpack.c.l.b16 %v5777
        %v5837 = vunpack.c.h.b16 %v5777
        %v5838 = vunpack.c.l.b16 %v5778
        %v5839 = vunpack.c.h.b16 %v5778
        %v5840 = vunpack.c.l.b16 %v5779
        %v5841 = vunpack.c.h.b16 %v5779
        %v5842 = vunpack.c.l.b16 %v5780
        %v5843 = vunpack.c.h.b16 %v5780
        %v5844 = vunpack.c.l.b16 %v5781
        %v5845 = vunpack.c.h.b16 %v5781
        %v5846 = vunpack.c.l.b16 %v5782
        %v5847 = vunpack.c.h.b16 %v5782
        %v5848 = vunpack.c.l.b16 %v5783
        %v5849 = vunpack.c.h.b16 %v5783
        %v5850 = vpack.c.b16 %v5842, %v5834
        %v5851 = vpack.c.b16 %v5843, %v5835
        %v5852 = vpack.c.b16 %v5844, %v5836
        %v5853 = vpack.c.b16 %v5845, %v5837
        %v5854 = vpack.c.b16 %v5846, %v5838
        %v5855 = vpack.c.b16 %v5847, %v5839
        %v5856 = vpack.c.b16 %v5848, %v5840
        %v5857 = vpack.c.b16 %v5849, %v5841
        %v5867 = vsel %vm3933, %v5775, 0
        %5869 = vmatprep.subr.bf16.mxu0 %v5851
        %5870 = vmatpush1.bf16.msra.mxu0 %v5850
        %5871 = vmatprep.subr.bf16.mxu0 0
        %5872 = vmatpush1.bf16.msra.mxu0 0
        %5873 = vmatprep.subr.bf16.mxu0 0
        %5874 = vmatpush1.bf16.msra.mxu0 0
        %5875 = vmatprep.subr.bf16.mxu0 0
        %5876 = vmatpush1.bf16.msra.mxu0 0
        %5877 = vmatprep.subr.bf16.mxu0 0
        %5878 = vmatpush1.bf16.msra.mxu0 0
        %5879 = vmatprep.subr.bf16.mxu0 0
        %5880 = vmatpush1.bf16.msra.mxu0 0
        %5881 = vmatprep.subr.bf16.mxu0 0
        %5882 = vmatpush1.bf16.msra.mxu0 0
        %5883 = vmatprep.subr.bf16.mxu0 0
        %5884 = vmatpush1.bf16.msra.mxu0 0
        %5885 = vmatprep.subr.bf16.mxu0 0
        %5886 = vmatpush1.bf16.msra.mxu0 0
        %5887 = vmatprep.subr.bf16.mxu0 0
        %5888 = vmatpush1.bf16.msra.mxu0 0
        %5889 = vmatprep.subr.bf16.mxu0 0
        %5890 = vmatpush1.bf16.msra.mxu0 0
        %5891 = vmatprep.subr.bf16.mxu0 0
        %5892 = vmatpush1.bf16.msra.mxu0 0
        %5893 = vmatprep.subr.bf16.mxu0 0
        %5894 = vmatpush1.bf16.msra.mxu0 0
        %5895 = vmatprep.subr.bf16.mxu0 0
        %5896 = vmatpush1.bf16.msra.mxu0 0
        %5897 = vmatprep.subr.bf16.mxu0 0
        %5898 = vmatpush1.bf16.msra.mxu0 0
        %5899 = vmatprep.subr.bf16.mxu0 0
        %5900 = vmatpush1.bf16.msra.mxu0 0
        %5901 = vmatprep.mubr.bf16.mxu0 0
        %5902 = vmatmul.mubr.bf16.gmra.mrb[0].mxu0 %v5867
        %v5903 = vpop.f32.mrb[0].mxu0
        %v5904 = vadd.f32 %v5789, %v5903
        %v5905 = vpop.f32.mrb[0].mxu0
        %v5906 = vadd.f32 %v5793, %v5905
        %v5907 = vpop.f32.mrb[0].mxu0
        %v5908 = vpop.f32.mrb[0].mxu0
        %5909 = vdwg.mxu0
        %5910 = vmatprep.subr.bf16.mxu0 %v5853
        %5911 = vmatpush1.bf16.msra.mxu0 %v5852
        %5912 = vmatprep.subr.bf16.mxu0 0
        %5913 = vmatpush1.bf16.msra.mxu0 0
        %5914 = vmatprep.subr.bf16.mxu0 0
        %5915 = vmatpush1.bf16.msra.mxu0 0
        %5916 = vmatprep.subr.bf16.mxu0 0
        %5917 = vmatpush1.bf16.msra.mxu0 0
        %5918 = vmatprep.subr.bf16.mxu0 0
        %5919 = vmatpush1.bf16.msra.mxu0 0
        %5920 = vmatprep.subr.bf16.mxu0 0
        %5921 = vmatpush1.bf16.msra.mxu0 0
        %5922 = vmatprep.subr.bf16.mxu0 0
        %5923 = vmatpush1.bf16.msra.mxu0 0
        %5924 = vmatprep.subr.bf16.mxu0 0
        %5925 = vmatpush1.bf16.msra.mxu0 0
        %5926 = vmatprep.subr.bf16.mxu0 0
        %5927 = vmatpush1.bf16.msra.mxu0 0
        %5928 = vmatprep.subr.bf16.mxu0 0
        %5929 = vmatpush1.bf16.msra.mxu0 0
        %5930 = vmatprep.subr.bf16.mxu0 0
        %5931 = vmatpush1.bf16.msra.mxu0 0
        %5932 = vmatprep.subr.bf16.mxu0 0
        %5933 = vmatpush1.bf16.msra.mxu0 0
        %5934 = vmatprep.subr.bf16.mxu0 0
        %5935 = vmatpush1.bf16.msra.mxu0 0
        %5936 = vmatprep.subr.bf16.mxu0 0
        %5937 = vmatpush1.bf16.msra.mxu0 0
        %5938 = vmatprep.subr.bf16.mxu0 0
        %5939 = vmatpush1.bf16.msra.mxu0 0
        %5940 = vmatprep.subr.bf16.mxu0 0
        %5941 = vmatpush1.bf16.msra.mxu0 0
        %5942 = vmatprep.mubr.bf16.mxu0 0
        %5943 = vmatmul.mubr.bf16.gmra.mrb[0].mxu0 %v5867
        %v5944 = vpop.f32.mrb[0].mxu0
        %v5945 = vadd.f32 %v5797, %v5944
        %v5946 = vpop.f32.mrb[0].mxu0
        %v5947 = vadd.f32 %v5801, %v5946
        %v5948 = vpop.f32.mrb[0].mxu0
        %v5949 = vpop.f32.mrb[0].mxu0
        %5950 = vdwg.mxu0
        %5951 = vmatprep.subr.bf16.mxu0 %v5855
        %5952 = vmatpush1.bf16.msra.mxu0 %v5854
        %5953 = vmatprep.subr.bf16.mxu0 0
        %5954 = vmatpush1.bf16.msra.mxu0 0
        %5955 = vmatprep.subr.bf16.mxu0 0
        %5956 = vmatpush1.bf16.msra.mxu0 0
        %5957 = vmatprep.subr.bf16.mxu0 0
        %5958 = vmatpush1.bf16.msra.mxu0 0
        %5959 = vmatprep.subr.bf16.mxu0 0
        %5960 = vmatpush1.bf16.msra.mxu0 0
        %5961 = vmatprep.subr.bf16.mxu0 0
        %5962 = vmatpush1.bf16.msra.mxu0 0
        %5963 = vmatprep.subr.bf16.mxu0 0
        %5964 = vmatpush1.bf16.msra.mxu0 0
        %5965 = vmatprep.subr.bf16.mxu0 0
        %5966 = vmatpush1.bf16.msra.mxu0 0
        %5967 = vmatprep.subr.bf16.mxu0 0
        %5968 = vmatpush1.bf16.msra.mxu0 0
        %5969 = vmatprep.subr.bf16.mxu0 0
        %5970 = vmatpush1.bf16.msra.mxu0 0
        %5971 = vmatprep.subr.bf16.mxu0 0
        %5972 = vmatpush1.bf16.msra.mxu0 0
        %5973 = vmatprep.subr.bf16.mxu0 0
        %5974 = vmatpush1.bf16.msra.mxu0 0
        %5975 = vmatprep.subr.bf16.mxu0 0
        %5976 = vmatpush1.bf16.msra.mxu0 0
        %5977 = vmatprep.subr.bf16.mxu0 0
        %5978 = vmatpush1.bf16.msra.mxu0 0
        %5979 = vmatprep.subr.bf16.mxu0 0
        %5980 = vmatpush1.bf16.msra.mxu0 0
        %5981 = vmatprep.subr.bf16.mxu0 0
        %5982 = vmatpush1.bf16.msra.mxu0 0
        %5983 = vmatprep.mubr.bf16.mxu0 0
        %5984 = vmatmul.mubr.bf16.gmra.mrb[0].mxu0 %v5867
        %v5985 = vpop.f32.mrb[0].mxu0
        %v5986 = vadd.f32 %v5805, %v5985
        %v5987 = vpop.f32.mrb[0].mxu0
        %v5988 = vadd.f32 %v5809, %v5987
        %v5989 = vpop.f32.mrb[0].mxu0
        %v5990 = vpop.f32.mrb[0].mxu0
        %5991 = vdwg.mxu0
        %5992 = vmatprep.subr.bf16.mxu0 %v5857
        %5993 = vmatpush1.bf16.msra.mxu0 %v5856
        %5994 = vmatprep.subr.bf16.mxu0 0
        %5995 = vmatpush1.bf16.msra.mxu0 0
        %5996 = vmatprep.subr.bf16.mxu0 0
        %5997 = vmatpush1.bf16.msra.mxu0 0
        %5998 = vmatprep.subr.bf16.mxu0 0
        %5999 = vmatpush1.bf16.msra.mxu0 0
        %6000 = vmatprep.subr.bf16.mxu0 0
        %6001 = vmatpush1.bf16.msra.mxu0 0
        %6002 = vmatprep.subr.bf16.mxu0 0
        %6003 = vmatpush1.bf16.msra.mxu0 0
        %6004 = vmatprep.subr.bf16.mxu0 0
        %6005 = vmatpush1.bf16.msra.mxu0 0
        %6006 = vmatprep.subr.bf16.mxu0 0
        %6007 = vmatpush1.bf16.msra.mxu0 0
        %6008 = vmatprep.subr.bf16.mxu0 0
        %6009 = vmatpush1.bf16.msra.mxu0 0
        %6010 = vmatprep.subr.bf16.mxu0 0
        %6011 = vmatpush1.bf16.msra.mxu0 0
        %6012 = vmatprep.subr.bf16.mxu0 0
        %6013 = vmatpush1.bf16.msra.mxu0 0
        %6014 = vmatprep.subr.bf16.mxu0 0
        %6015 = vmatpush1.bf16.msra.mxu0 0
        %6016 = vmatprep.subr.bf16.mxu0 0
        %6017 = vmatpush1.bf16.msra.mxu0 0
        %6018 = vmatprep.subr.bf16.mxu0 0
        %6019 = vmatpush1.bf16.msra.mxu0 0
        %6020 = vmatprep.subr.bf16.mxu0 0
        %6021 = vmatpush1.bf16.msra.mxu0 0
        %6022 = vmatprep.subr.bf16.mxu0 0
        %6023 = vmatpush1.bf16.msra.mxu0 0
        %6024 = vmatprep.mubr.bf16.mxu0 0
        %6025 = vmatmul.mubr.bf16.gmra.mrb[0].mxu0 %v5867
        %v6026 = vpop.f32.mrb[0].mxu0
        %v6027 = vadd.f32 %v5813, %v6026
        %v6028 = vpop.f32.mrb[0].mxu0
        %v6029 = vadd.f32 %v5817, %v6028
        %v6030 = vpop.f32.mrb[0].mxu0
        %v6031 = vpop.f32.mrb[0].mxu0
        %6032 = vdwg.mxu0
        %v6033 = vmul.f32 %v5904, 0.5
        %v6034 = vmul.f32 %v5906, 0.5
        %v6035 = vmul.f32 %v5945, 0.5
        %v6036 = vmul.f32 %v5947, 0.5
        %v6037 = vmul.f32 %v5986, 0.5
        %v6038 = vmul.f32 %v5988, 0.5
        %v6039 = vmul.f32 %v6027, 0.5
        %v6040 = vmul.f32 %v6029, 0.5
        %v6041 = vmul.f32 %v5904, 0.044715
        %v6042 = vmul.f32 %v5906, 0.044715
        %v6043 = vmul.f32 %v5945, 0.044715
        %v6044 = vmul.f32 %v5947, 0.044715
        %v6045 = vmul.f32 %v5986, 0.044715
        %v6046 = vmul.f32 %v5988, 0.044715
        %v6047 = vmul.f32 %v6027, 0.044715
        %v6048 = vmul.f32 %v6029, 0.044715
        %v6049 = vmul.f32 %v6041, %v5904
        %v6050 = vmul.f32 %v6042, %v5906
        %v6051 = vmul.f32 %v6043, %v5945
        %v6052 = vmul.f32 %v6044, %v5947
        %v6053 = vmul.f32 %v6045, %v5986
        %v6054 = vmul.f32 %v6046, %v5988
        %v6055 = vmul.f32 %v6047, %v6027
        %v6056 = vmul.f32 %v6048, %v6029
        %v6057 = vmul.f32 %v6049, %v5904
        %v6058 = vmul.f32 %v6050, %v5906
        %v6059 = vmul.f32 %v6051, %v5945
        %v6060 = vmul.f32 %v6052, %v5947
        %v6061 = vmul.f32 %v6053, %v5986
        %v6062 = vmul.f32 %v6054, %v5988
        %v6063 = vmul.f32 %v6055, %v6027
        %v6064 = vmul.f32 %v6056, %v6029
        %v6065 = vadd.f32 %v5904, %v6057
        %v6066 = vadd.f32 %v5906, %v6058
        %v6067 = vadd.f32 %v5945, %v6059
        %v6068 = vadd.f32 %v5947, %v6060
        %v6069 = vadd.f32 %v5986, %v6061
        %v6070 = vadd.f32 %v5988, %v6062
        %v6071 = vadd.f32 %v6027, %v6063
        %v6072 = vadd.f32 %v6029, %v6064
        %v6073 = vmul.f32 %v6065, 0.7978846
        %v6074 = vmul.f32 %v6066, 0.7978846
        %v6075 = vmul.f32 %v6067, 0.7978846
        %v6076 = vmul.f32 %v6068, 0.7978846
        %v6077 = vmul.f32 %v6069, 0.7978846
        %v6078 = vmul.f32 %v6070, 0.7978846
        %v6079 = vmul.f32 %v6071, 0.7978846
        %v6080 = vmul.f32 %v6072, 0.7978846
        %v6081 = vtanh.pop %v6073
        %v6082 = vtanh.pop %v6074
        %v6083 = vtanh.pop %v6075
        %v6084 = vtanh.pop %v6076
        %v6085 = vtanh.pop %v6077
        %v6086 = vtanh.pop %v6078
        %v6087 = vtanh.pop %v6079
        %v6088 = vtanh.pop %v6080
        %v6089 = vadd.f32 %v6081, 1.0
        %v6090 = vadd.f32 %v6082, 1.0
        %v6091 = vadd.f32 %v6083, 1.0
        %v6092 = vadd.f32 %v6084, 1.0
        %v6093 = vadd.f32 %v6085, 1.0
        %v6094 = vadd.f32 %v6086, 1.0
        %v6095 = vadd.f32 %v6087, 1.0
        %v6096 = vadd.f32 %v6088, 1.0
        %v6097 = vmul.f32 %v6033, %v6089
        %v6098 = vmul.f32 %v6034, %v6090
        %v6099 = vmul.f32 %v6035, %v6091
        %v6100 = vmul.f32 %v6036, %v6092
        %v6101 = vmul.f32 %v6037, %v6093
        %v6102 = vmul.f32 %v6038, %v6094
        %v6103 = vmul.f32 %v6039, %v6095
        %v6104 = vmul.f32 %v6040, %v6096
        %v6105 = vpack.c.bf16 %v6097, %v6097
        %v6106 = vpack.c.bf16 %v6098, %v6098
        %v6107 = vpack.c.bf16 %v6099, %v6099
        %v6108 = vpack.c.bf16 %v6100, %v6100
        %v6109 = vpack.c.bf16 %v6101, %v6101
        %v6110 = vpack.c.bf16 %v6102, %v6102
        %v6111 = vpack.c.bf16 %v6103, %v6103
        %v6112 = vpack.c.bf16 %v6104, %v6104
        %v6114 = vshrl.u32 %v6105, 16
        %v6118 = vshrl.u32 %v6106, 16
        %v6121 = vshrl.u32 %v6107, 16
        %v6124 = vshrl.u32 %v6108, 16
        %v6127 = vshrl.u32 %v6109, 16
        %v6130 = vshrl.u32 %v6110, 16
        %v6133 = vshrl.u32 %v6111, 16
        %v6136 = vshrl.u32 %v6112, 16
        %v6138 = vshll.u32 %v6106, 16
        %v6141 = vshll.u32 %v6118, 16
        %v6146 = vrot.slane %v6107, 7
        %v6147 = vrot.slane %v6121, 7
        %v6148 = vshll.u32 %v6108, 16
        %v6150 = vrot.slane %v6148, 7
        %v6152 = vshll.u32 %v6124, 16
        %v6154 = vrot.slane %v6152, 7
        %v6158 = vrot.slane %v6109, 6
        %v6159 = vrot.slane %v6127, 6
        %v6160 = vshll.u32 %v6110, 16
        %v6162 = vrot.slane %v6160, 6
        %v6164 = vshll.u32 %v6130, 16
        %v6166 = vrot.slane %v6164, 6
        %v6170 = vrot.slane %v6111, 5
        %v6171 = vrot.slane %v6133, 5
        %v6172 = vshll.u32 %v6112, 16
        %v6174 = vrot.slane %v6172, 5
        %v6176 = vshll.u32 %v6136, 16
        %v6178 = vrot.slane %v6176, 5
        %v6181 = vsel %vm5087, %v6105, %v6138
        %v6182 = vsel %vm5087, %v6114, %v6141
        %v6185 = vsel %vm2200, %v6181, %v6146
        %v6189 = vsel %vm2200, %v6182, %v6147
        %v6191 = vsel %vm2015, %v6185, %v6150
        %v6192 = vsel %vm2015, %v6189, %v6154
        %v6195 = vsel %vm4067, %v6191, %v6158
        %v6199 = vsel %vm4067, %v6192, %v6159
        %v6201 = vsel %vm2267, %v6195, %v6162
        %v6202 = vsel %vm2267, %v6199, %v6166
        %v6205 = vsel %vm2032, %v6201, %v6170
        %v6209 = vsel %vm2032, %v6202, %v6171
        %vm6211 = vcmask 1043456
        %vm6212 = vsmask.f32 3328
        %vm6213 = vmand %vm6211, %vm6212
        %v6214 = vsel %vm6213, %v6205, %v6174
        %v6215 = vsel %vm6213, %v6209, %v6178
        %v6216 = vld [vmem:[#allocation4] sm:$0xff]
        %v6217 = vld [vmem:[#allocation4 + $0x8] sm:$0xff]
        %v6218 = vld [vmem:[#allocation4 + $0x10] sm:$0xff]
        %v6219 = vld [vmem:[#allocation4 + $0x18] sm:$0xff]
        %v6220 = vld [vmem:[#allocation4 + $0x20] sm:$0xff]
        %v6221 = vld [vmem:[#allocation4 + $0x28] sm:$0xff]
        %v6222 = vld [vmem:[#allocation4 + $0x30] sm:$0xff]
        %v6223 = vld [vmem:[#allocation4 + $0x38] sm:$0xff]
        %v6224 = vld [vmem:[#allocation4 + $0x40] sm:$0xff]
        %v6225 = vld [vmem:[#allocation4 + $0x48] sm:$0xff]
        %v6226 = vld [vmem:[#allocation4 + $0x50] sm:$0xff]
        %v6227 = vld [vmem:[#allocation4 + $0x58] sm:$0xff]
        %v6228 = vld [vmem:[#allocation4 + $0x60] sm:$0xff]
        %v6229 = vld [vmem:[#allocation4 + $0x68] sm:$0xff]
        %v6230 = vld [vmem:[#allocation4 + $0x70] sm:$0xff]
        %v6231 = vld [vmem:[#allocation4 + $0x78] sm:$0xff]
        %v6248 = vunpack.c.l.b16 %v6216
        %v6249 = vunpack.c.h.b16 %v6216
        %v6250 = vunpack.c.l.b16 %v6217
        %v6251 = vunpack.c.h.b16 %v6217
        %v6252 = vunpack.c.l.b16 %v6218
        %v6253 = vunpack.c.h.b16 %v6218
        %v6254 = vunpack.c.l.b16 %v6219
        %v6255 = vunpack.c.h.b16 %v6219
        %v6256 = vunpack.c.l.b16 %v6220
        %v6257 = vunpack.c.h.b16 %v6220
        %v6258 = vunpack.c.l.b16 %v6221
        %v6259 = vunpack.c.h.b16 %v6221
        %v6260 = vunpack.c.l.b16 %v6222
        %v6261 = vunpack.c.h.b16 %v6222
        %v6262 = vunpack.c.l.b16 %v6223
        %v6263 = vunpack.c.h.b16 %v6223
        %v6264 = vunpack.c.l.b16 %v6224
        %v6265 = vunpack.c.h.b16 %v6224
        %v6266 = vunpack.c.l.b16 %v6225
        %v6267 = vunpack.c.h.b16 %v6225
        %v6268 = vunpack.c.l.b16 %v6226
        %v6269 = vunpack.c.h.b16 %v6226
        %v6270 = vunpack.c.l.b16 %v6227
        %v6271 = vunpack.c.h.b16 %v6227
        %v6272 = vunpack.c.l.b16 %v6228
        %v6273 = vunpack.c.h.b16 %v6228
        %v6274 = vunpack.c.l.b16 %v6229
        %v6275 = vunpack.c.h.b16 %v6229
        %v6276 = vunpack.c.l.b16 %v6230
        %v6277 = vunpack.c.h.b16 %v6230
        %v6278 = vunpack.c.l.b16 %v6231
        %v6279 = vunpack.c.h.b16 %v6231
        %v6280 = vpack.c.b16 %v6250, %v6248
        %v6281 = vpack.c.b16 %v6251, %v6249
        %v6282 = vpack.c.b16 %v6254, %v6252
        %v6283 = vpack.c.b16 %v6255, %v6253
        %v6284 = vpack.c.b16 %v6258, %v6256
        %v6285 = vpack.c.b16 %v6259, %v6257
        %v6286 = vpack.c.b16 %v6262, %v6260
        %v6287 = vpack.c.b16 %v6263, %v6261
        %v6288 = vpack.c.b16 %v6266, %v6264
        %v6289 = vpack.c.b16 %v6267, %v6265
        %v6290 = vpack.c.b16 %v6270, %v6268
        %v6291 = vpack.c.b16 %v6271, %v6269
        %v6292 = vpack.c.b16 %v6274, %v6272
        %v6293 = vpack.c.b16 %v6275, %v6273
        %v6294 = vpack.c.b16 %v6278, %v6276
        %v6295 = vpack.c.b16 %v6279, %v6277
        %6312 = vmatprep.subr.bf16.mxu0 %v6281
        %6313 = vmatpush1.bf16.msra.mxu0 %v6280
        %6314 = vmatprep.subr.bf16.mxu0 %v6283
        %6315 = vmatpush1.bf16.msra.mxu0 %v6282
        %6316 = vmatprep.subr.bf16.mxu0 %v6285
        %6317 = vmatpush1.bf16.msra.mxu0 %v6284
        %6318 = vmatprep.subr.bf16.mxu0 %v6287
        %6319 = vmatpush1.bf16.msra.mxu0 %v6286
        %6320 = vmatprep.subr.bf16.mxu0 %v6289
        %6321 = vmatpush1.bf16.msra.mxu0 %v6288
        %6322 = vmatprep.subr.bf16.mxu0 %v6291
        %6323 = vmatpush1.bf16.msra.mxu0 %v6290
        %6324 = vmatprep.subr.bf16.mxu0 %v6293
        %6325 = vmatpush1.bf16.msra.mxu0 %v6292
        %6326 = vmatprep.subr.bf16.mxu0 %v6295
        %6327 = vmatpush1.bf16.msra.mxu0 %v6294
        %6328 = vmatprep.subr.bf16.mxu0 0
        %6329 = vmatpush1.bf16.msra.mxu0 0
        %6330 = vmatprep.subr.bf16.mxu0 0
        %6331 = vmatpush1.bf16.msra.mxu0 0
        %6332 = vmatprep.subr.bf16.mxu0 0
        %6333 = vmatpush1.bf16.msra.mxu0 0
        %6334 = vmatprep.subr.bf16.mxu0 0
        %6335 = vmatpush1.bf16.msra.mxu0 0
        %6336 = vmatprep.subr.bf16.mxu0 0
        %6337 = vmatpush1.bf16.msra.mxu0 0
        %6338 = vmatprep.subr.bf16.mxu0 0
        %6339 = vmatpush1.bf16.msra.mxu0 0
        %6340 = vmatprep.subr.bf16.mxu0 0
        %6341 = vmatpush1.bf16.msra.mxu0 0
        %6342 = vmatprep.subr.bf16.mxu0 0
        %6343 = vmatpush1.bf16.msra.mxu0 0
        %6344 = vmatprep.mubr.bf16.mxu0 0
        %6345 = vmatmul.mubr.bf16.gmra.mrb[0].mxu0 %v6214
        %v6346 = vpop.f32.mrb[0].mxu0
        %v6347 = vadd.f32 0.0, %v6346
        %v6348 = vpop.f32.mrb[0].mxu0
        %v6349 = vadd.f32 0.0, %v6348
        %v6350 = vpop.f32.mrb[0].mxu0
        %v6351 = vpop.f32.mrb[0].mxu0
        %6352 = vdwg.mxu0
        %6353 = vmatprep.subr.bf16.mxu0 %v6281
        %6354 = vmatpush1.bf16.msra.mxu0 %v6280
        %6355 = vmatprep.subr.bf16.mxu0 %v6283
        %6356 = vmatpush1.bf16.msra.mxu0 %v6282
        %6357 = vmatprep.subr.bf16.mxu0 %v6285
        %6358 = vmatpush1.bf16.msra.mxu0 %v6284
        %6359 = vmatprep.subr.bf16.mxu0 %v6287
        %6360 = vmatpush1.bf16.msra.mxu0 %v6286
        %6361 = vmatprep.subr.bf16.mxu0 %v6289
        %6362 = vmatpush1.bf16.msra.mxu0 %v6288
        %6363 = vmatprep.subr.bf16.mxu0 %v6291
        %6364 = vmatpush1.bf16.msra.mxu0 %v6290
        %6365 = vmatprep.subr.bf16.mxu0 %v6293
        %6366 = vmatpush1.bf16.msra.mxu0 %v6292
        %6367 = vmatprep.subr.bf16.mxu0 %v6295
        %6368 = vmatpush1.bf16.msra.mxu0 %v6294
        %6369 = vmatprep.subr.bf16.mxu0 0
        %6370 = vmatpush1.bf16.msra.mxu0 0
        %6371 = vmatprep.subr.bf16.mxu0 0
        %6372 = vmatpush1.bf16.msra.mxu0 0
        %6373 = vmatprep.subr.bf16.mxu0 0
        %6374 = vmatpush1.bf16.msra.mxu0 0
        %6375 = vmatprep.subr.bf16.mxu0 0
        %6376 = vmatpush1.bf16.msra.mxu0 0
        %6377 = vmatprep.subr.bf16.mxu0 0
        %6378 = vmatpush1.bf16.msra.mxu0 0
        %6379 = vmatprep.subr.bf16.mxu0 0
        %6380 = vmatpush1.bf16.msra.mxu0 0
        %6381 = vmatprep.subr.bf16.mxu0 0
        %6382 = vmatpush1.bf16.msra.mxu0 0
        %6383 = vmatprep.subr.bf16.mxu0 0
        %6384 = vmatpush1.bf16.msra.mxu0 0
        %6385 = vmatprep.mubr.bf16.mxu0 0
        %6386 = vmatmul.mubr.bf16.gmra.mrb[0].mxu0 %v6215
        %v6387 = vpop.f32.mrb[0].mxu0
        %v6388 = vadd.f32 0.0, %v6387
        %v6389 = vpop.f32.mrb[0].mxu0
        %v6390 = vadd.f32 0.0, %v6389
        %v6391 = vpop.f32.mrb[0].mxu0
        %v6392 = vpop.f32.mrb[0].mxu0
        %6393 = vdwg.mxu0
        %v6394 = vpack.c.bf16 %v6347, %v6347
        %v6395 = vpack.c.bf16 %v6349, %v6349
        %v6396 = vpack.c.bf16 %v6388, %v6388
        %v6397 = vpack.c.bf16 %v6390, %v6390
        %v6398 = vld [vmem:[%s9] sm:$0xf]
        %6400 = vrot.lane.b32.xlu0 %v6397, 17
        %v6401 = vpop.permute.xlu0 %6400
        %6405 = vrot.lane.b32.xlu0 %v6394, 17
        %v6406 = vpop.permute.xlu0 %6405
        %6407 = vrot.lane.b32.xlu0 %v6395, 17
        %v6408 = vpop.permute.xlu0 %6407
        %6409 = vrot.lane.b32.xlu0 %v6396, 17
        %v6410 = vpop.permute.xlu0 %6409
        %v6411 = vsel %vm3913, %v6406, %v6408
        %v6412 = vsel %vm3913, %v6408, %v6410
        %v6413 = vsel %vm3913, %v6410, %v6401
        %v6416 = vsel %vm3917, %v6401, %v6406
        %6417 = vrot.lane.b32.xlu0 %v6397, 16
        %v6418 = vpop.permute.xlu0 %6417
        %6419 = vrot.lane.b32.xlu0 %v6394, 16
        %v6420 = vpop.permute.xlu0 %6419
        %6421 = vrot.lane.b32.xlu0 %v6395, 16
        %v6422 = vpop.permute.xlu0 %6421
        %6423 = vrot.lane.b32.xlu0 %v6396, 16
        %v6424 = vpop.permute.xlu0 %6423
        %v6425 = vsel %vm3929, %v6420, %v6422
        %v6426 = vsel %vm3929, %v6422, %v6424
        %v6427 = vsel %vm3929, %v6424, %v6418
        %v6430 = vsel %vm3933, %v6418, %v6420
        %6431 = vrot.lane.b32.xlu0 %v6397, 15
        %v6432 = vpop.permute.xlu0 %6431
        %6433 = vrot.lane.b32.xlu0 %v6394, 15
        %v6434 = vpop.permute.xlu0 %6433
        %6435 = vrot.lane.b32.xlu0 %v6395, 15
        %v6436 = vpop.permute.xlu0 %6435
        %6437 = vrot.lane.b32.xlu0 %v6396, 15
        %v6438 = vpop.permute.xlu0 %6437
        %v6439 = vsel %vm3945, %v6434, %v6436
        %v6440 = vsel %vm3945, %v6436, %v6438
        %v6441 = vsel %vm3945, %v6438, %v6432
        %v6444 = vsel %vm3949, %v6432, %v6434
        %6445 = vrot.lane.b32.xlu0 %v6397, 1
        %v6446 = vpop.permute.xlu0 %6445
        %6447 = vrot.lane.b32.xlu0 %v6394, 1
        %v6448 = vpop.permute.xlu0 %6447
        %6449 = vrot.lane.b32.xlu0 %v6395, 1
        %v6450 = vpop.permute.xlu0 %6449
        %6451 = vrot.lane.b32.xlu0 %v6396, 1
        %v6452 = vpop.permute.xlu0 %6451
        %v6453 = vsel %vm1058, %v6448, %v6450
        %v6454 = vsel %vm1058, %v6450, %v6452
        %v6455 = vsel %vm1058, %v6452, %v6446
        %v6458 = vsel %vm1074, %v6446, %v6448
        %6459 = vrot.lane.b32.xlu0 %v6394, 127
        %v6460 = vpop.permute.xlu0 %6459
        %6461 = vrot.lane.b32.xlu0 %v6395, 127
        %v6462 = vpop.permute.xlu0 %6461
        %6463 = vrot.lane.b32.xlu0 %v6396, 127
        %v6464 = vpop.permute.xlu0 %6463
        %6465 = vrot.lane.b32.xlu0 %v6397, 127
        %v6466 = vpop.permute.xlu0 %6465
        %v6467 = vsel %vm1110, %v6460, %v6462
        %v6468 = vsel %vm1110, %v6462, %v6464
        %v6469 = vsel %vm1110, %v6464, %v6466
        %v6472 = vsel %vm1126, %v6466, %v6460
        %6473 = vrot.lane.b32.xlu0 %v6394, 113
        %v6474 = vpop.permute.xlu0 %6473
        %6475 = vrot.lane.b32.xlu0 %v6395, 113
        %v6476 = vpop.permute.xlu0 %6475
        %6477 = vrot.lane.b32.xlu0 %v6396, 113
        %v6478 = vpop.permute.xlu0 %6477
        %6479 = vrot.lane.b32.xlu0 %v6397, 113
        %v6480 = vpop.permute.xlu0 %6479
        %v6481 = vsel %vm3989, %v6474, %v6476
        %v6482 = vsel %vm3989, %v6476, %v6478
        %v6483 = vsel %vm3989, %v6478, %v6480
        %v6486 = vsel %vm3993, %v6480, %v6474
        %6487 = vrot.lane.b32.xlu0 %v6394, 112
        %v6488 = vpop.permute.xlu0 %6487
        %6489 = vrot.lane.b32.xlu0 %v6395, 112
        %v6490 = vpop.permute.xlu0 %6489
        %6491 = vrot.lane.b32.xlu0 %v6396, 112
        %v6492 = vpop.permute.xlu0 %6491
        %6493 = vrot.lane.b32.xlu0 %v6397, 112
        %v6494 = vpop.permute.xlu0 %6493
        %v6495 = vsel %vm4005, %v6488, %v6490
        %v6496 = vsel %vm4005, %v6490, %v6492
        %v6497 = vsel %vm4005, %v6492, %v6494
        %v6500 = vsel %vm4009, %v6494, %v6488
        %6501 = vrot.lane.b32.xlu0 %v6394, 111
        %v6502 = vpop.permute.xlu0 %6501
        %6503 = vrot.lane.b32.xlu0 %v6395, 111
        %v6504 = vpop.permute.xlu0 %6503
        %6505 = vrot.lane.b32.xlu0 %v6396, 111
        %v6506 = vpop.permute.xlu0 %6505
        %6507 = vrot.lane.b32.xlu0 %v6397, 111
        %v6508 = vpop.permute.xlu0 %6507
        %v6509 = vsel %vm4021, %v6502, %v6504
        %v6510 = vsel %vm4021, %v6504, %v6506
        %v6511 = vsel %vm4021, %v6506, %v6508
        %v6514 = vsel %vm4025, %v6508, %v6502
        %v6516 = vrot.slane %v6430, 4
        %v6517 = vrot.slane %v6425, 4
        %v6518 = vrot.slane %v6426, 4
        %v6519 = vrot.slane %v6427, 4
        %v6521 = vrot.slane %v6458, 4
        %v6522 = vrot.slane %v6453, 4
        %v6523 = vrot.slane %v6454, 4
        %v6524 = vrot.slane %v6455, 4
        %v6526 = vrot.slane %v6467, 4
        %v6527 = vrot.slane %v6468, 4
        %v6528 = vrot.slane %v6469, 4
        %v6529 = vrot.slane %v6472, 4
        %v6531 = vrot.slane %v6495, 4
        %v6532 = vrot.slane %v6496, 4
        %v6533 = vrot.slane %v6497, 4
        %v6534 = vrot.slane %v6500, 4
        %v6535 = vrot.slane %v760, 4
        %v6536 = vrot.slane %v761, 4
        %v6537 = vrot.slane %v762, 4
        %v6538 = vrot.slane %v763, 4
        %v6540 = vsel %vm2284, %v6416, %v6516
        %v6544 = vsel %vm2284, %v6411, %v6517
        %v6548 = vsel %vm2284, %v6412, %v6518
        %v6552 = vsel %vm2284, %v6413, %v6519
        %v6555 = vsel %vm2284, %v6444, %v6521
        %v6559 = vsel %vm2284, %v6439, %v6522
        %v6563 = vsel %vm2284, %v6440, %v6523
        %v6567 = vsel %vm2284, %v6441, %v6524
        %v6571 = vsel %vm2284, %v6394, %v6526
        %v6575 = vsel %vm2284, %v6395, %v6527
        %v6579 = vsel %vm2284, %v6396, %v6528
        %v6583 = vsel %vm2284, %v6397, %v6529
        %v6587 = vsel %vm2284, %v6481, %v6531
        %v6591 = vsel %vm2284, %v6482, %v6532
        %v6595 = vsel %vm2284, %v6483, %v6533
        %v6598 = vsel %vm2284, %v6486, %v6534
        %v6602 = vsel %vm2284, %v6509, %v6535
        %v6605 = vsel %vm2284, %v6510, %v6536
        %v6608 = vsel %vm2284, %v6511, %v6537
        %v6610 = vsel %vm2284, %v6514, %v6538
        %v6612 = vsel %vm4953, %v6398, 0
        %v6614 = vand.u32 %v6602, %v4959
        %v6616 = vand.u32 %v6605, %v4959
        %v6618 = vand.u32 %v6608, %v4959
        %v6620 = vand.u32 %v6610, %v4959
        %6622 = vmatprep.subr.bf16.mxu0 %v6544
        %6623 = vmatpush1.bf16.msra.mxu0 %v6540
        %6624 = vmatprep.subr.bf16.mxu0 %v6559
        %6625 = vmatpush1.bf16.msra.mxu0 %v6555
        %6626 = vmatprep.subr.bf16.mxu0 %v6575
        %6627 = vmatpush1.bf16.msra.mxu0 %v6571
        %6628 = vmatprep.subr.bf16.mxu0 %v6591
        %6629 = vmatpush1.bf16.msra.mxu0 %v6587
        %6630 = vmatprep.subr.bf16.mxu0 %v6616
        %6631 = vmatpush1.bf16.msra.mxu0 %v6614
        %6632 = vmatprep.subr.bf16.mxu0 0
        %6633 = vmatpush1.bf16.msra.mxu0 0
        %6634 = vmatprep.subr.bf16.mxu0 0
        %6635 = vmatpush1.bf16.msra.mxu0 0
        %6636 = vmatprep.subr.bf16.mxu0 0
        %6637 = vmatpush1.bf16.msra.mxu0 0
        %6638 = vmatprep.subr.bf16.mxu0 0
        %6639 = vmatpush1.bf16.msra.mxu0 0
        %6640 = vmatprep.subr.bf16.mxu0 0
        %6641 = vmatpush1.bf16.msra.mxu0 0
        %6642 = vmatprep.subr.bf16.mxu0 0
        %6643 = vmatpush1.bf16.msra.mxu0 0
        %6644 = vmatprep.subr.bf16.mxu0 0
        %6645 = vmatpush1.bf16.msra.mxu0 0
        %6646 = vmatprep.subr.bf16.mxu0 0
        %6647 = vmatpush1.bf16.msra.mxu0 0
        %6648 = vmatprep.subr.bf16.mxu0 0
        %6649 = vmatpush1.bf16.msra.mxu0 0
        %6650 = vmatprep.subr.bf16.mxu0 0
        %6651 = vmatpush1.bf16.msra.mxu0 0
        %6652 = vmatprep.subr.bf16.mxu0 0
        %6653 = vmatpush1.bf16.msra.mxu0 0
        %6654 = vmatprep.mubr.bf16.mxu0 0
        %6655 = vmatmul.mubr.bf16.gmra.mrb[0].mxu0 %v6612
        %v6656 = vpop.f32.mrb[0].mxu0
        %v6657 = vadd.f32 0.0, %v6656
        %v6658 = vpop.f32.mrb[0].mxu0
        %v6659 = vadd.f32 0.0, %v6658
        %v6660 = vpop.f32.mrb[0].mxu0
        %v6661 = vpop.f32.mrb[0].mxu0
        %6662 = vdwg.mxu0
        %6663 = vmatprep.subr.bf16.mxu0 %v6552
        %6664 = vmatpush1.bf16.msra.mxu0 %v6548
        %6665 = vmatprep.subr.bf16.mxu0 %v6567
        %6666 = vmatpush1.bf16.msra.mxu0 %v6563
        %6667 = vmatprep.subr.bf16.mxu0 %v6583
        %6668 = vmatpush1.bf16.msra.mxu0 %v6579
        %6669 = vmatprep.subr.bf16.mxu0 %v6598
        %6670 = vmatpush1.bf16.msra.mxu0 %v6595
        %6671 = vmatprep.subr.bf16.mxu0 %v6620
        %6672 = vmatpush1.bf16.msra.mxu0 %v6618
        %6673 = vmatprep.subr.bf16.mxu0 0
        %6674 = vmatpush1.bf16.msra.mxu0 0
        %6675 = vmatprep.subr.bf16.mxu0 0
        %6676 = vmatpush1.bf16.msra.mxu0 0
        %6677 = vmatprep.subr.bf16.mxu0 0
        %6678 = vmatpush1.bf16.msra.mxu0 0
        %6679 = vmatprep.subr.bf16.mxu0 0
        %6680 = vmatpush1.bf16.msra.mxu0 0
        %6681 = vmatprep.subr.bf16.mxu0 0
        %6682 = vmatpush1.bf16.msra.mxu0 0
        %6683 = vmatprep.subr.bf16.mxu0 0
        %6684 = vmatpush1.bf16.msra.mxu0 0
        %6685 = vmatprep.subr.bf16.mxu0 0
        %6686 = vmatpush1.bf16.msra.mxu0 0
        %6687 = vmatprep.subr.bf16.mxu0 0
        %6688 = vmatpush1.bf16.msra.mxu0 0
        %6689 = vmatprep.subr.bf16.mxu0 0
        %6690 = vmatpush1.bf16.msra.mxu0 0
        %6691 = vmatprep.subr.bf16.mxu0 0
        %6692 = vmatpush1.bf16.msra.mxu0 0
        %6693 = vmatprep.subr.bf16.mxu0 0
        %6694 = vmatpush1.bf16.msra.mxu0 0
        %6695 = vmatprep.mubr.bf16.mxu0 0
        %6696 = vmatmul.mubr.bf16.gmra.mrb[0].mxu0 %v6612
        %v6697 = vpop.f32.mrb[0].mxu0
        %v6698 = vadd.f32 0.0, %v6697
        %v6699 = vpop.f32.mrb[0].mxu0
        %v6700 = vadd.f32 0.0, %v6699
        %v6701 = vpop.f32.mrb[0].mxu0
        %v6702 = vpop.f32.mrb[0].mxu0
        %6703 = vdwg.mxu0
        %v6704 = vmul.f32 %v6657, 0.5
        %v6705 = vmul.f32 %v6659, 0.5
        %v6706 = vmul.f32 %v6698, 0.5
        %v6707 = vmul.f32 %v6700, 0.5
        %v6708 = vmul.f32 %v6657, 0.044715
        %v6709 = vmul.f32 %v6659, 0.044715
        %v6710 = vmul.f32 %v6698, 0.044715
        %v6711 = vmul.f32 %v6700, 0.044715
        %v6712 = vmul.f32 %v6708, %v6657
        %v6713 = vmul.f32 %v6709, %v6659
        %v6714 = vmul.f32 %v6710, %v6698
        %v6715 = vmul.f32 %v6711, %v6700
        %v6716 = vmul.f32 %v6712, %v6657
        %v6717 = vmul.f32 %v6713, %v6659
        %v6718 = vmul.f32 %v6714, %v6698
        %v6719 = vmul.f32 %v6715, %v6700
        %v6720 = vadd.f32 %v6657, %v6716
        %v6721 = vadd.f32 %v6659, %v6717
        %v6722 = vadd.f32 %v6698, %v6718
        %v6723 = vadd.f32 %v6700, %v6719
        %v6724 = vmul.f32 %v6720, 0.7978846
        %v6725 = vmul.f32 %v6721, 0.7978846
        %v6726 = vmul.f32 %v6722, 0.7978846
        %v6727 = vmul.f32 %v6723, 0.7978846
        %v6728 = vtanh.pop %v6724
        %v6729 = vtanh.pop %v6725
        %v6730 = vtanh.pop %v6726
        %v6731 = vtanh.pop %v6727
        %v6732 = vadd.f32 %v6728, 1.0
        %v6733 = vadd.f32 %v6729, 1.0
        %v6734 = vadd.f32 %v6730, 1.0
        %v6735 = vadd.f32 %v6731, 1.0
        %v6736 = vmul.f32 %v6704, %v6732
        %v6737 = vmul.f32 %v6705, %v6733
        %v6738 = vmul.f32 %v6706, %v6734
        %v6739 = vmul.f32 %v6707, %v6735
        %v6740 = vmul.f32 %v6736, %v743
        %v6741 = vmul.f32 %v6737, %v747
        %v6742 = vmul.f32 %v6738, %v751
        %v6743 = vmul.f32 %v6739, %v755
        %v6744 = vpack.c.bf16 %v6740, %v6740
        %v6745 = vpack.c.bf16 %v6741, %v6741
        %v6746 = vpack.c.bf16 %v6742, %v6742
        %v6747 = vpack.c.bf16 %v6743, %v6743
        %v6748 = vld [vmem:[%s10] sm:$0xf]
        %6750 = vrot.lane.b32.xlu0 %v6747, 17
        %v6751 = vpop.permute.xlu0 %6750
        %6755 = vrot.lane.b32.xlu0 %v6744, 17
        %v6756 = vpop.permute.xlu0 %6755
        %6757 = vrot.lane.b32.xlu0 %v6745, 17
        %v6758 = vpop.permute.xlu0 %6757
        %6759 = vrot.lane.b32.xlu0 %v6746, 17
        %v6760 = vpop.permute.xlu0 %6759
        %v6761 = vsel %vm3913, %v6756, %v6758
        %v6762 = vsel %vm3913, %v6758, %v6760
        %v6763 = vsel %vm3913, %v6760, %v6751
        %v6766 = vsel %vm3917, %v6751, %v6756
        %6767 = vrot.lane.b32.xlu0 %v6747, 16
        %v6768 = vpop.permute.xlu0 %6767
        %6769 = vrot.lane.b32.xlu0 %v6744, 16
        %v6770 = vpop.permute.xlu0 %6769
        %6771 = vrot.lane.b32.xlu0 %v6745, 16
        %v6772 = vpop.permute.xlu0 %6771
        %6773 = vrot.lane.b32.xlu0 %v6746, 16
        %v6774 = vpop.permute.xlu0 %6773
        %v6775 = vsel %vm3929, %v6770, %v6772
        %v6776 = vsel %vm3929, %v6772, %v6774
        %v6777 = vsel %vm3929, %v6774, %v6768
        %v6780 = vsel %vm3933, %v6768, %v6770
        %6781 = vrot.lane.b32.xlu0 %v6747, 15
        %v6782 = vpop.permute.xlu0 %6781
        %6783 = vrot.lane.b32.xlu0 %v6744, 15
        %v6784 = vpop.permute.xlu0 %6783
        %6785 = vrot.lane.b32.xlu0 %v6745, 15
        %v6786 = vpop.permute.xlu0 %6785
        %6787 = vrot.lane.b32.xlu0 %v6746, 15
        %v6788 = vpop.permute.xlu0 %6787
        %v6789 = vsel %vm3945, %v6784, %v6786
        %v6790 = vsel %vm3945, %v6786, %v6788
        %v6791 = vsel %vm3945, %v6788, %v6782
        %v6794 = vsel %vm3949, %v6782, %v6784
        %6795 = vrot.lane.b32.xlu0 %v6747, 1
        %v6796 = vpop.permute.xlu0 %6795
        %6797 = vrot.lane.b32.xlu0 %v6744, 1
        %v6798 = vpop.permute.xlu0 %6797
        %6799 = vrot.lane.b32.xlu0 %v6745, 1
        %v6800 = vpop.permute.xlu0 %6799
        %6801 = vrot.lane.b32.xlu0 %v6746, 1
        %v6802 = vpop.permute.xlu0 %6801
        %v6803 = vsel %vm1058, %v6798, %v6800
        %v6804 = vsel %vm1058, %v6800, %v6802
        %v6805 = vsel %vm1058, %v6802, %v6796
        %v6808 = vsel %vm1074, %v6796, %v6798
        %6809 = vrot.lane.b32.xlu0 %v6744, 127
        %v6810 = vpop.permute.xlu0 %6809
        %6811 = vrot.lane.b32.xlu0 %v6745, 127
        %v6812 = vpop.permute.xlu0 %6811
        %6813 = vrot.lane.b32.xlu0 %v6746, 127
        %v6814 = vpop.permute.xlu0 %6813
        %6815 = vrot.lane.b32.xlu0 %v6747, 127
        %v6816 = vpop.permute.xlu0 %6815
        %v6817 = vsel %vm1110, %v6810, %v6812
        %v6818 = vsel %vm1110, %v6812, %v6814
        %v6819 = vsel %vm1110, %v6814, %v6816
        %v6822 = vsel %vm1126, %v6816, %v6810
        %6823 = vrot.lane.b32.xlu0 %v6744, 113
        %v6824 = vpop.permute.xlu0 %6823
        %6825 = vrot.lane.b32.xlu0 %v6745, 113
        %v6826 = vpop.permute.xlu0 %6825
        %6827 = vrot.lane.b32.xlu0 %v6746, 113
        %v6828 = vpop.permute.xlu0 %6827
        %6829 = vrot.lane.b32.xlu0 %v6747, 113
        %v6830 = vpop.permute.xlu0 %6829
        %v6831 = vsel %vm3989, %v6824, %v6826
        %v6832 = vsel %vm3989, %v6826, %v6828
        %v6833 = vsel %vm3989, %v6828, %v6830
        %v6836 = vsel %vm3993, %v6830, %v6824
        %6837 = vrot.lane.b32.xlu0 %v6744, 112
        %v6838 = vpop.permute.xlu0 %6837
        %6839 = vrot.lane.b32.xlu0 %v6745, 112
        %v6840 = vpop.permute.xlu0 %6839
        %6841 = vrot.lane.b32.xlu0 %v6746, 112
        %v6842 = vpop.permute.xlu0 %6841
        %6843 = vrot.lane.b32.xlu0 %v6747, 112
        %v6844 = vpop.permute.xlu0 %6843
        %v6845 = vsel %vm4005, %v6838, %v6840
        %v6846 = vsel %vm4005, %v6840, %v6842
        %v6847 = vsel %vm4005, %v6842, %v6844
        %v6850 = vsel %vm4009, %v6844, %v6838
        %6851 = vrot.lane.b32.xlu0 %v6744, 111
        %v6852 = vpop.permute.xlu0 %6851
        %6853 = vrot.lane.b32.xlu0 %v6745, 111
        %v6854 = vpop.permute.xlu0 %6853
        %6855 = vrot.lane.b32.xlu0 %v6746, 111
        %v6856 = vpop.permute.xlu0 %6855
        %6857 = vrot.lane.b32.xlu0 %v6747, 111
        %v6858 = vpop.permute.xlu0 %6857
        %v6859 = vsel %vm4021, %v6852, %v6854
        %v6860 = vsel %vm4021, %v6854, %v6856
        %v6861 = vsel %vm4021, %v6856, %v6858
        %v6864 = vsel %vm4025, %v6858, %v6852
        %v6866 = vrot.slane %v6780, 4
        %v6867 = vrot.slane %v6775, 4
        %v6868 = vrot.slane %v6776, 4
        %v6869 = vrot.slane %v6777, 4
        %v6871 = vrot.slane %v6808, 4
        %v6872 = vrot.slane %v6803, 4
        %v6873 = vrot.slane %v6804, 4
        %v6874 = vrot.slane %v6805, 4
        %v6876 = vrot.slane %v6817, 4
        %v6877 = vrot.slane %v6818, 4
        %v6878 = vrot.slane %v6819, 4
        %v6879 = vrot.slane %v6822, 4
        %v6881 = vrot.slane %v6845, 4
        %v6882 = vrot.slane %v6846, 4
        %v6883 = vrot.slane %v6847, 4
        %v6884 = vrot.slane %v6850, 4
        %v6886 = vsel %vm2284, %v6766, %v6866
        %v6890 = vsel %vm2284, %v6761, %v6867
        %v6894 = vsel %vm2284, %v6762, %v6868
        %v6898 = vsel %vm2284, %v6763, %v6869
        %v6901 = vsel %vm2284, %v6794, %v6871
        %v6905 = vsel %vm2284, %v6789, %v6872
        %v6909 = vsel %vm2284, %v6790, %v6873
        %v6913 = vsel %vm2284, %v6791, %v6874
        %v6917 = vsel %vm2284, %v6744, %v6876
        %v6921 = vsel %vm2284, %v6745, %v6877
        %v6925 = vsel %vm2284, %v6746, %v6878
        %v6929 = vsel %vm2284, %v6747, %v6879
        %v6933 = vsel %vm2284, %v6831, %v6881
        %v6937 = vsel %vm2284, %v6832, %v6882
        %v6941 = vsel %vm2284, %v6833, %v6883
        %v6944 = vsel %vm2284, %v6836, %v6884
        %v6947 = vsel %vm2284, %v6859, %v6535
        %v6949 = vsel %vm2284, %v6860, %v6536
        %v6951 = vsel %vm2284, %v6861, %v6537
        %v6952 = vsel %vm2284, %v6864, %v6538
        %v6954 = vsel %vm4953, %v6748, 0
        %v6956 = vand.u32 %v6947, %v4959
        %v6958 = vand.u32 %v6949, %v4959
        %v6960 = vand.u32 %v6951, %v4959
        %v6962 = vand.u32 %v6952, %v4959
        %6964 = vmatprep.subr.bf16.mxu0 %v6890
        %6965 = vmatpush1.bf16.msra.mxu0 %v6886
        %6966 = vmatprep.subr.bf16.mxu0 %v6905
        %6967 = vmatpush1.bf16.msra.mxu0 %v6901
        %6968 = vmatprep.subr.bf16.mxu0 %v6921
        %6969 = vmatpush1.bf16.msra.mxu0 %v6917
        %6970 = vmatprep.subr.bf16.mxu0 %v6937
        %6971 = vmatpush1.bf16.msra.mxu0 %v6933
        %6972 = vmatprep.subr.bf16.mxu0 %v6958
        %6973 = vmatpush1.bf16.msra.mxu0 %v6956
        %6974 = vmatprep.subr.bf16.mxu0 0
        %6975 = vmatpush1.bf16.msra.mxu0 0
        %6976 = vmatprep.subr.bf16.mxu0 0
        %6977 = vmatpush1.bf16.msra.mxu0 0
        %6978 = vmatprep.subr.bf16.mxu0 0
        %6979 = vmatpush1.bf16.msra.mxu0 0
        %6980 = vmatprep.subr.bf16.mxu0 0
        %6981 = vmatpush1.bf16.msra.mxu0 0
        %6982 = vmatprep.subr.bf16.mxu0 0
        %6983 = vmatpush1.bf16.msra.mxu0 0
        %6984 = vmatprep.subr.bf16.mxu0 0
        %6985 = vmatpush1.bf16.msra.mxu0 0
        %6986 = vmatprep.subr.bf16.mxu0 0
        %6987 = vmatpush1.bf16.msra.mxu0 0
        %6988 = vmatprep.subr.bf16.mxu0 0
        %6989 = vmatpush1.bf16.msra.mxu0 0
        %6990 = vmatprep.subr.bf16.mxu0 0
        %6991 = vmatpush1.bf16.msra.mxu0 0
        %6992 = vmatprep.subr.bf16.mxu0 0
        %6993 = vmatpush1.bf16.msra.mxu0 0
        %6994 = vmatprep.subr.bf16.mxu0 0
        %6995 = vmatpush1.bf16.msra.mxu0 0
        %6996 = vmatprep.mubr.bf16.mxu0 0
        %6997 = vmatmul.mubr.bf16.gmra.mrb[0].mxu0 %v6954
        %v6998 = vpop.f32.mrb[0].mxu0
        %v6999 = vadd.f32 0.0, %v6998
        %v7000 = vpop.f32.mrb[0].mxu0
        %v7001 = vadd.f32 0.0, %v7000
        %v7002 = vpop.f32.mrb[0].mxu0
        %v7003 = vpop.f32.mrb[0].mxu0
        %7004 = vdwg.mxu0
        %7005 = vmatprep.subr.bf16.mxu0 %v6898
        %7006 = vmatpush1.bf16.msra.mxu0 %v6894
        %7007 = vmatprep.subr.bf16.mxu0 %v6913
        %7008 = vmatpush1.bf16.msra.mxu0 %v6909
        %7009 = vmatprep.subr.bf16.mxu0 %v6929
        %7010 = vmatpush1.bf16.msra.mxu0 %v6925
        %7011 = vmatprep.subr.bf16.mxu0 %v6944
        %7012 = vmatpush1.bf16.msra.mxu0 %v6941
        %7013 = vmatprep.subr.bf16.mxu0 %v6962
        %7014 = vmatpush1.bf16.msra.mxu0 %v6960
        %7015 = vmatprep.subr.bf16.mxu0 0
        %7016 = vmatpush1.bf16.msra.mxu0 0
        %7017 = vmatprep.subr.bf16.mxu0 0
        %7018 = vmatpush1.bf16.msra.mxu0 0
        %7019 = vmatprep.subr.bf16.mxu0 0
        %7020 = vmatpush1.bf16.msra.mxu0 0
        %7021 = vmatprep.subr.bf16.mxu0 0
        %7022 = vmatpush1.bf16.msra.mxu0 0
        %7023 = vmatprep.subr.bf16.mxu0 0
        %7024 = vmatpush1.bf16.msra.mxu0 0
        %7025 = vmatprep.subr.bf16.mxu0 0
        %7026 = vmatpush1.bf16.msra.mxu0 0
        %7027 = vmatprep.subr.bf16.mxu0 0
        %7028 = vmatpush1.bf16.msra.mxu0 0
        %7029 = vmatprep.subr.bf16.mxu0 0
        %7030 = vmatpush1.bf16.msra.mxu0 0
        %7031 = vmatprep.subr.bf16.mxu0 0
        %7032 = vmatpush1.bf16.msra.mxu0 0
        %7033 = vmatprep.subr.bf16.mxu0 0
        %7034 = vmatpush1.bf16.msra.mxu0 0
        %7035 = vmatprep.subr.bf16.mxu0 0
        %7036 = vmatpush1.bf16.msra.mxu0 0
        %7037 = vmatprep.mubr.bf16.mxu0 0
        %7038 = vmatmul.mubr.bf16.gmra.mrb[0].mxu0 %v6954
        %v7039 = vpop.f32.mrb[0].mxu0
        %v7040 = vadd.f32 0.0, %v7039
        %v7041 = vpop.f32.mrb[0].mxu0
        %v7042 = vadd.f32 0.0, %v7041
        %v7043 = vpop.f32.mrb[0].mxu0
        %v7044 = vpop.f32.mrb[0].mxu0
        %7045 = vdwg.mxu0
        %v7046 = vmul.f32 %v6999, 0.5
        %v7047 = vmul.f32 %v7001, 0.5
        %v7048 = vmul.f32 %v7040, 0.5
        %v7049 = vmul.f32 %v7042, 0.5
        %v7050 = vmul.f32 %v6999, 0.044715
        %v7051 = vmul.f32 %v7001, 0.044715
        %v7052 = vmul.f32 %v7040, 0.044715
        %v7053 = vmul.f32 %v7042, 0.044715
        %v7054 = vmul.f32 %v7050, %v6999
        %v7055 = vmul.f32 %v7051, %v7001
        %v7056 = vmul.f32 %v7052, %v7040
        %v7057 = vmul.f32 %v7053, %v7042
        %v7058 = vmul.f32 %v7054, %v6999
        %v7059 = vmul.f32 %v7055, %v7001
        %v7060 = vmul.f32 %v7056, %v7040
        %v7061 = vmul.f32 %v7057, %v7042
        %v7062 = vadd.f32 %v6999, %v7058
        %v7063 = vadd.f32 %v7001, %v7059
        %v7064 = vadd.f32 %v7040, %v7060
        %v7065 = vadd.f32 %v7042, %v7061
        %v7066 = vmul.f32 %v7062, 0.7978846
        %v7067 = vmul.f32 %v7063, 0.7978846
        %v7068 = vmul.f32 %v7064, 0.7978846
        %v7069 = vmul.f32 %v7065, 0.7978846
        %v7070 = vtanh.pop %v7066
        %v7071 = vtanh.pop %v7067
        %v7072 = vtanh.pop %v7068
        %v7073 = vtanh.pop %v7069
        %v7074 = vadd.f32 %v7070, 1.0
        %v7075 = vadd.f32 %v7071, 1.0
        %v7076 = vadd.f32 %v7072, 1.0
        %v7077 = vadd.f32 %v7073, 1.0
        %v7078 = vmul.f32 %v7046, %v7074
        %v7079 = vmul.f32 %v7047, %v7075
        %v7080 = vmul.f32 %v7048, %v7076
        %v7081 = vmul.f32 %v7049, %v7077
        %v7082 = vmul.f32 %v7078, %v743
        %v7083 = vmul.f32 %v7079, %v747
        %v7084 = vmul.f32 %v7080, %v751
        %v7085 = vmul.f32 %v7081, %v755
        %v7086 = vpack.c.bf16 %v7082, %v7082
        %v7087 = vpack.c.bf16 %v7083, %v7083
        %v7088 = vpack.c.bf16 %v7084, %v7084
        %v7089 = vpack.c.bf16 %v7085, %v7085
        %v7090 = vld [vmem:[%s15] sm:$0xff]
        %v7091 = vld [vmem:[%s15 + $0x8] sm:$0xff]
        %v7092 = vld [vmem:[%s15 + $0x10] sm:$0xff]
        %v7093 = vld [vmem:[%s15 + $0x18] sm:$0xff]
        %v7094 = vld [vmem:[%s15 + $0x20] sm:$0xff]
        %v7095 = vld [vmem:[%s15 + $0x28] sm:$0xff]
        %v7096 = vld [vmem:[%s15 + $0x30] sm:$0xff]
        %v7097 = vld [vmem:[%s15 + $0x38] sm:$0xff]
        %v7098 = vld [vmem:[%s15 + $0x40] sm:$0xff]
        %v7099 = vld [vmem:[%s15 + $0x48] sm:$0xff]
        %v7100 = vld [vmem:[%s15 + $0x50] sm:$0xff]
        %v7101 = vld [vmem:[%s15 + $0x58] sm:$0xff]
        %v7102 = vld [vmem:[%s15 + $0x60] sm:$0xff]
        %v7103 = vld [vmem:[%s15 + $0x68] sm:$0xff]
        %v7104 = vld [vmem:[%s15 + $0x70] sm:$0xff]
        %v7105 = vld [vmem:[%s15 + $0x78] sm:$0xff]
        %v7106 = vld [vmem:[%s15 + $0x80] sm:$0xff]
        %v7107 = vld [vmem:[%s15 + $0x88] sm:$0xff]
        %v7108 = vld [vmem:[%s15 + $0x90] sm:$0xff]
        %v7109 = vld [vmem:[%s15 + $0x98] sm:$0xff]
        %v7110 = vld [vmem:[%s15 + $0xa0] sm:$0xff]
        %v7111 = vld [vmem:[%s15 + $0xa8] sm:$0xff]
        %v7112 = vld [vmem:[%s15 + $0xb0] sm:$0xff]
        %v7113 = vld [vmem:[%s15 + $0xb8] sm:$0xff]
        %v7114 = vld [vmem:[%s15 + $0xc0] sm:$0xff]
        %v7115 = vld [vmem:[%s15 + $0xc8] sm:$0xff]
        %v7116 = vld [vmem:[%s15 + $0xd0] sm:$0xff]
        %v7117 = vld [vmem:[%s15 + $0xd8] sm:$0xff]
        %v7118 = vld [vmem:[%s15 + $0xe0] sm:$0xff]
        %v7119 = vld [vmem:[%s15 + $0xe8] sm:$0xff]
        %v7120 = vld [vmem:[%s15 + $0xf0] sm:$0xff]
        %v7121 = vld [vmem:[%s15 + $0xf8] sm:$0xff]
        %v7122 = vld [vmem:[%s15 + $0x100] sm:$0xff]
        %v7123 = vld [vmem:[%s15 + $0x108] sm:$0xff]
        %v7124 = vld [vmem:[%s15 + $0x110] sm:$0xff]
        %v7125 = vld [vmem:[%s15 + $0x118] sm:$0xff]
        %v7126 = vld [vmem:[%s15 + $0x120] sm:$0xff]
        %v7127 = vld [vmem:[%s15 + $0x128] sm:$0xff]
        %v7128 = vld [vmem:[%s15 + $0x130] sm:$0xff]
        %v7129 = vld [vmem:[%s15 + $0x138] sm:$0xff]
        %v7130 = vld [vmem:[%s15 + $0x140] sm:$0xff]
        %v7131 = vld [vmem:[%s15 + $0x148] sm:$0xff]
        %v7132 = vld [vmem:[%s15 + $0x150] sm:$0xff]
        %v7133 = vld [vmem:[%s15 + $0x158] sm:$0xff]
        %v7134 = vld [vmem:[%s15 + $0x160] sm:$0xff]
        %v7135 = vld [vmem:[%s15 + $0x168] sm:$0xff]
        %v7136 = vld [vmem:[%s15 + $0x170] sm:$0xff]
        %v7137 = vld [vmem:[%s15 + $0x178] sm:$0xff]
        %v7138 = vld [vmem:[%s15 + $0x180] sm:$0xff]
        %v7139 = vld [vmem:[%s15 + $0x188] sm:$0xff]
        %v7140 = vld [vmem:[%s15 + $0x190] sm:$0xff]
        %v7141 = vld [vmem:[%s15 + $0x198] sm:$0xff]
        %v7142 = vld [vmem:[%s15 + $0x1a0] sm:$0xff]
        %v7143 = vld [vmem:[%s15 + $0x1a8] sm:$0xff]
        %v7144 = vld [vmem:[%s15 + $0x1b0] sm:$0xff]
        %v7145 = vld [vmem:[%s15 + $0x1b8] sm:$0xff]
        %v7146 = vld [vmem:[%s15 + $0x1c0] sm:$0xff]
        %v7147 = vld [vmem:[%s15 + $0x1c8] sm:$0xff]
        %v7148 = vld [vmem:[%s15 + $0x1d0] sm:$0xff]
        %v7149 = vld [vmem:[%s15 + $0x1d8] sm:$0xff]
        %v7150 = vld [vmem:[%s15 + $0x1e0] sm:$0xff]
        %v7151 = vld [vmem:[%s15 + $0x1e8] sm:$0xff]
        %v7152 = vld [vmem:[%s15 + $0x1f0] sm:$0xff]
        %v7153 = vld [vmem:[%s15 + $0x1f8] sm:$0xff]
        %v7154 = vld [vmem:[%s15 + $0x200] sm:$0xff]
        %v7155 = vld [vmem:[%s15 + $0x208] sm:$0xff]
        %v7156 = vld [vmem:[%s15 + $0x210] sm:$0xff]
        %v7157 = vld [vmem:[%s15 + $0x218] sm:$0xff]
        %v7158 = vld [vmem:[%s15 + $0x220] sm:$0xff]
        %v7159 = vld [vmem:[%s15 + $0x228] sm:$0xff]
        %v7160 = vld [vmem:[%s15 + $0x230] sm:$0xff]
        %v7161 = vld [vmem:[%s15 + $0x238] sm:$0xff]
        %v7162 = vld [vmem:[%s15 + $0x240] sm:$0xff]
        %v7163 = vld [vmem:[%s15 + $0x248] sm:$0xff]
        %v7164 = vld [vmem:[%s15 + $0x250] sm:$0xff]
        %v7165 = vld [vmem:[%s15 + $0x258] sm:$0xff]
        %v7166 = vld [vmem:[%s15 + $0x260] sm:$0xff]
        %v7167 = vld [vmem:[%s15 + $0x268] sm:$0xff]
        %v7168 = vld [vmem:[%s15 + $0x270] sm:$0xff]
        %v7169 = vld [vmem:[%s15 + $0x278] sm:$0xff]
        %v7170 = vld [vmem:[%s15 + $0x280] sm:$0xff]
        %v7171 = vld [vmem:[%s15 + $0x288] sm:$0xff]
        %v7172 = vld [vmem:[%s15 + $0x290] sm:$0xff]
        %v7173 = vld [vmem:[%s15 + $0x298] sm:$0xff]
        %v7174 = vld [vmem:[%s15 + $0x2a0] sm:$0xff]
        %v7175 = vld [vmem:[%s15 + $0x2a8] sm:$0xff]
        %v7176 = vld [vmem:[%s15 + $0x2b0] sm:$0xff]
        %v7177 = vld [vmem:[%s15 + $0x2b8] sm:$0xff]
        %v7178 = vld [vmem:[%s15 + $0x2c0] sm:$0xff]
        %v7179 = vld [vmem:[%s15 + $0x2c8] sm:$0xff]
        %v7180 = vld [vmem:[%s15 + $0x2d0] sm:$0xff]
        %v7181 = vld [vmem:[%s15 + $0x2d8] sm:$0xff]
        %v7182 = vld [vmem:[%s15 + $0x2e0] sm:$0xff]
        %v7183 = vld [vmem:[%s15 + $0x2e8] sm:$0xff]
        %v7184 = vld [vmem:[%s15 + $0x2f0] sm:$0xff]
        %v7185 = vld [vmem:[%s15 + $0x2f8] sm:$0xff]
        %v7186 = vld [vmem:[%s15 + $0x300] sm:$0xff]
        %v7187 = vld [vmem:[%s15 + $0x308] sm:$0xff]
        %v7188 = vld [vmem:[%s15 + $0x310] sm:$0xff]
        %v7189 = vld [vmem:[%s15 + $0x318] sm:$0xff]
        %v7190 = vld [vmem:[%s15 + $0x320] sm:$0xff]
        %v7191 = vld [vmem:[%s15 + $0x328] sm:$0xff]
        %v7192 = vld [vmem:[%s15 + $0x330] sm:$0xff]
        %v7193 = vld [vmem:[%s15 + $0x338] sm:$0xff]
        %v7194 = vld [vmem:[%s15 + $0x340] sm:$0xff]
        %v7195 = vld [vmem:[%s15 + $0x348] sm:$0xff]
        %v7196 = vld [vmem:[%s15 + $0x350] sm:$0xff]
        %v7197 = vld [vmem:[%s15 + $0x358] sm:$0xff]
        %v7198 = vld [vmem:[%s15 + $0x360] sm:$0xff]
        %v7199 = vld [vmem:[%s15 + $0x368] sm:$0xff]
        %v7200 = vld [vmem:[%s15 + $0x370] sm:$0xff]
        %v7201 = vld [vmem:[%s15 + $0x378] sm:$0xff]
        %v7202 = vld [vmem:[%s15 + $0x380] sm:$0xff]
        %v7203 = vld [vmem:[%s15 + $0x388] sm:$0xff]
        %v7204 = vld [vmem:[%s15 + $0x390] sm:$0xff]
        %v7205 = vld [vmem:[%s15 + $0x398] sm:$0xff]
        %v7206 = vld [vmem:[%s15 + $0x3a0] sm:$0xff]
        %v7207 = vld [vmem:[%s15 + $0x3a8] sm:$0xff]
        %v7208 = vld [vmem:[%s15 + $0x3b0] sm:$0xff]
        %v7209 = vld [vmem:[%s15 + $0x3b8] sm:$0xff]
        %v7210 = vld [vmem:[%s15 + $0x3c0] sm:$0xff]
        %v7211 = vld [vmem:[%s15 + $0x3c8] sm:$0xff]
        %v7212 = vld [vmem:[%s15 + $0x3d0] sm:$0xff]
        %v7213 = vld [vmem:[%s15 + $0x3d8] sm:$0xff]
        %v7214 = vld [vmem:[%s15 + $0x3e0] sm:$0xff]
        %v7215 = vld [vmem:[%s15 + $0x3e8] sm:$0xff]
        %v7216 = vld [vmem:[%s15 + $0x3f0] sm:$0xff]
        %v7217 = vld [vmem:[%s15 + $0x3f8] sm:$0xff]
        %v7346 = vunpack.c.l.b16 %v7090
        %v7347 = vunpack.c.h.b16 %v7090
        %v7348 = vunpack.c.l.b16 %v7091
        %v7349 = vunpack.c.h.b16 %v7091
        %v7350 = vunpack.c.l.b16 %v7092
        %v7351 = vunpack.c.h.b16 %v7092
        %v7352 = vunpack.c.l.b16 %v7093
        %v7353 = vunpack.c.h.b16 %v7093
        %v7354 = vunpack.c.l.b16 %v7094
        %v7355 = vunpack.c.h.b16 %v7094
        %v7356 = vunpack.c.l.b16 %v7095
        %v7357 = vunpack.c.h.b16 %v7095
        %v7358 = vunpack.c.l.b16 %v7096
        %v7359 = vunpack.c.h.b16 %v7096
        %v7360 = vunpack.c.l.b16 %v7097
        %v7361 = vunpack.c.h.b16 %v7097
        %v7362 = vunpack.c.l.b16 %v7098
        %v7363 = vunpack.c.h.b16 %v7098
        %v7364 = vunpack.c.l.b16 %v7099
        %v7365 = vunpack.c.h.b16 %v7099
        %v7366 = vunpack.c.l.b16 %v7100
        %v7367 = vunpack.c.h.b16 %v7100
        %v7368 = vunpack.c.l.b16 %v7101
        %v7369 = vunpack.c.h.b16 %v7101
        %v7370 = vunpack.c.l.b16 %v7102
        %v7371 = vunpack.c.h.b16 %v7102
        %v7372 = vunpack.c.l.b16 %v7103
        %v7373 = vunpack.c.h.b16 %v7103
        %v7374 = vunpack.c.l.b16 %v7104
        %v7375 = vunpack.c.h.b16 %v7104
        %v7376 = vunpack.c.l.b16 %v7105
        %v7377 = vunpack.c.h.b16 %v7105
        %v7378 = vunpack.c.l.b16 %v7106
        %v7379 = vunpack.c.h.b16 %v7106
        %v7380 = vunpack.c.l.b16 %v7107
        %v7381 = vunpack.c.h.b16 %v7107
        %v7382 = vunpack.c.l.b16 %v7108
        %v7383 = vunpack.c.h.b16 %v7108
        %v7384 = vunpack.c.l.b16 %v7109
        %v7385 = vunpack.c.h.b16 %v7109
        %v7386 = vunpack.c.l.b16 %v7110
        %v7387 = vunpack.c.h.b16 %v7110
        %v7388 = vunpack.c.l.b16 %v7111
        %v7389 = vunpack.c.h.b16 %v7111
        %v7390 = vunpack.c.l.b16 %v7112
        %v7391 = vunpack.c.h.b16 %v7112
        %v7392 = vunpack.c.l.b16 %v7113
        %v7393 = vunpack.c.h.b16 %v7113
        %v7394 = vunpack.c.l.b16 %v7114
        %v7395 = vunpack.c.h.b16 %v7114
        %v7396 = vunpack.c.l.b16 %v7115
        %v7397 = vunpack.c.h.b16 %v7115
        %v7398 = vunpack.c.l.b16 %v7116
        %v7399 = vunpack.c.h.b16 %v7116
        %v7400 = vunpack.c.l.b16 %v7117
        %v7401 = vunpack.c.h.b16 %v7117
        %v7402 = vunpack.c.l.b16 %v7118
        %v7403 = vunpack.c.h.b16 %v7118
        %v7404 = vunpack.c.l.b16 %v7119
        %v7405 = vunpack.c.h.b16 %v7119
        %v7406 = vunpack.c.l.b16 %v7120
        %v7407 = vunpack.c.h.b16 %v7120
        %v7408 = vunpack.c.l.b16 %v7121
        %v7409 = vunpack.c.h.b16 %v7121
        %v7410 = vunpack.c.l.b16 %v7122
        %v7411 = vunpack.c.h.b16 %v7122
        %v7412 = vunpack.c.l.b16 %v7123
        %v7413 = vunpack.c.h.b16 %v7123
        %v7414 = vunpack.c.l.b16 %v7124
        %v7415 = vunpack.c.h.b16 %v7124
        %v7416 = vunpack.c.l.b16 %v7125
        %v7417 = vunpack.c.h.b16 %v7125
        %v7418 = vunpack.c.l.b16 %v7126
        %v7419 = vunpack.c.h.b16 %v7126
        %v7420 = vunpack.c.l.b16 %v7127
        %v7421 = vunpack.c.h.b16 %v7127
        %v7422 = vunpack.c.l.b16 %v7128
        %v7423 = vunpack.c.h.b16 %v7128
        %v7424 = vunpack.c.l.b16 %v7129
        %v7425 = vunpack.c.h.b16 %v7129
        %v7426 = vunpack.c.l.b16 %v7130
        %v7427 = vunpack.c.h.b16 %v7130
        %v7428 = vunpack.c.l.b16 %v7131
        %v7429 = vunpack.c.h.b16 %v7131
        %v7430 = vunpack.c.l.b16 %v7132
        %v7431 = vunpack.c.h.b16 %v7132
        %v7432 = vunpack.c.l.b16 %v7133
        %v7433 = vunpack.c.h.b16 %v7133
        %v7434 = vunpack.c.l.b16 %v7134
        %v7435 = vunpack.c.h.b16 %v7134
        %v7436 = vunpack.c.l.b16 %v7135
        %v7437 = vunpack.c.h.b16 %v7135
        %v7438 = vunpack.c.l.b16 %v7136
        %v7439 = vunpack.c.h.b16 %v7136
        %v7440 = vunpack.c.l.b16 %v7137
        %v7441 = vunpack.c.h.b16 %v7137
        %v7442 = vunpack.c.l.b16 %v7138
        %v7443 = vunpack.c.h.b16 %v7138
        %v7444 = vunpack.c.l.b16 %v7139
        %v7445 = vunpack.c.h.b16 %v7139
        %v7446 = vunpack.c.l.b16 %v7140
        %v7447 = vunpack.c.h.b16 %v7140
        %v7448 = vunpack.c.l.b16 %v7141
        %v7449 = vunpack.c.h.b16 %v7141
        %v7450 = vunpack.c.l.b16 %v7142
        %v7451 = vunpack.c.h.b16 %v7142
        %v7452 = vunpack.c.l.b16 %v7143
        %v7453 = vunpack.c.h.b16 %v7143
        %v7454 = vunpack.c.l.b16 %v7144
        %v7455 = vunpack.c.h.b16 %v7144
        %v7456 = vunpack.c.l.b16 %v7145
        %v7457 = vunpack.c.h.b16 %v7145
        %v7458 = vunpack.c.l.b16 %v7146
        %v7459 = vunpack.c.h.b16 %v7146
        %v7460 = vunpack.c.l.b16 %v7147
        %v7461 = vunpack.c.h.b16 %v7147
        %v7462 = vunpack.c.l.b16 %v7148
        %v7463 = vunpack.c.h.b16 %v7148
        %v7464 = vunpack.c.l.b16 %v7149
        %v7465 = vunpack.c.h.b16 %v7149
        %v7466 = vunpack.c.l.b16 %v7150
        %v7467 = vunpack.c.h.b16 %v7150
        %v7468 = vunpack.c.l.b16 %v7151
        %v7469 = vunpack.c.h.b16 %v7151
        %v7470 = vunpack.c.l.b16 %v7152
        %v7471 = vunpack.c.h.b16 %v7152
        %v7472 = vunpack.c.l.b16 %v7153
        %v7473 = vunpack.c.h.b16 %v7153
        %v7474 = vunpack.c.l.b16 %v7154
        %v7475 = vunpack.c.h.b16 %v7154
        %v7476 = vunpack.c.l.b16 %v7155
        %v7477 = vunpack.c.h.b16 %v7155
        %v7478 = vunpack.c.l.b16 %v7156
        %v7479 = vunpack.c.h.b16 %v7156
        %v7480 = vunpack.c.l.b16 %v7157
        %v7481 = vunpack.c.h.b16 %v7157
        %v7482 = vunpack.c.l.b16 %v7158
        %v7483 = vunpack.c.h.b16 %v7158
        %v7484 = vunpack.c.l.b16 %v7159
        %v7485 = vunpack.c.h.b16 %v7159
        %v7486 = vunpack.c.l.b16 %v7160
        %v7487 = vunpack.c.h.b16 %v7160
        %v7488 = vunpack.c.l.b16 %v7161
        %v7489 = vunpack.c.h.b16 %v7161
        %v7490 = vunpack.c.l.b16 %v7162
        %v7491 = vunpack.c.h.b16 %v7162
        %v7492 = vunpack.c.l.b16 %v7163
        %v7493 = vunpack.c.h.b16 %v7163
        %v7494 = vunpack.c.l.b16 %v7164
        %v7495 = vunpack.c.h.b16 %v7164
        %v7496 = vunpack.c.l.b16 %v7165
        %v7497 = vunpack.c.h.b16 %v7165
        %v7498 = vunpack.c.l.b16 %v7166
        %v7499 = vunpack.c.h.b16 %v7166
        %v7500 = vunpack.c.l.b16 %v7167
        %v7501 = vunpack.c.h.b16 %v7167
        %v7502 = vunpack.c.l.b16 %v7168
        %v7503 = vunpack.c.h.b16 %v7168
        %v7504 = vunpack.c.l.b16 %v7169
        %v7505 = vunpack.c.h.b16 %v7169
        %v7506 = vunpack.c.l.b16 %v7170
        %v7507 = vunpack.c.h.b16 %v7170
        %v7508 = vunpack.c.l.b16 %v7171
        %v7509 = vunpack.c.h.b16 %v7171
        %v7510 = vunpack.c.l.b16 %v7172
        %v7511 = vunpack.c.h.b16 %v7172
        %v7512 = vunpack.c.l.b16 %v7173
        %v7513 = vunpack.c.h.b16 %v7173
        %v7514 = vunpack.c.l.b16 %v7174
        %v7515 = vunpack.c.h.b16 %v7174
        %v7516 = vunpack.c.l.b16 %v7175
        %v7517 = vunpack.c.h.b16 %v7175
        %v7518 = vunpack.c.l.b16 %v7176
        %v7519 = vunpack.c.h.b16 %v7176
        %v7520 = vunpack.c.l.b16 %v7177
        %v7521 = vunpack.c.h.b16 %v7177
        %v7522 = vunpack.c.l.b16 %v7178
        %v7523 = vunpack.c.h.b16 %v7178
        %v7524 = vunpack.c.l.b16 %v7179
        %v7525 = vunpack.c.h.b16 %v7179
        %v7526 = vunpack.c.l.b16 %v7180
        %v7527 = vunpack.c.h.b16 %v7180
        %v7528 = vunpack.c.l.b16 %v7181
        %v7529 = vunpack.c.h.b16 %v7181
        %v7530 = vunpack.c.l.b16 %v7182
        %v7531 = vunpack.c.h.b16 %v7182
        %v7532 = vunpack.c.l.b16 %v7183
        %v7533 = vunpack.c.h.b16 %v7183
        %v7534 = vunpack.c.l.b16 %v7184
        %v7535 = vunpack.c.h.b16 %v7184
        %v7536 = vunpack.c.l.b16 %v7185
        %v7537 = vunpack.c.h.b16 %v7185
        %v7538 = vunpack.c.l.b16 %v7186
        %v7539 = vunpack.c.h.b16 %v7186
        %v7540 = vunpack.c.l.b16 %v7187
        %v7541 = vunpack.c.h.b16 %v7187
        %v7542 = vunpack.c.l.b16 %v7188
        %v7543 = vunpack.c.h.b16 %v7188
        %v7544 = vunpack.c.l.b16 %v7189
        %v7545 = vunpack.c.h.b16 %v7189
        %v7546 = vunpack.c.l.b16 %v7190
        %v7547 = vunpack.c.h.b16 %v7190
        %v7548 = vunpack.c.l.b16 %v7191
        %v7549 = vunpack.c.h.b16 %v7191
        %v7550 = vunpack.c.l.b16 %v7192
        %v7551 = vunpack.c.h.b16 %v7192
        %v7552 = vunpack.c.l.b16 %v7193
        %v7553 = vunpack.c.h.b16 %v7193
        %v7554 = vunpack.c.l.b16 %v7194
        %v7555 = vunpack.c.h.b16 %v7194
        %v7556 = vunpack.c.l.b16 %v7195
        %v7557 = vunpack.c.h.b16 %v7195
        %v7558 = vunpack.c.l.b16 %v7196
        %v7559 = vunpack.c.h.b16 %v7196
        %v7560 = vunpack.c.l.b16 %v7197
        %v7561 = vunpack.c.h.b16 %v7197
        %v7562 = vunpack.c.l.b16 %v7198
        %v7563 = vunpack.c.h.b16 %v7198
        %v7564 = vunpack.c.l.b16 %v7199
        %v7565 = vunpack.c.h.b16 %v7199
        %v7566 = vunpack.c.l.b16 %v7200
        %v7567 = vunpack.c.h.b16 %v7200
        %v7568 = vunpack.c.l.b16 %v7201
        %v7569 = vunpack.c.h.b16 %v7201
        %v7570 = vunpack.c.l.b16 %v7202
        %v7571 = vunpack.c.h.b16 %v7202
        %v7572 = vunpack.c.l.b16 %v7203
        %v7573 = vunpack.c.h.b16 %v7203
        %v7574 = vunpack.c.l.b16 %v7204
        %v7575 = vunpack.c.h.b16 %v7204
        %v7576 = vunpack.c.l.b16 %v7205
        %v7577 = vunpack.c.h.b16 %v7205
        %v7578 = vunpack.c.l.b16 %v7206
        %v7579 = vunpack.c.h.b16 %v7206
        %v7580 = vunpack.c.l.b16 %v7207
        %v7581 = vunpack.c.h.b16 %v7207
        %v7582 = vunpack.c.l.b16 %v7208
        %v7583 = vunpack.c.h.b16 %v7208
        %v7584 = vunpack.c.l.b16 %v7209
        %v7585 = vunpack.c.h.b16 %v7209
        %v7586 = vunpack.c.l.b16 %v7210
        %v7587 = vunpack.c.h.b16 %v7210
        %v7588 = vunpack.c.l.b16 %v7211
        %v7589 = vunpack.c.h.b16 %v7211
        %v7590 = vunpack.c.l.b16 %v7212
        %v7591 = vunpack.c.h.b16 %v7212
        %v7592 = vunpack.c.l.b16 %v7213
        %v7593 = vunpack.c.h.b16 %v7213
        %v7594 = vunpack.c.l.b16 %v7214
        %v7595 = vunpack.c.h.b16 %v7214
        %v7596 = vunpack.c.l.b16 %v7215
        %v7597 = vunpack.c.h.b16 %v7215
        %v7598 = vunpack.c.l.b16 %v7216
        %v7599 = vunpack.c.h.b16 %v7216
        %v7600 = vunpack.c.l.b16 %v7217
        %v7601 = vunpack.c.h.b16 %v7217
        %v7602 = vpack.c.b16 %v7354, %v7346
        %v7603 = vpack.c.b16 %v7355, %v7347
        %v7604 = vpack.c.b16 %v7356, %v7348
        %v7605 = vpack.c.b16 %v7357, %v7349
        %v7606 = vpack.c.b16 %v7358, %v7350
        %v7607 = vpack.c.b16 %v7359, %v7351
        %v7608 = vpack.c.b16 %v7360, %v7352
        %v7609 = vpack.c.b16 %v7361, %v7353
        %v7610 = vpack.c.b16 %v7370, %v7362
        %v7611 = vpack.c.b16 %v7371, %v7363
        %v7612 = vpack.c.b16 %v7372, %v7364
        %v7613 = vpack.c.b16 %v7373, %v7365
        %v7614 = vpack.c.b16 %v7374, %v7366
        %v7615 = vpack.c.b16 %v7375, %v7367
        %v7616 = vpack.c.b16 %v7376, %v7368
        %v7617 = vpack.c.b16 %v7377, %v7369
        %v7618 = vpack.c.b16 %v7386, %v7378
        %v7619 = vpack.c.b16 %v7387, %v7379
        %v7620 = vpack.c.b16 %v7388, %v7380
        %v7621 = vpack.c.b16 %v7389, %v7381
        %v7622 = vpack.c.b16 %v7390, %v7382
        %v7623 = vpack.c.b16 %v7391, %v7383
        %v7624 = vpack.c.b16 %v7392, %v7384
        %v7625 = vpack.c.b16 %v7393, %v7385
        %v7626 = vpack.c.b16 %v7402, %v7394
        %v7627 = vpack.c.b16 %v7403, %v7395
        %v7628 = vpack.c.b16 %v7404, %v7396
        %v7629 = vpack.c.b16 %v7405, %v7397
        %v7630 = vpack.c.b16 %v7406, %v7398
        %v7631 = vpack.c.b16 %v7407, %v7399
        %v7632 = vpack.c.b16 %v7408, %v7400
        %v7633 = vpack.c.b16 %v7409, %v7401
        %v7634 = vpack.c.b16 %v7418, %v7410
        %v7635 = vpack.c.b16 %v7419, %v7411
        %v7636 = vpack.c.b16 %v7420, %v7412
        %v7637 = vpack.c.b16 %v7421, %v7413
        %v7638 = vpack.c.b16 %v7422, %v7414
        %v7639 = vpack.c.b16 %v7423, %v7415
        %v7640 = vpack.c.b16 %v7424, %v7416
        %v7641 = vpack.c.b16 %v7425, %v7417
        %v7642 = vpack.c.b16 %v7434, %v7426
        %v7643 = vpack.c.b16 %v7435, %v7427
        %v7644 = vpack.c.b16 %v7436, %v7428
        %v7645 = vpack.c.b16 %v7437, %v7429
        %v7646 = vpack.c.b16 %v7438, %v7430
        %v7647 = vpack.c.b16 %v7439, %v7431
        %v7648 = vpack.c.b16 %v7440, %v7432
        %v7649 = vpack.c.b16 %v7441, %v7433
        %v7650 = vpack.c.b16 %v7450, %v7442
        %v7651 = vpack.c.b16 %v7451, %v7443
        %v7652 = vpack.c.b16 %v7452, %v7444
        %v7653 = vpack.c.b16 %v7453, %v7445
        %v7654 = vpack.c.b16 %v7454, %v7446
        %v7655 = vpack.c.b16 %v7455, %v7447
        %v7656 = vpack.c.b16 %v7456, %v7448
        %v7657 = vpack.c.b16 %v7457, %v7449
        %v7658 = vpack.c.b16 %v7466, %v7458
        %v7659 = vpack.c.b16 %v7467, %v7459
        %v7660 = vpack.c.b16 %v7468, %v7460
        %v7661 = vpack.c.b16 %v7469, %v7461
        %v7662 = vpack.c.b16 %v7470, %v7462
        %v7663 = vpack.c.b16 %v7471, %v7463
        %v7664 = vpack.c.b16 %v7472, %v7464
        %v7665 = vpack.c.b16 %v7473, %v7465
        %v7666 = vpack.c.b16 %v7482, %v7474
        %v7667 = vpack.c.b16 %v7483, %v7475
        %v7668 = vpack.c.b16 %v7484, %v7476
        %v7669 = vpack.c.b16 %v7485, %v7477
        %v7670 = vpack.c.b16 %v7486, %v7478
        %v7671 = vpack.c.b16 %v7487, %v7479
        %v7672 = vpack.c.b16 %v7488, %v7480
        %v7673 = vpack.c.b16 %v7489, %v7481
        %v7674 = vpack.c.b16 %v7498, %v7490
        %v7675 = vpack.c.b16 %v7499, %v7491
        %v7676 = vpack.c.b16 %v7500, %v7492
        %v7677 = vpack.c.b16 %v7501, %v7493
        %v7678 = vpack.c.b16 %v7502, %v7494
        %v7679 = vpack.c.b16 %v7503, %v7495
        %v7680 = vpack.c.b16 %v7504, %v7496
        %v7681 = vpack.c.b16 %v7505, %v7497
        %v7682 = vpack.c.b16 %v7514, %v7506
        %v7683 = vpack.c.b16 %v7515, %v7507
        %v7684 = vpack.c.b16 %v7516, %v7508
        %v7685 = vpack.c.b16 %v7517, %v7509
        %v7686 = vpack.c.b16 %v7518, %v7510
        %v7687 = vpack.c.b16 %v7519, %v7511
        %v7688 = vpack.c.b16 %v7520, %v7512
        %v7689 = vpack.c.b16 %v7521, %v7513
        %v7690 = vpack.c.b16 %v7530, %v7522
        %v7691 = vpack.c.b16 %v7531, %v7523
        %v7692 = vpack.c.b16 %v7532, %v7524
        %v7693 = vpack.c.b16 %v7533, %v7525
        %v7694 = vpack.c.b16 %v7534, %v7526
        %v7695 = vpack.c.b16 %v7535, %v7527
        %v7696 = vpack.c.b16 %v7536, %v7528
        %v7697 = vpack.c.b16 %v7537, %v7529
        %v7698 = vpack.c.b16 %v7546, %v7538
        %v7699 = vpack.c.b16 %v7547, %v7539
        %v7700 = vpack.c.b16 %v7548, %v7540
        %v7701 = vpack.c.b16 %v7549, %v7541
        %v7702 = vpack.c.b16 %v7550, %v7542
        %v7703 = vpack.c.b16 %v7551, %v7543
        %v7704 = vpack.c.b16 %v7552, %v7544
        %v7705 = vpack.c.b16 %v7553, %v7545
        %v7706 = vpack.c.b16 %v7562, %v7554
        %v7707 = vpack.c.b16 %v7563, %v7555
        %v7708 = vpack.c.b16 %v7564, %v7556
        %v7709 = vpack.c.b16 %v7565, %v7557
        %v7710 = vpack.c.b16 %v7566, %v7558
        %v7711 = vpack.c.b16 %v7567, %v7559
        %v7712 = vpack.c.b16 %v7568, %v7560
        %v7713 = vpack.c.b16 %v7569, %v7561
        %v7714 = vpack.c.b16 %v7578, %v7570
        %v7715 = vpack.c.b16 %v7579, %v7571
        %v7716 = vpack.c.b16 %v7580, %v7572
        %v7717 = vpack.c.b16 %v7581, %v7573
        %v7718 = vpack.c.b16 %v7582, %v7574
        %v7719 = vpack.c.b16 %v7583, %v7575
        %v7720 = vpack.c.b16 %v7584, %v7576
        %v7721 = vpack.c.b16 %v7585, %v7577
        %v7722 = vpack.c.b16 %v7594, %v7586
        %v7723 = vpack.c.b16 %v7595, %v7587
        %v7724 = vpack.c.b16 %v7596, %v7588
        %v7725 = vpack.c.b16 %v7597, %v7589
        %v7726 = vpack.c.b16 %v7598, %v7590
        %v7727 = vpack.c.b16 %v7599, %v7591
        %v7728 = vpack.c.b16 %v7600, %v7592
        %v7729 = vpack.c.b16 %v7601, %v7593
        %7858 = vmatprep.subr.bf16.mxu0 %v7603
        %7859 = vmatpush1.bf16.msra.mxu0 %v7602
        %7860 = vmatprep.subr.bf16.mxu0 %v7611
        %7861 = vmatpush1.bf16.msra.mxu0 %v7610
        %7862 = vmatprep.subr.bf16.mxu0 %v7619
        %7863 = vmatpush1.bf16.msra.mxu0 %v7618
        %7864 = vmatprep.subr.bf16.mxu0 %v7627
        %7865 = vmatpush1.bf16.msra.mxu0 %v7626
        %7866 = vmatprep.subr.bf16.mxu0 %v7635
        %7867 = vmatpush1.bf16.msra.mxu0 %v7634
        %7868 = vmatprep.subr.bf16.mxu0 %v7643
        %7869 = vmatpush1.bf16.msra.mxu0 %v7642
        %7870 = vmatprep.subr.bf16.mxu0 %v7651
        %7871 = vmatpush1.bf16.msra.mxu0 %v7650
        %7872 = vmatprep.subr.bf16.mxu0 %v7659
        %7873 = vmatpush1.bf16.msra.mxu0 %v7658
        %7874 = vmatprep.subr.bf16.mxu0 %v7667
        %7875 = vmatpush1.bf16.msra.mxu0 %v7666
        %7876 = vmatprep.subr.bf16.mxu0 %v7675
        %7877 = vmatpush1.bf16.msra.mxu0 %v7674
        %7878 = vmatprep.subr.bf16.mxu0 %v7683
        %7879 = vmatpush1.bf16.msra.mxu0 %v7682
        %7880 = vmatprep.subr.bf16.mxu0 %v7691
        %7881 = vmatpush1.bf16.msra.mxu0 %v7690
        %7882 = vmatprep.subr.bf16.mxu0 %v7699
        %7883 = vmatpush1.bf16.msra.mxu0 %v7698
        %7884 = vmatprep.subr.bf16.mxu0 %v7707
        %7885 = vmatpush1.bf16.msra.mxu0 %v7706
        %7886 = vmatprep.subr.bf16.mxu0 %v7715
        %7887 = vmatpush1.bf16.msra.mxu0 %v7714
        %7888 = vmatprep.subr.bf16.mxu0 %v7723
        %7889 = vmatpush1.bf16.msra.mxu0 %v7722
        %7890 = vmatprep.mubr.bf16.mxu0 %v7087
        %7891 = vmatmul.mubr.bf16.gmra.mrb[0].mxu0 %v7086
        %v7892 = vpop.f32.mrb[0].mxu0
        %v7893 = vadd.f32 0.0, %v7892
        %v7894 = vpop.f32.mrb[0].mxu0
        %v7895 = vadd.f32 0.0, %v7894
        %v7896 = vpop.f32.mrb[0].mxu0
        %v7897 = vpop.f32.mrb[0].mxu0
        %7898 = vdwg.mxu0
        %7899 = vmatprep.subr.bf16.mxu0 %v7605
        %7900 = vmatpush1.bf16.msra.mxu0 %v7604
        %7901 = vmatprep.subr.bf16.mxu0 %v7613
        %7902 = vmatpush1.bf16.msra.mxu0 %v7612
        %7903 = vmatprep.subr.bf16.mxu0 %v7621
        %7904 = vmatpush1.bf16.msra.mxu0 %v7620
        %7905 = vmatprep.subr.bf16.mxu0 %v7629
        %7906 = vmatpush1.bf16.msra.mxu0 %v7628
        %7907 = vmatprep.subr.bf16.mxu0 %v7637
        %7908 = vmatpush1.bf16.msra.mxu0 %v7636
        %7909 = vmatprep.subr.bf16.mxu0 %v7645
        %7910 = vmatpush1.bf16.msra.mxu0 %v7644
        %7911 = vmatprep.subr.bf16.mxu0 %v7653
        %7912 = vmatpush1.bf16.msra.mxu0 %v7652
        %7913 = vmatprep.subr.bf16.mxu0 %v7661
        %7914 = vmatpush1.bf16.msra.mxu0 %v7660
        %7915 = vmatprep.subr.bf16.mxu0 %v7669
        %7916 = vmatpush1.bf16.msra.mxu0 %v7668
        %7917 = vmatprep.subr.bf16.mxu0 %v7677
        %7918 = vmatpush1.bf16.msra.mxu0 %v7676
        %7919 = vmatprep.subr.bf16.mxu0 %v7685
        %7920 = vmatpush1.bf16.msra.mxu0 %v7684
        %7921 = vmatprep.subr.bf16.mxu0 %v7693
        %7922 = vmatpush1.bf16.msra.mxu0 %v7692
        %7923 = vmatprep.subr.bf16.mxu0 %v7701
        %7924 = vmatpush1.bf16.msra.mxu0 %v7700
        %7925 = vmatprep.subr.bf16.mxu0 %v7709
        %7926 = vmatpush1.bf16.msra.mxu0 %v7708
        %7927 = vmatprep.subr.bf16.mxu0 %v7717
        %7928 = vmatpush1.bf16.msra.mxu0 %v7716
        %7929 = vmatprep.subr.bf16.mxu0 %v7725
        %7930 = vmatpush1.bf16.msra.mxu0 %v7724
        %7931 = vmatprep.mubr.bf16.mxu0 %v7087
        %7932 = vmatmul.mubr.bf16.gmra.mrb[0].mxu0 %v7086
        %v7933 = vpop.f32.mrb[0].mxu0
        %v7934 = vadd.f32 0.0, %v7933
        %v7935 = vpop.f32.mrb[0].mxu0
        %v7936 = vadd.f32 0.0, %v7935
        %v7937 = vpop.f32.mrb[0].mxu0
        %v7938 = vpop.f32.mrb[0].mxu0
        %7939 = vdwg.mxu0
        %7940 = vmatprep.subr.bf16.mxu0 %v7607
        %7941 = vmatpush1.bf16.msra.mxu0 %v7606
        %7942 = vmatprep.subr.bf16.mxu0 %v7615
        %7943 = vmatpush1.bf16.msra.mxu0 %v7614
        %7944 = vmatprep.subr.bf16.mxu0 %v7623
        %7945 = vmatpush1.bf16.msra.mxu0 %v7622
        %7946 = vmatprep.subr.bf16.mxu0 %v7631
        %7947 = vmatpush1.bf16.msra.mxu0 %v7630
        %7948 = vmatprep.subr.bf16.mxu0 %v7639
        %7949 = vmatpush1.bf16.msra.mxu0 %v7638
        %7950 = vmatprep.subr.bf16.mxu0 %v7647
        %7951 = vmatpush1.bf16.msra.mxu0 %v7646
        %7952 = vmatprep.subr.bf16.mxu0 %v7655
        %7953 = vmatpush1.bf16.msra.mxu0 %v7654
        %7954 = vmatprep.subr.bf16.mxu0 %v7663
        %7955 = vmatpush1.bf16.msra.mxu0 %v7662
        %7956 = vmatprep.subr.bf16.mxu0 %v7671
        %7957 = vmatpush1.bf16.msra.mxu0 %v7670
        %7958 = vmatprep.subr.bf16.mxu0 %v7679
        %7959 = vmatpush1.bf16.msra.mxu0 %v7678
        %7960 = vmatprep.subr.bf16.mxu0 %v7687
        %7961 = vmatpush1.bf16.msra.mxu0 %v7686
        %7962 = vmatprep.subr.bf16.mxu0 %v7695
        %7963 = vmatpush1.bf16.msra.mxu0 %v7694
        %7964 = vmatprep.subr.bf16.mxu0 %v7703
        %7965 = vmatpush1.bf16.msra.mxu0 %v7702
        %7966 = vmatprep.subr.bf16.mxu0 %v7711
        %7967 = vmatpush1.bf16.msra.mxu0 %v7710
        %7968 = vmatprep.subr.bf16.mxu0 %v7719
        %7969 = vmatpush1.bf16.msra.mxu0 %v7718
        %7970 = vmatprep.subr.bf16.mxu0 %v7727
        %7971 = vmatpush1.bf16.msra.mxu0 %v7726
        %7972 = vmatprep.mubr.bf16.mxu0 %v7087
        %7973 = vmatmul.mubr.bf16.gmra.mrb[0].mxu0 %v7086
        %v7974 = vpop.f32.mrb[0].mxu0
        %v7975 = vadd.f32 0.0, %v7974
        %v7976 = vpop.f32.mrb[0].mxu0
        %v7977 = vadd.f32 0.0, %v7976
        %v7978 = vpop.f32.mrb[0].mxu0
        %v7979 = vpop.f32.mrb[0].mxu0
        %7980 = vdwg.mxu0
        %7981 = vmatprep.subr.bf16.mxu0 %v7609
        %7982 = vmatpush1.bf16.msra.mxu0 %v7608
        %7983 = vmatprep.subr.bf16.mxu0 %v7617
        %7984 = vmatpush1.bf16.msra.mxu0 %v7616
        %7985 = vmatprep.subr.bf16.mxu0 %v7625
        %7986 = vmatpush1.bf16.msra.mxu0 %v7624
        %7987 = vmatprep.subr.bf16.mxu0 %v7633
        %7988 = vmatpush1.bf16.msra.mxu0 %v7632
        %7989 = vmatprep.subr.bf16.mxu0 %v7641
        %7990 = vmatpush1.bf16.msra.mxu0 %v7640
        %7991 = vmatprep.subr.bf16.mxu0 %v7649
        %7992 = vmatpush1.bf16.msra.mxu0 %v7648
        %7993 = vmatprep.subr.bf16.mxu0 %v7657
        %7994 = vmatpush1.bf16.msra.mxu0 %v7656
        %7995 = vmatprep.subr.bf16.mxu0 %v7665
        %7996 = vmatpush1.bf16.msra.mxu0 %v7664
        %7997 = vmatprep.subr.bf16.mxu0 %v7673
        %7998 = vmatpush1.bf16.msra.mxu0 %v7672
        %7999 = vmatprep.subr.bf16.mxu0 %v7681
        %8000 = vmatpush1.bf16.msra.mxu0 %v7680
        %8001 = vmatprep.subr.bf16.mxu0 %v7689
        %8002 = vmatpush1.bf16.msra.mxu0 %v7688
        %8003 = vmatprep.subr.bf16.mxu0 %v7697
        %8004 = vmatpush1.bf16.msra.mxu0 %v7696
        %8005 = vmatprep.subr.bf16.mxu0 %v7705
        %8006 = vmatpush1.bf16.msra.mxu0 %v7704
        %8007 = vmatprep.subr.bf16.mxu0 %v7713
        %8008 = vmatpush1.bf16.msra.mxu0 %v7712
        %8009 = vmatprep.subr.bf16.mxu0 %v7721
        %8010 = vmatpush1.bf16.msra.mxu0 %v7720
        %8011 = vmatprep.subr.bf16.mxu0 %v7729
        %8012 = vmatpush1.bf16.msra.mxu0 %v7728
        %8013 = vmatprep.mubr.bf16.mxu0 %v7087
        %8014 = vmatmul.mubr.bf16.gmra.mrb[0].mxu0 %v7086
        %v8015 = vpop.f32.mrb[0].mxu0
        %v8016 = vadd.f32 0.0, %v8015
        %v8017 = vpop.f32.mrb[0].mxu0
        %v8018 = vadd.f32 0.0, %v8017
        %v8019 = vpop.f32.mrb[0].mxu0
        %v8020 = vpop.f32.mrb[0].mxu0
        %8021 = vdwg.mxu0
        %8022 = vmatprep.subr.bf16.mxu0 %v7603
        %8023 = vmatpush1.bf16.msra.mxu0 %v7602
        %8024 = vmatprep.subr.bf16.mxu0 %v7611
        %8025 = vmatpush1.bf16.msra.mxu0 %v7610
        %8026 = vmatprep.subr.bf16.mxu0 %v7619
        %8027 = vmatpush1.bf16.msra.mxu0 %v7618
        %8028 = vmatprep.subr.bf16.mxu0 %v7627
        %8029 = vmatpush1.bf16.msra.mxu0 %v7626
        %8030 = vmatprep.subr.bf16.mxu0 %v7635
        %8031 = vmatpush1.bf16.msra.mxu0 %v7634
        %8032 = vmatprep.subr.bf16.mxu0 %v7643
        %8033 = vmatpush1.bf16.msra.mxu0 %v7642
        %8034 = vmatprep.subr.bf16.mxu0 %v7651
        %8035 = vmatpush1.bf16.msra.mxu0 %v7650
        %8036 = vmatprep.subr.bf16.mxu0 %v7659
        %8037 = vmatpush1.bf16.msra.mxu0 %v7658
        %8038 = vmatprep.subr.bf16.mxu0 %v7667
        %8039 = vmatpush1.bf16.msra.mxu0 %v7666
        %8040 = vmatprep.subr.bf16.mxu0 %v7675
        %8041 = vmatpush1.bf16.msra.mxu0 %v7674
        %8042 = vmatprep.subr.bf16.mxu0 %v7683
        %8043 = vmatpush1.bf16.msra.mxu0 %v7682
        %8044 = vmatprep.subr.bf16.mxu0 %v7691
        %8045 = vmatpush1.bf16.msra.mxu0 %v7690
        %8046 = vmatprep.subr.bf16.mxu0 %v7699
        %8047 = vmatpush1.bf16.msra.mxu0 %v7698
        %8048 = vmatprep.subr.bf16.mxu0 %v7707
        %8049 = vmatpush1.bf16.msra.mxu0 %v7706
        %8050 = vmatprep.subr.bf16.mxu0 %v7715
        %8051 = vmatpush1.bf16.msra.mxu0 %v7714
        %8052 = vmatprep.subr.bf16.mxu0 %v7723
        %8053 = vmatpush1.bf16.msra.mxu0 %v7722
        %8054 = vmatprep.mubr.bf16.mxu0 %v7089
        %8055 = vmatmul.mubr.bf16.gmra.mrb[0].mxu0 %v7088
        %v8056 = vpop.f32.mrb[0].mxu0
        %v8057 = vadd.f32 0.0, %v8056
        %v8058 = vpop.f32.mrb[0].mxu0
        %v8059 = vadd.f32 0.0, %v8058
        %v8060 = vpop.f32.mrb[0].mxu0
        %v8061 = vpop.f32.mrb[0].mxu0
        %8062 = vdwg.mxu0
        %8063 = vmatprep.subr.bf16.mxu0 %v7605
        %8064 = vmatpush1.bf16.msra.mxu0 %v7604
        %8065 = vmatprep.subr.bf16.mxu0 %v7613
        %8066 = vmatpush1.bf16.msra.mxu0 %v7612
        %8067 = vmatprep.subr.bf16.mxu0 %v7621
        %8068 = vmatpush1.bf16.msra.mxu0 %v7620
        %8069 = vmatprep.subr.bf16.mxu0 %v7629
        %8070 = vmatpush1.bf16.msra.mxu0 %v7628
        %8071 = vmatprep.subr.bf16.mxu0 %v7637
        %8072 = vmatpush1.bf16.msra.mxu0 %v7636
        %8073 = vmatprep.subr.bf16.mxu0 %v7645
        %8074 = vmatpush1.bf16.msra.mxu0 %v7644
        %8075 = vmatprep.subr.bf16.mxu0 %v7653
        %8076 = vmatpush1.bf16.msra.mxu0 %v7652
        %8077 = vmatprep.subr.bf16.mxu0 %v7661
        %8078 = vmatpush1.bf16.msra.mxu0 %v7660
        %8079 = vmatprep.subr.bf16.mxu0 %v7669
        %8080 = vmatpush1.bf16.msra.mxu0 %v7668
        %8081 = vmatprep.subr.bf16.mxu0 %v7677
        %8082 = vmatpush1.bf16.msra.mxu0 %v7676
        %8083 = vmatprep.subr.bf16.mxu0 %v7685
        %8084 = vmatpush1.bf16.msra.mxu0 %v7684
        %8085 = vmatprep.subr.bf16.mxu0 %v7693
        %8086 = vmatpush1.bf16.msra.mxu0 %v7692
        %8087 = vmatprep.subr.bf16.mxu0 %v7701
        %8088 = vmatpush1.bf16.msra.mxu0 %v7700
        %8089 = vmatprep.subr.bf16.mxu0 %v7709
        %8090 = vmatpush1.bf16.msra.mxu0 %v7708
        %8091 = vmatprep.subr.bf16.mxu0 %v7717
        %8092 = vmatpush1.bf16.msra.mxu0 %v7716
        %8093 = vmatprep.subr.bf16.mxu0 %v7725
        %8094 = vmatpush1.bf16.msra.mxu0 %v7724
        %8095 = vmatprep.mubr.bf16.mxu0 %v7089
        %8096 = vmatmul.mubr.bf16.gmra.mrb[0].mxu0 %v7088
        %v8097 = vpop.f32.mrb[0].mxu0
        %v8098 = vadd.f32 0.0, %v8097
        %v8099 = vpop.f32.mrb[0].mxu0
        %v8100 = vadd.f32 0.0, %v8099
        %v8101 = vpop.f32.mrb[0].mxu0
        %v8102 = vpop.f32.mrb[0].mxu0
        %8103 = vdwg.mxu0
        %8104 = vmatprep.subr.bf16.mxu0 %v7607
        %8105 = vmatpush1.bf16.msra.mxu0 %v7606
        %8106 = vmatprep.subr.bf16.mxu0 %v7615
        %8107 = vmatpush1.bf16.msra.mxu0 %v7614
        %8108 = vmatprep.subr.bf16.mxu0 %v7623
        %8109 = vmatpush1.bf16.msra.mxu0 %v7622
        %8110 = vmatprep.subr.bf16.mxu0 %v7631
        %8111 = vmatpush1.bf16.msra.mxu0 %v7630
        %8112 = vmatprep.subr.bf16.mxu0 %v7639
        %8113 = vmatpush1.bf16.msra.mxu0 %v7638
        %8114 = vmatprep.subr.bf16.mxu0 %v7647
        %8115 = vmatpush1.bf16.msra.mxu0 %v7646
        %8116 = vmatprep.subr.bf16.mxu0 %v7655
        %8117 = vmatpush1.bf16.msra.mxu0 %v7654
        %8118 = vmatprep.subr.bf16.mxu0 %v7663
        %8119 = vmatpush1.bf16.msra.mxu0 %v7662
        %8120 = vmatprep.subr.bf16.mxu0 %v7671
        %8121 = vmatpush1.bf16.msra.mxu0 %v7670
        %8122 = vmatprep.subr.bf16.mxu0 %v7679
        %8123 = vmatpush1.bf16.msra.mxu0 %v7678
        %8124 = vmatprep.subr.bf16.mxu0 %v7687
        %8125 = vmatpush1.bf16.msra.mxu0 %v7686
        %8126 = vmatprep.subr.bf16.mxu0 %v7695
        %8127 = vmatpush1.bf16.msra.mxu0 %v7694
        %8128 = vmatprep.subr.bf16.mxu0 %v7703
        %8129 = vmatpush1.bf16.msra.mxu0 %v7702
        %8130 = vmatprep.subr.bf16.mxu0 %v7711
        %8131 = vmatpush1.bf16.msra.mxu0 %v7710
        %8132 = vmatprep.subr.bf16.mxu0 %v7719
        %8133 = vmatpush1.bf16.msra.mxu0 %v7718
        %8134 = vmatprep.subr.bf16.mxu0 %v7727
        %8135 = vmatpush1.bf16.msra.mxu0 %v7726
        %8136 = vmatprep.mubr.bf16.mxu0 %v7089
        %8137 = vmatmul.mubr.bf16.gmra.mrb[0].mxu0 %v7088
        %v8138 = vpop.f32.mrb[0].mxu0
        %v8139 = vadd.f32 0.0, %v8138
        %v8140 = vpop.f32.mrb[0].mxu0
        %v8141 = vadd.f32 0.0, %v8140
        %v8142 = vpop.f32.mrb[0].mxu0
        %v8143 = vpop.f32.mrb[0].mxu0
        %8144 = vdwg.mxu0
        %8145 = vmatprep.subr.bf16.mxu0 %v7609
        %8146 = vmatpush1.bf16.msra.mxu0 %v7608
        %8147 = vmatprep.subr.bf16.mxu0 %v7617
        %8148 = vmatpush1.bf16.msra.mxu0 %v7616
        %8149 = vmatprep.subr.bf16.mxu0 %v7625
        %8150 = vmatpush1.bf16.msra.mxu0 %v7624
        %8151 = vmatprep.subr.bf16.mxu0 %v7633
        %8152 = vmatpush1.bf16.msra.mxu0 %v7632
        %8153 = vmatprep.subr.bf16.mxu0 %v7641
        %8154 = vmatpush1.bf16.msra.mxu0 %v7640
        %8155 = vmatprep.subr.bf16.mxu0 %v7649
        %8156 = vmatpush1.bf16.msra.mxu0 %v7648
        %8157 = vmatprep.subr.bf16.mxu0 %v7657
        %8158 = vmatpush1.bf16.msra.mxu0 %v7656
        %8159 = vmatprep.subr.bf16.mxu0 %v7665
        %8160 = vmatpush1.bf16.msra.mxu0 %v7664
        %8161 = vmatprep.subr.bf16.mxu0 %v7673
        %8162 = vmatpush1.bf16.msra.mxu0 %v7672
        %8163 = vmatprep.subr.bf16.mxu0 %v7681
        %8164 = vmatpush1.bf16.msra.mxu0 %v7680
        %8165 = vmatprep.subr.bf16.mxu0 %v7689
        %8166 = vmatpush1.bf16.msra.mxu0 %v7688
        %8167 = vmatprep.subr.bf16.mxu0 %v7697
        %8168 = vmatpush1.bf16.msra.mxu0 %v7696
        %8169 = vmatprep.subr.bf16.mxu0 %v7705
        %8170 = vmatpush1.bf16.msra.mxu0 %v7704
        %8171 = vmatprep.subr.bf16.mxu0 %v7713
        %8172 = vmatpush1.bf16.msra.mxu0 %v7712
        %8173 = vmatprep.subr.bf16.mxu0 %v7721
        %8174 = vmatpush1.bf16.msra.mxu0 %v7720
        %8175 = vmatprep.subr.bf16.mxu0 %v7729
        %8176 = vmatpush1.bf16.msra.mxu0 %v7728
        %8177 = vmatprep.mubr.bf16.mxu0 %v7089
        %8178 = vmatmul.mubr.bf16.gmra.mrb[0].mxu0 %v7088
        %v8179 = vpop.f32.mrb[0].mxu0
        %v8180 = vadd.f32 0.0, %v8179
        %v8181 = vpop.f32.mrb[0].mxu0
        %v8182 = vadd.f32 0.0, %v8181
        %v8183 = vpop.f32.mrb[0].mxu0
        %v8184 = vpop.f32.mrb[0].mxu0
        %8185 = vdwg.mxu0
        %v8186 = vpack.c.bf16 %v7893, %v7893
        %v8187 = vpack.c.bf16 %v7895, %v7895
        %v8188 = vpack.c.bf16 %v7934, %v7934
        %v8189 = vpack.c.bf16 %v7936, %v7936
        %v8190 = vpack.c.bf16 %v7975, %v7975
        %v8191 = vpack.c.bf16 %v7977, %v7977
        %v8192 = vpack.c.bf16 %v8016, %v8016
        %v8193 = vpack.c.bf16 %v8018, %v8018
        %v8194 = vpack.c.bf16 %v8057, %v8057
        %v8195 = vpack.c.bf16 %v8059, %v8059
        %v8196 = vpack.c.bf16 %v8098, %v8098
        %v8197 = vpack.c.bf16 %v8100, %v8100
        %v8198 = vpack.c.bf16 %v8139, %v8139
        %v8199 = vpack.c.bf16 %v8141, %v8141
        %v8200 = vpack.c.bf16 %v8180, %v8180
        %v8201 = vpack.c.bf16 %v8182, %v8182
        %v8202 = vld [vmem:[%s11] sm:$0x3]
        %8204 = vrot.lane.b32.xlu0 %v8201, 31
        %v8205 = vpop.permute.xlu0 %8204
        %8221 = vrot.lane.b32.xlu0 %v8186, 31
        %v8222 = vpop.permute.xlu0 %8221
        %8223 = vrot.lane.b32.xlu0 %v8187, 31
        %v8224 = vpop.permute.xlu0 %8223
        %8225 = vrot.lane.b32.xlu0 %v8188, 31
        %v8226 = vpop.permute.xlu0 %8225
        %8227 = vrot.lane.b32.xlu0 %v8189, 31
        %v8228 = vpop.permute.xlu0 %8227
        %8229 = vrot.lane.b32.xlu0 %v8190, 31
        %v8230 = vpop.permute.xlu0 %8229
        %8231 = vrot.lane.b32.xlu0 %v8191, 31
        %v8232 = vpop.permute.xlu0 %8231
        %8233 = vrot.lane.b32.xlu0 %v8192, 31
        %v8234 = vpop.permute.xlu0 %8233
        %8235 = vrot.lane.b32.xlu0 %v8193, 31
        %v8236 = vpop.permute.xlu0 %8235
        %8237 = vrot.lane.b32.xlu0 %v8194, 31
        %v8238 = vpop.permute.xlu0 %8237
        %8239 = vrot.lane.b32.xlu0 %v8195, 31
        %v8240 = vpop.permute.xlu0 %8239
        %8241 = vrot.lane.b32.xlu0 %v8196, 31
        %v8242 = vpop.permute.xlu0 %8241
        %8243 = vrot.lane.b32.xlu0 %v8197, 31
        %v8244 = vpop.permute.xlu0 %8243
        %8245 = vrot.lane.b32.xlu0 %v8198, 31
        %v8246 = vpop.permute.xlu0 %8245
        %8247 = vrot.lane.b32.xlu0 %v8199, 31
        %v8248 = vpop.permute.xlu0 %8247
        %8249 = vrot.lane.b32.xlu0 %v8200, 31
        %v8250 = vpop.permute.xlu0 %8249
        %v8251 = vsel %vm886, %v8222, %v8224
        %v8252 = vsel %vm886, %v8224, %v8226
        %v8253 = vsel %vm886, %v8226, %v8228
        %v8254 = vsel %vm886, %v8228, %v8230
        %v8255 = vsel %vm886, %v8230, %v8232
        %v8256 = vsel %vm886, %v8232, %v8234
        %v8257 = vsel %vm886, %v8234, %v8236
        %v8258 = vsel %vm886, %v8236, %v8238
        %v8259 = vsel %vm886, %v8238, %v8240
        %v8260 = vsel %vm886, %v8240, %v8242
        %v8261 = vsel %vm886, %v8242, %v8244
        %v8262 = vsel %vm886, %v8244, %v8246
        %v8263 = vsel %vm886, %v8246, %v8248
        %v8264 = vsel %vm886, %v8248, %v8250
        %v8265 = vsel %vm886, %v8250, %v8205
        %v8268 = vsel %vm917, %v8205, %v8222
        %8269 = vrot.lane.b32.xlu0 %v8201, 30
        %v8270 = vpop.permute.xlu0 %8269
        %8271 = vrot.lane.b32.xlu0 %v8186, 30
        %v8272 = vpop.permute.xlu0 %8271
        %8273 = vrot.lane.b32.xlu0 %v8187, 30
        %v8274 = vpop.permute.xlu0 %8273
        %8275 = vrot.lane.b32.xlu0 %v8188, 30
        %v8276 = vpop.permute.xlu0 %8275
        %8277 = vrot.lane.b32.xlu0 %v8189, 30
        %v8278 = vpop.permute.xlu0 %8277
        %8279 = vrot.lane.b32.xlu0 %v8190, 30
        %v8280 = vpop.permute.xlu0 %8279
        %8281 = vrot.lane.b32.xlu0 %v8191, 30
        %v8282 = vpop.permute.xlu0 %8281
        %8283 = vrot.lane.b32.xlu0 %v8192, 30
        %v8284 = vpop.permute.xlu0 %8283
        %8285 = vrot.lane.b32.xlu0 %v8193, 30
        %v8286 = vpop.permute.xlu0 %8285
        %8287 = vrot.lane.b32.xlu0 %v8194, 30
        %v8288 = vpop.permute.xlu0 %8287
        %8289 = vrot.lane.b32.xlu0 %v8195, 30
        %v8290 = vpop.permute.xlu0 %8289
        %8291 = vrot.lane.b32.xlu0 %v8196, 30
        %v8292 = vpop.permute.xlu0 %8291
        %8293 = vrot.lane.b32.xlu0 %v8197, 30
        %v8294 = vpop.permute.xlu0 %8293
        %8295 = vrot.lane.b32.xlu0 %v8198, 30
        %v8296 = vpop.permute.xlu0 %8295
        %8297 = vrot.lane.b32.xlu0 %v8199, 30
        %v8298 = vpop.permute.xlu0 %8297
        %8299 = vrot.lane.b32.xlu0 %v8200, 30
        %v8300 = vpop.permute.xlu0 %8299
        %v8301 = vsel %vm954, %v8272, %v8274
        %v8302 = vsel %vm954, %v8274, %v8276
        %v8303 = vsel %vm954, %v8276, %v8278
        %v8304 = vsel %vm954, %v8278, %v8280
        %v8305 = vsel %vm954, %v8280, %v8282
        %v8306 = vsel %vm954, %v8282, %v8284
        %v8307 = vsel %vm954, %v8284, %v8286
        %v8308 = vsel %vm954, %v8286, %v8288
        %v8309 = vsel %vm954, %v8288, %v8290
        %v8310 = vsel %vm954, %v8290, %v8292
        %v8311 = vsel %vm954, %v8292, %v8294
        %v8312 = vsel %vm954, %v8294, %v8296
        %v8313 = vsel %vm954, %v8296, %v8298
        %v8314 = vsel %vm954, %v8298, %v8300
        %v8315 = vsel %vm954, %v8300, %v8270
        %v8318 = vsel %vm970, %v8270, %v8272
        %8319 = vrot.lane.b32.xlu0 %v8201, 29
        %v8320 = vpop.permute.xlu0 %8319
        %8321 = vrot.lane.b32.xlu0 %v8186, 29
        %v8322 = vpop.permute.xlu0 %8321
        %8323 = vrot.lane.b32.xlu0 %v8187, 29
        %v8324 = vpop.permute.xlu0 %8323
        %8325 = vrot.lane.b32.xlu0 %v8188, 29
        %v8326 = vpop.permute.xlu0 %8325
        %8327 = vrot.lane.b32.xlu0 %v8189, 29
        %v8328 = vpop.permute.xlu0 %8327
        %8329 = vrot.lane.b32.xlu0 %v8190, 29
        %v8330 = vpop.permute.xlu0 %8329
        %8331 = vrot.lane.b32.xlu0 %v8191, 29
        %v8332 = vpop.permute.xlu0 %8331
        %8333 = vrot.lane.b32.xlu0 %v8192, 29
        %v8334 = vpop.permute.xlu0 %8333
        %8335 = vrot.lane.b32.xlu0 %v8193, 29
        %v8336 = vpop.permute.xlu0 %8335
        %8337 = vrot.lane.b32.xlu0 %v8194, 29
        %v8338 = vpop.permute.xlu0 %8337
        %8339 = vrot.lane.b32.xlu0 %v8195, 29
        %v8340 = vpop.permute.xlu0 %8339
        %8341 = vrot.lane.b32.xlu0 %v8196, 29
        %v8342 = vpop.permute.xlu0 %8341
        %8343 = vrot.lane.b32.xlu0 %v8197, 29
        %v8344 = vpop.permute.xlu0 %8343
        %8345 = vrot.lane.b32.xlu0 %v8198, 29
        %v8346 = vpop.permute.xlu0 %8345
        %8347 = vrot.lane.b32.xlu0 %v8199, 29
        %v8348 = vpop.permute.xlu0 %8347
        %8349 = vrot.lane.b32.xlu0 %v8200, 29
        %v8350 = vpop.permute.xlu0 %8349
        %v8351 = vsel %vm1006, %v8322, %v8324
        %v8352 = vsel %vm1006, %v8324, %v8326
        %v8353 = vsel %vm1006, %v8326, %v8328
        %v8354 = vsel %vm1006, %v8328, %v8330
        %v8355 = vsel %vm1006, %v8330, %v8332
        %v8356 = vsel %vm1006, %v8332, %v8334
        %v8357 = vsel %vm1006, %v8334, %v8336
        %v8358 = vsel %vm1006, %v8336, %v8338
        %v8359 = vsel %vm1006, %v8338, %v8340
        %v8360 = vsel %vm1006, %v8340, %v8342
        %v8361 = vsel %vm1006, %v8342, %v8344
        %v8362 = vsel %vm1006, %v8344, %v8346
        %v8363 = vsel %vm1006, %v8346, %v8348
        %v8364 = vsel %vm1006, %v8348, %v8350
        %v8365 = vsel %vm1006, %v8350, %v8320
        %v8368 = vsel %vm1022, %v8320, %v8322
        %8369 = vrot.lane.b32.xlu0 %v8201, 1
        %v8370 = vpop.permute.xlu0 %8369
        %8371 = vrot.lane.b32.xlu0 %v8186, 1
        %v8372 = vpop.permute.xlu0 %8371
        %8373 = vrot.lane.b32.xlu0 %v8187, 1
        %v8374 = vpop.permute.xlu0 %8373
        %8375 = vrot.lane.b32.xlu0 %v8188, 1
        %v8376 = vpop.permute.xlu0 %8375
        %8377 = vrot.lane.b32.xlu0 %v8189, 1
        %v8378 = vpop.permute.xlu0 %8377
        %8379 = vrot.lane.b32.xlu0 %v8190, 1
        %v8380 = vpop.permute.xlu0 %8379
        %8381 = vrot.lane.b32.xlu0 %v8191, 1
        %v8382 = vpop.permute.xlu0 %8381
        %8383 = vrot.lane.b32.xlu0 %v8192, 1
        %v8384 = vpop.permute.xlu0 %8383
        %8385 = vrot.lane.b32.xlu0 %v8193, 1
        %v8386 = vpop.permute.xlu0 %8385
        %8387 = vrot.lane.b32.xlu0 %v8194, 1
        %v8388 = vpop.permute.xlu0 %8387
        %8389 = vrot.lane.b32.xlu0 %v8195, 1
        %v8390 = vpop.permute.xlu0 %8389
        %8391 = vrot.lane.b32.xlu0 %v8196, 1
        %v8392 = vpop.permute.xlu0 %8391
        %8393 = vrot.lane.b32.xlu0 %v8197, 1
        %v8394 = vpop.permute.xlu0 %8393
        %8395 = vrot.lane.b32.xlu0 %v8198, 1
        %v8396 = vpop.permute.xlu0 %8395
        %8397 = vrot.lane.b32.xlu0 %v8199, 1
        %v8398 = vpop.permute.xlu0 %8397
        %8399 = vrot.lane.b32.xlu0 %v8200, 1
        %v8400 = vpop.permute.xlu0 %8399
        %v8401 = vsel %vm1058, %v8372, %v8374
        %v8402 = vsel %vm1058, %v8374, %v8376
        %v8403 = vsel %vm1058, %v8376, %v8378
        %v8404 = vsel %vm1058, %v8378, %v8380
        %v8405 = vsel %vm1058, %v8380, %v8382
        %v8406 = vsel %vm1058, %v8382, %v8384
        %v8407 = vsel %vm1058, %v8384, %v8386
        %v8408 = vsel %vm1058, %v8386, %v8388
        %v8409 = vsel %vm1058, %v8388, %v8390
        %v8410 = vsel %vm1058, %v8390, %v8392
        %v8411 = vsel %vm1058, %v8392, %v8394
        %v8412 = vsel %vm1058, %v8394, %v8396
        %v8413 = vsel %vm1058, %v8396, %v8398
        %v8414 = vsel %vm1058, %v8398, %v8400
        %v8415 = vsel %vm1058, %v8400, %v8370
        %v8418 = vsel %vm1074, %v8370, %v8372
        %8419 = vrot.lane.b32.xlu0 %v8186, 127
        %v8420 = vpop.permute.xlu0 %8419
        %8421 = vrot.lane.b32.xlu0 %v8187, 127
        %v8422 = vpop.permute.xlu0 %8421
        %8423 = vrot.lane.b32.xlu0 %v8188, 127
        %v8424 = vpop.permute.xlu0 %8423
        %8425 = vrot.lane.b32.xlu0 %v8189, 127
        %v8426 = vpop.permute.xlu0 %8425
        %8427 = vrot.lane.b32.xlu0 %v8190, 127
        %v8428 = vpop.permute.xlu0 %8427
        %8429 = vrot.lane.b32.xlu0 %v8191, 127
        %v8430 = vpop.permute.xlu0 %8429
        %8431 = vrot.lane.b32.xlu0 %v8192, 127
        %v8432 = vpop.permute.xlu0 %8431
        %8433 = vrot.lane.b32.xlu0 %v8193, 127
        %v8434 = vpop.permute.xlu0 %8433
        %8435 = vrot.lane.b32.xlu0 %v8194, 127
        %v8436 = vpop.permute.xlu0 %8435
        %8437 = vrot.lane.b32.xlu0 %v8195, 127
        %v8438 = vpop.permute.xlu0 %8437
        %8439 = vrot.lane.b32.xlu0 %v8196, 127
        %v8440 = vpop.permute.xlu0 %8439
        %8441 = vrot.lane.b32.xlu0 %v8197, 127
        %v8442 = vpop.permute.xlu0 %8441
        %8443 = vrot.lane.b32.xlu0 %v8198, 127
        %v8444 = vpop.permute.xlu0 %8443
        %8445 = vrot.lane.b32.xlu0 %v8199, 127
        %v8446 = vpop.permute.xlu0 %8445
        %8447 = vrot.lane.b32.xlu0 %v8200, 127
        %v8448 = vpop.permute.xlu0 %8447
        %8449 = vrot.lane.b32.xlu0 %v8201, 127
        %v8450 = vpop.permute.xlu0 %8449
        %v8451 = vsel %vm1110, %v8420, %v8422
        %v8452 = vsel %vm1110, %v8422, %v8424
        %v8453 = vsel %vm1110, %v8424, %v8426
        %v8454 = vsel %vm1110, %v8426, %v8428
        %v8455 = vsel %vm1110, %v8428, %v8430
        %v8456 = vsel %vm1110, %v8430, %v8432
        %v8457 = vsel %vm1110, %v8432, %v8434
        %v8458 = vsel %vm1110, %v8434, %v8436
        %v8459 = vsel %vm1110, %v8436, %v8438
        %v8460 = vsel %vm1110, %v8438, %v8440
        %v8461 = vsel %vm1110, %v8440, %v8442
        %v8462 = vsel %vm1110, %v8442, %v8444
        %v8463 = vsel %vm1110, %v8444, %v8446
        %v8464 = vsel %vm1110, %v8446, %v8448
        %v8465 = vsel %vm1110, %v8448, %v8450
        %v8468 = vsel %vm1126, %v8450, %v8420
        %8469 = vrot.lane.b32.xlu0 %v8186, 99
        %v8470 = vpop.permute.xlu0 %8469
        %8471 = vrot.lane.b32.xlu0 %v8187, 99
        %v8472 = vpop.permute.xlu0 %8471
        %8473 = vrot.lane.b32.xlu0 %v8188, 99
        %v8474 = vpop.permute.xlu0 %8473
        %8475 = vrot.lane.b32.xlu0 %v8189, 99
        %v8476 = vpop.permute.xlu0 %8475
        %8477 = vrot.lane.b32.xlu0 %v8190, 99
        %v8478 = vpop.permute.xlu0 %8477
        %8479 = vrot.lane.b32.xlu0 %v8191, 99
        %v8480 = vpop.permute.xlu0 %8479
        %8481 = vrot.lane.b32.xlu0 %v8192, 99
        %v8482 = vpop.permute.xlu0 %8481
        %8483 = vrot.lane.b32.xlu0 %v8193, 99
        %v8484 = vpop.permute.xlu0 %8483
        %8485 = vrot.lane.b32.xlu0 %v8194, 99
        %v8486 = vpop.permute.xlu0 %8485
        %8487 = vrot.lane.b32.xlu0 %v8195, 99
        %v8488 = vpop.permute.xlu0 %8487
        %8489 = vrot.lane.b32.xlu0 %v8196, 99
        %v8490 = vpop.permute.xlu0 %8489
        %8491 = vrot.lane.b32.xlu0 %v8197, 99
        %v8492 = vpop.permute.xlu0 %8491
        %8493 = vrot.lane.b32.xlu0 %v8198, 99
        %v8494 = vpop.permute.xlu0 %8493
        %8495 = vrot.lane.b32.xlu0 %v8199, 99
        %v8496 = vpop.permute.xlu0 %8495
        %8497 = vrot.lane.b32.xlu0 %v8200, 99
        %v8498 = vpop.permute.xlu0 %8497
        %8499 = vrot.lane.b32.xlu0 %v8201, 99
        %v8500 = vpop.permute.xlu0 %8499
        %v8501 = vsel %vm1162, %v8470, %v8472
        %v8502 = vsel %vm1162, %v8472, %v8474
        %v8503 = vsel %vm1162, %v8474, %v8476
        %v8504 = vsel %vm1162, %v8476, %v8478
        %v8505 = vsel %vm1162, %v8478, %v8480
        %v8506 = vsel %vm1162, %v8480, %v8482
        %v8507 = vsel %vm1162, %v8482, %v8484
        %v8508 = vsel %vm1162, %v8484, %v8486
        %v8509 = vsel %vm1162, %v8486, %v8488
        %v8510 = vsel %vm1162, %v8488, %v8490
        %v8511 = vsel %vm1162, %v8490, %v8492
        %v8512 = vsel %vm1162, %v8492, %v8494
        %v8513 = vsel %vm1162, %v8494, %v8496
        %v8514 = vsel %vm1162, %v8496, %v8498
        %v8515 = vsel %vm1162, %v8498, %v8500
        %v8518 = vsel %vm1178, %v8500, %v8470
        %8519 = vrot.lane.b32.xlu0 %v8186, 98
        %v8520 = vpop.permute.xlu0 %8519
        %8521 = vrot.lane.b32.xlu0 %v8187, 98
        %v8522 = vpop.permute.xlu0 %8521
        %8523 = vrot.lane.b32.xlu0 %v8188, 98
        %v8524 = vpop.permute.xlu0 %8523
        %8525 = vrot.lane.b32.xlu0 %v8189, 98
        %v8526 = vpop.permute.xlu0 %8525
        %8527 = vrot.lane.b32.xlu0 %v8190, 98
        %v8528 = vpop.permute.xlu0 %8527
        %8529 = vrot.lane.b32.xlu0 %v8191, 98
        %v8530 = vpop.permute.xlu0 %8529
        %8531 = vrot.lane.b32.xlu0 %v8192, 98
        %v8532 = vpop.permute.xlu0 %8531
        %8533 = vrot.lane.b32.xlu0 %v8193, 98
        %v8534 = vpop.permute.xlu0 %8533
        %8535 = vrot.lane.b32.xlu0 %v8194, 98
        %v8536 = vpop.permute.xlu0 %8535
        %8537 = vrot.lane.b32.xlu0 %v8195, 98
        %v8538 = vpop.permute.xlu0 %8537
        %8539 = vrot.lane.b32.xlu0 %v8196, 98
        %v8540 = vpop.permute.xlu0 %8539
        %8541 = vrot.lane.b32.xlu0 %v8197, 98
        %v8542 = vpop.permute.xlu0 %8541
        %8543 = vrot.lane.b32.xlu0 %v8198, 98
        %v8544 = vpop.permute.xlu0 %8543
        %8545 = vrot.lane.b32.xlu0 %v8199, 98
        %v8546 = vpop.permute.xlu0 %8545
        %8547 = vrot.lane.b32.xlu0 %v8200, 98
        %v8548 = vpop.permute.xlu0 %8547
        %8549 = vrot.lane.b32.xlu0 %v8201, 98
        %v8550 = vpop.permute.xlu0 %8549
        %v8551 = vsel %vm1214, %v8520, %v8522
        %v8552 = vsel %vm1214, %v8522, %v8524
        %v8553 = vsel %vm1214, %v8524, %v8526
        %v8554 = vsel %vm1214, %v8526, %v8528
        %v8555 = vsel %vm1214, %v8528, %v8530
        %v8556 = vsel %vm1214, %v8530, %v8532
        %v8557 = vsel %vm1214, %v8532, %v8534
        %v8558 = vsel %vm1214, %v8534, %v8536
        %v8559 = vsel %vm1214, %v8536, %v8538
        %v8560 = vsel %vm1214, %v8538, %v8540
        %v8561 = vsel %vm1214, %v8540, %v8542
        %v8562 = vsel %vm1214, %v8542, %v8544
        %v8563 = vsel %vm1214, %v8544, %v8546
        %v8564 = vsel %vm1214, %v8546, %v8548
        %v8565 = vsel %vm1214, %v8548, %v8550
        %v8568 = vsel %vm1230, %v8550, %v8520
        %8569 = vrot.lane.b32.xlu0 %v8186, 97
        %v8570 = vpop.permute.xlu0 %8569
        %8571 = vrot.lane.b32.xlu0 %v8187, 97
        %v8572 = vpop.permute.xlu0 %8571
        %8573 = vrot.lane.b32.xlu0 %v8188, 97
        %v8574 = vpop.permute.xlu0 %8573
        %8575 = vrot.lane.b32.xlu0 %v8189, 97
        %v8576 = vpop.permute.xlu0 %8575
        %8577 = vrot.lane.b32.xlu0 %v8190, 97
        %v8578 = vpop.permute.xlu0 %8577
        %8579 = vrot.lane.b32.xlu0 %v8191, 97
        %v8580 = vpop.permute.xlu0 %8579
        %8581 = vrot.lane.b32.xlu0 %v8192, 97
        %v8582 = vpop.permute.xlu0 %8581
        %8583 = vrot.lane.b32.xlu0 %v8193, 97
        %v8584 = vpop.permute.xlu0 %8583
        %8585 = vrot.lane.b32.xlu0 %v8194, 97
        %v8586 = vpop.permute.xlu0 %8585
        %8587 = vrot.lane.b32.xlu0 %v8195, 97
        %v8588 = vpop.permute.xlu0 %8587
        %8589 = vrot.lane.b32.xlu0 %v8196, 97
        %v8590 = vpop.permute.xlu0 %8589
        %8591 = vrot.lane.b32.xlu0 %v8197, 97
        %v8592 = vpop.permute.xlu0 %8591
        %8593 = vrot.lane.b32.xlu0 %v8198, 97
        %v8594 = vpop.permute.xlu0 %8593
        %8595 = vrot.lane.b32.xlu0 %v8199, 97
        %v8596 = vpop.permute.xlu0 %8595
        %8597 = vrot.lane.b32.xlu0 %v8200, 97
        %v8598 = vpop.permute.xlu0 %8597
        %8599 = vrot.lane.b32.xlu0 %v8201, 97
        %v8600 = vpop.permute.xlu0 %8599
        %v8601 = vsel %vm1266, %v8570, %v8572
        %v8602 = vsel %vm1266, %v8572, %v8574
        %v8603 = vsel %vm1266, %v8574, %v8576
        %v8604 = vsel %vm1266, %v8576, %v8578
        %v8605 = vsel %vm1266, %v8578, %v8580
        %v8606 = vsel %vm1266, %v8580, %v8582
        %v8607 = vsel %vm1266, %v8582, %v8584
        %v8608 = vsel %vm1266, %v8584, %v8586
        %v8609 = vsel %vm1266, %v8586, %v8588
        %v8610 = vsel %vm1266, %v8588, %v8590
        %v8611 = vsel %vm1266, %v8590, %v8592
        %v8612 = vsel %vm1266, %v8592, %v8594
        %v8613 = vsel %vm1266, %v8594, %v8596
        %v8614 = vsel %vm1266, %v8596, %v8598
        %v8615 = vsel %vm1266, %v8598, %v8600
        %v8618 = vsel %vm1282, %v8600, %v8570
        %v8620 = vrot.slane %v8318, 4
        %v8621 = vrot.slane %v8301, 4
        %v8622 = vrot.slane %v8302, 4
        %v8623 = vrot.slane %v8303, 4
        %v8624 = vrot.slane %v8304, 4
        %v8625 = vrot.slane %v8305, 4
        %v8626 = vrot.slane %v8306, 4
        %v8627 = vrot.slane %v8307, 4
        %v8628 = vrot.slane %v8308, 4
        %v8629 = vrot.slane %v8309, 4
        %v8630 = vrot.slane %v8310, 4
        %v8631 = vrot.slane %v8311, 4
        %v8632 = vrot.slane %v8312, 4
        %v8633 = vrot.slane %v8313, 4
        %v8634 = vrot.slane %v8314, 4
        %v8635 = vrot.slane %v8315, 4
        %v8637 = vrot.slane %v8418, 4
        %v8638 = vrot.slane %v8401, 4
        %v8639 = vrot.slane %v8402, 4
        %v8640 = vrot.slane %v8403, 4
        %v8641 = vrot.slane %v8404, 4
        %v8642 = vrot.slane %v8405, 4
        %v8643 = vrot.slane %v8406, 4
        %v8644 = vrot.slane %v8407, 4
        %v8645 = vrot.slane %v8408, 4
        %v8646 = vrot.slane %v8409, 4
        %v8647 = vrot.slane %v8410, 4
        %v8648 = vrot.slane %v8411, 4
        %v8649 = vrot.slane %v8412, 4
        %v8650 = vrot.slane %v8413, 4
        %v8651 = vrot.slane %v8414, 4
        %v8652 = vrot.slane %v8415, 4
        %v8654 = vrot.slane %v8451, 4
        %v8655 = vrot.slane %v8452, 4
        %v8656 = vrot.slane %v8453, 4
        %v8657 = vrot.slane %v8454, 4
        %v8658 = vrot.slane %v8455, 4
        %v8659 = vrot.slane %v8456, 4
        %v8660 = vrot.slane %v8457, 4
        %v8661 = vrot.slane %v8458, 4
        %v8662 = vrot.slane %v8459, 4
        %v8663 = vrot.slane %v8460, 4
        %v8664 = vrot.slane %v8461, 4
        %v8665 = vrot.slane %v8462, 4
        %v8666 = vrot.slane %v8463, 4
        %v8667 = vrot.slane %v8464, 4
        %v8668 = vrot.slane %v8465, 4
        %v8669 = vrot.slane %v8468, 4
        %v8671 = vrot.slane %v8551, 4
        %v8672 = vrot.slane %v8552, 4
        %v8673 = vrot.slane %v8553, 4
        %v8674 = vrot.slane %v8554, 4
        %v8675 = vrot.slane %v8555, 4
        %v8676 = vrot.slane %v8556, 4
        %v8677 = vrot.slane %v8557, 4
        %v8678 = vrot.slane %v8558, 4
        %v8679 = vrot.slane %v8559, 4
        %v8680 = vrot.slane %v8560, 4
        %v8681 = vrot.slane %v8561, 4
        %v8682 = vrot.slane %v8562, 4
        %v8683 = vrot.slane %v8563, 4
        %v8684 = vrot.slane %v8564, 4
        %v8685 = vrot.slane %v8565, 4
        %v8686 = vrot.slane %v8568, 4
        %v8703 = vrot.slane %v723, 4
        %v8704 = vrot.slane %v724, 4
        %v8705 = vrot.slane %v725, 4
        %v8706 = vrot.slane %v726, 4
        %v8707 = vrot.slane %v727, 4
        %v8708 = vrot.slane %v728, 4
        %v8709 = vrot.slane %v729, 4
        %v8710 = vrot.slane %v730, 4
        %v8711 = vrot.slane %v731, 4
        %v8712 = vrot.slane %v732, 4
        %v8713 = vrot.slane %v733, 4
        %v8714 = vrot.slane %v734, 4
        %v8715 = vrot.slane %v735, 4
        %v8716 = vrot.slane %v736, 4
        %v8717 = vrot.slane %v737, 4
        %v8718 = vrot.slane %v738, 4
        %v8720 = vsel %vm2284, %v8268, %v8620
        %v8724 = vsel %vm2284, %v8251, %v8621
        %v8728 = vsel %vm2284, %v8252, %v8622
        %v8732 = vsel %vm2284, %v8253, %v8623
        %v8736 = vsel %vm2284, %v8254, %v8624
        %v8740 = vsel %vm2284, %v8255, %v8625
        %v8744 = vsel %vm2284, %v8256, %v8626
        %v8748 = vsel %vm2284, %v8257, %v8627
        %v8752 = vsel %vm2284, %v8258, %v8628
        %v8756 = vsel %vm2284, %v8259, %v8629
        %v8760 = vsel %vm2284, %v8260, %v8630
        %v8764 = vsel %vm2284, %v8261, %v8631
        %v8768 = vsel %vm2284, %v8262, %v8632
        %v8772 = vsel %vm2284, %v8263, %v8633
        %v8776 = vsel %vm2284, %v8264, %v8634
        %v8780 = vsel %vm2284, %v8265, %v8635
        %v8783 = vsel %vm2284, %v8368, %v8637
        %v8787 = vsel %vm2284, %v8351, %v8638
        %v8791 = vsel %vm2284, %v8352, %v8639
        %v8795 = vsel %vm2284, %v8353, %v8640
        %v8799 = vsel %vm2284, %v8354, %v8641
        %v8803 = vsel %vm2284, %v8355, %v8642
        %v8807 = vsel %vm2284, %v8356, %v8643
        %v8811 = vsel %vm2284, %v8357, %v8644
        %v8815 = vsel %vm2284, %v8358, %v8645
        %v8819 = vsel %vm2284, %v8359, %v8646
        %v8823 = vsel %vm2284, %v8360, %v8647
        %v8827 = vsel %vm2284, %v8361, %v8648
        %v8831 = vsel %vm2284, %v8362, %v8649
        %v8835 = vsel %vm2284, %v8363, %v8650
        %v8839 = vsel %vm2284, %v8364, %v8651
        %v8843 = vsel %vm2284, %v8365, %v8652
        %v8847 = vsel %vm2284, %v8186, %v8654
        %v8851 = vsel %vm2284, %v8187, %v8655
        %v8855 = vsel %vm2284, %v8188, %v8656
        %v8859 = vsel %vm2284, %v8189, %v8657
        %v8863 = vsel %vm2284, %v8190, %v8658
        %v8867 = vsel %vm2284, %v8191, %v8659
        %v8871 = vsel %vm2284, %v8192, %v8660
        %v8875 = vsel %vm2284, %v8193, %v8661
        %v8879 = vsel %vm2284, %v8194, %v8662
        %v8883 = vsel %vm2284, %v8195, %v8663
        %v8887 = vsel %vm2284, %v8196, %v8664
        %v8891 = vsel %vm2284, %v8197, %v8665
        %v8895 = vsel %vm2284, %v8198, %v8666
        %v8899 = vsel %vm2284, %v8199, %v8667
        %v8903 = vsel %vm2284, %v8200, %v8668
        %v8907 = vsel %vm2284, %v8201, %v8669
        %v8911 = vsel %vm2284, %v8501, %v8671
        %v8915 = vsel %vm2284, %v8502, %v8672
        %v8919 = vsel %vm2284, %v8503, %v8673
        %v8923 = vsel %vm2284, %v8504, %v8674
        %v8927 = vsel %vm2284, %v8505, %v8675
        %v8931 = vsel %vm2284, %v8506, %v8676
        %v8935 = vsel %vm2284, %v8507, %v8677
        %v8939 = vsel %vm2284, %v8508, %v8678
        %v8943 = vsel %vm2284, %v8509, %v8679
        %v8947 = vsel %vm2284, %v8510, %v8680
        %v8951 = vsel %vm2284, %v8511, %v8681
        %v8955 = vsel %vm2284, %v8512, %v8682
        %v8959 = vsel %vm2284, %v8513, %v8683
        %v8963 = vsel %vm2284, %v8514, %v8684
        %v8967 = vsel %vm2284, %v8515, %v8685
        %v8970 = vsel %vm2284, %v8518, %v8686
        %v8974 = vsel %vm2284, %v8601, %v8703
        %v8977 = vsel %vm2284, %v8602, %v8704
        %v8980 = vsel %vm2284, %v8603, %v8705
        %v8983 = vsel %vm2284, %v8604, %v8706
        %v8986 = vsel %vm2284, %v8605, %v8707
        %v8989 = vsel %vm2284, %v8606, %v8708
        %v8992 = vsel %vm2284, %v8607, %v8709
        %v8995 = vsel %vm2284, %v8608, %v8710
        %v8998 = vsel %vm2284, %v8609, %v8711
        %v9001 = vsel %vm2284, %v8610, %v8712
        %v9004 = vsel %vm2284, %v8611, %v8713
        %v9007 = vsel %vm2284, %v8612, %v8714
        %v9010 = vsel %vm2284, %v8613, %v8715
        %v9013 = vsel %vm2284, %v8614, %v8716
        %v9016 = vsel %vm2284, %v8615, %v8717
        %v9018 = vsel %vm2284, %v8618, %v8718
        %v9020 = vsel %vm4953, %v8202, 0
        %v9022 = vand.u32 %v8974, %v4959
        %v9024 = vand.u32 %v8977, %v4959
        %v9026 = vand.u32 %v8980, %v4959
        %v9028 = vand.u32 %v8983, %v4959
        %v9030 = vand.u32 %v8986, %v4959
        %v9032 = vand.u32 %v8989, %v4959
        %v9034 = vand.u32 %v8992, %v4959
        %v9036 = vand.u32 %v8995, %v4959
        %v9038 = vand.u32 %v8998, %v4959
        %v9040 = vand.u32 %v9001, %v4959
        %v9042 = vand.u32 %v9004, %v4959
        %v9044 = vand.u32 %v9007, %v4959
        %v9046 = vand.u32 %v9010, %v4959
        %v9048 = vand.u32 %v9013, %v4959
        %v9050 = vand.u32 %v9016, %v4959
        %v9052 = vand.u32 %v9018, %v4959
        %9054 = vmatprep.subr.bf16.mxu0 %v8724
        %9055 = vmatpush1.bf16.msra.mxu0 %v8720
        %9056 = vmatprep.subr.bf16.mxu0 %v8787
        %9057 = vmatpush1.bf16.msra.mxu0 %v8783
        %9058 = vmatprep.subr.bf16.mxu0 %v8851
        %9059 = vmatpush1.bf16.msra.mxu0 %v8847
        %9060 = vmatprep.subr.bf16.mxu0 %v8915
        %9061 = vmatpush1.bf16.msra.mxu0 %v8911
        %9062 = vmatprep.subr.bf16.mxu0 %v9024
        %9063 = vmatpush1.bf16.msra.mxu0 %v9022
        %9064 = vmatprep.subr.bf16.mxu0 0
        %9065 = vmatpush1.bf16.msra.mxu0 0
        %9066 = vmatprep.subr.bf16.mxu0 0
        %9067 = vmatpush1.bf16.msra.mxu0 0
        %9068 = vmatprep.subr.bf16.mxu0 0
        %9069 = vmatpush1.bf16.msra.mxu0 0
        %9070 = vmatprep.subr.bf16.mxu0 0
        %9071 = vmatpush1.bf16.msra.mxu0 0
        %9072 = vmatprep.subr.bf16.mxu0 0
        %9073 = vmatpush1.bf16.msra.mxu0 0
        %9074 = vmatprep.subr.bf16.mxu0 0
        %9075 = vmatpush1.bf16.msra.mxu0 0
        %9076 = vmatprep.subr.bf16.mxu0 0
        %9077 = vmatpush1.bf16.msra.mxu0 0
        %9078 = vmatprep.subr.bf16.mxu0 0
        %9079 = vmatpush1.bf16.msra.mxu0 0
        %9080 = vmatprep.subr.bf16.mxu0 0
        %9081 = vmatpush1.bf16.msra.mxu0 0
        %9082 = vmatprep.subr.bf16.mxu0 0
        %9083 = vmatpush1.bf16.msra.mxu0 0
        %9084 = vmatprep.subr.bf16.mxu0 0
        %9085 = vmatpush1.bf16.msra.mxu0 0
        %9086 = vmatprep.mubr.bf16.mxu0 0
        %9087 = vmatmul.mubr.bf16.gmra.mrb[0].mxu0 %v9020
        %v9088 = vpop.f32.mrb[0].mxu0
        %v9089 = vadd.f32 0.0, %v9088
        %v9090 = vpop.f32.mrb[0].mxu0
        %v9091 = vadd.f32 0.0, %v9090
        %v9092 = vpop.f32.mrb[0].mxu0
        %v9093 = vpop.f32.mrb[0].mxu0
        %9094 = vdwg.mxu0
        %9095 = vmatprep.subr.bf16.mxu0 %v8732
        %9096 = vmatpush1.bf16.msra.mxu0 %v8728
        %9097 = vmatprep.subr.bf16.mxu0 %v8795
        %9098 = vmatpush1.bf16.msra.mxu0 %v8791
        %9099 = vmatprep.subr.bf16.mxu0 %v8859
        %9100 = vmatpush1.bf16.msra.mxu0 %v8855
        %9101 = vmatprep.subr.bf16.mxu0 %v8923
        %9102 = vmatpush1.bf16.msra.mxu0 %v8919
        %9103 = vmatprep.subr.bf16.mxu0 %v9028
        %9104 = vmatpush1.bf16.msra.mxu0 %v9026
        %9105 = vmatprep.subr.bf16.mxu0 0
        %9106 = vmatpush1.bf16.msra.mxu0 0
        %9107 = vmatprep.subr.bf16.mxu0 0
        %9108 = vmatpush1.bf16.msra.mxu0 0
        %9109 = vmatprep.subr.bf16.mxu0 0
        %9110 = vmatpush1.bf16.msra.mxu0 0
        %9111 = vmatprep.subr.bf16.mxu0 0
        %9112 = vmatpush1.bf16.msra.mxu0 0
        %9113 = vmatprep.subr.bf16.mxu0 0
        %9114 = vmatpush1.bf16.msra.mxu0 0
        %9115 = vmatprep.subr.bf16.mxu0 0
        %9116 = vmatpush1.bf16.msra.mxu0 0
        %9117 = vmatprep.subr.bf16.mxu0 0
        %9118 = vmatpush1.bf16.msra.mxu0 0
        %9119 = vmatprep.subr.bf16.mxu0 0
        %9120 = vmatpush1.bf16.msra.mxu0 0
        %9121 = vmatprep.subr.bf16.mxu0 0
        %9122 = vmatpush1.bf16.msra.mxu0 0
        %9123 = vmatprep.subr.bf16.mxu0 0
        %9124 = vmatpush1.bf16.msra.mxu0 0
        %9125 = vmatprep.subr.bf16.mxu0 0
        %9126 = vmatpush1.bf16.msra.mxu0 0
        %9127 = vmatprep.mubr.bf16.mxu0 0
        %9128 = vmatmul.mubr.bf16.gmra.mrb[0].mxu0 %v9020
        %v9129 = vpop.f32.mrb[0].mxu0
        %v9130 = vadd.f32 0.0, %v9129
        %v9131 = vpop.f32.mrb[0].mxu0
        %v9132 = vadd.f32 0.0, %v9131
        %v9133 = vpop.f32.mrb[0].mxu0
        %v9134 = vpop.f32.mrb[0].mxu0
        %9135 = vdwg.mxu0
        %9136 = vmatprep.subr.bf16.mxu0 %v8740
        %9137 = vmatpush1.bf16.msra.mxu0 %v8736
        %9138 = vmatprep.subr.bf16.mxu0 %v8803
        %9139 = vmatpush1.bf16.msra.mxu0 %v8799
        %9140 = vmatprep.subr.bf16.mxu0 %v8867
        %9141 = vmatpush1.bf16.msra.mxu0 %v8863
        %9142 = vmatprep.subr.bf16.mxu0 %v8931
        %9143 = vmatpush1.bf16.msra.mxu0 %v8927
        %9144 = vmatprep.subr.bf16.mxu0 %v9032
        %9145 = vmatpush1.bf16.msra.mxu0 %v9030
        %9146 = vmatprep.subr.bf16.mxu0 0
        %9147 = vmatpush1.bf16.msra.mxu0 0
        %9148 = vmatprep.subr.bf16.mxu0 0
        %9149 = vmatpush1.bf16.msra.mxu0 0
        %9150 = vmatprep.subr.bf16.mxu0 0
        %9151 = vmatpush1.bf16.msra.mxu0 0
        %9152 = vmatprep.subr.bf16.mxu0 0
        %9153 = vmatpush1.bf16.msra.mxu0 0
        %9154 = vmatprep.subr.bf16.mxu0 0
        %9155 = vmatpush1.bf16.msra.mxu0 0
        %9156 = vmatprep.subr.bf16.mxu0 0
        %9157 = vmatpush1.bf16.msra.mxu0 0
        %9158 = vmatprep.subr.bf16.mxu0 0
        %9159 = vmatpush1.bf16.msra.mxu0 0
        %9160 = vmatprep.subr.bf16.mxu0 0
        %9161 = vmatpush1.bf16.msra.mxu0 0
        %9162 = vmatprep.subr.bf16.mxu0 0
        %9163 = vmatpush1.bf16.msra.mxu0 0
        %9164 = vmatprep.subr.bf16.mxu0 0
        %9165 = vmatpush1.bf16.msra.mxu0 0
        %9166 = vmatprep.subr.bf16.mxu0 0
        %9167 = vmatpush1.bf16.msra.mxu0 0
        %9168 = vmatprep.mubr.bf16.mxu0 0
        %9169 = vmatmul.mubr.bf16.gmra.mrb[0].mxu0 %v9020
        %v9170 = vpop.f32.mrb[0].mxu0
        %v9171 = vadd.f32 0.0, %v9170
        %v9172 = vpop.f32.mrb[0].mxu0
        %v9173 = vadd.f32 0.0, %v9172
        %v9174 = vpop.f32.mrb[0].mxu0
        %v9175 = vpop.f32.mrb[0].mxu0
        %9176 = vdwg.mxu0
        %9177 = vmatprep.subr.bf16.mxu0 %v8748
        %9178 = vmatpush1.bf16.msra.mxu0 %v8744
        %9179 = vmatprep.subr.bf16.mxu0 %v8811
        %9180 = vmatpush1.bf16.msra.mxu0 %v8807
        %9181 = vmatprep.subr.bf16.mxu0 %v8875
        %9182 = vmatpush1.bf16.msra.mxu0 %v8871
        %9183 = vmatprep.subr.bf16.mxu0 %v8939
        %9184 = vmatpush1.bf16.msra.mxu0 %v8935
        %9185 = vmatprep.subr.bf16.mxu0 %v9036
        %9186 = vmatpush1.bf16.msra.mxu0 %v9034
        %9187 = vmatprep.subr.bf16.mxu0 0
        %9188 = vmatpush1.bf16.msra.mxu0 0
        %9189 = vmatprep.subr.bf16.mxu0 0
        %9190 = vmatpush1.bf16.msra.mxu0 0
        %9191 = vmatprep.subr.bf16.mxu0 0
        %9192 = vmatpush1.bf16.msra.mxu0 0
        %9193 = vmatprep.subr.bf16.mxu0 0
        %9194 = vmatpush1.bf16.msra.mxu0 0
        %9195 = vmatprep.subr.bf16.mxu0 0
        %9196 = vmatpush1.bf16.msra.mxu0 0
        %9197 = vmatprep.subr.bf16.mxu0 0
        %9198 = vmatpush1.bf16.msra.mxu0 0
        %9199 = vmatprep.subr.bf16.mxu0 0
        %9200 = vmatpush1.bf16.msra.mxu0 0
        %9201 = vmatprep.subr.bf16.mxu0 0
        %9202 = vmatpush1.bf16.msra.mxu0 0
        %9203 = vmatprep.subr.bf16.mxu0 0
        %9204 = vmatpush1.bf16.msra.mxu0 0
        %9205 = vmatprep.subr.bf16.mxu0 0
        %9206 = vmatpush1.bf16.msra.mxu0 0
        %9207 = vmatprep.subr.bf16.mxu0 0
        %9208 = vmatpush1.bf16.msra.mxu0 0
        %9209 = vmatprep.mubr.bf16.mxu0 0
        %9210 = vmatmul.mubr.bf16.gmra.mrb[0].mxu0 %v9020
        %v9211 = vpop.f32.mrb[0].mxu0
        %v9212 = vadd.f32 0.0, %v9211
        %v9213 = vpop.f32.mrb[0].mxu0
        %v9214 = vadd.f32 0.0, %v9213
        %v9215 = vpop.f32.mrb[0].mxu0
        %v9216 = vpop.f32.mrb[0].mxu0
        %9217 = vdwg.mxu0
        %9218 = vmatprep.subr.bf16.mxu0 %v8756
        %9219 = vmatpush1.bf16.msra.mxu0 %v8752
        %9220 = vmatprep.subr.bf16.mxu0 %v8819
        %9221 = vmatpush1.bf16.msra.mxu0 %v8815
        %9222 = vmatprep.subr.bf16.mxu0 %v8883
        %9223 = vmatpush1.bf16.msra.mxu0 %v8879
        %9224 = vmatprep.subr.bf16.mxu0 %v8947
        %9225 = vmatpush1.bf16.msra.mxu0 %v8943
        %9226 = vmatprep.subr.bf16.mxu0 %v9040
        %9227 = vmatpush1.bf16.msra.mxu0 %v9038
        %9228 = vmatprep.subr.bf16.mxu0 0
        %9229 = vmatpush1.bf16.msra.mxu0 0
        %9230 = vmatprep.subr.bf16.mxu0 0
        %9231 = vmatpush1.bf16.msra.mxu0 0
        %9232 = vmatprep.subr.bf16.mxu0 0
        %9233 = vmatpush1.bf16.msra.mxu0 0
        %9234 = vmatprep.subr.bf16.mxu0 0
        %9235 = vmatpush1.bf16.msra.mxu0 0
        %9236 = vmatprep.subr.bf16.mxu0 0
        %9237 = vmatpush1.bf16.msra.mxu0 0
        %9238 = vmatprep.subr.bf16.mxu0 0
        %9239 = vmatpush1.bf16.msra.mxu0 0
        %9240 = vmatprep.subr.bf16.mxu0 0
        %9241 = vmatpush1.bf16.msra.mxu0 0
        %9242 = vmatprep.subr.bf16.mxu0 0
        %9243 = vmatpush1.bf16.msra.mxu0 0
        %9244 = vmatprep.subr.bf16.mxu0 0
        %9245 = vmatpush1.bf16.msra.mxu0 0
        %9246 = vmatprep.subr.bf16.mxu0 0
        %9247 = vmatpush1.bf16.msra.mxu0 0
        %9248 = vmatprep.subr.bf16.mxu0 0
        %9249 = vmatpush1.bf16.msra.mxu0 0
        %9250 = vmatprep.mubr.bf16.mxu0 0
        %9251 = vmatmul.mubr.bf16.gmra.mrb[0].mxu0 %v9020
        %v9252 = vpop.f32.mrb[0].mxu0
        %v9253 = vadd.f32 0.0, %v9252
        %v9254 = vpop.f32.mrb[0].mxu0
        %v9255 = vadd.f32 0.0, %v9254
        %v9256 = vpop.f32.mrb[0].mxu0
        %v9257 = vpop.f32.mrb[0].mxu0
        %9258 = vdwg.mxu0
        %9259 = vmatprep.subr.bf16.mxu0 %v8764
        %9260 = vmatpush1.bf16.msra.mxu0 %v8760
        %9261 = vmatprep.subr.bf16.mxu0 %v8827
        %9262 = vmatpush1.bf16.msra.mxu0 %v8823
        %9263 = vmatprep.subr.bf16.mxu0 %v8891
        %9264 = vmatpush1.bf16.msra.mxu0 %v8887
        %9265 = vmatprep.subr.bf16.mxu0 %v8955
        %9266 = vmatpush1.bf16.msra.mxu0 %v8951
        %9267 = vmatprep.subr.bf16.mxu0 %v9044
        %9268 = vmatpush1.bf16.msra.mxu0 %v9042
        %9269 = vmatprep.subr.bf16.mxu0 0
        %9270 = vmatpush1.bf16.msra.mxu0 0
        %9271 = vmatprep.subr.bf16.mxu0 0
        %9272 = vmatpush1.bf16.msra.mxu0 0
        %9273 = vmatprep.subr.bf16.mxu0 0
        %9274 = vmatpush1.bf16.msra.mxu0 0
        %9275 = vmatprep.subr.bf16.mxu0 0
        %9276 = vmatpush1.bf16.msra.mxu0 0
        %9277 = vmatprep.subr.bf16.mxu0 0
        %9278 = vmatpush1.bf16.msra.mxu0 0
        %9279 = vmatprep.subr.bf16.mxu0 0
        %9280 = vmatpush1.bf16.msra.mxu0 0
        %9281 = vmatprep.subr.bf16.mxu0 0
        %9282 = vmatpush1.bf16.msra.mxu0 0
        %9283 = vmatprep.subr.bf16.mxu0 0
        %9284 = vmatpush1.bf16.msra.mxu0 0
        %9285 = vmatprep.subr.bf16.mxu0 0
        %9286 = vmatpush1.bf16.msra.mxu0 0
        %9287 = vmatprep.subr.bf16.mxu0 0
        %9288 = vmatpush1.bf16.msra.mxu0 0
        %9289 = vmatprep.subr.bf16.mxu0 0
        %9290 = vmatpush1.bf16.msra.mxu0 0
        %9291 = vmatprep.mubr.bf16.mxu0 0
        %9292 = vmatmul.mubr.bf16.gmra.mrb[0].mxu0 %v9020
        %v9293 = vpop.f32.mrb[0].mxu0
        %v9294 = vadd.f32 0.0, %v9293
        %v9295 = vpop.f32.mrb[0].mxu0
        %v9296 = vadd.f32 0.0, %v9295
        %v9297 = vpop.f32.mrb[0].mxu0
        %v9298 = vpop.f32.mrb[0].mxu0
        %9299 = vdwg.mxu0
        %9300 = vmatprep.subr.bf16.mxu0 %v8772
        %9301 = vmatpush1.bf16.msra.mxu0 %v8768
        %9302 = vmatprep.subr.bf16.mxu0 %v8835
        %9303 = vmatpush1.bf16.msra.mxu0 %v8831
        %9304 = vmatprep.subr.bf16.mxu0 %v8899
        %9305 = vmatpush1.bf16.msra.mxu0 %v8895
        %9306 = vmatprep.subr.bf16.mxu0 %v8963
        %9307 = vmatpush1.bf16.msra.mxu0 %v8959
        %9308 = vmatprep.subr.bf16.mxu0 %v9048
        %9309 = vmatpush1.bf16.msra.mxu0 %v9046
        %9310 = vmatprep.subr.bf16.mxu0 0
        %9311 = vmatpush1.bf16.msra.mxu0 0
        %9312 = vmatprep.subr.bf16.mxu0 0
        %9313 = vmatpush1.bf16.msra.mxu0 0
        %9314 = vmatprep.subr.bf16.mxu0 0
        %9315 = vmatpush1.bf16.msra.mxu0 0
        %9316 = vmatprep.subr.bf16.mxu0 0
        %9317 = vmatpush1.bf16.msra.mxu0 0
        %9318 = vmatprep.subr.bf16.mxu0 0
        %9319 = vmatpush1.bf16.msra.mxu0 0
        %9320 = vmatprep.subr.bf16.mxu0 0
        %9321 = vmatpush1.bf16.msra.mxu0 0
        %9322 = vmatprep.subr.bf16.mxu0 0
        %9323 = vmatpush1.bf16.msra.mxu0 0
        %9324 = vmatprep.subr.bf16.mxu0 0
        %9325 = vmatpush1.bf16.msra.mxu0 0
        %9326 = vmatprep.subr.bf16.mxu0 0
        %9327 = vmatpush1.bf16.msra.mxu0 0
        %9328 = vmatprep.subr.bf16.mxu0 0
        %9329 = vmatpush1.bf16.msra.mxu0 0
        %9330 = vmatprep.subr.bf16.mxu0 0
        %9331 = vmatpush1.bf16.msra.mxu0 0
        %9332 = vmatprep.mubr.bf16.mxu0 0
        %9333 = vmatmul.mubr.bf16.gmra.mrb[0].mxu0 %v9020
        %v9334 = vpop.f32.mrb[0].mxu0
        %v9335 = vadd.f32 0.0, %v9334
        %v9336 = vpop.f32.mrb[0].mxu0
        %v9337 = vadd.f32 0.0, %v9336
        %v9338 = vpop.f32.mrb[0].mxu0
        %v9339 = vpop.f32.mrb[0].mxu0
        %9340 = vdwg.mxu0
        %9341 = vmatprep.subr.bf16.mxu0 %v8780
        %9342 = vmatpush1.bf16.msra.mxu0 %v8776
        %9343 = vmatprep.subr.bf16.mxu0 %v8843
        %9344 = vmatpush1.bf16.msra.mxu0 %v8839
        %9345 = vmatprep.subr.bf16.mxu0 %v8907
        %9346 = vmatpush1.bf16.msra.mxu0 %v8903
        %9347 = vmatprep.subr.bf16.mxu0 %v8970
        %9348 = vmatpush1.bf16.msra.mxu0 %v8967
        %9349 = vmatprep.subr.bf16.mxu0 %v9052
        %9350 = vmatpush1.bf16.msra.mxu0 %v9050
        %9351 = vmatprep.subr.bf16.mxu0 0
        %9352 = vmatpush1.bf16.msra.mxu0 0
        %9353 = vmatprep.subr.bf16.mxu0 0
        %9354 = vmatpush1.bf16.msra.mxu0 0
        %9355 = vmatprep.subr.bf16.mxu0 0
        %9356 = vmatpush1.bf16.msra.mxu0 0
        %9357 = vmatprep.subr.bf16.mxu0 0
        %9358 = vmatpush1.bf16.msra.mxu0 0
        %9359 = vmatprep.subr.bf16.mxu0 0
        %9360 = vmatpush1.bf16.msra.mxu0 0
        %9361 = vmatprep.subr.bf16.mxu0 0
        %9362 = vmatpush1.bf16.msra.mxu0 0
        %9363 = vmatprep.subr.bf16.mxu0 0
        %9364 = vmatpush1.bf16.msra.mxu0 0
        %9365 = vmatprep.subr.bf16.mxu0 0
        %9366 = vmatpush1.bf16.msra.mxu0 0
        %9367 = vmatprep.subr.bf16.mxu0 0
        %9368 = vmatpush1.bf16.msra.mxu0 0
        %9369 = vmatprep.subr.bf16.mxu0 0
        %9370 = vmatpush1.bf16.msra.mxu0 0
        %9371 = vmatprep.subr.bf16.mxu0 0
        %9372 = vmatpush1.bf16.msra.mxu0 0
        %9373 = vmatprep.mubr.bf16.mxu0 0
        %9374 = vmatmul.mubr.bf16.gmra.mrb[0].mxu0 %v9020
        %v9375 = vpop.f32.mrb[0].mxu0
        %v9376 = vadd.f32 0.0, %v9375
        %v9377 = vpop.f32.mrb[0].mxu0
        %v9378 = vadd.f32 0.0, %v9377
        %v9379 = vpop.f32.mrb[0].mxu0
        %v9380 = vpop.f32.mrb[0].mxu0
        %9381 = vdwg.mxu0
        %v9382 = vsub.f32 0.0, %v9089
        %v9383 = vsub.f32 0.0, %v9091
        %v9384 = vsub.f32 0.0, %v9130
        %v9385 = vsub.f32 0.0, %v9132
        %v9386 = vsub.f32 0.0, %v9171
        %v9387 = vsub.f32 0.0, %v9173
        %v9388 = vsub.f32 0.0, %v9212
        %v9389 = vsub.f32 0.0, %v9214
        %v9390 = vsub.f32 0.0, %v9253
        %v9391 = vsub.f32 0.0, %v9255
        %v9392 = vsub.f32 0.0, %v9294
        %v9393 = vsub.f32 0.0, %v9296
        %v9394 = vsub.f32 0.0, %v9335
        %v9395 = vsub.f32 0.0, %v9337
        %v9396 = vsub.f32 0.0, %v9376
        %v9397 = vsub.f32 0.0, %v9378
        %v9398 = vmul.f32 %v9382, 1.442695
        %v9399 = vpow.pop %v9398
        %v9400 = vmul.f32 %v9383, 1.442695
        %v9401 = vpow.pop %v9400
        %v9402 = vmul.f32 %v9384, 1.442695
        %v9403 = vpow.pop %v9402
        %v9404 = vmul.f32 %v9385, 1.442695
        %v9405 = vpow.pop %v9404
        %v9406 = vmul.f32 %v9386, 1.442695
        %v9407 = vpow.pop %v9406
        %v9408 = vmul.f32 %v9387, 1.442695
        %v9409 = vpow.pop %v9408
        %v9410 = vmul.f32 %v9388, 1.442695
        %v9411 = vpow.pop %v9410
        %v9412 = vmul.f32 %v9389, 1.442695
        %v9413 = vpow.pop %v9412
        %v9414 = vmul.f32 %v9390, 1.442695
        %v9415 = vpow.pop %v9414
        %v9416 = vmul.f32 %v9391, 1.442695
        %v9417 = vpow.pop %v9416
        %v9418 = vmul.f32 %v9392, 1.442695
        %v9419 = vpow.pop %v9418
        %v9420 = vmul.f32 %v9393, 1.442695
        %v9421 = vpow.pop %v9420
        %v9422 = vmul.f32 %v9394, 1.442695
        %v9423 = vpow.pop %v9422
        %v9424 = vmul.f32 %v9395, 1.442695
        %v9425 = vpow.pop %v9424
        %v9426 = vmul.f32 %v9396, 1.442695
        %v9427 = vpow.pop %v9426
        %v9428 = vmul.f32 %v9397, 1.442695
        %v9429 = vpow.pop %v9428
        %v9430 = vadd.f32 %v9399, 1.0
        %v9431 = vadd.f32 %v9401, 1.0
        %v9432 = vadd.f32 %v9403, 1.0
        %v9433 = vadd.f32 %v9405, 1.0
        %v9434 = vadd.f32 %v9407, 1.0
        %v9435 = vadd.f32 %v9409, 1.0
        %v9436 = vadd.f32 %v9411, 1.0
        %v9437 = vadd.f32 %v9413, 1.0
        %v9438 = vadd.f32 %v9415, 1.0
        %v9439 = vadd.f32 %v9417, 1.0
        %v9440 = vadd.f32 %v9419, 1.0
        %v9441 = vadd.f32 %v9421, 1.0
        %v9442 = vadd.f32 %v9423, 1.0
        %v9443 = vadd.f32 %v9425, 1.0
        %v9444 = vadd.f32 %v9427, 1.0
        %v9445 = vadd.f32 %v9429, 1.0
        %v9446 = vrcp.pop %v9430
        %v9447 = vmul.f32 1.0, %v9446
        %v9448 = vrcp.pop %v9431
        %v9449 = vmul.f32 1.0, %v9448
        %v9450 = vrcp.pop %v9432
        %v9451 = vmul.f32 1.0, %v9450
        %v9452 = vrcp.pop %v9433
        %v9453 = vmul.f32 1.0, %v9452
        %v9454 = vrcp.pop %v9434
        %v9455 = vmul.f32 1.0, %v9454
        %v9456 = vrcp.pop %v9435
        %v9457 = vmul.f32 1.0, %v9456
        %v9458 = vrcp.pop %v9436
        %v9459 = vmul.f32 1.0, %v9458
        %v9460 = vrcp.pop %v9437
        %v9461 = vmul.f32 1.0, %v9460
        %v9462 = vrcp.pop %v9438
        %v9463 = vmul.f32 1.0, %v9462
        %v9464 = vrcp.pop %v9439
        %v9465 = vmul.f32 1.0, %v9464
        %v9466 = vrcp.pop %v9440
        %v9467 = vmul.f32 1.0, %v9466
        %v9468 = vrcp.pop %v9441
        %v9469 = vmul.f32 1.0, %v9468
        %v9470 = vrcp.pop %v9442
        %v9471 = vmul.f32 1.0, %v9470
        %v9472 = vrcp.pop %v9443
        %v9473 = vmul.f32 1.0, %v9472
        %v9474 = vrcp.pop %v9444
        %v9475 = vmul.f32 1.0, %v9474
        %v9476 = vrcp.pop %v9445
        %v9477 = vmul.f32 1.0, %v9476
        %v9494 = vcombine.low %v9447, %v9449
        %v9495 = vcombine.low %v9451, %v9453
        %v9496 = vcombine.low %v9455, %v9457
        %v9497 = vcombine.low %v9459, %v9461
        %v9498 = vcombine.low %v9463, %v9465
        %v9499 = vcombine.low %v9467, %v9469
        %v9500 = vcombine.low %v9471, %v9473
        %v9501 = vcombine.low %v9475, %v9477
        %9510 = vst [vmem:[%s634] sm:$0x77] %v9494
        %9511 = vst [vmem:[%s634 + $0x8] sm:$0x77] %v9495
        %9512 = vst [vmem:[%s634 + $0x10] sm:$0x77] %v9496
        %9513 = vst [vmem:[%s634 + $0x18] sm:$0x77] %v9497
        %9514 = vst [vmem:[%s634 + $0x20] sm:$0x77] %v9498
        %9515 = vst [vmem:[%s634 + $0x28] sm:$0x77] %v9499
        %9516 = vst [vmem:[%s634 + $0x30] sm:$0x77] %v9500
        %9517 = vst [vmem:[%s634 + $0x38] sm:$0x77] %v9501
        %s9518 = smul.u32 16, %s32
        %p9519 = scmp.lt.s32.totalorder %s9518, 31
        %s9520 = scalar_select %p9519, %s9518, 31
        %s9521 = smul.addr %s9520, 4
        %s9522 = scalar_lea.vmem %s19, %s9521
        // Predicated region
        $region105: #{autoencoder_forward.1} parent=95 // pred_check
          %p9523 = pneg %p454
        $region106: #{autoencoder_forward.1} parent=95 // pred_check_branch
          %9525 = sbr.rel (%p9523) target = $region108
        $region107: #{autoencoder_forward.1} parent=95 // pred_region
          %s9526 = smul.u32 16, %s32
        $region108: #{autoencoder_forward.1} parent=95 // pred_fallthru
          _
      $region96: #{autoencoder_forward.1} parent=5 // pred_fallthru
        _
      %p9527 = scmp.le.s32.totalorder 2, %s27
      // Predicated region
      $region109: #{autoencoder_forward.1} parent=5 // pred_check
        %p9528 = pneg %p9527
      $region110: #{autoencoder_forward.1} parent=5 // pred_check_branch
        %9530 = sbr.rel (%p9528) target = $region112
      $region111: #{autoencoder_forward.1} parent=5 // pred_region
        %s9531 = ssub.s32 %s27, 2
        // Predicated region
        $region113: #{autoencoder_forward.1} parent=111 // pred_check
          %p9532 = pneg %p460
        $region114: #{autoencoder_forward.1} parent=111 // pred_check_branch
          %9534 = sbr.rel (%p9532) target = $region116
        $region115: #{autoencoder_forward.1} parent=111 // pred_region
          %s9535 = smul.u32 16, %s33
          %p9536 = scmp.lt.s32.totalorder %s9535, 31
          %s9537 = scalar_select %p9536, %s9535, 31
          %s9538 = smul.addr %s9537, 4
          %s9539 = scalar_lea.vmem %s19, %s9538
        $region116: #{autoencoder_forward.1} parent=111 // pred_fallthru
          _
      $region112: #{autoencoder_forward.1} parent=5 // pred_fallthru
        _
    $region6: #{autoencoder_forward.1} parent=1 // loop_footer
      %s31 = sadd.s32 1, %s27
    $region7: #{autoencoder_forward.1} parent=1 // loop_footer_branch
      %26 = sbr.rel target = $region3
    $region8: #{autoencoder_forward.1} parent=1 // loop_exit
      _
    %9540 = vsyncpa [#allocation3], 1
    %s9541 = scalar_lea.sflag [#allocation3], 1
    %9542 = vsyncpa %s9541, 1
    %9543 = vsyncpa [#allocation5], 1

</llo_original>
